<compile_context>
chip_gen: v7x
topology: tpu7x:2x2x1
jax: 0.10.0
libtpu: 0.0.40
codegen_flags: <defaults>
</compile_context>

<pallas_src>
import jax
import jax.numpy as jnp
from jax.experimental import pallas as pl
from jax.experimental.pallas import tpu as pltpu

BN_EPS = 1e-5


# --------------------------------------------------------------------------
# Kernel
# --------------------------------------------------------------------------
def _make_kernel(TD, HW, W, C, inkernel_masks):
    """TD depth slabs per tile, HW = H*W rows per slab, W = grid width."""
    R = TD * HW

    def _body(xc_ref, xp_ref, xn_ref, w_ref, b_ref, o_ref, mask_ref):
        t = pl.program_id(1)
        nt = pl.num_programs(1)
        xc = xc_ref[...]                                   # (R, C) f32
        f = xc.dtype

        # ---- depth (conv3x1x1) neighbours: one-slab halos + in-tile shift ----
        xp = xp_ref[...] * (t > 0).astype(f)               # depth 0 has no d-1
        xn = xn_ref[...] * (t < nt - 1).astype(f)          # depth D-1 has no d+1
        if TD > 1:
            xdm = jnp.concatenate([xp, xc[: R - HW]], axis=0)   # x[d-1]
            xdp = jnp.concatenate([xc[HW:], xn], axis=0)        # x[d+1]
        else:
            xdm, xdp = xp, xn

        # ---- boundary validity masks for the h/w shifts ----------------------
        if inkernel_masks:   # W and H*W are powers of two: iota + bitwise AND
            r = jax.lax.broadcasted_iota(jnp.int32, (R, 1), 0)
            rh = jnp.bitwise_and(r, HW - 1)                # r % (H*W)
            rw = jnp.bitwise_and(r, W - 1)                 # r % W
            hm = (rh >= W).astype(f)                       # has h-1 neighbour
            hp = (rh < HW - W).astype(f)                   # has h+1 neighbour
            wm = (rw > 0).astype(f)                        # has w-1 neighbour
            wp = (rw < W - 1).astype(f)                    # has w+1 neighbour
        else:                # fallback: precomputed (R, 4) mask stream
            hm = mask_ref[:, 0:1]
            hp = mask_ref[:, 1:2]
            wm = mask_ref[:, 2:3]
            wp = mask_ref[:, 3:4]

        # ---- height (conv1x3x1) / width (conv1x1x3) neighbours via XLU roll --
        # roll wraps around the tile; the masks zero exactly the wrapped and
        # slab-boundary rows, so this is identical to a zero-padded shift.
        xhm = pltpu.roll(xc, W % R, axis=0) * hm           # x[h-1]
        xhp = pltpu.roll(xc, (R - W) % R, axis=0) * hp     # x[h+1]
        xwm = pltpu.roll(xc, 1 % R, axis=0) * wm           # x[w-1]
        xwp = pltpu.roll(xc, (R - 1) % R, axis=0) * wp     # x[w+1]

        # ---- 9 accumulating MXU dots (0.5 * BN scale pre-folded in weights) --
        def dot(a, k):
            return jnp.dot(a, w_ref[k], preferred_element_type=jnp.float32)

        y1 = dot(xdm, 0) + dot(xc, 1) + dot(xdp, 2)        # conv3x1x1 branch
        y2 = dot(xhm, 3) + dot(xc, 4) + dot(xhp, 5)        # conv1x3x1 branch
        y3 = dot(xwm, 6) + dot(xc, 7) + dot(xwp, 8)        # conv1x1x3 branch

        # ---- sigmoid(z) = 0.5*tanh(z/2) + 0.5, branch sum, input gating ------
        gate = 1.5 + 0.5 * (jnp.tanh(y1 + b_ref[0:1, :])
                            + jnp.tanh(y2 + b_ref[1:2, :])
                            + jnp.tanh(y3 + b_ref[2:3, :]))
        o_ref[...] = (gate * xc).astype(o_ref.dtype)

    if inkernel_masks:
        def kernel(xc_ref, xp_ref, xn_ref, w_ref, b_ref, o_ref):
            _body(xc_ref, xp_ref, xn_ref, w_ref, b_ref, o_ref, None)
    else:
        def kernel(xc_ref, xp_ref, xn_ref, w_ref, b_ref, mask_ref, o_ref):
            _body(xc_ref, xp_ref, xn_ref, w_ref, b_ref, o_ref, mask_ref)
    return kernel


# --------------------------------------------------------------------------
# Parameter fusion / wrapper-side helpers (plain JAX, run once at trace time)
# --------------------------------------------------------------------------
def _fold_params(w1, w2, w3, bn_params):
    """Fold inference BatchNorm (and the 0.5 of the tanh-sigmoid identity)
    into the conv weights / biases.

    Returns
      w_all: (9, C, C) -- [w1 taps 0..2, w2 taps 0..2, w3 taps 0..2], each with
             output channels pre-scaled by 0.5 * gamma / sqrt(var + eps)
      b_all: (3, C)    -- per-branch 0.5 * (beta - mean * scale)
    """
    ws, bs = [], []
    for w, (gamma, beta, mean, var) in zip((w1, w2, w3), bn_params):
        scale = gamma / jnp.sqrt(var + BN_EPS)             # (C,)
        ws.append(w * (0.5 * scale)[None, None, :])        # scale output cols
        bs.append(0.5 * (beta - mean * scale))
    return jnp.concatenate(ws, axis=0), jnp.stack(bs, axis=0)


def _boundary_masks(R, HW, W, dtype=jnp.float32):
    """(R, 4) validity mask for h-1 / h+1 / w-1 / w+1 shifted operands.
    Only used as a fallback when W or H*W is not a power of two."""
    r = jnp.arange(R, dtype=jnp.int32)
    rh = r % HW
    rw = r % W
    hm = rh >= W
    hp = rh < (HW - W)
    wm = rw != 0
    wp = rw != (W - 1)
    return jnp.stack([hm, hp, wm, wp], axis=1).astype(dtype)


def _pick_tile_d(N, D, HW, C, budget_bytes):
    """Largest divisor of D whose tile working set fits the VMEM budget,
    capped so the (N, D/TD) grid keeps >= 2 parallel steps (v7x megacore)."""
    lane_bytes = 4 * 128 * ((C + 127) // 128)   # f32 row, lane-padded to 128
    slab_bytes = HW * lane_bytes
    # live VMEM per depth slab of a tile: double-buffered center-in + out
    # streams (4), depth-shifted copies (2), rolled+masked h/w operands (4),
    # three f32 branch accumulators (3), gate / cast temporaries (~3).
    per_slab = 16 * slab_bytes
    fixed = 4 * slab_bytes                      # double-buffered depth halos
    max_td = max(1, (budget_bytes - fixed) // per_slab)
    td = 1
    for cand in range(1, D + 1):
        if D % cand == 0 and cand <= max_td:
            td = cand
    if N * (D // td) < 2 and D > 1:             # expose work for both TCs
        for cand in range(td - 1, 0, -1):
            if D % cand == 0 and N * (D // cand) >= 2:
                td = cand
                break
    return td


# --------------------------------------------------------------------------
# Public entry point
# --------------------------------------------------------------------------
def recon_block(x, w1, w2, w3, bn_params, vmem_budget_bytes=24 * 1024 * 1024):
    """x: (N, D, H, W, C) f32; w*: (3, C, C) (tap 0 hits index-1, tap 2 index+1).

    vmem_budget_bytes sizes the depth tile.  The 24 MiB default fits v7x's
    64 MiB VMEM with double buffering; v5e / v6e (128 MiB) can pass 32-48 MiB.
    """
    N, D, H, W, C = x.shape
    assert w1.shape == (3, C, C) and w2.shape == (3, C, C) and w3.shape == (3, C, C)
    HW = H * W
    # TODO(synk): support H*W not a multiple of the f32 sublane count (needs a
    # padded spatial layout or per-slab grid steps).
    assert HW % 8 == 0, "H*W must be a multiple of 8 for this tiling"
    # TODO(synk): add a second (H-row) tiling axis with h-halos when a single
    # depth slab (HW x C) already exceeds the VMEM budget; TD bottoms out at 1.
    # TODO(synk): for C < 128 a (N, D*H, W*C) channels-in-lanes layout would
    # avoid masked stores and MXU lane waste; kept channels-last for clarity.

    TD = _pick_tile_d(N, D, HW, C, vmem_budget_bytes)   # TD | D
    R = TD * HW

    x_flat = x.reshape(N, D * HW, C)                    # free row-major reshape
    w_all, b_all = _fold_params(w1, w2, w3, bn_params)  # (9,C,C), (3,C)

    pow2 = ((W & (W - 1)) == 0) and ((HW & (HW - 1)) == 0)
    kernel = _make_kernel(TD, HW, W, C, pow2)
    grid = (N, D // TD)

    spec_center = pl.BlockSpec((None, R, C), lambda n, t: (n, t, 0))
    spec_prev = pl.BlockSpec(
        (None, HW, C), lambda n, t: (n, jnp.maximum(t * TD - 1, 0), 0))
    spec_next = pl.BlockSpec(
        (None, HW, C), lambda n, t: (n, jnp.minimum(t * TD + TD, D - 1), 0))
    spec_w = pl.BlockSpec((9, C, C), lambda n, t: (0, 0, 0))
    spec_b = pl.BlockSpec((3, C), lambda n, t: (0, 0))
    out_spec = pl.BlockSpec((None, R, C), lambda n, t: (n, t, 0))

    in_specs = [spec_center, spec_prev, spec_next, spec_w, spec_b]
    operands = [x_flat, x_flat, x_flat, w_all, b_all]
    if not pow2:
        in_specs.append(pl.BlockSpec((R, 4), lambda n, t: (0, 0)))
        operands.append(_boundary_masks(R, HW, W, x.dtype))

    # vmem_limit_bytes tracks the actual tile working set (v7x has 64 MiB).
    lane_bytes = 4 * 128 * ((C + 127) // 128)
    tile_bytes = (16 * TD + 4) * HW * lane_bytes
    vmem_limit = int(min(48 * 1024 * 1024, max(32 * 1024 * 1024, 2 * tile_bytes)))

    out = pl.pallas_call(
        kernel,
        out_shape=jax.ShapeDtypeStruct((N, D * HW, C), x.dtype),
        grid_spec=pltpu.PrefetchScalarGridSpec(
            num_scalar_prefetch=0,
            grid=grid,
            in_specs=in_specs,
            out_specs=out_spec,
        ),
        compiler_params=pltpu.CompilerParams(
            dimension_semantics=("parallel", "parallel"),
            vmem_limit_bytes=vmem_limit,
        ),
    )(*operands)
    return out.reshape(N, D, H, W, C)


# --------------------------------------------------------------------------
# Independent dense reference (lax conv) for correctness checking
# --------------------------------------------------------------------------
def recon_block_reference(x, w1, w2, w3, bn_params):
    N, D, H, W, C = x.shape

    def conv(xx, w, taps_axis):
        shape = [1, 1, 1]
        shape[taps_axis] = 3
        w_full = w.reshape(tuple(shape) + (C, C))  # DHWIO
        return jax.lax.conv_general_dilated(
            xx, w_full, window_strides=(1, 1, 1), padding="SAME",
            dimension_numbers=("NDHWC", "DHWIO", "NDHWC"))

    def bn_sig(y, params):
        gamma, beta, mean, var = params
        y = (y - mean) / jnp.sqrt(var + BN_EPS) * gamma + beta
        return jax.nn.sigmoid(y)

    s1 = bn_sig(conv(x, w1, 0), bn_params[0])  # kernel (3,1,1)
    s2 = bn_sig(conv(x, w2, 1), bn_params[1])  # kernel (1,3,1)
    s3 = bn_sig(conv(x, w3, 2), bn_params[2])  # kernel (1,1,3)
    return (s1 + s2 + s3) * x


if __name__ == "__main__":
    key = jax.random.PRNGKey(0)
    kx, k1, k2, k3 = jax.random.split(key, 4)

    # small shapes: batch=2, channels=4 (in_filters == out_filters), spatial=8^3
    N, D, H, W, C = 2, 8, 8, 8, 4
    x = jax.random.normal(kx, (N, D, H, W, C), jnp.float32)

    # deterministic conv weights, shape (taps=3, C_in, C_out), no bias
    w1 = 0.3 * jax.random.normal(k1, (3, C, C), jnp.float32)
    w2 = 0.3 * jax.random.normal(k2, (3, C, C), jnp.float32)
    w3 = 0.3 * jax.random.normal(k3, (3, C, C), jnp.float32)

    # deterministic BatchNorm1d parameters (inference: running stats)
    c = jnp.arange(C, dtype=jnp.float32)
    bn_params = []
    for i in range(3):
        gamma = 1.0 + 0.10 * c + 0.01 * i
        beta = 0.05 * c - 0.02 * i
        mean = 0.02 * c + 0.005 * i
        var = 1.0 + 0.03 * c + 0.01 * i
        bn_params.append((gamma, beta, mean, var))

    out = jax.block_until_ready(recon_block(x, w1, w2, w3, bn_params))
    ref = recon_block_reference(x, w1, w2, w3, bn_params)

    assert out.shape == (N, D, H, W, C) and out.dtype == jnp.float32
    err = float(jnp.max(jnp.abs(out - ref)))
    # default-precision MXU matmuls (bf16 operand rounding, f32 accumulate) on
    # the kernel side -> compare with a correspondingly loose tolerance.
    assert jnp.allclose(out, ref, rtol=2e-2, atol=2e-2), f"max abs err = {err}"
    print("KERNEL_OK")
</pallas_src>

<mosaic_0001>
module attributes {stable_mosaic.version = 11 : i64} {
  func.func @kernel(%arg0: i32, %arg1: i32, %arg2: memref<1x512x4xf32, #tpu.memory_space<vmem>>, %arg3: memref<1x64x4xf32, #tpu.memory_space<vmem>>, %arg4: memref<1x64x4xf32, #tpu.memory_space<vmem>>, %arg5: memref<9x4x4xf32, #tpu.memory_space<vmem>>, %arg6: memref<3x4xf32, #tpu.memory_space<vmem>>, %arg7: memref<1x512x4xf32, #tpu.memory_space<vmem>>) attributes {dimension_semantics = [#tpu.dimension_semantics<parallel>, #tpu.dimension_semantics<parallel>], iteration_bounds = array<i64: 2, 1>, scalar_prefetch = 0 : i64, scratch_operands = 0 : i64, tpu.core_type = #tpu.core_type<tc>, window_params = [{transform_indices = @transform_0, window_bounds = array<i64: 1, 512, 4>}, {transform_indices = @transform_1, window_bounds = array<i64: 1, 64, 4>}, {transform_indices = @transform_2, window_bounds = array<i64: 1, 64, 4>}, {pipeline_mode = #tpu.pipeline_mode<synchronous>, transform_indices = @transform_3, window_bounds = array<i64: 9, 4, 4>}, {pipeline_mode = #tpu.pipeline_mode<synchronous>, transform_indices = @transform_4, window_bounds = array<i64: 3, 4>}, {transform_indices = @transform_5, window_bounds = array<i64: 1, 512, 4>}]} {
    %c0 = arith.constant 0 : index
    %c0_0 = arith.constant 0 : index
    %c0_1 = arith.constant 0 : index
    %0 = vector.load %arg2[%c0, %c0_0, %c0_1] : memref<1x512x4xf32, #tpu.memory_space<vmem>>, vector<1x512x4xf32>
    %1 = vector.shape_cast %0 : vector<1x512x4xf32> to vector<512x4xf32>
    %c0_2 = arith.constant 0 : index
    %c0_3 = arith.constant 0 : index
    %c0_4 = arith.constant 0 : index
    %2 = vector.load %arg3[%c0_2, %c0_3, %c0_4] : memref<1x64x4xf32, #tpu.memory_space<vmem>>, vector<1x64x4xf32>
    %3 = vector.shape_cast %2 : vector<1x64x4xf32> to vector<64x4xf32>
    %c0_i32 = arith.constant 0 : i32
    %4 = arith.cmpi sgt, %arg1, %c0_i32 : i32
    %5 = arith.extui %4 : i1 to i32
    %6 = arith.sitofp %5 : i32 to f32
    %7 = vector.broadcast %6 : f32 to vector<64x4xf32>
    %8 = arith.mulf %3, %7 : vector<64x4xf32>
    %c0_5 = arith.constant 0 : index
    %c0_6 = arith.constant 0 : index
    %c0_7 = arith.constant 0 : index
    %9 = vector.load %arg4[%c0_5, %c0_6, %c0_7] : memref<1x64x4xf32, #tpu.memory_space<vmem>>, vector<1x64x4xf32>
    %10 = vector.shape_cast %9 : vector<1x64x4xf32> to vector<64x4xf32>
    %c0_i32_8 = arith.constant 0 : i32
    %11 = arith.cmpi slt, %arg1, %c0_i32_8 : i32
    %12 = arith.extui %11 : i1 to i32
    %13 = arith.sitofp %12 : i32 to f32
    %14 = vector.broadcast %13 : f32 to vector<64x4xf32>
    %15 = arith.mulf %10, %14 : vector<64x4xf32>
    %16 = vector.extract_strided_slice %1 {offsets = [0, 0], sizes = [448, 4], strides = [1, 1]} : vector<512x4xf32> to vector<448x4xf32>
    %17 = tpu.concatenate %8, %16 in 0 : vector<64x4xf32>, vector<448x4xf32> -> vector<512x4xf32>
    %18 = vector.extract_strided_slice %1 {offsets = [64, 0], sizes = [448, 4], strides = [1, 1]} : vector<512x4xf32> to vector<448x4xf32>
    %19 = tpu.concatenate %18, %15 in 0 : vector<448x4xf32>, vector<64x4xf32> -> vector<512x4xf32>
    %20 = tpu.iota {dimensions = array<i32: 0>} : vector<512x1xi32>
    %c63_i32 = arith.constant 63 : i32
    %21 = vector.broadcast %c63_i32 : i32 to vector<512x1xi32>
    %22 = arith.andi %20, %21 : vector<512x1xi32>
    %c7_i32 = arith.constant 7 : i32
    %23 = vector.broadcast %c7_i32 : i32 to vector<512x1xi32>
    %24 = arith.andi %20, %23 : vector<512x1xi32>
    %c8_i32 = arith.constant 8 : i32
    %25 = vector.broadcast %c8_i32 : i32 to vector<512x1xi32>
    %26 = arith.cmpi sge, %22, %25 : vector<512x1xi32>
    %27 = arith.extui %26 : vector<512x1xi1> to vector<512x1xi32>
    %28 = arith.sitofp %27 : vector<512x1xi32> to vector<512x1xf32>
    %c56_i32 = arith.constant 56 : i32
    %29 = vector.broadcast %c56_i32 : i32 to vector<512x1xi32>
    %30 = arith.cmpi slt, %22, %29 : vector<512x1xi32>
    %31 = arith.extui %30 : vector<512x1xi1> to vector<512x1xi32>
    %32 = arith.sitofp %31 : vector<512x1xi32> to vector<512x1xf32>
    %c0_i32_9 = arith.constant 0 : i32
    %33 = vector.broadcast %c0_i32_9 : i32 to vector<512x1xi32>
    %34 = arith.cmpi sgt, %24, %33 : vector<512x1xi32>
    %35 = arith.extui %34 : vector<512x1xi1> to vector<512x1xi32>
    %36 = arith.sitofp %35 : vector<512x1xi32> to vector<512x1xf32>
    %c7_i32_10 = arith.constant 7 : i32
    %37 = vector.broadcast %c7_i32_10 : i32 to vector<512x1xi32>
    %38 = arith.cmpi slt, %24, %37 : vector<512x1xi32>
    %39 = arith.extui %38 : vector<512x1xi1> to vector<512x1xi32>
    %40 = arith.sitofp %39 : vector<512x1xi32> to vector<512x1xf32>
    %c8_i32_11 = arith.constant 8 : i32
    %41 = tpu.dynamic_rotate %1 by %c8_i32_11 dim 0 : vector<512x4xf32>, i32 -> vector<512x4xf32>
    %42 = vector.broadcast %28 : vector<512x1xf32> to vector<512x4xf32>
    %43 = arith.mulf %41, %42 : vector<512x4xf32>
    %c504_i32 = arith.constant 504 : i32
    %44 = tpu.dynamic_rotate %1 by %c504_i32 dim 0 : vector<512x4xf32>, i32 -> vector<512x4xf32>
    %45 = vector.broadcast %32 : vector<512x1xf32> to vector<512x4xf32>
    %46 = arith.mulf %44, %45 : vector<512x4xf32>
    %c1_i32 = arith.constant 1 : i32
    %47 = tpu.dynamic_rotate %1 by %c1_i32 dim 0 : vector<512x4xf32>, i32 -> vector<512x4xf32>
    %48 = vector.broadcast %36 : vector<512x1xf32> to vector<512x4xf32>
    %49 = arith.mulf %47, %48 : vector<512x4xf32>
    %c511_i32 = arith.constant 511 : i32
    %50 = tpu.dynamic_rotate %1 by %c511_i32 dim 0 : vector<512x4xf32>, i32 -> vector<512x4xf32>
    %51 = vector.broadcast %40 : vector<512x1xf32> to vector<512x4xf32>
    %52 = arith.mulf %50, %51 : vector<512x4xf32>
    %c0_12 = arith.constant 0 : index
    %c0_13 = arith.constant 0 : index
    %c0_14 = arith.constant 0 : index
    %53 = vector.load %arg5[%c0_12, %c0_13, %c0_14] : memref<9x4x4xf32, #tpu.memory_space<vmem>>, vector<1x4x4xf32>
    %54 = vector.shape_cast %53 : vector<1x4x4xf32> to vector<4x4xf32>
    %cst = arith.constant dense<0.000000e+00> : vector<512x4xf32>
    %55 = tpu.matmul %17, %54, %cst {dimension_numbers = #tpu.dot_dimension_numbers<[1], [0], [0], [1], [0, 0, 1, 1], [], []>} : vector<512x4xf32>, vector<4x4xf32>, vector<512x4xf32> -> vector<512x4xf32>
    %c1 = arith.constant 1 : index
    %c0_15 = arith.constant 0 : index
    %c0_16 = arith.constant 0 : index
    %56 = vector.load %arg5[%c1, %c0_15, %c0_16] : memref<9x4x4xf32, #tpu.memory_space<vmem>>, vector<1x4x4xf32>
    %57 = vector.shape_cast %56 : vector<1x4x4xf32> to vector<4x4xf32>
    %cst_17 = arith.constant dense<0.000000e+00> : vector<512x4xf32>
    %58 = tpu.matmul %1, %57, %cst_17 {dimension_numbers = #tpu.dot_dimension_numbers<[1], [0], [0], [1], [0, 0, 1, 1], [], []>} : vector<512x4xf32>, vector<4x4xf32>, vector<512x4xf32> -> vector<512x4xf32>
    %59 = arith.addf %55, %58 : vector<512x4xf32>
    %c2 = arith.constant 2 : index
    %c0_18 = arith.constant 0 : index
    %c0_19 = arith.constant 0 : index
    %60 = vector.load %arg5[%c2, %c0_18, %c0_19] : memref<9x4x4xf32, #tpu.memory_space<vmem>>, vector<1x4x4xf32>
    %61 = vector.shape_cast %60 : vector<1x4x4xf32> to vector<4x4xf32>
    %cst_20 = arith.constant dense<0.000000e+00> : vector<512x4xf32>
    %62 = tpu.matmul %19, %61, %cst_20 {dimension_numbers = #tpu.dot_dimension_numbers<[1], [0], [0], [1], [0, 0, 1, 1], [], []>} : vector<512x4xf32>, vector<4x4xf32>, vector<512x4xf32> -> vector<512x4xf32>
    %63 = arith.addf %59, %62 : vector<512x4xf32>
    %c3 = arith.constant 3 : index
    %c0_21 = arith.constant 0 : index
    %c0_22 = arith.constant 0 : index
    %64 = vector.load %arg5[%c3, %c0_21, %c0_22] : memref<9x4x4xf32, #tpu.memory_space<vmem>>, vector<1x4x4xf32>
    %65 = vector.shape_cast %64 : vector<1x4x4xf32> to vector<4x4xf32>
    %cst_23 = arith.constant dense<0.000000e+00> : vector<512x4xf32>
    %66 = tpu.matmul %43, %65, %cst_23 {dimension_numbers = #tpu.dot_dimension_numbers<[1], [0], [0], [1], [0, 0, 1, 1], [], []>} : vector<512x4xf32>, vector<4x4xf32>, vector<512x4xf32> -> vector<512x4xf32>
    %c4 = arith.constant 4 : index
    %c0_24 = arith.constant 0 : index
    %c0_25 = arith.constant 0 : index
    %67 = vector.load %arg5[%c4, %c0_24, %c0_25] : memref<9x4x4xf32, #tpu.memory_space<vmem>>, vector<1x4x4xf32>
    %68 = vector.shape_cast %67 : vector<1x4x4xf32> to vector<4x4xf32>
    %cst_26 = arith.constant dense<0.000000e+00> : vector<512x4xf32>
    %69 = tpu.matmul %1, %68, %cst_26 {dimension_numbers = #tpu.dot_dimension_numbers<[1], [0], [0], [1], [0, 0, 1, 1], [], []>} : vector<512x4xf32>, vector<4x4xf32>, vector<512x4xf32> -> vector<512x4xf32>
    %70 = arith.addf %66, %69 : vector<512x4xf32>
    %c5 = arith.constant 5 : index
    %c0_27 = arith.constant 0 : index
    %c0_28 = arith.constant 0 : index
    %71 = vector.load %arg5[%c5, %c0_27, %c0_28] : memref<9x4x4xf32, #tpu.memory_space<vmem>>, vector<1x4x4xf32>
    %72 = vector.shape_cast %71 : vector<1x4x4xf32> to vector<4x4xf32>
    %cst_29 = arith.constant dense<0.000000e+00> : vector<512x4xf32>
    %73 = tpu.matmul %46, %72, %cst_29 {dimension_numbers = #tpu.dot_dimension_numbers<[1], [0], [0], [1], [0, 0, 1, 1], [], []>} : vector<512x4xf32>, vector<4x4xf32>, vector<512x4xf32> -> vector<512x4xf32>
    %74 = arith.addf %70, %73 : vector<512x4xf32>
    %c6 = arith.constant 6 : index
    %c0_30 = arith.constant 0 : index
    %c0_31 = arith.constant 0 : index
    %75 = vector.load %arg5[%c6, %c0_30, %c0_31] : memref<9x4x4xf32, #tpu.memory_space<vmem>>, vector<1x4x4xf32>
    %76 = vector.shape_cast %75 : vector<1x4x4xf32> to vector<4x4xf32>
    %cst_32 = arith.constant dense<0.000000e+00> : vector<512x4xf32>
    %77 = tpu.matmul %49, %76, %cst_32 {dimension_numbers = #tpu.dot_dimension_numbers<[1], [0], [0], [1], [0, 0, 1, 1], [], []>} : vector<512x4xf32>, vector<4x4xf32>, vector<512x4xf32> -> vector<512x4xf32>
    %c7 = arith.constant 7 : index
    %c0_33 = arith.constant 0 : index
    %c0_34 = arith.constant 0 : index
    %78 = vector.load %arg5[%c7, %c0_33, %c0_34] : memref<9x4x4xf32, #tpu.memory_space<vmem>>, vector<1x4x4xf32>
    %79 = vector.shape_cast %78 : vector<1x4x4xf32> to vector<4x4xf32>
    %cst_35 = arith.constant dense<0.000000e+00> : vector<512x4xf32>
    %80 = tpu.matmul %1, %79, %cst_35 {dimension_numbers = #tpu.dot_dimension_numbers<[1], [0], [0], [1], [0, 0, 1, 1], [], []>} : vector<512x4xf32>, vector<4x4xf32>, vector<512x4xf32> -> vector<512x4xf32>
    %81 = arith.addf %77, %80 : vector<512x4xf32>
    %c8 = arith.constant 8 : index
    %c0_36 = arith.constant 0 : index
    %c0_37 = arith.constant 0 : index
    %82 = vector.load %arg5[%c8, %c0_36, %c0_37] : memref<9x4x4xf32, #tpu.memory_space<vmem>>, vector<1x4x4xf32>
    %83 = vector.shape_cast %82 : vector<1x4x4xf32> to vector<4x4xf32>
    %cst_38 = arith.constant dense<0.000000e+00> : vector<512x4xf32>
    %84 = tpu.matmul %52, %83, %cst_38 {dimension_numbers = #tpu.dot_dimension_numbers<[1], [0], [0], [1], [0, 0, 1, 1], [], []>} : vector<512x4xf32>, vector<4x4xf32>, vector<512x4xf32> -> vector<512x4xf32>
    %85 = arith.addf %81, %84 : vector<512x4xf32>
    %c0_39 = arith.constant 0 : index
    %c0_40 = arith.constant 0 : index
    %86 = vector.load %arg6[%c0_39, %c0_40] : memref<3x4xf32, #tpu.memory_space<vmem>>, vector<1x4xf32>
    %87 = vector.broadcast %86 : vector<1x4xf32> to vector<512x4xf32>
    %88 = arith.addf %63, %87 : vector<512x4xf32>
    %89 = math.tanh %88 : vector<512x4xf32>
    %c1_41 = arith.constant 1 : index
    %c0_42 = arith.constant 0 : index
    %90 = vector.load %arg6[%c1_41, %c0_42] : memref<3x4xf32, #tpu.memory_space<vmem>>, vector<1x4xf32>
    %91 = vector.broadcast %90 : vector<1x4xf32> to vector<512x4xf32>
    %92 = arith.addf %74, %91 : vector<512x4xf32>
    %93 = math.tanh %92 : vector<512x4xf32>
    %94 = arith.addf %89, %93 : vector<512x4xf32>
    %c2_43 = arith.constant 2 : index
    %c0_44 = arith.constant 0 : index
    %95 = vector.load %arg6[%c2_43, %c0_44] : memref<3x4xf32, #tpu.memory_space<vmem>>, vector<1x4xf32>
    %96 = vector.broadcast %95 : vector<1x4xf32> to vector<512x4xf32>
    %97 = arith.addf %85, %96 : vector<512x4xf32>
    %98 = math.tanh %97 : vector<512x4xf32>
    %99 = arith.addf %94, %98 : vector<512x4xf32>
    %cst_45 = arith.constant 5.000000e-01 : f32
    %100 = vector.broadcast %cst_45 : f32 to vector<512x4xf32>
    %101 = arith.mulf %100, %99 : vector<512x4xf32>
    %cst_46 = arith.constant 1.500000e+00 : f32
    %102 = vector.broadcast %cst_46 : f32 to vector<512x4xf32>
    %103 = arith.addf %102, %101 : vector<512x4xf32>
    %104 = arith.mulf %103, %1 : vector<512x4xf32>
    %c0_47 = arith.constant 0 : index
    %c0_48 = arith.constant 0 : index
    %c0_49 = arith.constant 0 : index
    %105 = vector.load %arg7[%c0_47, %c0_48, %c0_49] : memref<1x512x4xf32, #tpu.memory_space<vmem>>, vector<1x512x4xf32>
    %106 = vector.shape_cast %105 : vector<1x512x4xf32> to vector<512x4xf32>
    %107 = vector.shape_cast %104 : vector<512x4xf32> to vector<1x512x4xf32>
    tpu.vector_store %arg7[%c0_47, %c0_48, %c0_49], %107 {strides = array<i32>} : memref<1x512x4xf32, #tpu.memory_space<vmem>>, vector<1x512x4xf32>,
    return
  }
  func.func @transform_0(%arg0: i32, %arg1: i32) -> (i32, i32, i32) {
    %c0_i32 = arith.constant 0 : i32
    %c0_i32_0 = arith.constant 0 : i32
    return %arg0, %arg1, %c0_i32 : i32, i32, i32
  }
  func.func @transform_1(%arg0: i32, %arg1: i32) -> (i32, i32, i32) {
    %c8_i32 = arith.constant 8 : i32
    %0 = arith.muli %arg1, %c8_i32 : i32
    %c1_i32 = arith.constant 1 : i32
    %1 = arith.subi %0, %c1_i32 : i32
    %c0_i32 = arith.constant 0 : i32
    %2 = arith.maxsi %1, %c0_i32 : i32
    %c0_i32_0 = arith.constant 0 : i32
    %c0_i32_1 = arith.constant 0 : i32
    return %arg0, %2, %c0_i32_0 : i32, i32, i32
  }
  func.func @transform_2(%arg0: i32, %arg1: i32) -> (i32, i32, i32) {
    %c8_i32 = arith.constant 8 : i32
    %0 = arith.muli %arg1, %c8_i32 : i32
    %c8_i32_0 = arith.constant 8 : i32
    %1 = arith.addi %0, %c8_i32_0 : i32
    %c7_i32 = arith.constant 7 : i32
    %2 = arith.minsi %1, %c7_i32 : i32
    %c0_i32 = arith.constant 0 : i32
    %c0_i32_1 = arith.constant 0 : i32
    return %arg0, %2, %c0_i32 : i32, i32, i32
  }
  func.func @transform_3(%arg0: i32, %arg1: i32) -> (i32, i32, i32) {
    %c0_i32 = arith.constant 0 : i32
    %c0_i32_0 = arith.constant 0 : i32
    %c0_i32_1 = arith.constant 0 : i32
    %c0_i32_2 = arith.constant 0 : i32
    return %c0_i32, %c0_i32_0, %c0_i32_1 : i32, i32, i32
  }
  func.func @transform_4(%arg0: i32, %arg1: i32) -> (i32, i32) {
    %c0_i32 = arith.constant 0 : i32
    %c0_i32_0 = arith.constant 0 : i32
    %c0_i32_1 = arith.constant 0 : i32
    return %c0_i32, %c0_i32_0 : i32, i32
  }
  func.func @transform_5(%arg0: i32, %arg1: i32) -> (i32, i32, i32) {
    %c0_i32 = arith.constant 0 : i32
    %c0_i32_0 = arith.constant 0 : i32
    return %arg0, %arg1, %c0_i32 : i32, i32, i32
  }
}

</mosaic_0001>

<llo_original>
// kernel: tpu_custom_call.1
$region0: #{tpu_custom_call.1}
  #allocation0 [shape = 'u32[]', space=smem, size = 0x4, offset = 0x4, fixed_abs, tag = 'smem constant byte address 0x4 - core index']
  #allocation1 [shape = 'u32[144,128]{1,0:T(1,128)}', space=vmem, size = 0x12000, scoped, tag = 'internal scratch']
  %s0 = inlined_call_operand.vmem [shape: f32[2,512,4], index: 0, kind: input, shape index: {}]
  %s1 = inlined_call_operand.vmem [shape: f32[2,512,4], index: 1, kind: input, shape index: {}]
  %s2 = inlined_call_operand.vmem [shape: f32[2,512,4], index: 2, kind: input, shape index: {}]
  %s3 = inlined_call_operand.vmem [shape: f32[9,4,4], index: 3, kind: input, shape index: {}]
  %s4 = inlined_call_operand.vmem [shape: f32[3,4], index: 4, kind: input, shape index: {}]
  %s5 = inlined_call_operand.vmem [shape: f32[2,512,4], index: 5, kind: output, shape index: {}]
  %s6 = sld [smem:[#allocation0]]
  $region53: #{tpu_custom_call.1} parent=0
    _
  %s8 = ssub.s32 1, %s6
  %s9 = scalar_select 0, %s8, %s6
  loop: start=0, step=1, limit=4
  $region2: #{tpu_custom_call.1} parent=0 // loop_pre_header
    _
  $region3: #{tpu_custom_call.1} parent=0 // loop_header
    %s11 = sphi 0, %s15
    %p12 = scmp.ge.s32.totalorder %s11, 4
    %s18 = sphi 0, %s30
    %s19 = sphi 0, %s26
    %s20 = sphi 0, %s18
    %s21 = sphi 0, %s19
    %s22 = sphi 0, %s20
    %s23 = sphi 0, %s21
    %s35 = sphi 0, %s37
    %s38 = sphi 0, %s35
    %s39 = sphi 0, %s38
    %s55 = sphi 0, %s39
    %s71 = sphi 0, %s73
    %s74 = sphi 0, %s71
    %s75 = sphi 0, %s74
    %s91 = sphi 0, %s75
    %s107 = sphi 0, %s109
    %s110 = sphi 0, %s107
    %s111 = sphi 0, %s110
    %s127 = sphi 0, %s111
    %s131 = sphi 0, %s131
    %s133 = sphi 0, %s131
    %s134 = sphi 0, %s133
    %s148 = sphi 0, %s134
    %s152 = sphi 0, %s152
    %s154 = sphi 0, %s152
    %s155 = sphi 0, %s154
    %s169 = sphi 0, %s155
    %s177 = sphi 0, %s179
    %s180 = sphi 0, %s177
    %s181 = sphi 0, %s180
    %s197 = sphi 0, %s181
  $region4: #{tpu_custom_call.1} parent=0 // loop_header_branch
    %14 = sbr.rel (%p12) target = $region8
  $region5: #{tpu_custom_call.1} parent=0 // loop_body
    %s16 = ssub.s32 %s11, 1
    %s17 = ssub.s32 %s11, 2
    %s24 = sadd.s32 1, %s19
    %p25 = scmp.ge.s32.totalorder %s24, 1
    %s26 = scalar_select %p25, 0, %s24
    %s27 = sadd.s32 1, %s18
    %s28 = scalar_select %p25, %s27, %s18
    %p29 = scmp.ge.s32.totalorder %s28, 2
    %s30 = scalar_select %p29, 0, %s28
    %s31 = ssub.s32 %s18, %s30
    %s32 = ssub.s32 %s19, %s26
    %s33 = sor.u32 %s31, %s32
    %p34 = scmp.eq.s32.totalorder %s33, 0
    %s36 = sadd.s32 %s35, 1
    %s37 = scalar_select %p34, %s35, %s36
    %p40 = pneg %p34
    %p41 = scmp.eq.s32.totalorder %s11, 1
    %p42 = por %p40, %p41
    %p43 = scmp.ne.s32.totalorder %s35, %s38
    %p44 = scmp.eq.s32.totalorder %s11, 0
    %p45 = por %p43, %p44
    %p46 = scmp.ne.s32.totalorder %s35, %s38
    %p47 = scmp.eq.s32.totalorder %s16, 1
    %p48 = por %p46, %p47
    %p49 = scmp.ne.s32.totalorder %s38, %s39
    %p50 = scmp.eq.s32.totalorder %s16, 0
    %p51 = por %p49, %p50
    %p52 = scmp.ne.s32.totalorder %s38, %s39
    %p53 = scmp.eq.s32.totalorder %s17, 1
    %p54 = por %p52, %p53
    %p56 = scmp.ne.s32.totalorder %s39, %s55
    %p57 = scmp.eq.s32.totalorder %s17, 0
    %p58 = por %p56, %p57
    %s59 = smul.u32 %s19, 8
    %s60 = ssub.s32 %s59, 1
    %p61 = scmp.gt.s32.totalorder %s60, 0
    %s62 = scalar_select %p61, %s60, 0
    %s63 = smul.u32 %s26, 8
    %s64 = ssub.s32 %s63, 1
    %p65 = scmp.gt.s32.totalorder %s64, 0
    %s66 = scalar_select %p65, %s64, 0
    %s67 = ssub.s32 %s18, %s30
    %s68 = ssub.s32 %s62, %s66
    %s69 = sor.u32 %s67, %s68
    %p70 = scmp.eq.s32.totalorder %s69, 0
    %s72 = sadd.s32 %s71, 1
    %s73 = scalar_select %p70, %s71, %s72
    %p76 = pneg %p70
    %p77 = scmp.eq.s32.totalorder %s11, 1
    %p78 = por %p76, %p77
    %p79 = scmp.ne.s32.totalorder %s71, %s74
    %p80 = scmp.eq.s32.totalorder %s11, 0
    %p81 = por %p79, %p80
    %p82 = scmp.ne.s32.totalorder %s71, %s74
    %p83 = scmp.eq.s32.totalorder %s16, 1
    %p84 = por %p82, %p83
    %p85 = scmp.ne.s32.totalorder %s74, %s75
    %p86 = scmp.eq.s32.totalorder %s16, 0
    %p87 = por %p85, %p86
    %p88 = scmp.ne.s32.totalorder %s74, %s75
    %p89 = scmp.eq.s32.totalorder %s17, 1
    %p90 = por %p88, %p89
    %p92 = scmp.ne.s32.totalorder %s75, %s91
    %p93 = scmp.eq.s32.totalorder %s17, 0
    %p94 = por %p92, %p93
    %s95 = smul.u32 %s19, 8
    %s96 = sadd.s32 %s95, 8
    %p97 = scmp.lt.s32.totalorder %s96, 7
    %s98 = scalar_select %p97, %s96, 7
    %s99 = smul.u32 %s26, 8
    %s100 = sadd.s32 %s99, 8
    %p101 = scmp.lt.s32.totalorder %s100, 7
    %s102 = scalar_select %p101, %s100, 7
    %s103 = ssub.s32 %s18, %s30
    %s104 = ssub.s32 %s98, %s102
    %s105 = sor.u32 %s103, %s104
    %p106 = scmp.eq.s32.totalorder %s105, 0
    %s108 = sadd.s32 %s107, 1
    %s109 = scalar_select %p106, %s107, %s108
    %p112 = pneg %p106
    %p113 = scmp.eq.s32.totalorder %s11, 1
    %p114 = por %p112, %p113
    %p115 = scmp.ne.s32.totalorder %s107, %s110
    %p116 = scmp.eq.s32.totalorder %s11, 0
    %p117 = por %p115, %p116
    %p118 = scmp.ne.s32.totalorder %s107, %s110
    %p119 = scmp.eq.s32.totalorder %s16, 1
    %p120 = por %p118, %p119
    %p121 = scmp.ne.s32.totalorder %s110, %s111
    %p122 = scmp.eq.s32.totalorder %s16, 0
    %p123 = por %p121, %p122
    %p124 = scmp.ne.s32.totalorder %s110, %s111
    %p125 = scmp.eq.s32.totalorder %s17, 1
    %p126 = por %p124, %p125
    %p128 = scmp.ne.s32.totalorder %s111, %s127
    %p129 = scmp.eq.s32.totalorder %s17, 0
    %p130 = por %p128, %p129
    %s132 = sadd.s32 %s131, 1
    %p135 = scmp.eq.s32.totalorder %s11, 1
    %p136 = scmp.ne.s32.totalorder %s131, %s133
    %p137 = scmp.eq.s32.totalorder %s11, 0
    %p138 = por %p136, %p137
    %p139 = scmp.ne.s32.totalorder %s131, %s133
    %p140 = scmp.eq.s32.totalorder %s16, 1
    %p141 = por %p139, %p140
    %p142 = scmp.ne.s32.totalorder %s133, %s134
    %p143 = scmp.eq.s32.totalorder %s16, 0
    %p144 = por %p142, %p143
    %p145 = scmp.ne.s32.totalorder %s133, %s134
    %p146 = scmp.eq.s32.totalorder %s17, 1
    %p147 = por %p145, %p146
    %p149 = scmp.ne.s32.totalorder %s134, %s148
    %p150 = scmp.eq.s32.totalorder %s17, 0
    %p151 = por %p149, %p150
    %s153 = sadd.s32 %s152, 1
    %p156 = scmp.eq.s32.totalorder %s11, 1
    %p157 = scmp.ne.s32.totalorder %s152, %s154
    %p158 = scmp.eq.s32.totalorder %s11, 0
    %p159 = por %p157, %p158
    %p160 = scmp.ne.s32.totalorder %s152, %s154
    %p161 = scmp.eq.s32.totalorder %s16, 1
    %p162 = por %p160, %p161
    %p163 = scmp.ne.s32.totalorder %s154, %s155
    %p164 = scmp.eq.s32.totalorder %s16, 0
    %p165 = por %p163, %p164
    %p166 = scmp.ne.s32.totalorder %s154, %s155
    %p167 = scmp.eq.s32.totalorder %s17, 1
    %p168 = por %p166, %p167
    %p170 = scmp.ne.s32.totalorder %s155, %s169
    %p171 = scmp.eq.s32.totalorder %s17, 0
    %p172 = por %p170, %p171
    %s173 = ssub.s32 %s18, %s30
    %s174 = ssub.s32 %s19, %s26
    %s175 = sor.u32 %s173, %s174
    %p176 = scmp.eq.s32.totalorder %s175, 0
    %s178 = sadd.s32 %s177, 1
    %s179 = scalar_select %p176, %s177, %s178
    %p182 = pneg %p176
    %p183 = scmp.eq.s32.totalorder %s11, 1
    %p184 = por %p182, %p183
    %p185 = scmp.ne.s32.totalorder %s177, %s180
    %p186 = scmp.eq.s32.totalorder %s11, 0
    %p187 = por %p185, %p186
    %p188 = scmp.ne.s32.totalorder %s177, %s180
    %p189 = scmp.eq.s32.totalorder %s16, 1
    %p190 = por %p188, %p189
    %p191 = scmp.ne.s32.totalorder %s180, %s181
    %p192 = scmp.eq.s32.totalorder %s16, 0
    %p193 = por %p191, %p192
    %p194 = scmp.ne.s32.totalorder %s180, %s181
    %p195 = scmp.eq.s32.totalorder %s17, 1
    %p196 = por %p194, %p195
    %p198 = scmp.ne.s32.totalorder %s181, %s197
    %p199 = scmp.eq.s32.totalorder %s17, 0
    %p200 = por %p198, %p199
    %p201 = scmp.le.s32.totalorder 1, %s11
    %p202 = scmp.lt.s32.totalorder %s11, 3
    %p203 = pnand %p201, %p202
    %p204 = pneg %p203
    // Predicated region
    $region9: #{tpu_custom_call.1} parent=5 // pred_check
      _
    $region10: #{tpu_custom_call.1} parent=5 // pred_check_branch
      %206 = sbr.rel (%p203) target = $region12
    $region11: #{tpu_custom_call.1} parent=5 // pred_region
      %s207 = ssub.s32 %s11, 1
      // Predicated region
      $region13: #{tpu_custom_call.1} parent=11 // pred_check
        %p208 = pneg %p144
      $region14: #{tpu_custom_call.1} parent=11 // pred_check_branch
        %210 = sbr.rel (%p208) target = $region16
      $region15: #{tpu_custom_call.1} parent=11 // pred_region
        _
      $region16: #{tpu_custom_call.1} parent=11 // pred_fallthru
        _
      // Predicated region
      $region17: #{tpu_custom_call.1} parent=11 // pred_check
        %p211 = pneg %p165
      $region18: #{tpu_custom_call.1} parent=11 // pred_check_branch
        %213 = sbr.rel (%p211) target = $region20
      $region19: #{tpu_custom_call.1} parent=11 // pred_region
        _
      $region20: #{tpu_custom_call.1} parent=11 // pred_fallthru
        _
    $region12: #{tpu_custom_call.1} parent=5 // pred_fallthru
      _
    %p214 = scmp.lt.s32.totalorder %s11, 2
    // Predicated region
    $region21: #{tpu_custom_call.1} parent=5 // pred_check
      %p215 = pneg %p214
    $region22: #{tpu_custom_call.1} parent=5 // pred_check_branch
      %217 = sbr.rel (%p215) target = $region24
    $region23: #{tpu_custom_call.1} parent=5 // pred_region
      // Predicated region
      $region25: #{tpu_custom_call.1} parent=23 // pred_check
        %p218 = pneg %p45
      $region26: #{tpu_custom_call.1} parent=23 // pred_check_branch
        %220 = sbr.rel (%p218) target = $region28
      $region27: #{tpu_custom_call.1} parent=23 // pred_region
        %s221 = smul.u32 64, %s19
        %p222 = scmp.lt.s32.totalorder %s18, 1
        %s223 = scalar_select %p222, %s18, 1
        %p224 = scmp.lt.s32.totalorder %s221, 63
        %s225 = scalar_select %p224, %s221, 63
        %s226 = smul.addr %s223, 64
        %s227 = sadd.s32 %s225, %s226
        %s228 = smul.addr %s227, 8
        %s229 = scalar_lea.vmem %s0, %s228
        %s230 = smul.u32 64, %s19
      $region28: #{tpu_custom_call.1} parent=23 // pred_fallthru
        _
      // Predicated region
      $region29: #{tpu_custom_call.1} parent=23 // pred_check
        %p231 = pneg %p81
      $region30: #{tpu_custom_call.1} parent=23 // pred_check_branch
        %233 = sbr.rel (%p231) target = $region32
      $region31: #{tpu_custom_call.1} parent=23 // pred_region
        %s234 = smul.u32 %s19, 8
        %s235 = ssub.s32 %s234, 1
        %p236 = scmp.gt.s32.totalorder %s235, 0
        %s237 = scalar_select %p236, %s235, 0
        %s238 = smul.u32 8, %s237
        %p239 = scmp.lt.s32.totalorder %s18, 1
        %s240 = scalar_select %p239, %s18, 1
        %p241 = scmp.lt.s32.totalorder %s238, 63
        %s242 = scalar_select %p241, %s238, 63
        %s243 = smul.addr %s240, 64
        %s244 = sadd.s32 %s242, %s243
        %s245 = smul.addr %s244, 8
        %s246 = scalar_lea.vmem %s1, %s245
        %s247 = smul.u32 %s19, 8
        %s248 = ssub.s32 %s247, 1
        %p249 = scmp.gt.s32.totalorder %s248, 0
        %s250 = scalar_select %p249, %s248, 0
        %s251 = smul.u32 8, %s250
      $region32: #{tpu_custom_call.1} parent=23 // pred_fallthru
        _
      // Predicated region
      $region33: #{tpu_custom_call.1} parent=23 // pred_check
        %p252 = pneg %p117
      $region34: #{tpu_custom_call.1} parent=23 // pred_check_branch
        %254 = sbr.rel (%p252) target = $region36
      $region35: #{tpu_custom_call.1} parent=23 // pred_region
        %s255 = smul.u32 %s19, 8
        %s256 = sadd.s32 %s255, 8
        %p257 = scmp.lt.s32.totalorder %s256, 7
        %s258 = scalar_select %p257, %s256, 7
        %s259 = smul.u32 8, %s258
        %p260 = scmp.lt.s32.totalorder %s18, 1
        %s261 = scalar_select %p260, %s18, 1
        %p262 = scmp.lt.s32.totalorder %s259, 63
        %s263 = scalar_select %p262, %s259, 63
        %s264 = smul.addr %s261, 64
        %s265 = sadd.s32 %s263, %s264
        %s266 = smul.addr %s265, 8
        %s267 = scalar_lea.vmem %s2, %s266
        %s268 = smul.u32 %s19, 8
        %s269 = sadd.s32 %s268, 8
        %p270 = scmp.lt.s32.totalorder %s269, 7
        %s271 = scalar_select %p270, %s269, 7
        %s272 = smul.u32 8, %s271
      $region36: #{tpu_custom_call.1} parent=23 // pred_fallthru
        _
    $region24: #{tpu_custom_call.1} parent=5 // pred_fallthru
      _
    %p273 = scmp.le.s32.totalorder 1, %s11
    %p274 = scmp.lt.s32.totalorder %s11, 3
    %p275 = pnand %p273, %p274
    %p276 = pneg %p275
    // Predicated region
    $region37: #{tpu_custom_call.1} parent=5 // pred_check
      _
    $region38: #{tpu_custom_call.1} parent=5 // pred_check_branch
      %278 = sbr.rel (%p275) target = $region40
    $region39: #{tpu_custom_call.1} parent=5 // pred_region
      %s279 = ssub.s32 %s11, 1
      %s280 = smul.u32 64, %s21
      %p281 = scmp.lt.s32.totalorder %s20, 1
      %s282 = scalar_select %p281, %s20, 1
      %p283 = scmp.lt.s32.totalorder %s280, 63
      %s284 = scalar_select %p283, %s280, 63
      %s285 = smul.addr %s282, 64
      %s286 = sadd.s32 %s284, %s285
      %s287 = smul.addr %s286, 8
      %s288 = scalar_lea.vmem %s0, %s287
      %p289 = pneg %p51
      %p290 = pneg %p48
      %s291 = smul.u32 %s21, 8
      %s292 = ssub.s32 %s291, 1
      %p293 = scmp.gt.s32.totalorder %s292, 0
      %s294 = scalar_select %p293, %s292, 0
      %s295 = smul.u32 8, %s294
      %p296 = scmp.lt.s32.totalorder %s20, 1
      %s297 = scalar_select %p296, %s20, 1
      %p298 = scmp.lt.s32.totalorder %s295, 63
      %s299 = scalar_select %p298, %s295, 63
      %s300 = smul.addr %s297, 64
      %s301 = sadd.s32 %s299, %s300
      %s302 = smul.addr %s301, 8
      %s303 = scalar_lea.vmem %s1, %s302
      %p304 = pneg %p87
      %p305 = pneg %p84
      %s306 = smul.u32 %s21, 8
      %s307 = sadd.s32 %s306, 8
      %p308 = scmp.lt.s32.totalorder %s307, 7
      %s309 = scalar_select %p308, %s307, 7
      %s310 = smul.u32 8, %s309
      %p311 = scmp.lt.s32.totalorder %s20, 1
      %s312 = scalar_select %p311, %s20, 1
      %p313 = scmp.lt.s32.totalorder %s310, 63
      %s314 = scalar_select %p313, %s310, 63
      %s315 = smul.addr %s312, 64
      %s316 = sadd.s32 %s314, %s315
      %s317 = smul.addr %s316, 8
      %s318 = scalar_lea.vmem %s2, %s317
      %p319 = pneg %p123
      %p320 = pneg %p120
      %p321 = pneg %p144
      %p322 = pneg %p141
      %p323 = pneg %p165
      %p324 = pneg %p162
      %p325 = pneg %p193
      %p326 = pneg %p190
      %s327 = smul.u32 64, %s21
      %p328 = scmp.lt.s32.totalorder %s20, 1
      %s329 = scalar_select %p328, %s20, 1
      %p330 = scmp.lt.s32.totalorder %s327, 63
      %s331 = scalar_select %p330, %s327, 63
      %s332 = smul.addr %s329, 64
      %s333 = sadd.s32 %s331, %s332
      %s334 = smul.addr %s333, 8
      %s335 = scalar_lea.vmem %s5, %s334
      %s336 = smul.u32 64, %s21
      %p337 = scmp.lt.s32.totalorder %s20, 1
      %s338 = scalar_select %p337, %s20, 1
      %p339 = scmp.lt.s32.totalorder %s336, 63
      %s340 = scalar_select %p339, %s336, 63
      %s341 = smul.addr %s338, 64
      %s342 = sadd.s32 %s340, %s341
      %s343 = smul.addr %s342, 8
      %s344 = scalar_lea.vmem %s0, %s343
      %s345 = smul.u32 64, %s21
      %s346 = smul.u32 %s21, 8
      %s347 = ssub.s32 %s346, 1
      %p348 = scmp.gt.s32.totalorder %s347, 0
      %s349 = scalar_select %p348, %s347, 0
      %s350 = smul.u32 8, %s349
      %p351 = scmp.lt.s32.totalorder %s20, 1
      %s352 = scalar_select %p351, %s20, 1
      %p353 = scmp.lt.s32.totalorder %s350, 63
      %s354 = scalar_select %p353, %s350, 63
      %s355 = smul.addr %s352, 64
      %s356 = sadd.s32 %s354, %s355
      %s357 = smul.addr %s356, 8
      %s358 = scalar_lea.vmem %s1, %s357
      %s359 = smul.u32 %s21, 8
      %s360 = ssub.s32 %s359, 1
      %p361 = scmp.gt.s32.totalorder %s360, 0
      %s362 = scalar_select %p361, %s360, 0
      %s363 = smul.u32 8, %s362
      %s364 = smul.u32 %s21, 8
      %s365 = sadd.s32 %s364, 8
      %p366 = scmp.lt.s32.totalorder %s365, 7
      %s367 = scalar_select %p366, %s365, 7
      %s368 = smul.u32 8, %s367
      %p369 = scmp.lt.s32.totalorder %s20, 1
      %s370 = scalar_select %p369, %s20, 1
      %p371 = scmp.lt.s32.totalorder %s368, 63
      %s372 = scalar_select %p371, %s368, 63
      %s373 = smul.addr %s370, 64
      %s374 = sadd.s32 %s372, %s373
      %s375 = smul.addr %s374, 8
      %s376 = scalar_lea.vmem %s2, %s375
      %s377 = smul.u32 %s21, 8
      %s378 = sadd.s32 %s377, 8
      %p379 = scmp.lt.s32.totalorder %s378, 7
      %s380 = scalar_select %p379, %s378, 7
      %s381 = smul.u32 8, %s380
      %s382 = smul.u32 64, %s21
      %p383 = scmp.lt.s32.totalorder %s20, 1
      %s384 = scalar_select %p383, %s20, 1
      %p385 = scmp.lt.s32.totalorder %s382, 63
      %s386 = scalar_select %p385, %s382, 63
      %s387 = smul.addr %s384, 64
      %s388 = sadd.s32 %s386, %s387
      %s389 = smul.addr %s388, 8
      %s390 = scalar_lea.vmem %s5, %s389
      %s391 = smul.u32 64, %s21
      %v392 = vld [vmem:[%s344] sm:$0xff]
      %v393 = vld [vmem:[%s344 + $0x8] sm:$0xff]
      %v394 = vld [vmem:[%s344 + $0x10] sm:$0xff]
      %v395 = vld [vmem:[%s344 + $0x18] sm:$0xff]
      %v396 = vld [vmem:[%s344 + $0x20] sm:$0xff]
      %v397 = vld [vmem:[%s344 + $0x28] sm:$0xff]
      %v398 = vld [vmem:[%s344 + $0x30] sm:$0xff]
      %v399 = vld [vmem:[%s344 + $0x38] sm:$0xff]
      %v400 = vld [vmem:[%s344 + $0x40] sm:$0xff]
      %v401 = vld [vmem:[%s344 + $0x48] sm:$0xff]
      %v402 = vld [vmem:[%s344 + $0x50] sm:$0xff]
      %v403 = vld [vmem:[%s344 + $0x58] sm:$0xff]
      %v404 = vld [vmem:[%s344 + $0x60] sm:$0xff]
      %v405 = vld [vmem:[%s344 + $0x68] sm:$0xff]
      %v406 = vld [vmem:[%s344 + $0x70] sm:$0xff]
      %v407 = vld [vmem:[%s344 + $0x78] sm:$0xff]
      %v408 = vld [vmem:[%s344 + $0x80] sm:$0xff]
      %v409 = vld [vmem:[%s344 + $0x88] sm:$0xff]
      %v410 = vld [vmem:[%s344 + $0x90] sm:$0xff]
      %v411 = vld [vmem:[%s344 + $0x98] sm:$0xff]
      %v412 = vld [vmem:[%s344 + $0xa0] sm:$0xff]
      %v413 = vld [vmem:[%s344 + $0xa8] sm:$0xff]
      %v414 = vld [vmem:[%s344 + $0xb0] sm:$0xff]
      %v415 = vld [vmem:[%s344 + $0xb8] sm:$0xff]
      %v416 = vld [vmem:[%s344 + $0xc0] sm:$0xff]
      %v417 = vld [vmem:[%s344 + $0xc8] sm:$0xff]
      %v418 = vld [vmem:[%s344 + $0xd0] sm:$0xff]
      %v419 = vld [vmem:[%s344 + $0xd8] sm:$0xff]
      %v420 = vld [vmem:[%s344 + $0xe0] sm:$0xff]
      %v421 = vld [vmem:[%s344 + $0xe8] sm:$0xff]
      %v422 = vld [vmem:[%s344 + $0xf0] sm:$0xff]
      %v423 = vld [vmem:[%s344 + $0xf8] sm:$0xff]
      %v424 = vld [vmem:[%s344 + $0x100] sm:$0xff]
      %v425 = vld [vmem:[%s344 + $0x108] sm:$0xff]
      %v426 = vld [vmem:[%s344 + $0x110] sm:$0xff]
      %v427 = vld [vmem:[%s344 + $0x118] sm:$0xff]
      %v428 = vld [vmem:[%s344 + $0x120] sm:$0xff]
      %v429 = vld [vmem:[%s344 + $0x128] sm:$0xff]
      %v430 = vld [vmem:[%s344 + $0x130] sm:$0xff]
      %v431 = vld [vmem:[%s344 + $0x138] sm:$0xff]
      %v432 = vld [vmem:[%s344 + $0x140] sm:$0xff]
      %v433 = vld [vmem:[%s344 + $0x148] sm:$0xff]
      %v434 = vld [vmem:[%s344 + $0x150] sm:$0xff]
      %v435 = vld [vmem:[%s344 + $0x158] sm:$0xff]
      %v436 = vld [vmem:[%s344 + $0x160] sm:$0xff]
      %v437 = vld [vmem:[%s344 + $0x168] sm:$0xff]
      %v438 = vld [vmem:[%s344 + $0x170] sm:$0xff]
      %v439 = vld [vmem:[%s344 + $0x178] sm:$0xff]
      %v440 = vld [vmem:[%s344 + $0x180] sm:$0xff]
      %v441 = vld [vmem:[%s344 + $0x188] sm:$0xff]
      %v442 = vld [vmem:[%s344 + $0x190] sm:$0xff]
      %v443 = vld [vmem:[%s344 + $0x198] sm:$0xff]
      %v444 = vld [vmem:[%s344 + $0x1a0] sm:$0xff]
      %v445 = vld [vmem:[%s344 + $0x1a8] sm:$0xff]
      %v446 = vld [vmem:[%s344 + $0x1b0] sm:$0xff]
      %v447 = vld [vmem:[%s344 + $0x1b8] sm:$0xff]
      %v448 = vld [vmem:[%s344 + $0x1c0] sm:$0xff]
      %v449 = vld [vmem:[%s344 + $0x1c8] sm:$0xff]
      %v450 = vld [vmem:[%s344 + $0x1d0] sm:$0xff]
      %v451 = vld [vmem:[%s344 + $0x1d8] sm:$0xff]
      %v452 = vld [vmem:[%s344 + $0x1e0] sm:$0xff]
      %v453 = vld [vmem:[%s344 + $0x1e8] sm:$0xff]
      %v454 = vld [vmem:[%s344 + $0x1f0] sm:$0xff]
      %v455 = vld [vmem:[%s344 + $0x1f8] sm:$0xff]
      %v456 = vld [vmem:[%s358] sm:$0xff]
      %v457 = vld [vmem:[%s358 + $0x8] sm:$0xff]
      %v458 = vld [vmem:[%s358 + $0x10] sm:$0xff]
      %v459 = vld [vmem:[%s358 + $0x18] sm:$0xff]
      %v460 = vld [vmem:[%s358 + $0x20] sm:$0xff]
      %v461 = vld [vmem:[%s358 + $0x28] sm:$0xff]
      %v462 = vld [vmem:[%s358 + $0x30] sm:$0xff]
      %v463 = vld [vmem:[%s358 + $0x38] sm:$0xff]
      %p464 = scmp.gt.s32.totalorder %s21, 0
      %s465 = scalar_select %p464, 1, 0
      %s466 = scvt.s32.f32 %s465
      %v467 = vstv %s466
      %v468 = vmul.f32 %v456, %v467
      %v469 = vmul.f32 %v457, %v467
      %v470 = vmul.f32 %v458, %v467
      %v471 = vmul.f32 %v459, %v467
      %v472 = vmul.f32 %v460, %v467
      %v473 = vmul.f32 %v461, %v467
      %v474 = vmul.f32 %v462, %v467
      %v475 = vmul.f32 %v463, %v467
      %v476 = vld [vmem:[%s376] sm:$0xff]
      %v477 = vld [vmem:[%s376 + $0x8] sm:$0xff]
      %v478 = vld [vmem:[%s376 + $0x10] sm:$0xff]
      %v479 = vld [vmem:[%s376 + $0x18] sm:$0xff]
      %v480 = vld [vmem:[%s376 + $0x20] sm:$0xff]
      %v481 = vld [vmem:[%s376 + $0x28] sm:$0xff]
      %v482 = vld [vmem:[%s376 + $0x30] sm:$0xff]
      %v483 = vld [vmem:[%s376 + $0x38] sm:$0xff]
      %p484 = scmp.lt.s32.totalorder %s21, 0
      %s485 = scalar_select %p484, 1, 0
      %s486 = scvt.s32.f32 %s485
      %v487 = vstv %s486
      %v488 = vmul.f32 %v476, %v487
      %v489 = vmul.f32 %v477, %v487
      %v490 = vmul.f32 %v478, %v487
      %v491 = vmul.f32 %v479, %v487
      %v492 = vmul.f32 %v480, %v487
      %v493 = vmul.f32 %v481, %v487
      %v494 = vmul.f32 %v482, %v487
      %v495 = vmul.f32 %v483, %v487
      %v496 = vlaneseq
      %v497 = vshrl.u32 %v496, 7
      %v498 = vadd.s32 %v497, 8
      %v499 = vadd.s32 %v497, 16
      %v500 = vadd.s32 %v497, 24
      %v501 = vadd.s32 %v497, 32
      %v502 = vadd.s32 %v497, 40
      %v503 = vadd.s32 %v497, 48
      %v504 = vadd.s32 %v497, 56
      %v505 = vadd.s32 %v497, 64
      %v506 = vadd.s32 %v497, 72
      %v507 = vadd.s32 %v497, 80
      %v508 = vadd.s32 %v497, 88
      %v509 = vadd.s32 %v497, 96
      %v510 = vadd.s32 %v497, 104
      %v511 = vadd.s32 %v497, 112
      %v512 = vadd.s32 %v497, 120
      %v513 = vadd.s32 %v497, 128
      %v514 = vadd.s32 %v497, 136
      %v515 = vadd.s32 %v497, 144
      %v516 = vadd.s32 %v497, 152
      %v517 = vadd.s32 %v497, 160
      %v518 = vadd.s32 %v497, 168
      %v519 = vadd.s32 %v497, 176
      %v520 = vadd.s32 %v497, 184
      %v521 = vadd.s32 %v497, 192
      %v522 = vadd.s32 %v497, 200
      %v523 = vadd.s32 %v497, 208
      %v524 = vadd.s32 %v497, 216
      %v525 = vadd.s32 %v497, 224
      %v526 = vadd.s32 %v497, 232
      %v527 = vadd.s32 %v497, 240
      %v528 = vadd.s32 %v497, 248
      %v529 = vadd.s32 %v497, 256
      %v530 = vadd.s32 %v497, 264
      %v531 = vadd.s32 %v497, 272
      %v532 = vadd.s32 %v497, 280
      %v533 = vadd.s32 %v497, 288
      %v534 = vadd.s32 %v497, 296
      %v535 = vadd.s32 %v497, 304
      %v536 = vadd.s32 %v497, 312
      %v537 = vadd.s32 %v497, 320
      %v538 = vadd.s32 %v497, 328
      %v539 = vadd.s32 %v497, 336
      %v540 = vadd.s32 %v497, 344
      %v541 = vadd.s32 %v497, 352
      %v542 = vadd.s32 %v497, 360
      %v543 = vadd.s32 %v497, 368
      %v544 = vadd.s32 %v497, 376
      %v545 = vadd.s32 %v497, 384
      %v546 = vadd.s32 %v497, 392
      %v547 = vadd.s32 %v497, 400
      %v548 = vadd.s32 %v497, 408
      %v549 = vadd.s32 %v497, 416
      %v550 = vadd.s32 %v497, 424
      %v551 = vadd.s32 %v497, 432
      %v552 = vadd.s32 %v497, 440
      %v553 = vadd.s32 %v497, 448
      %v554 = vadd.s32 %v497, 456
      %v555 = vadd.s32 %v497, 464
      %v556 = vadd.s32 %v497, 472
      %v557 = vadd.s32 %v497, 480
      %v558 = vadd.s32 %v497, 488
      %v559 = vadd.s32 %v497, 496
      %v560 = vadd.s32 %v497, 504
      %v561 = vand.u32 %v497, 63
      %v562 = vand.u32 %v498, 63
      %v563 = vand.u32 %v499, 63
      %v564 = vand.u32 %v500, 63
      %v565 = vand.u32 %v501, 63
      %v566 = vand.u32 %v502, 63
      %v567 = vand.u32 %v503, 63
      %v568 = vand.u32 %v504, 63
      %v569 = vand.u32 %v505, 63
      %v570 = vand.u32 %v506, 63
      %v571 = vand.u32 %v507, 63
      %v572 = vand.u32 %v508, 63
      %v573 = vand.u32 %v509, 63
      %v574 = vand.u32 %v510, 63
      %v575 = vand.u32 %v511, 63
      %v576 = vand.u32 %v512, 63
      %v577 = vand.u32 %v513, 63
      %v578 = vand.u32 %v514, 63
      %v579 = vand.u32 %v515, 63
      %v580 = vand.u32 %v516, 63
      %v581 = vand.u32 %v517, 63
      %v582 = vand.u32 %v518, 63
      %v583 = vand.u32 %v519, 63
      %v584 = vand.u32 %v520, 63
      %v585 = vand.u32 %v521, 63
      %v586 = vand.u32 %v522, 63
      %v587 = vand.u32 %v523, 63
      %v588 = vand.u32 %v524, 63
      %v589 = vand.u32 %v525, 63
      %v590 = vand.u32 %v526, 63
      %v591 = vand.u32 %v527, 63
      %v592 = vand.u32 %v528, 63
      %v593 = vand.u32 %v529, 63
      %v594 = vand.u32 %v530, 63
      %v595 = vand.u32 %v531, 63
      %v596 = vand.u32 %v532, 63
      %v597 = vand.u32 %v533, 63
      %v598 = vand.u32 %v534, 63
      %v599 = vand.u32 %v535, 63
      %v600 = vand.u32 %v536, 63
      %v601 = vand.u32 %v537, 63
      %v602 = vand.u32 %v538, 63
      %v603 = vand.u32 %v539, 63
      %v604 = vand.u32 %v540, 63
      %v605 = vand.u32 %v541, 63
      %v606 = vand.u32 %v542, 63
      %v607 = vand.u32 %v543, 63
      %v608 = vand.u32 %v544, 63
      %v609 = vand.u32 %v545, 63
      %v610 = vand.u32 %v546, 63
      %v611 = vand.u32 %v547, 63
      %v612 = vand.u32 %v548, 63
      %v613 = vand.u32 %v549, 63
      %v614 = vand.u32 %v550, 63
      %v615 = vand.u32 %v551, 63
      %v616 = vand.u32 %v552, 63
      %v617 = vand.u32 %v553, 63
      %v618 = vand.u32 %v554, 63
      %v619 = vand.u32 %v555, 63
      %v620 = vand.u32 %v556, 63
      %v621 = vand.u32 %v557, 63
      %v622 = vand.u32 %v558, 63
      %v623 = vand.u32 %v559, 63
      %v624 = vand.u32 %v560, 63
      %v625 = vand.u32 %v497, 7
      %v626 = vand.u32 %v498, 7
      %v627 = vand.u32 %v499, 7
      %v628 = vand.u32 %v500, 7
      %v629 = vand.u32 %v501, 7
      %v630 = vand.u32 %v502, 7
      %v631 = vand.u32 %v503, 7
      %v632 = vand.u32 %v504, 7
      %v633 = vand.u32 %v505, 7
      %v634 = vand.u32 %v506, 7
      %v635 = vand.u32 %v507, 7
      %v636 = vand.u32 %v508, 7
      %v637 = vand.u32 %v509, 7
      %v638 = vand.u32 %v510, 7
      %v639 = vand.u32 %v511, 7
      %v640 = vand.u32 %v512, 7
      %v641 = vand.u32 %v513, 7
      %v642 = vand.u32 %v514, 7
      %v643 = vand.u32 %v515, 7
      %v644 = vand.u32 %v516, 7
      %v645 = vand.u32 %v517, 7
      %v646 = vand.u32 %v518, 7
      %v647 = vand.u32 %v519, 7
      %v648 = vand.u32 %v520, 7
      %v649 = vand.u32 %v521, 7
      %v650 = vand.u32 %v522, 7
      %v651 = vand.u32 %v523, 7
      %v652 = vand.u32 %v524, 7
      %v653 = vand.u32 %v525, 7
      %v654 = vand.u32 %v526, 7
      %v655 = vand.u32 %v527, 7
      %v656 = vand.u32 %v528, 7
      %v657 = vand.u32 %v529, 7
      %v658 = vand.u32 %v530, 7
      %v659 = vand.u32 %v531, 7
      %v660 = vand.u32 %v532, 7
      %v661 = vand.u32 %v533, 7
      %v662 = vand.u32 %v534, 7
      %v663 = vand.u32 %v535, 7
      %v664 = vand.u32 %v536, 7
      %v665 = vand.u32 %v537, 7
      %v666 = vand.u32 %v538, 7
      %v667 = vand.u32 %v539, 7
      %v668 = vand.u32 %v540, 7
      %v669 = vand.u32 %v541, 7
      %v670 = vand.u32 %v542, 7
      %v671 = vand.u32 %v543, 7
      %v672 = vand.u32 %v544, 7
      %v673 = vand.u32 %v545, 7
      %v674 = vand.u32 %v546, 7
      %v675 = vand.u32 %v547, 7
      %v676 = vand.u32 %v548, 7
      %v677 = vand.u32 %v549, 7
      %v678 = vand.u32 %v550, 7
      %v679 = vand.u32 %v551, 7
      %v680 = vand.u32 %v552, 7
      %v681 = vand.u32 %v553, 7
      %v682 = vand.u32 %v554, 7
      %v683 = vand.u32 %v555, 7
      %v684 = vand.u32 %v556, 7
      %v685 = vand.u32 %v557, 7
      %v686 = vand.u32 %v558, 7
      %v687 = vand.u32 %v559, 7
      %v688 = vand.u32 %v560, 7
      %vm689 = vcmp.ge.s32.totalorder %v561, 8
      %vm690 = vcmp.ge.s32.totalorder %v562, 8
      %vm691 = vcmp.ge.s32.totalorder %v563, 8
      %vm692 = vcmp.ge.s32.totalorder %v564, 8
      %vm693 = vcmp.ge.s32.totalorder %v565, 8
      %vm694 = vcmp.ge.s32.totalorder %v566, 8
      %vm695 = vcmp.ge.s32.totalorder %v567, 8
      %vm696 = vcmp.ge.s32.totalorder %v568, 8
      %vm697 = vcmp.ge.s32.totalorder %v569, 8
      %vm698 = vcmp.ge.s32.totalorder %v570, 8
      %vm699 = vcmp.ge.s32.totalorder %v571, 8
      %vm700 = vcmp.ge.s32.totalorder %v572, 8
      %vm701 = vcmp.ge.s32.totalorder %v573, 8
      %vm702 = vcmp.ge.s32.totalorder %v574, 8
      %vm703 = vcmp.ge.s32.totalorder %v575, 8
      %vm704 = vcmp.ge.s32.totalorder %v576, 8
      %vm705 = vcmp.ge.s32.totalorder %v577, 8
      %vm706 = vcmp.ge.s32.totalorder %v578, 8
      %vm707 = vcmp.ge.s32.totalorder %v579, 8
      %vm708 = vcmp.ge.s32.totalorder %v580, 8
      %vm709 = vcmp.ge.s32.totalorder %v581, 8
      %vm710 = vcmp.ge.s32.totalorder %v582, 8
      %vm711 = vcmp.ge.s32.totalorder %v583, 8
      %vm712 = vcmp.ge.s32.totalorder %v584, 8
      %vm713 = vcmp.ge.s32.totalorder %v585, 8
      %vm714 = vcmp.ge.s32.totalorder %v586, 8
      %vm715 = vcmp.ge.s32.totalorder %v587, 8
      %vm716 = vcmp.ge.s32.totalorder %v588, 8
      %vm717 = vcmp.ge.s32.totalorder %v589, 8
      %vm718 = vcmp.ge.s32.totalorder %v590, 8
      %vm719 = vcmp.ge.s32.totalorder %v591, 8
      %vm720 = vcmp.ge.s32.totalorder %v592, 8
      %vm721 = vcmp.ge.s32.totalorder %v593, 8
      %vm722 = vcmp.ge.s32.totalorder %v594, 8
      %vm723 = vcmp.ge.s32.totalorder %v595, 8
      %vm724 = vcmp.ge.s32.totalorder %v596, 8
      %vm725 = vcmp.ge.s32.totalorder %v597, 8
      %vm726 = vcmp.ge.s32.totalorder %v598, 8
      %vm727 = vcmp.ge.s32.totalorder %v599, 8
      %vm728 = vcmp.ge.s32.totalorder %v600, 8
      %vm729 = vcmp.ge.s32.totalorder %v601, 8
      %vm730 = vcmp.ge.s32.totalorder %v602, 8
      %vm731 = vcmp.ge.s32.totalorder %v603, 8
      %vm732 = vcmp.ge.s32.totalorder %v604, 8
      %vm733 = vcmp.ge.s32.totalorder %v605, 8
      %vm734 = vcmp.ge.s32.totalorder %v606, 8
      %vm735 = vcmp.ge.s32.totalorder %v607, 8
      %vm736 = vcmp.ge.s32.totalorder %v608, 8
      %vm737 = vcmp.ge.s32.totalorder %v609, 8
      %vm738 = vcmp.ge.s32.totalorder %v610, 8
      %vm739 = vcmp.ge.s32.totalorder %v611, 8
      %vm740 = vcmp.ge.s32.totalorder %v612, 8
      %vm741 = vcmp.ge.s32.totalorder %v613, 8
      %vm742 = vcmp.ge.s32.totalorder %v614, 8
      %vm743 = vcmp.ge.s32.totalorder %v615, 8
      %vm744 = vcmp.ge.s32.totalorder %v616, 8
      %vm745 = vcmp.ge.s32.totalorder %v617, 8
      %vm746 = vcmp.ge.s32.totalorder %v618, 8
      %vm747 = vcmp.ge.s32.totalorder %v619, 8
      %vm748 = vcmp.ge.s32.totalorder %v620, 8
      %vm749 = vcmp.ge.s32.totalorder %v621, 8
      %vm750 = vcmp.ge.s32.totalorder %v622, 8
      %vm751 = vcmp.ge.s32.totalorder %v623, 8
      %vm752 = vcmp.ge.s32.totalorder %v624, 8
      %v753 = vsel %vm689, 1, 0
      %v754 = vsel %vm690, 1, 0
      %v755 = vsel %vm691, 1, 0
      %v756 = vsel %vm692, 1, 0
      %v757 = vsel %vm693, 1, 0
      %v758 = vsel %vm694, 1, 0
      %v759 = vsel %vm695, 1, 0
      %v760 = vsel %vm696, 1, 0
      %v761 = vsel %vm697, 1, 0
      %v762 = vsel %vm698, 1, 0
      %v763 = vsel %vm699, 1, 0
      %v764 = vsel %vm700, 1, 0
      %v765 = vsel %vm701, 1, 0
      %v766 = vsel %vm702, 1, 0
      %v767 = vsel %vm703, 1, 0
      %v768 = vsel %vm704, 1, 0
      %v769 = vsel %vm705, 1, 0
      %v770 = vsel %vm706, 1, 0
      %v771 = vsel %vm707, 1, 0
      %v772 = vsel %vm708, 1, 0
      %v773 = vsel %vm709, 1, 0
      %v774 = vsel %vm710, 1, 0
      %v775 = vsel %vm711, 1, 0
      %v776 = vsel %vm712, 1, 0
      %v777 = vsel %vm713, 1, 0
      %v778 = vsel %vm714, 1, 0
      %v779 = vsel %vm715, 1, 0
      %v780 = vsel %vm716, 1, 0
      %v781 = vsel %vm717, 1, 0
      %v782 = vsel %vm718, 1, 0
      %v783 = vsel %vm719, 1, 0
      %v784 = vsel %vm720, 1, 0
      %v785 = vsel %vm721, 1, 0
      %v786 = vsel %vm722, 1, 0
      %v787 = vsel %vm723, 1, 0
      %v788 = vsel %vm724, 1, 0
      %v789 = vsel %vm725, 1, 0
      %v790 = vsel %vm726, 1, 0
      %v791 = vsel %vm727, 1, 0
      %v792 = vsel %vm728, 1, 0
      %v793 = vsel %vm729, 1, 0
      %v794 = vsel %vm730, 1, 0
      %v795 = vsel %vm731, 1, 0
      %v796 = vsel %vm732, 1, 0
      %v797 = vsel %vm733, 1, 0
      %v798 = vsel %vm734, 1, 0
      %v799 = vsel %vm735, 1, 0
      %v800 = vsel %vm736, 1, 0
      %v801 = vsel %vm737, 1, 0
      %v802 = vsel %vm738, 1, 0
      %v803 = vsel %vm739, 1, 0
      %v804 = vsel %vm740, 1, 0
      %v805 = vsel %vm741, 1, 0
      %v806 = vsel %vm742, 1, 0
      %v807 = vsel %vm743, 1, 0
      %v808 = vsel %vm744, 1, 0
      %v809 = vsel %vm745, 1, 0
      %v810 = vsel %vm746, 1, 0
      %v811 = vsel %vm747, 1, 0
      %v812 = vsel %vm748, 1, 0
      %v813 = vsel %vm749, 1, 0
      %v814 = vsel %vm750, 1, 0
      %v815 = vsel %vm751, 1, 0
      %v816 = vsel %vm752, 1, 0
      %v817 = vcvt.s32.f32 %v753
      %v818 = vcvt.s32.f32 %v754
      %v819 = vcvt.s32.f32 %v755
      %v820 = vcvt.s32.f32 %v756
      %v821 = vcvt.s32.f32 %v757
      %v822 = vcvt.s32.f32 %v758
      %v823 = vcvt.s32.f32 %v759
      %v824 = vcvt.s32.f32 %v760
      %v825 = vcvt.s32.f32 %v761
      %v826 = vcvt.s32.f32 %v762
      %v827 = vcvt.s32.f32 %v763
      %v828 = vcvt.s32.f32 %v764
      %v829 = vcvt.s32.f32 %v765
      %v830 = vcvt.s32.f32 %v766
      %v831 = vcvt.s32.f32 %v767
      %v832 = vcvt.s32.f32 %v768
      %v833 = vcvt.s32.f32 %v769
      %v834 = vcvt.s32.f32 %v770
      %v835 = vcvt.s32.f32 %v771
      %v836 = vcvt.s32.f32 %v772
      %v837 = vcvt.s32.f32 %v773
      %v838 = vcvt.s32.f32 %v774
      %v839 = vcvt.s32.f32 %v775
      %v840 = vcvt.s32.f32 %v776
      %v841 = vcvt.s32.f32 %v777
      %v842 = vcvt.s32.f32 %v778
      %v843 = vcvt.s32.f32 %v779
      %v844 = vcvt.s32.f32 %v780
      %v845 = vcvt.s32.f32 %v781
      %v846 = vcvt.s32.f32 %v782
      %v847 = vcvt.s32.f32 %v783
      %v848 = vcvt.s32.f32 %v784
      %v849 = vcvt.s32.f32 %v785
      %v850 = vcvt.s32.f32 %v786
      %v851 = vcvt.s32.f32 %v787
      %v852 = vcvt.s32.f32 %v788
      %v853 = vcvt.s32.f32 %v789
      %v854 = vcvt.s32.f32 %v790
      %v855 = vcvt.s32.f32 %v791
      %v856 = vcvt.s32.f32 %v792
      %v857 = vcvt.s32.f32 %v793
      %v858 = vcvt.s32.f32 %v794
      %v859 = vcvt.s32.f32 %v795
      %v860 = vcvt.s32.f32 %v796
      %v861 = vcvt.s32.f32 %v797
      %v862 = vcvt.s32.f32 %v798
      %v863 = vcvt.s32.f32 %v799
      %v864 = vcvt.s32.f32 %v800
      %v865 = vcvt.s32.f32 %v801
      %v866 = vcvt.s32.f32 %v802
      %v867 = vcvt.s32.f32 %v803
      %v868 = vcvt.s32.f32 %v804
      %v869 = vcvt.s32.f32 %v805
      %v870 = vcvt.s32.f32 %v806
      %v871 = vcvt.s32.f32 %v807
      %v872 = vcvt.s32.f32 %v808
      %v873 = vcvt.s32.f32 %v809
      %v874 = vcvt.s32.f32 %v810
      %v875 = vcvt.s32.f32 %v811
      %v876 = vcvt.s32.f32 %v812
      %v877 = vcvt.s32.f32 %v813
      %v878 = vcvt.s32.f32 %v814
      %v879 = vcvt.s32.f32 %v815
      %v880 = vcvt.s32.f32 %v816
      %vm881 = vcmp.lt.s32.totalorder %v561, 56
      %vm882 = vcmp.lt.s32.totalorder %v562, 56
      %vm883 = vcmp.lt.s32.totalorder %v563, 56
      %vm884 = vcmp.lt.s32.totalorder %v564, 56
      %vm885 = vcmp.lt.s32.totalorder %v565, 56
      %vm886 = vcmp.lt.s32.totalorder %v566, 56
      %vm887 = vcmp.lt.s32.totalorder %v567, 56
      %vm888 = vcmp.lt.s32.totalorder %v568, 56
      %vm889 = vcmp.lt.s32.totalorder %v569, 56
      %vm890 = vcmp.lt.s32.totalorder %v570, 56
      %vm891 = vcmp.lt.s32.totalorder %v571, 56
      %vm892 = vcmp.lt.s32.totalorder %v572, 56
      %vm893 = vcmp.lt.s32.totalorder %v573, 56
      %vm894 = vcmp.lt.s32.totalorder %v574, 56
      %vm895 = vcmp.lt.s32.totalorder %v575, 56
      %vm896 = vcmp.lt.s32.totalorder %v576, 56
      %vm897 = vcmp.lt.s32.totalorder %v577, 56
      %vm898 = vcmp.lt.s32.totalorder %v578, 56
      %vm899 = vcmp.lt.s32.totalorder %v579, 56
      %vm900 = vcmp.lt.s32.totalorder %v580, 56
      %vm901 = vcmp.lt.s32.totalorder %v581, 56
      %vm902 = vcmp.lt.s32.totalorder %v582, 56
      %vm903 = vcmp.lt.s32.totalorder %v583, 56
      %vm904 = vcmp.lt.s32.totalorder %v584, 56
      %vm905 = vcmp.lt.s32.totalorder %v585, 56
      %vm906 = vcmp.lt.s32.totalorder %v586, 56
      %vm907 = vcmp.lt.s32.totalorder %v587, 56
      %vm908 = vcmp.lt.s32.totalorder %v588, 56
      %vm909 = vcmp.lt.s32.totalorder %v589, 56
      %vm910 = vcmp.lt.s32.totalorder %v590, 56
      %vm911 = vcmp.lt.s32.totalorder %v591, 56
      %vm912 = vcmp.lt.s32.totalorder %v592, 56
      %vm913 = vcmp.lt.s32.totalorder %v593, 56
      %vm914 = vcmp.lt.s32.totalorder %v594, 56
      %vm915 = vcmp.lt.s32.totalorder %v595, 56
      %vm916 = vcmp.lt.s32.totalorder %v596, 56
      %vm917 = vcmp.lt.s32.totalorder %v597, 56
      %vm918 = vcmp.lt.s32.totalorder %v598, 56
      %vm919 = vcmp.lt.s32.totalorder %v599, 56
      %vm920 = vcmp.lt.s32.totalorder %v600, 56
      %vm921 = vcmp.lt.s32.totalorder %v601, 56
      %vm922 = vcmp.lt.s32.totalorder %v602, 56
      %vm923 = vcmp.lt.s32.totalorder %v603, 56
      %vm924 = vcmp.lt.s32.totalorder %v604, 56
      %vm925 = vcmp.lt.s32.totalorder %v605, 56
      %vm926 = vcmp.lt.s32.totalorder %v606, 56
      %vm927 = vcmp.lt.s32.totalorder %v607, 56
      %vm928 = vcmp.lt.s32.totalorder %v608, 56
      %vm929 = vcmp.lt.s32.totalorder %v609, 56
      %vm930 = vcmp.lt.s32.totalorder %v610, 56
      %vm931 = vcmp.lt.s32.totalorder %v611, 56
      %vm932 = vcmp.lt.s32.totalorder %v612, 56
      %vm933 = vcmp.lt.s32.totalorder %v613, 56
      %vm934 = vcmp.lt.s32.totalorder %v614, 56
      %vm935 = vcmp.lt.s32.totalorder %v615, 56
      %vm936 = vcmp.lt.s32.totalorder %v616, 56
      %vm937 = vcmp.lt.s32.totalorder %v617, 56
      %vm938 = vcmp.lt.s32.totalorder %v618, 56
      %vm939 = vcmp.lt.s32.totalorder %v619, 56
      %vm940 = vcmp.lt.s32.totalorder %v620, 56
      %vm941 = vcmp.lt.s32.totalorder %v621, 56
      %vm942 = vcmp.lt.s32.totalorder %v622, 56
      %vm943 = vcmp.lt.s32.totalorder %v623, 56
      %vm944 = vcmp.lt.s32.totalorder %v624, 56
      %v945 = vsel %vm881, 1, 0
      %v946 = vsel %vm882, 1, 0
      %v947 = vsel %vm883, 1, 0
      %v948 = vsel %vm884, 1, 0
      %v949 = vsel %vm885, 1, 0
      %v950 = vsel %vm886, 1, 0
      %v951 = vsel %vm887, 1, 0
      %v952 = vsel %vm888, 1, 0
      %v953 = vsel %vm889, 1, 0
      %v954 = vsel %vm890, 1, 0
      %v955 = vsel %vm891, 1, 0
      %v956 = vsel %vm892, 1, 0
      %v957 = vsel %vm893, 1, 0
      %v958 = vsel %vm894, 1, 0
      %v959 = vsel %vm895, 1, 0
      %v960 = vsel %vm896, 1, 0
      %v961 = vsel %vm897, 1, 0
      %v962 = vsel %vm898, 1, 0
      %v963 = vsel %vm899, 1, 0
      %v964 = vsel %vm900, 1, 0
      %v965 = vsel %vm901, 1, 0
      %v966 = vsel %vm902, 1, 0
      %v967 = vsel %vm903, 1, 0
      %v968 = vsel %vm904, 1, 0
      %v969 = vsel %vm905, 1, 0
      %v970 = vsel %vm906, 1, 0
      %v971 = vsel %vm907, 1, 0
      %v972 = vsel %vm908, 1, 0
      %v973 = vsel %vm909, 1, 0
      %v974 = vsel %vm910, 1, 0
      %v975 = vsel %vm911, 1, 0
      %v976 = vsel %vm912, 1, 0
      %v977 = vsel %vm913, 1, 0
      %v978 = vsel %vm914, 1, 0
      %v979 = vsel %vm915, 1, 0
      %v980 = vsel %vm916, 1, 0
      %v981 = vsel %vm917, 1, 0
      %v982 = vsel %vm918, 1, 0
      %v983 = vsel %vm919, 1, 0
      %v984 = vsel %vm920, 1, 0
      %v985 = vsel %vm921, 1, 0
      %v986 = vsel %vm922, 1, 0
      %v987 = vsel %vm923, 1, 0
      %v988 = vsel %vm924, 1, 0
      %v989 = vsel %vm925, 1, 0
      %v990 = vsel %vm926, 1, 0
      %v991 = vsel %vm927, 1, 0
      %v992 = vsel %vm928, 1, 0
      %v993 = vsel %vm929, 1, 0
      %v994 = vsel %vm930, 1, 0
      %v995 = vsel %vm931, 1, 0
      %v996 = vsel %vm932, 1, 0
      %v997 = vsel %vm933, 1, 0
      %v998 = vsel %vm934, 1, 0
      %v999 = vsel %vm935, 1, 0
      %v1000 = vsel %vm936, 1, 0
      %v1001 = vsel %vm937, 1, 0
      %v1002 = vsel %vm938, 1, 0
      %v1003 = vsel %vm939, 1, 0
      %v1004 = vsel %vm940, 1, 0
      %v1005 = vsel %vm941, 1, 0
      %v1006 = vsel %vm942, 1, 0
      %v1007 = vsel %vm943, 1, 0
      %v1008 = vsel %vm944, 1, 0
      %v1009 = vcvt.s32.f32 %v945
      %v1010 = vcvt.s32.f32 %v946
      %v1011 = vcvt.s32.f32 %v947
      %v1012 = vcvt.s32.f32 %v948
      %v1013 = vcvt.s32.f32 %v949
      %v1014 = vcvt.s32.f32 %v950
      %v1015 = vcvt.s32.f32 %v951
      %v1016 = vcvt.s32.f32 %v952
      %v1017 = vcvt.s32.f32 %v953
      %v1018 = vcvt.s32.f32 %v954
      %v1019 = vcvt.s32.f32 %v955
      %v1020 = vcvt.s32.f32 %v956
      %v1021 = vcvt.s32.f32 %v957
      %v1022 = vcvt.s32.f32 %v958
      %v1023 = vcvt.s32.f32 %v959
      %v1024 = vcvt.s32.f32 %v960
      %v1025 = vcvt.s32.f32 %v961
      %v1026 = vcvt.s32.f32 %v962
      %v1027 = vcvt.s32.f32 %v963
      %v1028 = vcvt.s32.f32 %v964
      %v1029 = vcvt.s32.f32 %v965
      %v1030 = vcvt.s32.f32 %v966
      %v1031 = vcvt.s32.f32 %v967
      %v1032 = vcvt.s32.f32 %v968
      %v1033 = vcvt.s32.f32 %v969
      %v1034 = vcvt.s32.f32 %v970
      %v1035 = vcvt.s32.f32 %v971
      %v1036 = vcvt.s32.f32 %v972
      %v1037 = vcvt.s32.f32 %v973
      %v1038 = vcvt.s32.f32 %v974
      %v1039 = vcvt.s32.f32 %v975
      %v1040 = vcvt.s32.f32 %v976
      %v1041 = vcvt.s32.f32 %v977
      %v1042 = vcvt.s32.f32 %v978
      %v1043 = vcvt.s32.f32 %v979
      %v1044 = vcvt.s32.f32 %v980
      %v1045 = vcvt.s32.f32 %v981
      %v1046 = vcvt.s32.f32 %v982
      %v1047 = vcvt.s32.f32 %v983
      %v1048 = vcvt.s32.f32 %v984
      %v1049 = vcvt.s32.f32 %v985
      %v1050 = vcvt.s32.f32 %v986
      %v1051 = vcvt.s32.f32 %v987
      %v1052 = vcvt.s32.f32 %v988
      %v1053 = vcvt.s32.f32 %v989
      %v1054 = vcvt.s32.f32 %v990
      %v1055 = vcvt.s32.f32 %v991
      %v1056 = vcvt.s32.f32 %v992
      %v1057 = vcvt.s32.f32 %v993
      %v1058 = vcvt.s32.f32 %v994
      %v1059 = vcvt.s32.f32 %v995
      %v1060 = vcvt.s32.f32 %v996
      %v1061 = vcvt.s32.f32 %v997
      %v1062 = vcvt.s32.f32 %v998
      %v1063 = vcvt.s32.f32 %v999
      %v1064 = vcvt.s32.f32 %v1000
      %v1065 = vcvt.s32.f32 %v1001
      %v1066 = vcvt.s32.f32 %v1002
      %v1067 = vcvt.s32.f32 %v1003
      %v1068 = vcvt.s32.f32 %v1004
      %v1069 = vcvt.s32.f32 %v1005
      %v1070 = vcvt.s32.f32 %v1006
      %v1071 = vcvt.s32.f32 %v1007
      %v1072 = vcvt.s32.f32 %v1008
      %vm1073 = vcmp.gt.s32.totalorder %v625, 0
      %vm1074 = vcmp.gt.s32.totalorder %v626, 0
      %vm1075 = vcmp.gt.s32.totalorder %v627, 0
      %vm1076 = vcmp.gt.s32.totalorder %v628, 0
      %vm1077 = vcmp.gt.s32.totalorder %v629, 0
      %vm1078 = vcmp.gt.s32.totalorder %v630, 0
      %vm1079 = vcmp.gt.s32.totalorder %v631, 0
      %vm1080 = vcmp.gt.s32.totalorder %v632, 0
      %vm1081 = vcmp.gt.s32.totalorder %v633, 0
      %vm1082 = vcmp.gt.s32.totalorder %v634, 0
      %vm1083 = vcmp.gt.s32.totalorder %v635, 0
      %vm1084 = vcmp.gt.s32.totalorder %v636, 0
      %vm1085 = vcmp.gt.s32.totalorder %v637, 0
      %vm1086 = vcmp.gt.s32.totalorder %v638, 0
      %vm1087 = vcmp.gt.s32.totalorder %v639, 0
      %vm1088 = vcmp.gt.s32.totalorder %v640, 0
      %vm1089 = vcmp.gt.s32.totalorder %v641, 0
      %vm1090 = vcmp.gt.s32.totalorder %v642, 0
      %vm1091 = vcmp.gt.s32.totalorder %v643, 0
      %vm1092 = vcmp.gt.s32.totalorder %v644, 0
      %vm1093 = vcmp.gt.s32.totalorder %v645, 0
      %vm1094 = vcmp.gt.s32.totalorder %v646, 0
      %vm1095 = vcmp.gt.s32.totalorder %v647, 0
      %vm1096 = vcmp.gt.s32.totalorder %v648, 0
      %vm1097 = vcmp.gt.s32.totalorder %v649, 0
      %vm1098 = vcmp.gt.s32.totalorder %v650, 0
      %vm1099 = vcmp.gt.s32.totalorder %v651, 0
      %vm1100 = vcmp.gt.s32.totalorder %v652, 0
      %vm1101 = vcmp.gt.s32.totalorder %v653, 0
      %vm1102 = vcmp.gt.s32.totalorder %v654, 0
      %vm1103 = vcmp.gt.s32.totalorder %v655, 0
      %vm1104 = vcmp.gt.s32.totalorder %v656, 0
      %vm1105 = vcmp.gt.s32.totalorder %v657, 0
      %vm1106 = vcmp.gt.s32.totalorder %v658, 0
      %vm1107 = vcmp.gt.s32.totalorder %v659, 0
      %vm1108 = vcmp.gt.s32.totalorder %v660, 0
      %vm1109 = vcmp.gt.s32.totalorder %v661, 0
      %vm1110 = vcmp.gt.s32.totalorder %v662, 0
      %vm1111 = vcmp.gt.s32.totalorder %v663, 0
      %vm1112 = vcmp.gt.s32.totalorder %v664, 0
      %vm1113 = vcmp.gt.s32.totalorder %v665, 0
      %vm1114 = vcmp.gt.s32.totalorder %v666, 0
      %vm1115 = vcmp.gt.s32.totalorder %v667, 0
      %vm1116 = vcmp.gt.s32.totalorder %v668, 0
      %vm1117 = vcmp.gt.s32.totalorder %v669, 0
      %vm1118 = vcmp.gt.s32.totalorder %v670, 0
      %vm1119 = vcmp.gt.s32.totalorder %v671, 0
      %vm1120 = vcmp.gt.s32.totalorder %v672, 0
      %vm1121 = vcmp.gt.s32.totalorder %v673, 0
      %vm1122 = vcmp.gt.s32.totalorder %v674, 0
      %vm1123 = vcmp.gt.s32.totalorder %v675, 0
      %vm1124 = vcmp.gt.s32.totalorder %v676, 0
      %vm1125 = vcmp.gt.s32.totalorder %v677, 0
      %vm1126 = vcmp.gt.s32.totalorder %v678, 0
      %vm1127 = vcmp.gt.s32.totalorder %v679, 0
      %vm1128 = vcmp.gt.s32.totalorder %v680, 0
      %vm1129 = vcmp.gt.s32.totalorder %v681, 0
      %vm1130 = vcmp.gt.s32.totalorder %v682, 0
      %vm1131 = vcmp.gt.s32.totalorder %v683, 0
      %vm1132 = vcmp.gt.s32.totalorder %v684, 0
      %vm1133 = vcmp.gt.s32.totalorder %v685, 0
      %vm1134 = vcmp.gt.s32.totalorder %v686, 0
      %vm1135 = vcmp.gt.s32.totalorder %v687, 0
      %vm1136 = vcmp.gt.s32.totalorder %v688, 0
      %v1137 = vsel %vm1073, 1, 0
      %v1138 = vsel %vm1074, 1, 0
      %v1139 = vsel %vm1075, 1, 0
      %v1140 = vsel %vm1076, 1, 0
      %v1141 = vsel %vm1077, 1, 0
      %v1142 = vsel %vm1078, 1, 0
      %v1143 = vsel %vm1079, 1, 0
      %v1144 = vsel %vm1080, 1, 0
      %v1145 = vsel %vm1081, 1, 0
      %v1146 = vsel %vm1082, 1, 0
      %v1147 = vsel %vm1083, 1, 0
      %v1148 = vsel %vm1084, 1, 0
      %v1149 = vsel %vm1085, 1, 0
      %v1150 = vsel %vm1086, 1, 0
      %v1151 = vsel %vm1087, 1, 0
      %v1152 = vsel %vm1088, 1, 0
      %v1153 = vsel %vm1089, 1, 0
      %v1154 = vsel %vm1090, 1, 0
      %v1155 = vsel %vm1091, 1, 0
      %v1156 = vsel %vm1092, 1, 0
      %v1157 = vsel %vm1093, 1, 0
      %v1158 = vsel %vm1094, 1, 0
      %v1159 = vsel %vm1095, 1, 0
      %v1160 = vsel %vm1096, 1, 0
      %v1161 = vsel %vm1097, 1, 0
      %v1162 = vsel %vm1098, 1, 0
      %v1163 = vsel %vm1099, 1, 0
      %v1164 = vsel %vm1100, 1, 0
      %v1165 = vsel %vm1101, 1, 0
      %v1166 = vsel %vm1102, 1, 0
      %v1167 = vsel %vm1103, 1, 0
      %v1168 = vsel %vm1104, 1, 0
      %v1169 = vsel %vm1105, 1, 0
      %v1170 = vsel %vm1106, 1, 0
      %v1171 = vsel %vm1107, 1, 0
      %v1172 = vsel %vm1108, 1, 0
      %v1173 = vsel %vm1109, 1, 0
      %v1174 = vsel %vm1110, 1, 0
      %v1175 = vsel %vm1111, 1, 0
      %v1176 = vsel %vm1112, 1, 0
      %v1177 = vsel %vm1113, 1, 0
      %v1178 = vsel %vm1114, 1, 0
      %v1179 = vsel %vm1115, 1, 0
      %v1180 = vsel %vm1116, 1, 0
      %v1181 = vsel %vm1117, 1, 0
      %v1182 = vsel %vm1118, 1, 0
      %v1183 = vsel %vm1119, 1, 0
      %v1184 = vsel %vm1120, 1, 0
      %v1185 = vsel %vm1121, 1, 0
      %v1186 = vsel %vm1122, 1, 0
      %v1187 = vsel %vm1123, 1, 0
      %v1188 = vsel %vm1124, 1, 0
      %v1189 = vsel %vm1125, 1, 0
      %v1190 = vsel %vm1126, 1, 0
      %v1191 = vsel %vm1127, 1, 0
      %v1192 = vsel %vm1128, 1, 0
      %v1193 = vsel %vm1129, 1, 0
      %v1194 = vsel %vm1130, 1, 0
      %v1195 = vsel %vm1131, 1, 0
      %v1196 = vsel %vm1132, 1, 0
      %v1197 = vsel %vm1133, 1, 0
      %v1198 = vsel %vm1134, 1, 0
      %v1199 = vsel %vm1135, 1, 0
      %v1200 = vsel %vm1136, 1, 0
      %v1201 = vcvt.s32.f32 %v1137
      %v1202 = vcvt.s32.f32 %v1138
      %v1203 = vcvt.s32.f32 %v1139
      %v1204 = vcvt.s32.f32 %v1140
      %v1205 = vcvt.s32.f32 %v1141
      %v1206 = vcvt.s32.f32 %v1142
      %v1207 = vcvt.s32.f32 %v1143
      %v1208 = vcvt.s32.f32 %v1144
      %v1209 = vcvt.s32.f32 %v1145
      %v1210 = vcvt.s32.f32 %v1146
      %v1211 = vcvt.s32.f32 %v1147
      %v1212 = vcvt.s32.f32 %v1148
      %v1213 = vcvt.s32.f32 %v1149
      %v1214 = vcvt.s32.f32 %v1150
      %v1215 = vcvt.s32.f32 %v1151
      %v1216 = vcvt.s32.f32 %v1152
      %v1217 = vcvt.s32.f32 %v1153
      %v1218 = vcvt.s32.f32 %v1154
      %v1219 = vcvt.s32.f32 %v1155
      %v1220 = vcvt.s32.f32 %v1156
      %v1221 = vcvt.s32.f32 %v1157
      %v1222 = vcvt.s32.f32 %v1158
      %v1223 = vcvt.s32.f32 %v1159
      %v1224 = vcvt.s32.f32 %v1160
      %v1225 = vcvt.s32.f32 %v1161
      %v1226 = vcvt.s32.f32 %v1162
      %v1227 = vcvt.s32.f32 %v1163
      %v1228 = vcvt.s32.f32 %v1164
      %v1229 = vcvt.s32.f32 %v1165
      %v1230 = vcvt.s32.f32 %v1166
      %v1231 = vcvt.s32.f32 %v1167
      %v1232 = vcvt.s32.f32 %v1168
      %v1233 = vcvt.s32.f32 %v1169
      %v1234 = vcvt.s32.f32 %v1170
      %v1235 = vcvt.s32.f32 %v1171
      %v1236 = vcvt.s32.f32 %v1172
      %v1237 = vcvt.s32.f32 %v1173
      %v1238 = vcvt.s32.f32 %v1174
      %v1239 = vcvt.s32.f32 %v1175
      %v1240 = vcvt.s32.f32 %v1176
      %v1241 = vcvt.s32.f32 %v1177
      %v1242 = vcvt.s32.f32 %v1178
      %v1243 = vcvt.s32.f32 %v1179
      %v1244 = vcvt.s32.f32 %v1180
      %v1245 = vcvt.s32.f32 %v1181
      %v1246 = vcvt.s32.f32 %v1182
      %v1247 = vcvt.s32.f32 %v1183
      %v1248 = vcvt.s32.f32 %v1184
      %v1249 = vcvt.s32.f32 %v1185
      %v1250 = vcvt.s32.f32 %v1186
      %v1251 = vcvt.s32.f32 %v1187
      %v1252 = vcvt.s32.f32 %v1188
      %v1253 = vcvt.s32.f32 %v1189
      %v1254 = vcvt.s32.f32 %v1190
      %v1255 = vcvt.s32.f32 %v1191
      %v1256 = vcvt.s32.f32 %v1192
      %v1257 = vcvt.s32.f32 %v1193
      %v1258 = vcvt.s32.f32 %v1194
      %v1259 = vcvt.s32.f32 %v1195
      %v1260 = vcvt.s32.f32 %v1196
      %v1261 = vcvt.s32.f32 %v1197
      %v1262 = vcvt.s32.f32 %v1198
      %v1263 = vcvt.s32.f32 %v1199
      %v1264 = vcvt.s32.f32 %v1200
      %vm1265 = vcmp.lt.s32.totalorder %v625, 7
      %vm1266 = vcmp.lt.s32.totalorder %v626, 7
      %vm1267 = vcmp.lt.s32.totalorder %v627, 7
      %vm1268 = vcmp.lt.s32.totalorder %v628, 7
      %vm1269 = vcmp.lt.s32.totalorder %v629, 7
      %vm1270 = vcmp.lt.s32.totalorder %v630, 7
      %vm1271 = vcmp.lt.s32.totalorder %v631, 7
      %vm1272 = vcmp.lt.s32.totalorder %v632, 7
      %vm1273 = vcmp.lt.s32.totalorder %v633, 7
      %vm1274 = vcmp.lt.s32.totalorder %v634, 7
      %vm1275 = vcmp.lt.s32.totalorder %v635, 7
      %vm1276 = vcmp.lt.s32.totalorder %v636, 7
      %vm1277 = vcmp.lt.s32.totalorder %v637, 7
      %vm1278 = vcmp.lt.s32.totalorder %v638, 7
      %vm1279 = vcmp.lt.s32.totalorder %v639, 7
      %vm1280 = vcmp.lt.s32.totalorder %v640, 7
      %vm1281 = vcmp.lt.s32.totalorder %v641, 7
      %vm1282 = vcmp.lt.s32.totalorder %v642, 7
      %vm1283 = vcmp.lt.s32.totalorder %v643, 7
      %vm1284 = vcmp.lt.s32.totalorder %v644, 7
      %vm1285 = vcmp.lt.s32.totalorder %v645, 7
      %vm1286 = vcmp.lt.s32.totalorder %v646, 7
      %vm1287 = vcmp.lt.s32.totalorder %v647, 7
      %vm1288 = vcmp.lt.s32.totalorder %v648, 7
      %vm1289 = vcmp.lt.s32.totalorder %v649, 7
      %vm1290 = vcmp.lt.s32.totalorder %v650, 7
      %vm1291 = vcmp.lt.s32.totalorder %v651, 7
      %vm1292 = vcmp.lt.s32.totalorder %v652, 7
      %vm1293 = vcmp.lt.s32.totalorder %v653, 7
      %vm1294 = vcmp.lt.s32.totalorder %v654, 7
      %vm1295 = vcmp.lt.s32.totalorder %v655, 7
      %vm1296 = vcmp.lt.s32.totalorder %v656, 7
      %vm1297 = vcmp.lt.s32.totalorder %v657, 7
      %vm1298 = vcmp.lt.s32.totalorder %v658, 7
      %vm1299 = vcmp.lt.s32.totalorder %v659, 7
      %vm1300 = vcmp.lt.s32.totalorder %v660, 7
      %vm1301 = vcmp.lt.s32.totalorder %v661, 7
      %vm1302 = vcmp.lt.s32.totalorder %v662, 7
      %vm1303 = vcmp.lt.s32.totalorder %v663, 7
      %vm1304 = vcmp.lt.s32.totalorder %v664, 7
      %vm1305 = vcmp.lt.s32.totalorder %v665, 7
      %vm1306 = vcmp.lt.s32.totalorder %v666, 7
      %vm1307 = vcmp.lt.s32.totalorder %v667, 7
      %vm1308 = vcmp.lt.s32.totalorder %v668, 7
      %vm1309 = vcmp.lt.s32.totalorder %v669, 7
      %vm1310 = vcmp.lt.s32.totalorder %v670, 7
      %vm1311 = vcmp.lt.s32.totalorder %v671, 7
      %vm1312 = vcmp.lt.s32.totalorder %v672, 7
      %vm1313 = vcmp.lt.s32.totalorder %v673, 7
      %vm1314 = vcmp.lt.s32.totalorder %v674, 7
      %vm1315 = vcmp.lt.s32.totalorder %v675, 7
      %vm1316 = vcmp.lt.s32.totalorder %v676, 7
      %vm1317 = vcmp.lt.s32.totalorder %v677, 7
      %vm1318 = vcmp.lt.s32.totalorder %v678, 7
      %vm1319 = vcmp.lt.s32.totalorder %v679, 7
      %vm1320 = vcmp.lt.s32.totalorder %v680, 7
      %vm1321 = vcmp.lt.s32.totalorder %v681, 7
      %vm1322 = vcmp.lt.s32.totalorder %v682, 7
      %vm1323 = vcmp.lt.s32.totalorder %v683, 7
      %vm1324 = vcmp.lt.s32.totalorder %v684, 7
      %vm1325 = vcmp.lt.s32.totalorder %v685, 7
      %vm1326 = vcmp.lt.s32.totalorder %v686, 7
      %vm1327 = vcmp.lt.s32.totalorder %v687, 7
      %vm1328 = vcmp.lt.s32.totalorder %v688, 7
      %v1329 = vsel %vm1265, 1, 0
      %v1330 = vsel %vm1266, 1, 0
      %v1331 = vsel %vm1267, 1, 0
      %v1332 = vsel %vm1268, 1, 0
      %v1333 = vsel %vm1269, 1, 0
      %v1334 = vsel %vm1270, 1, 0
      %v1335 = vsel %vm1271, 1, 0
      %v1336 = vsel %vm1272, 1, 0
      %v1337 = vsel %vm1273, 1, 0
      %v1338 = vsel %vm1274, 1, 0
      %v1339 = vsel %vm1275, 1, 0
      %v1340 = vsel %vm1276, 1, 0
      %v1341 = vsel %vm1277, 1, 0
      %v1342 = vsel %vm1278, 1, 0
      %v1343 = vsel %vm1279, 1, 0
      %v1344 = vsel %vm1280, 1, 0
      %v1345 = vsel %vm1281, 1, 0
      %v1346 = vsel %vm1282, 1, 0
      %v1347 = vsel %vm1283, 1, 0
      %v1348 = vsel %vm1284, 1, 0
      %v1349 = vsel %vm1285, 1, 0
      %v1350 = vsel %vm1286, 1, 0
      %v1351 = vsel %vm1287, 1, 0
      %v1352 = vsel %vm1288, 1, 0
      %v1353 = vsel %vm1289, 1, 0
      %v1354 = vsel %vm1290, 1, 0
      %v1355 = vsel %vm1291, 1, 0
      %v1356 = vsel %vm1292, 1, 0
      %v1357 = vsel %vm1293, 1, 0
      %v1358 = vsel %vm1294, 1, 0
      %v1359 = vsel %vm1295, 1, 0
      %v1360 = vsel %vm1296, 1, 0
      %v1361 = vsel %vm1297, 1, 0
      %v1362 = vsel %vm1298, 1, 0
      %v1363 = vsel %vm1299, 1, 0
      %v1364 = vsel %vm1300, 1, 0
      %v1365 = vsel %vm1301, 1, 0
      %v1366 = vsel %vm1302, 1, 0
      %v1367 = vsel %vm1303, 1, 0
      %v1368 = vsel %vm1304, 1, 0
      %v1369 = vsel %vm1305, 1, 0
      %v1370 = vsel %vm1306, 1, 0
      %v1371 = vsel %vm1307, 1, 0
      %v1372 = vsel %vm1308, 1, 0
      %v1373 = vsel %vm1309, 1, 0
      %v1374 = vsel %vm1310, 1, 0
      %v1375 = vsel %vm1311, 1, 0
      %v1376 = vsel %vm1312, 1, 0
      %v1377 = vsel %vm1313, 1, 0
      %v1378 = vsel %vm1314, 1, 0
      %v1379 = vsel %vm1315, 1, 0
      %v1380 = vsel %vm1316, 1, 0
      %v1381 = vsel %vm1317, 1, 0
      %v1382 = vsel %vm1318, 1, 0
      %v1383 = vsel %vm1319, 1, 0
      %v1384 = vsel %vm1320, 1, 0
      %v1385 = vsel %vm1321, 1, 0
      %v1386 = vsel %vm1322, 1, 0
      %v1387 = vsel %vm1323, 1, 0
      %v1388 = vsel %vm1324, 1, 0
      %v1389 = vsel %vm1325, 1, 0
      %v1390 = vsel %vm1326, 1, 0
      %v1391 = vsel %vm1327, 1, 0
      %v1392 = vsel %vm1328, 1, 0
      %v1393 = vcvt.s32.f32 %v1329
      %v1394 = vcvt.s32.f32 %v1330
      %v1395 = vcvt.s32.f32 %v1331
      %v1396 = vcvt.s32.f32 %v1332
      %v1397 = vcvt.s32.f32 %v1333
      %v1398 = vcvt.s32.f32 %v1334
      %v1399 = vcvt.s32.f32 %v1335
      %v1400 = vcvt.s32.f32 %v1336
      %v1401 = vcvt.s32.f32 %v1337
      %v1402 = vcvt.s32.f32 %v1338
      %v1403 = vcvt.s32.f32 %v1339
      %v1404 = vcvt.s32.f32 %v1340
      %v1405 = vcvt.s32.f32 %v1341
      %v1406 = vcvt.s32.f32 %v1342
      %v1407 = vcvt.s32.f32 %v1343
      %v1408 = vcvt.s32.f32 %v1344
      %v1409 = vcvt.s32.f32 %v1345
      %v1410 = vcvt.s32.f32 %v1346
      %v1411 = vcvt.s32.f32 %v1347
      %v1412 = vcvt.s32.f32 %v1348
      %v1413 = vcvt.s32.f32 %v1349
      %v1414 = vcvt.s32.f32 %v1350
      %v1415 = vcvt.s32.f32 %v1351
      %v1416 = vcvt.s32.f32 %v1352
      %v1417 = vcvt.s32.f32 %v1353
      %v1418 = vcvt.s32.f32 %v1354
      %v1419 = vcvt.s32.f32 %v1355
      %v1420 = vcvt.s32.f32 %v1356
      %v1421 = vcvt.s32.f32 %v1357
      %v1422 = vcvt.s32.f32 %v1358
      %v1423 = vcvt.s32.f32 %v1359
      %v1424 = vcvt.s32.f32 %v1360
      %v1425 = vcvt.s32.f32 %v1361
      %v1426 = vcvt.s32.f32 %v1362
      %v1427 = vcvt.s32.f32 %v1363
      %v1428 = vcvt.s32.f32 %v1364
      %v1429 = vcvt.s32.f32 %v1365
      %v1430 = vcvt.s32.f32 %v1366
      %v1431 = vcvt.s32.f32 %v1367
      %v1432 = vcvt.s32.f32 %v1368
      %v1433 = vcvt.s32.f32 %v1369
      %v1434 = vcvt.s32.f32 %v1370
      %v1435 = vcvt.s32.f32 %v1371
      %v1436 = vcvt.s32.f32 %v1372
      %v1437 = vcvt.s32.f32 %v1373
      %v1438 = vcvt.s32.f32 %v1374
      %v1439 = vcvt.s32.f32 %v1375
      %v1440 = vcvt.s32.f32 %v1376
      %v1441 = vcvt.s32.f32 %v1377
      %v1442 = vcvt.s32.f32 %v1378
      %v1443 = vcvt.s32.f32 %v1379
      %v1444 = vcvt.s32.f32 %v1380
      %v1445 = vcvt.s32.f32 %v1381
      %v1446 = vcvt.s32.f32 %v1382
      %v1447 = vcvt.s32.f32 %v1383
      %v1448 = vcvt.s32.f32 %v1384
      %v1449 = vcvt.s32.f32 %v1385
      %v1450 = vcvt.s32.f32 %v1386
      %v1451 = vcvt.s32.f32 %v1387
      %v1452 = vcvt.s32.f32 %v1388
      %v1453 = vcvt.s32.f32 %v1389
      %v1454 = vcvt.s32.f32 %v1390
      %v1455 = vcvt.s32.f32 %v1391
      %v1456 = vcvt.s32.f32 %v1392
      %v1457 = vmul.f32 %v455, %v817
      %v1458 = vmul.f32 %v392, %v818
      %v1459 = vmul.f32 %v393, %v819
      %v1460 = vmul.f32 %v394, %v820
      %v1461 = vmul.f32 %v395, %v821
      %v1462 = vmul.f32 %v396, %v822
      %v1463 = vmul.f32 %v397, %v823
      %v1464 = vmul.f32 %v398, %v824
      %v1465 = vmul.f32 %v399, %v825
      %v1466 = vmul.f32 %v400, %v826
      %v1467 = vmul.f32 %v401, %v827
      %v1468 = vmul.f32 %v402, %v828
      %v1469 = vmul.f32 %v403, %v829
      %v1470 = vmul.f32 %v404, %v830
      %v1471 = vmul.f32 %v405, %v831
      %v1472 = vmul.f32 %v406, %v832
      %v1473 = vmul.f32 %v407, %v833
      %v1474 = vmul.f32 %v408, %v834
      %v1475 = vmul.f32 %v409, %v835
      %v1476 = vmul.f32 %v410, %v836
      %v1477 = vmul.f32 %v411, %v837
      %v1478 = vmul.f32 %v412, %v838
      %v1479 = vmul.f32 %v413, %v839
      %v1480 = vmul.f32 %v414, %v840
      %v1481 = vmul.f32 %v415, %v841
      %v1482 = vmul.f32 %v416, %v842
      %v1483 = vmul.f32 %v417, %v843
      %v1484 = vmul.f32 %v418, %v844
      %v1485 = vmul.f32 %v419, %v845
      %v1486 = vmul.f32 %v420, %v846
      %v1487 = vmul.f32 %v421, %v847
      %v1488 = vmul.f32 %v422, %v848
      %v1489 = vmul.f32 %v423, %v849
      %v1490 = vmul.f32 %v424, %v850
      %v1491 = vmul.f32 %v425, %v851
      %v1492 = vmul.f32 %v426, %v852
      %v1493 = vmul.f32 %v427, %v853
      %v1494 = vmul.f32 %v428, %v854
      %v1495 = vmul.f32 %v429, %v855
      %v1496 = vmul.f32 %v430, %v856
      %v1497 = vmul.f32 %v431, %v857
      %v1498 = vmul.f32 %v432, %v858
      %v1499 = vmul.f32 %v433, %v859
      %v1500 = vmul.f32 %v434, %v860
      %v1501 = vmul.f32 %v435, %v861
      %v1502 = vmul.f32 %v436, %v862
      %v1503 = vmul.f32 %v437, %v863
      %v1504 = vmul.f32 %v438, %v864
      %v1505 = vmul.f32 %v439, %v865
      %v1506 = vmul.f32 %v440, %v866
      %v1507 = vmul.f32 %v441, %v867
      %v1508 = vmul.f32 %v442, %v868
      %v1509 = vmul.f32 %v443, %v869
      %v1510 = vmul.f32 %v444, %v870
      %v1511 = vmul.f32 %v445, %v871
      %v1512 = vmul.f32 %v446, %v872
      %v1513 = vmul.f32 %v447, %v873
      %v1514 = vmul.f32 %v448, %v874
      %v1515 = vmul.f32 %v449, %v875
      %v1516 = vmul.f32 %v450, %v876
      %v1517 = vmul.f32 %v451, %v877
      %v1518 = vmul.f32 %v452, %v878
      %v1519 = vmul.f32 %v453, %v879
      %v1520 = vmul.f32 %v454, %v880
      %v1521 = vmul.f32 %v393, %v1009
      %v1522 = vmul.f32 %v394, %v1010
      %v1523 = vmul.f32 %v395, %v1011
      %v1524 = vmul.f32 %v396, %v1012
      %v1525 = vmul.f32 %v397, %v1013
      %v1526 = vmul.f32 %v398, %v1014
      %v1527 = vmul.f32 %v399, %v1015
      %v1528 = vmul.f32 %v400, %v1016
      %v1529 = vmul.f32 %v401, %v1017
      %v1530 = vmul.f32 %v402, %v1018
      %v1531 = vmul.f32 %v403, %v1019
      %v1532 = vmul.f32 %v404, %v1020
      %v1533 = vmul.f32 %v405, %v1021
      %v1534 = vmul.f32 %v406, %v1022
      %v1535 = vmul.f32 %v407, %v1023
      %v1536 = vmul.f32 %v408, %v1024
      %v1537 = vmul.f32 %v409, %v1025
      %v1538 = vmul.f32 %v410, %v1026
      %v1539 = vmul.f32 %v411, %v1027
      %v1540 = vmul.f32 %v412, %v1028
      %v1541 = vmul.f32 %v413, %v1029
      %v1542 = vmul.f32 %v414, %v1030
      %v1543 = vmul.f32 %v415, %v1031
      %v1544 = vmul.f32 %v416, %v1032
      %v1545 = vmul.f32 %v417, %v1033
      %v1546 = vmul.f32 %v418, %v1034
      %v1547 = vmul.f32 %v419, %v1035
      %v1548 = vmul.f32 %v420, %v1036
      %v1549 = vmul.f32 %v421, %v1037
      %v1550 = vmul.f32 %v422, %v1038
      %v1551 = vmul.f32 %v423, %v1039
      %v1552 = vmul.f32 %v424, %v1040
      %v1553 = vmul.f32 %v425, %v1041
      %v1554 = vmul.f32 %v426, %v1042
      %v1555 = vmul.f32 %v427, %v1043
      %v1556 = vmul.f32 %v428, %v1044
      %v1557 = vmul.f32 %v429, %v1045
      %v1558 = vmul.f32 %v430, %v1046
      %v1559 = vmul.f32 %v431, %v1047
      %v1560 = vmul.f32 %v432, %v1048
      %v1561 = vmul.f32 %v433, %v1049
      %v1562 = vmul.f32 %v434, %v1050
      %v1563 = vmul.f32 %v435, %v1051
      %v1564 = vmul.f32 %v436, %v1052
      %v1565 = vmul.f32 %v437, %v1053
      %v1566 = vmul.f32 %v438, %v1054
      %v1567 = vmul.f32 %v439, %v1055
      %v1568 = vmul.f32 %v440, %v1056
      %v1569 = vmul.f32 %v441, %v1057
      %v1570 = vmul.f32 %v442, %v1058
      %v1571 = vmul.f32 %v443, %v1059
      %v1572 = vmul.f32 %v444, %v1060
      %v1573 = vmul.f32 %v445, %v1061
      %v1574 = vmul.f32 %v446, %v1062
      %v1575 = vmul.f32 %v447, %v1063
      %v1576 = vmul.f32 %v448, %v1064
      %v1577 = vmul.f32 %v449, %v1065
      %v1578 = vmul.f32 %v450, %v1066
      %v1579 = vmul.f32 %v451, %v1067
      %v1580 = vmul.f32 %v452, %v1068
      %v1581 = vmul.f32 %v453, %v1069
      %v1582 = vmul.f32 %v454, %v1070
      %v1583 = vmul.f32 %v455, %v1071
      %v1584 = vmul.f32 %v392, %v1072
      %v1585 = vrot.slane %v392, 7
      %v1586 = vrot.slane %v393, 7
      %v1587 = vrot.slane %v394, 7
      %v1588 = vrot.slane %v395, 7
      %v1589 = vrot.slane %v396, 7
      %v1590 = vrot.slane %v397, 7
      %v1591 = vrot.slane %v398, 7
      %v1592 = vrot.slane %v399, 7
      %v1593 = vrot.slane %v400, 7
      %v1594 = vrot.slane %v401, 7
      %v1595 = vrot.slane %v402, 7
      %v1596 = vrot.slane %v403, 7
      %v1597 = vrot.slane %v404, 7
      %v1598 = vrot.slane %v405, 7
      %v1599 = vrot.slane %v406, 7
      %v1600 = vrot.slane %v407, 7
      %v1601 = vrot.slane %v408, 7
      %v1602 = vrot.slane %v409, 7
      %v1603 = vrot.slane %v410, 7
      %v1604 = vrot.slane %v411, 7
      %v1605 = vrot.slane %v412, 7
      %v1606 = vrot.slane %v413, 7
      %v1607 = vrot.slane %v414, 7
      %v1608 = vrot.slane %v415, 7
      %v1609 = vrot.slane %v416, 7
      %v1610 = vrot.slane %v417, 7
      %v1611 = vrot.slane %v418, 7
      %v1612 = vrot.slane %v419, 7
      %v1613 = vrot.slane %v420, 7
      %v1614 = vrot.slane %v421, 7
      %v1615 = vrot.slane %v422, 7
      %v1616 = vrot.slane %v423, 7
      %v1617 = vrot.slane %v424, 7
      %v1618 = vrot.slane %v425, 7
      %v1619 = vrot.slane %v426, 7
      %v1620 = vrot.slane %v427, 7
      %v1621 = vrot.slane %v428, 7
      %v1622 = vrot.slane %v429, 7
      %v1623 = vrot.slane %v430, 7
      %v1624 = vrot.slane %v431, 7
      %v1625 = vrot.slane %v432, 7
      %v1626 = vrot.slane %v433, 7
      %v1627 = vrot.slane %v434, 7
      %v1628 = vrot.slane %v435, 7
      %v1629 = vrot.slane %v436, 7
      %v1630 = vrot.slane %v437, 7
      %v1631 = vrot.slane %v438, 7
      %v1632 = vrot.slane %v439, 7
      %v1633 = vrot.slane %v440, 7
      %v1634 = vrot.slane %v441, 7
      %v1635 = vrot.slane %v442, 7
      %v1636 = vrot.slane %v443, 7
      %v1637 = vrot.slane %v444, 7
      %v1638 = vrot.slane %v445, 7
      %v1639 = vrot.slane %v446, 7
      %v1640 = vrot.slane %v447, 7
      %v1641 = vrot.slane %v448, 7
      %v1642 = vrot.slane %v449, 7
      %v1643 = vrot.slane %v450, 7
      %v1644 = vrot.slane %v451, 7
      %v1645 = vrot.slane %v452, 7
      %v1646 = vrot.slane %v453, 7
      %v1647 = vrot.slane %v454, 7
      %v1648 = vrot.slane %v455, 7
      %vm1649 = vcmp.lt.s32.totalorder %v497, 1
      %v1650 = vsel %vm1649, %v1647, %v1648
      %v1651 = vsel %vm1649, %v1646, %v1647
      %v1652 = vsel %vm1649, %v1645, %v1646
      %v1653 = vsel %vm1649, %v1644, %v1645
      %v1654 = vsel %vm1649, %v1643, %v1644
      %v1655 = vsel %vm1649, %v1642, %v1643
      %v1656 = vsel %vm1649, %v1641, %v1642
      %v1657 = vsel %vm1649, %v1640, %v1641
      %v1658 = vsel %vm1649, %v1639, %v1640
      %v1659 = vsel %vm1649, %v1638, %v1639
      %v1660 = vsel %vm1649, %v1637, %v1638
      %v1661 = vsel %vm1649, %v1636, %v1637
      %v1662 = vsel %vm1649, %v1635, %v1636
      %v1663 = vsel %vm1649, %v1634, %v1635
      %v1664 = vsel %vm1649, %v1633, %v1634
      %v1665 = vsel %vm1649, %v1632, %v1633
      %v1666 = vsel %vm1649, %v1631, %v1632
      %v1667 = vsel %vm1649, %v1630, %v1631
      %v1668 = vsel %vm1649, %v1629, %v1630
      %v1669 = vsel %vm1649, %v1628, %v1629
      %v1670 = vsel %vm1649, %v1627, %v1628
      %v1671 = vsel %vm1649, %v1626, %v1627
      %v1672 = vsel %vm1649, %v1625, %v1626
      %v1673 = vsel %vm1649, %v1624, %v1625
      %v1674 = vsel %vm1649, %v1623, %v1624
      %v1675 = vsel %vm1649, %v1622, %v1623
      %v1676 = vsel %vm1649, %v1621, %v1622
      %v1677 = vsel %vm1649, %v1620, %v1621
      %v1678 = vsel %vm1649, %v1619, %v1620
      %v1679 = vsel %vm1649, %v1618, %v1619
      %v1680 = vsel %vm1649, %v1617, %v1618
      %v1681 = vsel %vm1649, %v1616, %v1617
      %v1682 = vsel %vm1649, %v1615, %v1616
      %v1683 = vsel %vm1649, %v1614, %v1615
      %v1684 = vsel %vm1649, %v1613, %v1614
      %v1685 = vsel %vm1649, %v1612, %v1613
      %v1686 = vsel %vm1649, %v1611, %v1612
      %v1687 = vsel %vm1649, %v1610, %v1611
      %v1688 = vsel %vm1649, %v1609, %v1610
      %v1689 = vsel %vm1649, %v1608, %v1609
      %v1690 = vsel %vm1649, %v1607, %v1608
      %v1691 = vsel %vm1649, %v1606, %v1607
      %v1692 = vsel %vm1649, %v1605, %v1606
      %v1693 = vsel %vm1649, %v1604, %v1605
      %v1694 = vsel %vm1649, %v1603, %v1604
      %v1695 = vsel %vm1649, %v1602, %v1603
      %v1696 = vsel %vm1649, %v1601, %v1602
      %v1697 = vsel %vm1649, %v1600, %v1601
      %v1698 = vsel %vm1649, %v1599, %v1600
      %v1699 = vsel %vm1649, %v1598, %v1599
      %v1700 = vsel %vm1649, %v1597, %v1598
      %v1701 = vsel %vm1649, %v1596, %v1597
      %v1702 = vsel %vm1649, %v1595, %v1596
      %v1703 = vsel %vm1649, %v1594, %v1595
      %v1704 = vsel %vm1649, %v1593, %v1594
      %v1705 = vsel %vm1649, %v1592, %v1593
      %v1706 = vsel %vm1649, %v1591, %v1592
      %v1707 = vsel %vm1649, %v1590, %v1591
      %v1708 = vsel %vm1649, %v1589, %v1590
      %v1709 = vsel %vm1649, %v1588, %v1589
      %v1710 = vsel %vm1649, %v1587, %v1588
      %v1711 = vsel %vm1649, %v1586, %v1587
      %v1712 = vsel %vm1649, %v1585, %v1586
      %v1713 = vsel %vm1649, %v1648, %v1585
      %v1714 = vmul.f32 %v1713, %v1201
      %v1715 = vmul.f32 %v1712, %v1202
      %v1716 = vmul.f32 %v1711, %v1203
      %v1717 = vmul.f32 %v1710, %v1204
      %v1718 = vmul.f32 %v1709, %v1205
      %v1719 = vmul.f32 %v1708, %v1206
      %v1720 = vmul.f32 %v1707, %v1207
      %v1721 = vmul.f32 %v1706, %v1208
      %v1722 = vmul.f32 %v1705, %v1209
      %v1723 = vmul.f32 %v1704, %v1210
      %v1724 = vmul.f32 %v1703, %v1211
      %v1725 = vmul.f32 %v1702, %v1212
      %v1726 = vmul.f32 %v1701, %v1213
      %v1727 = vmul.f32 %v1700, %v1214
      %v1728 = vmul.f32 %v1699, %v1215
      %v1729 = vmul.f32 %v1698, %v1216
      %v1730 = vmul.f32 %v1697, %v1217
      %v1731 = vmul.f32 %v1696, %v1218
      %v1732 = vmul.f32 %v1695, %v1219
      %v1733 = vmul.f32 %v1694, %v1220
      %v1734 = vmul.f32 %v1693, %v1221
      %v1735 = vmul.f32 %v1692, %v1222
      %v1736 = vmul.f32 %v1691, %v1223
      %v1737 = vmul.f32 %v1690, %v1224
      %v1738 = vmul.f32 %v1689, %v1225
      %v1739 = vmul.f32 %v1688, %v1226
      %v1740 = vmul.f32 %v1687, %v1227
      %v1741 = vmul.f32 %v1686, %v1228
      %v1742 = vmul.f32 %v1685, %v1229
      %v1743 = vmul.f32 %v1684, %v1230
      %v1744 = vmul.f32 %v1683, %v1231
      %v1745 = vmul.f32 %v1682, %v1232
      %v1746 = vmul.f32 %v1681, %v1233
      %v1747 = vmul.f32 %v1680, %v1234
      %v1748 = vmul.f32 %v1679, %v1235
      %v1749 = vmul.f32 %v1678, %v1236
      %v1750 = vmul.f32 %v1677, %v1237
      %v1751 = vmul.f32 %v1676, %v1238
      %v1752 = vmul.f32 %v1675, %v1239
      %v1753 = vmul.f32 %v1674, %v1240
      %v1754 = vmul.f32 %v1673, %v1241
      %v1755 = vmul.f32 %v1672, %v1242
      %v1756 = vmul.f32 %v1671, %v1243
      %v1757 = vmul.f32 %v1670, %v1244
      %v1758 = vmul.f32 %v1669, %v1245
      %v1759 = vmul.f32 %v1668, %v1246
      %v1760 = vmul.f32 %v1667, %v1247
      %v1761 = vmul.f32 %v1666, %v1248
      %v1762 = vmul.f32 %v1665, %v1249
      %v1763 = vmul.f32 %v1664, %v1250
      %v1764 = vmul.f32 %v1663, %v1251
      %v1765 = vmul.f32 %v1662, %v1252
      %v1766 = vmul.f32 %v1661, %v1253
      %v1767 = vmul.f32 %v1660, %v1254
      %v1768 = vmul.f32 %v1659, %v1255
      %v1769 = vmul.f32 %v1658, %v1256
      %v1770 = vmul.f32 %v1657, %v1257
      %v1771 = vmul.f32 %v1656, %v1258
      %v1772 = vmul.f32 %v1655, %v1259
      %v1773 = vmul.f32 %v1654, %v1260
      %v1774 = vmul.f32 %v1653, %v1261
      %v1775 = vmul.f32 %v1652, %v1262
      %v1776 = vmul.f32 %v1651, %v1263
      %v1777 = vmul.f32 %v1650, %v1264
      %v1778 = vrot.slane %v392, 1
      %v1779 = vrot.slane %v393, 1
      %v1780 = vrot.slane %v394, 1
      %v1781 = vrot.slane %v395, 1
      %v1782 = vrot.slane %v396, 1
      %v1783 = vrot.slane %v397, 1
      %v1784 = vrot.slane %v398, 1
      %v1785 = vrot.slane %v399, 1
      %v1786 = vrot.slane %v400, 1
      %v1787 = vrot.slane %v401, 1
      %v1788 = vrot.slane %v402, 1
      %v1789 = vrot.slane %v403, 1
      %v1790 = vrot.slane %v404, 1
      %v1791 = vrot.slane %v405, 1
      %v1792 = vrot.slane %v406, 1
      %v1793 = vrot.slane %v407, 1
      %v1794 = vrot.slane %v408, 1
      %v1795 = vrot.slane %v409, 1
      %v1796 = vrot.slane %v410, 1
      %v1797 = vrot.slane %v411, 1
      %v1798 = vrot.slane %v412, 1
      %v1799 = vrot.slane %v413, 1
      %v1800 = vrot.slane %v414, 1
      %v1801 = vrot.slane %v415, 1
      %v1802 = vrot.slane %v416, 1
      %v1803 = vrot.slane %v417, 1
      %v1804 = vrot.slane %v418, 1
      %v1805 = vrot.slane %v419, 1
      %v1806 = vrot.slane %v420, 1
      %v1807 = vrot.slane %v421, 1
      %v1808 = vrot.slane %v422, 1
      %v1809 = vrot.slane %v423, 1
      %v1810 = vrot.slane %v424, 1
      %v1811 = vrot.slane %v425, 1
      %v1812 = vrot.slane %v426, 1
      %v1813 = vrot.slane %v427, 1
      %v1814 = vrot.slane %v428, 1
      %v1815 = vrot.slane %v429, 1
      %v1816 = vrot.slane %v430, 1
      %v1817 = vrot.slane %v431, 1
      %v1818 = vrot.slane %v432, 1
      %v1819 = vrot.slane %v433, 1
      %v1820 = vrot.slane %v434, 1
      %v1821 = vrot.slane %v435, 1
      %v1822 = vrot.slane %v436, 1
      %v1823 = vrot.slane %v437, 1
      %v1824 = vrot.slane %v438, 1
      %v1825 = vrot.slane %v439, 1
      %v1826 = vrot.slane %v440, 1
      %v1827 = vrot.slane %v441, 1
      %v1828 = vrot.slane %v442, 1
      %v1829 = vrot.slane %v443, 1
      %v1830 = vrot.slane %v444, 1
      %v1831 = vrot.slane %v445, 1
      %v1832 = vrot.slane %v446, 1
      %v1833 = vrot.slane %v447, 1
      %v1834 = vrot.slane %v448, 1
      %v1835 = vrot.slane %v449, 1
      %v1836 = vrot.slane %v450, 1
      %v1837 = vrot.slane %v451, 1
      %v1838 = vrot.slane %v452, 1
      %v1839 = vrot.slane %v453, 1
      %v1840 = vrot.slane %v454, 1
      %v1841 = vrot.slane %v455, 1
      %vm1842 = vcmp.lt.s32.totalorder %v497, 7
      %v1843 = vsel %vm1842, %v1840, %v1841
      %v1844 = vsel %vm1842, %v1839, %v1840
      %v1845 = vsel %vm1842, %v1838, %v1839
      %v1846 = vsel %vm1842, %v1837, %v1838
      %v1847 = vsel %vm1842, %v1836, %v1837
      %v1848 = vsel %vm1842, %v1835, %v1836
      %v1849 = vsel %vm1842, %v1834, %v1835
      %v1850 = vsel %vm1842, %v1833, %v1834
      %v1851 = vsel %vm1842, %v1832, %v1833
      %v1852 = vsel %vm1842, %v1831, %v1832
      %v1853 = vsel %vm1842, %v1830, %v1831
      %v1854 = vsel %vm1842, %v1829, %v1830
      %v1855 = vsel %vm1842, %v1828, %v1829
      %v1856 = vsel %vm1842, %v1827, %v1828
      %v1857 = vsel %vm1842, %v1826, %v1827
      %v1858 = vsel %vm1842, %v1825, %v1826
      %v1859 = vsel %vm1842, %v1824, %v1825
      %v1860 = vsel %vm1842, %v1823, %v1824
      %v1861 = vsel %vm1842, %v1822, %v1823
      %v1862 = vsel %vm1842, %v1821, %v1822
      %v1863 = vsel %vm1842, %v1820, %v1821
      %v1864 = vsel %vm1842, %v1819, %v1820
      %v1865 = vsel %vm1842, %v1818, %v1819
      %v1866 = vsel %vm1842, %v1817, %v1818
      %v1867 = vsel %vm1842, %v1816, %v1817
      %v1868 = vsel %vm1842, %v1815, %v1816
      %v1869 = vsel %vm1842, %v1814, %v1815
      %v1870 = vsel %vm1842, %v1813, %v1814
      %v1871 = vsel %vm1842, %v1812, %v1813
      %v1872 = vsel %vm1842, %v1811, %v1812
      %v1873 = vsel %vm1842, %v1810, %v1811
      %v1874 = vsel %vm1842, %v1809, %v1810
      %v1875 = vsel %vm1842, %v1808, %v1809
      %v1876 = vsel %vm1842, %v1807, %v1808
      %v1877 = vsel %vm1842, %v1806, %v1807
      %v1878 = vsel %vm1842, %v1805, %v1806
      %v1879 = vsel %vm1842, %v1804, %v1805
      %v1880 = vsel %vm1842, %v1803, %v1804
      %v1881 = vsel %vm1842, %v1802, %v1803
      %v1882 = vsel %vm1842, %v1801, %v1802
      %v1883 = vsel %vm1842, %v1800, %v1801
      %v1884 = vsel %vm1842, %v1799, %v1800
      %v1885 = vsel %vm1842, %v1798, %v1799
      %v1886 = vsel %vm1842, %v1797, %v1798
      %v1887 = vsel %vm1842, %v1796, %v1797
      %v1888 = vsel %vm1842, %v1795, %v1796
      %v1889 = vsel %vm1842, %v1794, %v1795
      %v1890 = vsel %vm1842, %v1793, %v1794
      %v1891 = vsel %vm1842, %v1792, %v1793
      %v1892 = vsel %vm1842, %v1791, %v1792
      %v1893 = vsel %vm1842, %v1790, %v1791
      %v1894 = vsel %vm1842, %v1789, %v1790
      %v1895 = vsel %vm1842, %v1788, %v1789
      %v1896 = vsel %vm1842, %v1787, %v1788
      %v1897 = vsel %vm1842, %v1786, %v1787
      %v1898 = vsel %vm1842, %v1785, %v1786
      %v1899 = vsel %vm1842, %v1784, %v1785
      %v1900 = vsel %vm1842, %v1783, %v1784
      %v1901 = vsel %vm1842, %v1782, %v1783
      %v1902 = vsel %vm1842, %v1781, %v1782
      %v1903 = vsel %vm1842, %v1780, %v1781
      %v1904 = vsel %vm1842, %v1779, %v1780
      %v1905 = vsel %vm1842, %v1778, %v1779
      %v1906 = vsel %vm1842, %v1841, %v1778
      %v1907 = vmul.f32 %v1905, %v1393
      %v1908 = vmul.f32 %v1904, %v1394
      %v1909 = vmul.f32 %v1903, %v1395
      %v1910 = vmul.f32 %v1902, %v1396
      %v1911 = vmul.f32 %v1901, %v1397
      %v1912 = vmul.f32 %v1900, %v1398
      %v1913 = vmul.f32 %v1899, %v1399
      %v1914 = vmul.f32 %v1898, %v1400
      %v1915 = vmul.f32 %v1897, %v1401
      %v1916 = vmul.f32 %v1896, %v1402
      %v1917 = vmul.f32 %v1895, %v1403
      %v1918 = vmul.f32 %v1894, %v1404
      %v1919 = vmul.f32 %v1893, %v1405
      %v1920 = vmul.f32 %v1892, %v1406
      %v1921 = vmul.f32 %v1891, %v1407
      %v1922 = vmul.f32 %v1890, %v1408
      %v1923 = vmul.f32 %v1889, %v1409
      %v1924 = vmul.f32 %v1888, %v1410
      %v1925 = vmul.f32 %v1887, %v1411
      %v1926 = vmul.f32 %v1886, %v1412
      %v1927 = vmul.f32 %v1885, %v1413
      %v1928 = vmul.f32 %v1884, %v1414
      %v1929 = vmul.f32 %v1883, %v1415
      %v1930 = vmul.f32 %v1882, %v1416
      %v1931 = vmul.f32 %v1881, %v1417
      %v1932 = vmul.f32 %v1880, %v1418
      %v1933 = vmul.f32 %v1879, %v1419
      %v1934 = vmul.f32 %v1878, %v1420
      %v1935 = vmul.f32 %v1877, %v1421
      %v1936 = vmul.f32 %v1876, %v1422
      %v1937 = vmul.f32 %v1875, %v1423
      %v1938 = vmul.f32 %v1874, %v1424
      %v1939 = vmul.f32 %v1873, %v1425
      %v1940 = vmul.f32 %v1872, %v1426
      %v1941 = vmul.f32 %v1871, %v1427
      %v1942 = vmul.f32 %v1870, %v1428
      %v1943 = vmul.f32 %v1869, %v1429
      %v1944 = vmul.f32 %v1868, %v1430
      %v1945 = vmul.f32 %v1867, %v1431
      %v1946 = vmul.f32 %v1866, %v1432
      %v1947 = vmul.f32 %v1865, %v1433
      %v1948 = vmul.f32 %v1864, %v1434
      %v1949 = vmul.f32 %v1863, %v1435
      %v1950 = vmul.f32 %v1862, %v1436
      %v1951 = vmul.f32 %v1861, %v1437
      %v1952 = vmul.f32 %v1860, %v1438
      %v1953 = vmul.f32 %v1859, %v1439
      %v1954 = vmul.f32 %v1858, %v1440
      %v1955 = vmul.f32 %v1857, %v1441
      %v1956 = vmul.f32 %v1856, %v1442
      %v1957 = vmul.f32 %v1855, %v1443
      %v1958 = vmul.f32 %v1854, %v1444
      %v1959 = vmul.f32 %v1853, %v1445
      %v1960 = vmul.f32 %v1852, %v1446
      %v1961 = vmul.f32 %v1851, %v1447
      %v1962 = vmul.f32 %v1850, %v1448
      %v1963 = vmul.f32 %v1849, %v1449
      %v1964 = vmul.f32 %v1848, %v1450
      %v1965 = vmul.f32 %v1847, %v1451
      %v1966 = vmul.f32 %v1846, %v1452
      %v1967 = vmul.f32 %v1845, %v1453
      %v1968 = vmul.f32 %v1844, %v1454
      %v1969 = vmul.f32 %v1843, %v1455
      %v1970 = vmul.f32 %v1906, %v1456
      %v1971 = vld [vmem:[%s3] sm:$0xf]
      %s1972 = scalar_lea.vmem %s3, 4
      %v1973 = vld [vmem:[%s1972] sm:$0xf]
      %vm1974 = vcmask 31744
      %v1976 = vsel %vm1974, %v392, 0
      %v1979 = vsel %vm1974, %v393, 0
      %v1982 = vsel %vm1974, %v394, 0
      %v1985 = vsel %vm1974, %v395, 0
      %v1988 = vsel %vm1974, %v396, 0
      %v1991 = vsel %vm1974, %v397, 0
      %v1994 = vsel %vm1974, %v398, 0
      %v1997 = vsel %vm1974, %v399, 0
      %v2000 = vsel %vm1974, %v400, 0
      %v2003 = vsel %vm1974, %v401, 0
      %v2006 = vsel %vm1974, %v402, 0
      %v2009 = vsel %vm1974, %v403, 0
      %v2012 = vsel %vm1974, %v404, 0
      %v2015 = vsel %vm1974, %v405, 0
      %v2018 = vsel %vm1974, %v406, 0
      %v2021 = vsel %vm1974, %v407, 0
      %v2024 = vsel %vm1974, %v408, 0
      %v2027 = vsel %vm1974, %v409, 0
      %v2030 = vsel %vm1974, %v410, 0
      %v2033 = vsel %vm1974, %v411, 0
      %v2036 = vsel %vm1974, %v412, 0
      %v2039 = vsel %vm1974, %v413, 0
      %v2042 = vsel %vm1974, %v414, 0
      %v2045 = vsel %vm1974, %v415, 0
      %v2048 = vsel %vm1974, %v416, 0
      %v2051 = vsel %vm1974, %v417, 0
      %v2054 = vsel %vm1974, %v418, 0
      %v2057 = vsel %vm1974, %v419, 0
      %v2060 = vsel %vm1974, %v420, 0
      %v2063 = vsel %vm1974, %v421, 0
      %v2066 = vsel %vm1974, %v422, 0
      %v2069 = vsel %vm1974, %v423, 0
      %v2072 = vsel %vm1974, %v424, 0
      %v2075 = vsel %vm1974, %v425, 0
      %v2078 = vsel %vm1974, %v426, 0
      %v2081 = vsel %vm1974, %v427, 0
      %v2084 = vsel %vm1974, %v428, 0
      %v2087 = vsel %vm1974, %v429, 0
      %v2090 = vsel %vm1974, %v430, 0
      %v2093 = vsel %vm1974, %v431, 0
      %v2096 = vsel %vm1974, %v432, 0
      %v2099 = vsel %vm1974, %v433, 0
      %v2102 = vsel %vm1974, %v434, 0
      %v2105 = vsel %vm1974, %v435, 0
      %v2108 = vsel %vm1974, %v436, 0
      %v2111 = vsel %vm1974, %v437, 0
      %v2114 = vsel %vm1974, %v438, 0
      %v2117 = vsel %vm1974, %v439, 0
      %v2120 = vsel %vm1974, %v440, 0
      %v2123 = vsel %vm1974, %v441, 0
      %v2126 = vsel %vm1974, %v442, 0
      %v2129 = vsel %vm1974, %v443, 0
      %v2132 = vsel %vm1974, %v444, 0
      %v2135 = vsel %vm1974, %v445, 0
      %v2138 = vsel %vm1974, %v446, 0
      %v2141 = vsel %vm1974, %v447, 0
      %v2144 = vsel %vm1974, %v448, 0
      %v2147 = vsel %vm1974, %v449, 0
      %v2150 = vsel %vm1974, %v450, 0
      %v2153 = vsel %vm1974, %v451, 0
      %v2156 = vsel %vm1974, %v452, 0
      %v2159 = vsel %vm1974, %v453, 0
      %v2162 = vsel %vm1974, %v454, 0
      %v2165 = vsel %vm1974, %v455, 0
      %vm2167 = vcmask 1043456
      %v2169 = vsel %vm2167, %v1973, 0
      %2171 = vmatprep.subr.mxu0 0.0
      %2172 = vmatpush1.msra.mxu0 %v2169
      %2173 = vmatprep.subr.mxu0 0.0
      %2174 = vmatpush1.msra.mxu0 0.0
      %2175 = vmatprep.subr.mxu0 0.0
      %2176 = vmatpush1.msra.mxu0 0.0
      %2177 = vmatprep.subr.mxu0 0.0
      %2178 = vmatpush1.msra.mxu0 0.0
      %2179 = vmatprep.subr.mxu0 0.0
      %2180 = vmatpush1.msra.mxu0 0.0
      %2181 = vmatprep.subr.mxu0 0.0
      %2182 = vmatpush1.msra.mxu0 0.0
      %2183 = vmatprep.subr.mxu0 0.0
      %2184 = vmatpush1.msra.mxu0 0.0
      %2185 = vmatprep.subr.mxu0 0.0
      %2186 = vmatpush1.msra.mxu0 0.0
      %2187 = vmatprep.subr.mxu0 0.0
      %2188 = vmatpush1.msra.mxu0 0.0
      %2189 = vmatprep.subr.mxu0 0.0
      %2190 = vmatpush1.msra.mxu0 0.0
      %2191 = vmatprep.subr.mxu0 0.0
      %2192 = vmatpush1.msra.mxu0 0.0
      %2193 = vmatprep.subr.mxu0 0.0
      %2194 = vmatpush1.msra.mxu0 0.0
      %2195 = vmatprep.subr.mxu0 0.0
      %2196 = vmatpush1.msra.mxu0 0.0
      %2197 = vmatprep.subr.mxu0 0.0
      %2198 = vmatpush1.msra.mxu0 0.0
      %2199 = vmatprep.subr.mxu0 0.0
      %2200 = vmatpush1.msra.mxu0 0.0
      %2201 = vmatprep.subr.mxu0 0.0
      %2202 = vmatpush1.msra.mxu0 0.0
      %2203 = vmatprep.subr.mxu0 0.0
      %2204 = vmatpush1.msra.mxu0 0.0
      %2205 = vmatprep.subr.mxu0 0.0
      %2206 = vmatpush1.msra.mxu0 0.0
      %2207 = vmatprep.subr.mxu0 0.0
      %2208 = vmatpush1.msra.mxu0 0.0
      %2209 = vmatprep.subr.mxu0 0.0
      %2210 = vmatpush1.msra.mxu0 0.0
      %2211 = vmatprep.subr.mxu0 0.0
      %2212 = vmatpush1.msra.mxu0 0.0
      %2213 = vmatprep.subr.mxu0 0.0
      %2214 = vmatpush1.msra.mxu0 0.0
      %2215 = vmatprep.subr.mxu0 0.0
      %2216 = vmatpush1.msra.mxu0 0.0
      %2217 = vmatprep.subr.mxu0 0.0
      %2218 = vmatpush1.msra.mxu0 0.0
      %2219 = vmatprep.subr.mxu0 0.0
      %2220 = vmatpush1.msra.mxu0 0.0
      %2221 = vmatprep.subr.mxu0 0.0
      %2222 = vmatpush1.msra.mxu0 0.0
      %2223 = vmatprep.subr.mxu0 0.0
      %2224 = vmatpush1.msra.mxu0 0.0
      %2225 = vmatprep.subr.mxu0 0.0
      %2226 = vmatpush1.msra.mxu0 0.0
      %2227 = vmatprep.subr.mxu0 0.0
      %2228 = vmatpush1.msra.mxu0 0.0
      %2229 = vmatprep.subr.mxu0 0.0
      %2230 = vmatpush1.msra.mxu0 0.0
      %2231 = vmatprep.subr.mxu0 0.0
      %2232 = vmatpush1.msra.mxu0 0.0
      %2233 = vmatprep.subr.mxu0 0.0
      %2234 = vmatpush1.msra.mxu0 0.0
      %2235 = vmatprep.mubr.f32.mxu0 0.0
      %2236 = vmatmul.mubr.f32.gmra.mrb[0].mxu0 %v1976
      %v2237 = vpop.f32.mrb[0].mxu0
      %v2238 = vadd.f32 0.0, %v2237
      %v2239 = vpop.f32.mrb[0].mxu0
      %2240 = vmatprep.mubr.f32.mxu0 0.0
      %2241 = vmatmul.mubr.f32.gmra.mrb[0].mxu0 %v1979
      %v2242 = vpop.f32.mrb[0].mxu0
      %v2243 = vadd.f32 0.0, %v2242
      %v2244 = vpop.f32.mrb[0].mxu0
      %2245 = vmatprep.mubr.f32.mxu0 0.0
      %2246 = vmatmul.mubr.f32.gmra.mrb[0].mxu0 %v1982
      %v2247 = vpop.f32.mrb[0].mxu0
      %v2248 = vadd.f32 0.0, %v2247
      %v2249 = vpop.f32.mrb[0].mxu0
      %2250 = vmatprep.mubr.f32.mxu0 0.0
      %2251 = vmatmul.mubr.f32.gmra.mrb[0].mxu0 %v1985
      %v2252 = vpop.f32.mrb[0].mxu0
      %v2253 = vadd.f32 0.0, %v2252
      %v2254 = vpop.f32.mrb[0].mxu0
      %2255 = vmatprep.mubr.f32.mxu0 0.0
      %2256 = vmatmul.mubr.f32.gmra.mrb[0].mxu0 %v1988
      %v2257 = vpop.f32.mrb[0].mxu0
      %v2258 = vadd.f32 0.0, %v2257
      %v2259 = vpop.f32.mrb[0].mxu0
      %2260 = vmatprep.mubr.f32.mxu0 0.0
      %2261 = vmatmul.mubr.f32.gmra.mrb[0].mxu0 %v1991
      %v2262 = vpop.f32.mrb[0].mxu0
      %v2263 = vadd.f32 0.0, %v2262
      %v2264 = vpop.f32.mrb[0].mxu0
      %2265 = vmatprep.mubr.f32.mxu0 0.0
      %2266 = vmatmul.mubr.f32.gmra.mrb[0].mxu0 %v1994
      %v2267 = vpop.f32.mrb[0].mxu0
      %v2268 = vadd.f32 0.0, %v2267
      %v2269 = vpop.f32.mrb[0].mxu0
      %2270 = vmatprep.mubr.f32.mxu0 0.0
      %2271 = vmatmul.mubr.f32.gmra.mrb[0].mxu0 %v1997
      %v2272 = vpop.f32.mrb[0].mxu0
      %v2273 = vadd.f32 0.0, %v2272
      %v2274 = vpop.f32.mrb[0].mxu0
      %2275 = vmatprep.mubr.f32.mxu0 0.0
      %2276 = vmatmul.mubr.f32.gmra.mrb[0].mxu0 %v2000
      %v2277 = vpop.f32.mrb[0].mxu0
      %v2278 = vadd.f32 0.0, %v2277
      %v2279 = vpop.f32.mrb[0].mxu0
      %2280 = vmatprep.mubr.f32.mxu0 0.0
      %2281 = vmatmul.mubr.f32.gmra.mrb[0].mxu0 %v2003
      %v2282 = vpop.f32.mrb[0].mxu0
      %v2283 = vadd.f32 0.0, %v2282
      %v2284 = vpop.f32.mrb[0].mxu0
      %2285 = vmatprep.mubr.f32.mxu0 0.0
      %2286 = vmatmul.mubr.f32.gmra.mrb[0].mxu0 %v2006
      %v2287 = vpop.f32.mrb[0].mxu0
      %v2288 = vadd.f32 0.0, %v2287
      %v2289 = vpop.f32.mrb[0].mxu0
      %2290 = vmatprep.mubr.f32.mxu0 0.0
      %2291 = vmatmul.mubr.f32.gmra.mrb[0].mxu0 %v2009
      %v2292 = vpop.f32.mrb[0].mxu0
      %v2293 = vadd.f32 0.0, %v2292
      %v2294 = vpop.f32.mrb[0].mxu0
      %2295 = vmatprep.mubr.f32.mxu0 0.0
      %2296 = vmatmul.mubr.f32.gmra.mrb[0].mxu0 %v2012
      %v2297 = vpop.f32.mrb[0].mxu0
      %v2298 = vadd.f32 0.0, %v2297
      %v2299 = vpop.f32.mrb[0].mxu0
      %2300 = vmatprep.mubr.f32.mxu0 0.0
      %2301 = vmatmul.mubr.f32.gmra.mrb[0].mxu0 %v2015
      %v2302 = vpop.f32.mrb[0].mxu0
      %v2303 = vadd.f32 0.0, %v2302
      %v2304 = vpop.f32.mrb[0].mxu0
      %2305 = vmatprep.mubr.f32.mxu0 0.0
      %2306 = vmatmul.mubr.f32.gmra.mrb[0].mxu0 %v2018
      %v2307 = vpop.f32.mrb[0].mxu0
      %v2308 = vadd.f32 0.0, %v2307
      %v2309 = vpop.f32.mrb[0].mxu0
      %2310 = vmatprep.mubr.f32.mxu0 0.0
      %2311 = vmatmul.mubr.f32.gmra.mrb[0].mxu0 %v2021
      %v2312 = vpop.f32.mrb[0].mxu0
      %v2313 = vadd.f32 0.0, %v2312
      %v2314 = vpop.f32.mrb[0].mxu0
      %2315 = vmatprep.mubr.f32.mxu0 0.0
      %2316 = vmatmul.mubr.f32.gmra.mrb[0].mxu0 %v2024
      %v2317 = vpop.f32.mrb[0].mxu0
      %v2318 = vadd.f32 0.0, %v2317
      %v2319 = vpop.f32.mrb[0].mxu0
      %2320 = vmatprep.mubr.f32.mxu0 0.0
      %2321 = vmatmul.mubr.f32.gmra.mrb[0].mxu0 %v2027
      %v2322 = vpop.f32.mrb[0].mxu0
      %v2323 = vadd.f32 0.0, %v2322
      %v2324 = vpop.f32.mrb[0].mxu0
      %2325 = vmatprep.mubr.f32.mxu0 0.0
      %2326 = vmatmul.mubr.f32.gmra.mrb[0].mxu0 %v2030
      %v2327 = vpop.f32.mrb[0].mxu0
      %v2328 = vadd.f32 0.0, %v2327
      %v2329 = vpop.f32.mrb[0].mxu0
      %2330 = vmatprep.mubr.f32.mxu0 0.0
      %2331 = vmatmul.mubr.f32.gmra.mrb[0].mxu0 %v2033
      %v2332 = vpop.f32.mrb[0].mxu0
      %v2333 = vadd.f32 0.0, %v2332
      %v2334 = vpop.f32.mrb[0].mxu0
      %2335 = vmatprep.mubr.f32.mxu0 0.0
      %2336 = vmatmul.mubr.f32.gmra.mrb[0].mxu0 %v2036
      %v2337 = vpop.f32.mrb[0].mxu0
      %v2338 = vadd.f32 0.0, %v2337
      %v2339 = vpop.f32.mrb[0].mxu0
      %2340 = vmatprep.mubr.f32.mxu0 0.0
      %2341 = vmatmul.mubr.f32.gmra.mrb[0].mxu0 %v2039
      %v2342 = vpop.f32.mrb[0].mxu0
      %v2343 = vadd.f32 0.0, %v2342
      %v2344 = vpop.f32.mrb[0].mxu0
      %2345 = vmatprep.mubr.f32.mxu0 0.0
      %2346 = vmatmul.mubr.f32.gmra.mrb[0].mxu0 %v2042
      %v2347 = vpop.f32.mrb[0].mxu0
      %v2348 = vadd.f32 0.0, %v2347
      %v2349 = vpop.f32.mrb[0].mxu0
      %2350 = vmatprep.mubr.f32.mxu0 0.0
      %2351 = vmatmul.mubr.f32.gmra.mrb[0].mxu0 %v2045
      %v2352 = vpop.f32.mrb[0].mxu0
      %v2353 = vadd.f32 0.0, %v2352
      %v2354 = vpop.f32.mrb[0].mxu0
      %2355 = vmatprep.mubr.f32.mxu0 0.0
      %2356 = vmatmul.mubr.f32.gmra.mrb[0].mxu0 %v2048
      %v2357 = vpop.f32.mrb[0].mxu0
      %v2358 = vadd.f32 0.0, %v2357
      %v2359 = vpop.f32.mrb[0].mxu0
      %2360 = vmatprep.mubr.f32.mxu0 0.0
      %2361 = vmatmul.mubr.f32.gmra.mrb[0].mxu0 %v2051
      %v2362 = vpop.f32.mrb[0].mxu0
      %v2363 = vadd.f32 0.0, %v2362
      %v2364 = vpop.f32.mrb[0].mxu0
      %2365 = vmatprep.mubr.f32.mxu0 0.0
      %2366 = vmatmul.mubr.f32.gmra.mrb[0].mxu0 %v2054
      %v2367 = vpop.f32.mrb[0].mxu0
      %v2368 = vadd.f32 0.0, %v2367
      %v2369 = vpop.f32.mrb[0].mxu0
      %2370 = vmatprep.mubr.f32.mxu0 0.0
      %2371 = vmatmul.mubr.f32.gmra.mrb[0].mxu0 %v2057
      %v2372 = vpop.f32.mrb[0].mxu0
      %v2373 = vadd.f32 0.0, %v2372
      %v2374 = vpop.f32.mrb[0].mxu0
      %2375 = vmatprep.mubr.f32.mxu0 0.0
      %2376 = vmatmul.mubr.f32.gmra.mrb[0].mxu0 %v2060
      %v2377 = vpop.f32.mrb[0].mxu0
      %v2378 = vadd.f32 0.0, %v2377
      %v2379 = vpop.f32.mrb[0].mxu0
      %2380 = vmatprep.mubr.f32.mxu0 0.0
      %2381 = vmatmul.mubr.f32.gmra.mrb[0].mxu0 %v2063
      %v2382 = vpop.f32.mrb[0].mxu0
      %v2383 = vadd.f32 0.0, %v2382
      %v2384 = vpop.f32.mrb[0].mxu0
      %2385 = vmatprep.mubr.f32.mxu0 0.0
      %2386 = vmatmul.mubr.f32.gmra.mrb[0].mxu0 %v2066
      %v2387 = vpop.f32.mrb[0].mxu0
      %v2388 = vadd.f32 0.0, %v2387
      %v2389 = vpop.f32.mrb[0].mxu0
      %2390 = vmatprep.mubr.f32.mxu0 0.0
      %2391 = vmatmul.mubr.f32.gmra.mrb[0].mxu0 %v2069
      %v2392 = vpop.f32.mrb[0].mxu0
      %v2393 = vadd.f32 0.0, %v2392
      %v2394 = vpop.f32.mrb[0].mxu0
      %2395 = vmatprep.mubr.f32.mxu0 0.0
      %2396 = vmatmul.mubr.f32.gmra.mrb[0].mxu0 %v2072
      %v2397 = vpop.f32.mrb[0].mxu0
      %v2398 = vadd.f32 0.0, %v2397
      %v2399 = vpop.f32.mrb[0].mxu0
      %2400 = vmatprep.mubr.f32.mxu0 0.0
      %2401 = vmatmul.mubr.f32.gmra.mrb[0].mxu0 %v2075
      %v2402 = vpop.f32.mrb[0].mxu0
      %v2403 = vadd.f32 0.0, %v2402
      %v2404 = vpop.f32.mrb[0].mxu0
      %2405 = vmatprep.mubr.f32.mxu0 0.0
      %2406 = vmatmul.mubr.f32.gmra.mrb[0].mxu0 %v2078
      %v2407 = vpop.f32.mrb[0].mxu0
      %v2408 = vadd.f32 0.0, %v2407
      %v2409 = vpop.f32.mrb[0].mxu0
      %2410 = vmatprep.mubr.f32.mxu0 0.0
      %2411 = vmatmul.mubr.f32.gmra.mrb[0].mxu0 %v2081
      %v2412 = vpop.f32.mrb[0].mxu0
      %v2413 = vadd.f32 0.0, %v2412
      %v2414 = vpop.f32.mrb[0].mxu0
      %2415 = vmatprep.mubr.f32.mxu0 0.0
      %2416 = vmatmul.mubr.f32.gmra.mrb[0].mxu0 %v2084
      %v2417 = vpop.f32.mrb[0].mxu0
      %v2418 = vadd.f32 0.0, %v2417
      %v2419 = vpop.f32.mrb[0].mxu0
      %2420 = vmatprep.mubr.f32.mxu0 0.0
      %2421 = vmatmul.mubr.f32.gmra.mrb[0].mxu0 %v2087
      %v2422 = vpop.f32.mrb[0].mxu0
      %v2423 = vadd.f32 0.0, %v2422
      %v2424 = vpop.f32.mrb[0].mxu0
      %2425 = vmatprep.mubr.f32.mxu0 0.0
      %2426 = vmatmul.mubr.f32.gmra.mrb[0].mxu0 %v2090
      %v2427 = vpop.f32.mrb[0].mxu0
      %v2428 = vadd.f32 0.0, %v2427
      %v2429 = vpop.f32.mrb[0].mxu0
      %2430 = vmatprep.mubr.f32.mxu0 0.0
      %2431 = vmatmul.mubr.f32.gmra.mrb[0].mxu0 %v2093
      %v2432 = vpop.f32.mrb[0].mxu0
      %v2433 = vadd.f32 0.0, %v2432
      %v2434 = vpop.f32.mrb[0].mxu0
      %2435 = vmatprep.mubr.f32.mxu0 0.0
      %2436 = vmatmul.mubr.f32.gmra.mrb[0].mxu0 %v2096
      %v2437 = vpop.f32.mrb[0].mxu0
      %v2438 = vadd.f32 0.0, %v2437
      %v2439 = vpop.f32.mrb[0].mxu0
      %2440 = vmatprep.mubr.f32.mxu0 0.0
      %2441 = vmatmul.mubr.f32.gmra.mrb[0].mxu0 %v2099
      %v2442 = vpop.f32.mrb[0].mxu0
      %v2443 = vadd.f32 0.0, %v2442
      %v2444 = vpop.f32.mrb[0].mxu0
      %2445 = vmatprep.mubr.f32.mxu0 0.0
      %2446 = vmatmul.mubr.f32.gmra.mrb[0].mxu0 %v2102
      %v2447 = vpop.f32.mrb[0].mxu0
      %v2448 = vadd.f32 0.0, %v2447
      %v2449 = vpop.f32.mrb[0].mxu0
      %2450 = vmatprep.mubr.f32.mxu0 0.0
      %2451 = vmatmul.mubr.f32.gmra.mrb[0].mxu0 %v2105
      %v2452 = vpop.f32.mrb[0].mxu0
      %v2453 = vadd.f32 0.0, %v2452
      %v2454 = vpop.f32.mrb[0].mxu0
      %2455 = vmatprep.mubr.f32.mxu0 0.0
      %2456 = vmatmul.mubr.f32.gmra.mrb[0].mxu0 %v2108
      %v2457 = vpop.f32.mrb[0].mxu0
      %v2458 = vadd.f32 0.0, %v2457
      %v2459 = vpop.f32.mrb[0].mxu0
      %2460 = vmatprep.mubr.f32.mxu0 0.0
      %2461 = vmatmul.mubr.f32.gmra.mrb[0].mxu0 %v2111
      %v2462 = vpop.f32.mrb[0].mxu0
      %v2463 = vadd.f32 0.0, %v2462
      %v2464 = vpop.f32.mrb[0].mxu0
      %2465 = vmatprep.mubr.f32.mxu0 0.0
      %2466 = vmatmul.mubr.f32.gmra.mrb[0].mxu0 %v2114
      %v2467 = vpop.f32.mrb[0].mxu0
      %v2468 = vadd.f32 0.0, %v2467
      %v2469 = vpop.f32.mrb[0].mxu0
      %2470 = vmatprep.mubr.f32.mxu0 0.0
      %2471 = vmatmul.mubr.f32.gmra.mrb[0].mxu0 %v2117
      %v2472 = vpop.f32.mrb[0].mxu0
      %v2473 = vadd.f32 0.0, %v2472
      %v2474 = vpop.f32.mrb[0].mxu0
      %2475 = vmatprep.mubr.f32.mxu0 0.0
      %2476 = vmatmul.mubr.f32.gmra.mrb[0].mxu0 %v2120
      %v2477 = vpop.f32.mrb[0].mxu0
      %v2478 = vadd.f32 0.0, %v2477
      %v2479 = vpop.f32.mrb[0].mxu0
      %2480 = vmatprep.mubr.f32.mxu0 0.0
      %2481 = vmatmul.mubr.f32.gmra.mrb[0].mxu0 %v2123
      %v2482 = vpop.f32.mrb[0].mxu0
      %v2483 = vadd.f32 0.0, %v2482
      %v2484 = vpop.f32.mrb[0].mxu0
      %2485 = vmatprep.mubr.f32.mxu0 0.0
      %2486 = vmatmul.mubr.f32.gmra.mrb[0].mxu0 %v2126
      %v2487 = vpop.f32.mrb[0].mxu0
      %v2488 = vadd.f32 0.0, %v2487
      %v2489 = vpop.f32.mrb[0].mxu0
      %2490 = vmatprep.mubr.f32.mxu0 0.0
      %2491 = vmatmul.mubr.f32.gmra.mrb[0].mxu0 %v2129
      %v2492 = vpop.f32.mrb[0].mxu0
      %v2493 = vadd.f32 0.0, %v2492
      %v2494 = vpop.f32.mrb[0].mxu0
      %2495 = vmatprep.mubr.f32.mxu0 0.0
      %2496 = vmatmul.mubr.f32.gmra.mrb[0].mxu0 %v2132
      %v2497 = vpop.f32.mrb[0].mxu0
      %v2498 = vadd.f32 0.0, %v2497
      %v2499 = vpop.f32.mrb[0].mxu0
      %2500 = vmatprep.mubr.f32.mxu0 0.0
      %2501 = vmatmul.mubr.f32.gmra.mrb[0].mxu0 %v2135
      %v2502 = vpop.f32.mrb[0].mxu0
      %v2503 = vadd.f32 0.0, %v2502
      %v2504 = vpop.f32.mrb[0].mxu0
      %2505 = vmatprep.mubr.f32.mxu0 0.0
      %2506 = vmatmul.mubr.f32.gmra.mrb[0].mxu0 %v2138
      %v2507 = vpop.f32.mrb[0].mxu0
      %v2508 = vadd.f32 0.0, %v2507
      %v2509 = vpop.f32.mrb[0].mxu0
      %2510 = vmatprep.mubr.f32.mxu0 0.0
      %2511 = vmatmul.mubr.f32.gmra.mrb[0].mxu0 %v2141
      %v2512 = vpop.f32.mrb[0].mxu0
      %v2513 = vadd.f32 0.0, %v2512
      %v2514 = vpop.f32.mrb[0].mxu0
      %2515 = vmatprep.mubr.f32.mxu0 0.0
      %2516 = vmatmul.mubr.f32.gmra.mrb[0].mxu0 %v2144
      %v2517 = vpop.f32.mrb[0].mxu0
      %v2518 = vadd.f32 0.0, %v2517
      %v2519 = vpop.f32.mrb[0].mxu0
      %2520 = vmatprep.mubr.f32.mxu0 0.0
      %2521 = vmatmul.mubr.f32.gmra.mrb[0].mxu0 %v2147
      %v2522 = vpop.f32.mrb[0].mxu0
      %v2523 = vadd.f32 0.0, %v2522
      %v2524 = vpop.f32.mrb[0].mxu0
      %2525 = vmatprep.mubr.f32.mxu0 0.0
      %2526 = vmatmul.mubr.f32.gmra.mrb[0].mxu0 %v2150
      %v2527 = vpop.f32.mrb[0].mxu0
      %v2528 = vadd.f32 0.0, %v2527
      %v2529 = vpop.f32.mrb[0].mxu0
      %2530 = vmatprep.mubr.f32.mxu0 0.0
      %2531 = vmatmul.mubr.f32.gmra.mrb[0].mxu0 %v2153
      %v2532 = vpop.f32.mrb[0].mxu0
      %v2533 = vadd.f32 0.0, %v2532
      %v2534 = vpop.f32.mrb[0].mxu0
      %2535 = vmatprep.mubr.f32.mxu0 0.0
      %2536 = vmatmul.mubr.f32.gmra.mrb[0].mxu0 %v2156
      %v2537 = vpop.f32.mrb[0].mxu0
      %v2538 = vadd.f32 0.0, %v2537
      %v2539 = vpop.f32.mrb[0].mxu0
      %2540 = vmatprep.mubr.f32.mxu0 0.0
      %2541 = vmatmul.mubr.f32.gmra.mrb[0].mxu0 %v2159
      %v2542 = vpop.f32.mrb[0].mxu0
      %v2543 = vadd.f32 0.0, %v2542
      %v2544 = vpop.f32.mrb[0].mxu0
      %2545 = vmatprep.mubr.f32.mxu0 0.0
      %2546 = vmatmul.mubr.f32.gmra.mrb[0].mxu0 %v2162
      %v2547 = vpop.f32.mrb[0].mxu0
      %v2548 = vadd.f32 0.0, %v2547
      %v2549 = vpop.f32.mrb[0].mxu0
      %2550 = vmatprep.mubr.f32.mxu0 0.0
      %2551 = vmatmul.mubr.f32.gmra.mrb[0].mxu0 %v2165
      %v2552 = vpop.f32.mrb[0].mxu0
      %v2553 = vadd.f32 0.0, %v2552
      %v2554 = vpop.f32.mrb[0].mxu0
      %2555 = vdwg.mxu0
      %v2557 = vsel %vm1974, %v468, 0
      %v2560 = vsel %vm1974, %v469, 0
      %v2563 = vsel %vm1974, %v470, 0
      %v2566 = vsel %vm1974, %v471, 0
      %v2569 = vsel %vm1974, %v472, 0
      %v2572 = vsel %vm1974, %v473, 0
      %v2575 = vsel %vm1974, %v474, 0
      %v2578 = vsel %vm1974, %v475, 0
      %v2581 = vsel %vm2167, %v1971, 0
      %2583 = vmatprep.subr.mxu0 0.0
      %2584 = vmatpush1.msra.mxu0 %v2581
      %2585 = vmatprep.subr.mxu0 0.0
      %2586 = vmatpush1.msra.mxu0 0.0
      %2587 = vmatprep.subr.mxu0 0.0
      %2588 = vmatpush1.msra.mxu0 0.0
      %2589 = vmatprep.subr.mxu0 0.0
      %2590 = vmatpush1.msra.mxu0 0.0
      %2591 = vmatprep.subr.mxu0 0.0
      %2592 = vmatpush1.msra.mxu0 0.0
      %2593 = vmatprep.subr.mxu0 0.0
      %2594 = vmatpush1.msra.mxu0 0.0
      %2595 = vmatprep.subr.mxu0 0.0
      %2596 = vmatpush1.msra.mxu0 0.0
      %2597 = vmatprep.subr.mxu0 0.0
      %2598 = vmatpush1.msra.mxu0 0.0
      %2599 = vmatprep.subr.mxu0 0.0
      %2600 = vmatpush1.msra.mxu0 0.0
      %2601 = vmatprep.subr.mxu0 0.0
      %2602 = vmatpush1.msra.mxu0 0.0
      %2603 = vmatprep.subr.mxu0 0.0
      %2604 = vmatpush1.msra.mxu0 0.0
      %2605 = vmatprep.subr.mxu0 0.0
      %2606 = vmatpush1.msra.mxu0 0.0
      %2607 = vmatprep.subr.mxu0 0.0
      %2608 = vmatpush1.msra.mxu0 0.0
      %2609 = vmatprep.subr.mxu0 0.0
      %2610 = vmatpush1.msra.mxu0 0.0
      %2611 = vmatprep.subr.mxu0 0.0
      %2612 = vmatpush1.msra.mxu0 0.0
      %2613 = vmatprep.subr.mxu0 0.0
      %2614 = vmatpush1.msra.mxu0 0.0
      %2615 = vmatprep.subr.mxu0 0.0
      %2616 = vmatpush1.msra.mxu0 0.0
      %2617 = vmatprep.subr.mxu0 0.0
      %2618 = vmatpush1.msra.mxu0 0.0
      %2619 = vmatprep.subr.mxu0 0.0
      %2620 = vmatpush1.msra.mxu0 0.0
      %2621 = vmatprep.subr.mxu0 0.0
      %2622 = vmatpush1.msra.mxu0 0.0
      %2623 = vmatprep.subr.mxu0 0.0
      %2624 = vmatpush1.msra.mxu0 0.0
      %2625 = vmatprep.subr.mxu0 0.0
      %2626 = vmatpush1.msra.mxu0 0.0
      %2627 = vmatprep.subr.mxu0 0.0
      %2628 = vmatpush1.msra.mxu0 0.0
      %2629 = vmatprep.subr.mxu0 0.0
      %2630 = vmatpush1.msra.mxu0 0.0
      %2631 = vmatprep.subr.mxu0 0.0
      %2632 = vmatpush1.msra.mxu0 0.0
      %2633 = vmatprep.subr.mxu0 0.0
      %2634 = vmatpush1.msra.mxu0 0.0
      %2635 = vmatprep.subr.mxu0 0.0
      %2636 = vmatpush1.msra.mxu0 0.0
      %2637 = vmatprep.subr.mxu0 0.0
      %2638 = vmatpush1.msra.mxu0 0.0
      %2639 = vmatprep.subr.mxu0 0.0
      %2640 = vmatpush1.msra.mxu0 0.0
      %2641 = vmatprep.subr.mxu0 0.0
      %2642 = vmatpush1.msra.mxu0 0.0
      %2643 = vmatprep.subr.mxu0 0.0
      %2644 = vmatpush1.msra.mxu0 0.0
      %2645 = vmatprep.subr.mxu0 0.0
      %2646 = vmatpush1.msra.mxu0 0.0
      %2647 = vmatprep.mubr.f32.mxu0 0.0
      %2648 = vmatmul.mubr.f32.gmra.mrb[0].mxu0 %v2557
      %v2649 = vpop.f32.mrb[0].mxu0
      %v2650 = vadd.f32 %v2238, %v2649
      %v2651 = vpop.f32.mrb[0].mxu0
      %2652 = vmatprep.mubr.f32.mxu0 0.0
      %2653 = vmatmul.mubr.f32.gmra.mrb[0].mxu0 %v2560
      %v2654 = vpop.f32.mrb[0].mxu0
      %v2655 = vadd.f32 %v2243, %v2654
      %v2656 = vpop.f32.mrb[0].mxu0
      %2657 = vmatprep.mubr.f32.mxu0 0.0
      %2658 = vmatmul.mubr.f32.gmra.mrb[0].mxu0 %v2563
      %v2659 = vpop.f32.mrb[0].mxu0
      %v2660 = vadd.f32 %v2248, %v2659
      %v2661 = vpop.f32.mrb[0].mxu0
      %2662 = vmatprep.mubr.f32.mxu0 0.0
      %2663 = vmatmul.mubr.f32.gmra.mrb[0].mxu0 %v2566
      %v2664 = vpop.f32.mrb[0].mxu0
      %v2665 = vadd.f32 %v2253, %v2664
      %v2666 = vpop.f32.mrb[0].mxu0
      %2667 = vmatprep.mubr.f32.mxu0 0.0
      %2668 = vmatmul.mubr.f32.gmra.mrb[0].mxu0 %v2569
      %v2669 = vpop.f32.mrb[0].mxu0
      %v2670 = vadd.f32 %v2258, %v2669
      %v2671 = vpop.f32.mrb[0].mxu0
      %2672 = vmatprep.mubr.f32.mxu0 0.0
      %2673 = vmatmul.mubr.f32.gmra.mrb[0].mxu0 %v2572
      %v2674 = vpop.f32.mrb[0].mxu0
      %v2675 = vadd.f32 %v2263, %v2674
      %v2676 = vpop.f32.mrb[0].mxu0
      %2677 = vmatprep.mubr.f32.mxu0 0.0
      %2678 = vmatmul.mubr.f32.gmra.mrb[0].mxu0 %v2575
      %v2679 = vpop.f32.mrb[0].mxu0
      %v2680 = vadd.f32 %v2268, %v2679
      %v2681 = vpop.f32.mrb[0].mxu0
      %2682 = vmatprep.mubr.f32.mxu0 0.0
      %2683 = vmatmul.mubr.f32.gmra.mrb[0].mxu0 %v2578
      %v2684 = vpop.f32.mrb[0].mxu0
      %v2685 = vadd.f32 %v2273, %v2684
      %v2686 = vpop.f32.mrb[0].mxu0
      %2687 = vmatprep.mubr.f32.mxu0 0.0
      %2688 = vmatmul.mubr.f32.gmra.mrb[0].mxu0 %v1976
      %v2689 = vpop.f32.mrb[0].mxu0
      %v2690 = vadd.f32 %v2278, %v2689
      %v2691 = vpop.f32.mrb[0].mxu0
      %2692 = vmatprep.mubr.f32.mxu0 0.0
      %2693 = vmatmul.mubr.f32.gmra.mrb[0].mxu0 %v1979
      %v2694 = vpop.f32.mrb[0].mxu0
      %v2695 = vadd.f32 %v2283, %v2694
      %v2696 = vpop.f32.mrb[0].mxu0
      %2697 = vmatprep.mubr.f32.mxu0 0.0
      %2698 = vmatmul.mubr.f32.gmra.mrb[0].mxu0 %v1982
      %v2699 = vpop.f32.mrb[0].mxu0
      %v2700 = vadd.f32 %v2288, %v2699
      %v2701 = vpop.f32.mrb[0].mxu0
      %2702 = vmatprep.mubr.f32.mxu0 0.0
      %2703 = vmatmul.mubr.f32.gmra.mrb[0].mxu0 %v1985
      %v2704 = vpop.f32.mrb[0].mxu0
      %v2705 = vadd.f32 %v2293, %v2704
      %v2706 = vpop.f32.mrb[0].mxu0
      %2707 = vmatprep.mubr.f32.mxu0 0.0
      %2708 = vmatmul.mubr.f32.gmra.mrb[0].mxu0 %v1988
      %v2709 = vpop.f32.mrb[0].mxu0
      %v2710 = vadd.f32 %v2298, %v2709
      %v2711 = vpop.f32.mrb[0].mxu0
      %2712 = vmatprep.mubr.f32.mxu0 0.0
      %2713 = vmatmul.mubr.f32.gmra.mrb[0].mxu0 %v1991
      %v2714 = vpop.f32.mrb[0].mxu0
      %v2715 = vadd.f32 %v2303, %v2714
      %v2716 = vpop.f32.mrb[0].mxu0
      %2717 = vmatprep.mubr.f32.mxu0 0.0
      %2718 = vmatmul.mubr.f32.gmra.mrb[0].mxu0 %v1994
      %v2719 = vpop.f32.mrb[0].mxu0
      %v2720 = vadd.f32 %v2308, %v2719
      %v2721 = vpop.f32.mrb[0].mxu0
      %2722 = vmatprep.mubr.f32.mxu0 0.0
      %2723 = vmatmul.mubr.f32.gmra.mrb[0].mxu0 %v1997
      %v2724 = vpop.f32.mrb[0].mxu0
      %v2725 = vadd.f32 %v2313, %v2724
      %v2726 = vpop.f32.mrb[0].mxu0
      %2727 = vmatprep.mubr.f32.mxu0 0.0
      %2728 = vmatmul.mubr.f32.gmra.mrb[0].mxu0 %v2000
      %v2729 = vpop.f32.mrb[0].mxu0
      %v2730 = vadd.f32 %v2318, %v2729
      %v2731 = vpop.f32.mrb[0].mxu0
      %2732 = vmatprep.mubr.f32.mxu0 0.0
      %2733 = vmatmul.mubr.f32.gmra.mrb[0].mxu0 %v2003
      %v2734 = vpop.f32.mrb[0].mxu0
      %v2735 = vadd.f32 %v2323, %v2734
      %v2736 = vpop.f32.mrb[0].mxu0
      %2737 = vmatprep.mubr.f32.mxu0 0.0
      %2738 = vmatmul.mubr.f32.gmra.mrb[0].mxu0 %v2006
      %v2739 = vpop.f32.mrb[0].mxu0
      %v2740 = vadd.f32 %v2328, %v2739
      %v2741 = vpop.f32.mrb[0].mxu0
      %2742 = vmatprep.mubr.f32.mxu0 0.0
      %2743 = vmatmul.mubr.f32.gmra.mrb[0].mxu0 %v2009
      %v2744 = vpop.f32.mrb[0].mxu0
      %v2745 = vadd.f32 %v2333, %v2744
      %v2746 = vpop.f32.mrb[0].mxu0
      %2747 = vmatprep.mubr.f32.mxu0 0.0
      %2748 = vmatmul.mubr.f32.gmra.mrb[0].mxu0 %v2012
      %v2749 = vpop.f32.mrb[0].mxu0
      %v2750 = vadd.f32 %v2338, %v2749
      %v2751 = vpop.f32.mrb[0].mxu0
      %2752 = vmatprep.mubr.f32.mxu0 0.0
      %2753 = vmatmul.mubr.f32.gmra.mrb[0].mxu0 %v2015
      %v2754 = vpop.f32.mrb[0].mxu0
      %v2755 = vadd.f32 %v2343, %v2754
      %v2756 = vpop.f32.mrb[0].mxu0
      %2757 = vmatprep.mubr.f32.mxu0 0.0
      %2758 = vmatmul.mubr.f32.gmra.mrb[0].mxu0 %v2018
      %v2759 = vpop.f32.mrb[0].mxu0
      %v2760 = vadd.f32 %v2348, %v2759
      %v2761 = vpop.f32.mrb[0].mxu0
      %2762 = vmatprep.mubr.f32.mxu0 0.0
      %2763 = vmatmul.mubr.f32.gmra.mrb[0].mxu0 %v2021
      %v2764 = vpop.f32.mrb[0].mxu0
      %v2765 = vadd.f32 %v2353, %v2764
      %v2766 = vpop.f32.mrb[0].mxu0
      %2767 = vmatprep.mubr.f32.mxu0 0.0
      %2768 = vmatmul.mubr.f32.gmra.mrb[0].mxu0 %v2024
      %v2769 = vpop.f32.mrb[0].mxu0
      %v2770 = vadd.f32 %v2358, %v2769
      %v2771 = vpop.f32.mrb[0].mxu0
      %2772 = vmatprep.mubr.f32.mxu0 0.0
      %2773 = vmatmul.mubr.f32.gmra.mrb[0].mxu0 %v2027
      %v2774 = vpop.f32.mrb[0].mxu0
      %v2775 = vadd.f32 %v2363, %v2774
      %v2776 = vpop.f32.mrb[0].mxu0
      %2777 = vmatprep.mubr.f32.mxu0 0.0
      %2778 = vmatmul.mubr.f32.gmra.mrb[0].mxu0 %v2030
      %v2779 = vpop.f32.mrb[0].mxu0
      %v2780 = vadd.f32 %v2368, %v2779
      %v2781 = vpop.f32.mrb[0].mxu0
      %2782 = vmatprep.mubr.f32.mxu0 0.0
      %2783 = vmatmul.mubr.f32.gmra.mrb[0].mxu0 %v2033
      %v2784 = vpop.f32.mrb[0].mxu0
      %v2785 = vadd.f32 %v2373, %v2784
      %v2786 = vpop.f32.mrb[0].mxu0
      %2787 = vmatprep.mubr.f32.mxu0 0.0
      %2788 = vmatmul.mubr.f32.gmra.mrb[0].mxu0 %v2036
      %v2789 = vpop.f32.mrb[0].mxu0
      %v2790 = vadd.f32 %v2378, %v2789
      %v2791 = vpop.f32.mrb[0].mxu0
      %2792 = vmatprep.mubr.f32.mxu0 0.0
      %2793 = vmatmul.mubr.f32.gmra.mrb[0].mxu0 %v2039
      %v2794 = vpop.f32.mrb[0].mxu0
      %v2795 = vadd.f32 %v2383, %v2794
      %v2796 = vpop.f32.mrb[0].mxu0
      %2797 = vmatprep.mubr.f32.mxu0 0.0
      %2798 = vmatmul.mubr.f32.gmra.mrb[0].mxu0 %v2042
      %v2799 = vpop.f32.mrb[0].mxu0
      %v2800 = vadd.f32 %v2388, %v2799
      %v2801 = vpop.f32.mrb[0].mxu0
      %2802 = vmatprep.mubr.f32.mxu0 0.0
      %2803 = vmatmul.mubr.f32.gmra.mrb[0].mxu0 %v2045
      %v2804 = vpop.f32.mrb[0].mxu0
      %v2805 = vadd.f32 %v2393, %v2804
      %v2806 = vpop.f32.mrb[0].mxu0
      %2807 = vmatprep.mubr.f32.mxu0 0.0
      %2808 = vmatmul.mubr.f32.gmra.mrb[0].mxu0 %v2048
      %v2809 = vpop.f32.mrb[0].mxu0
      %v2810 = vadd.f32 %v2398, %v2809
      %v2811 = vpop.f32.mrb[0].mxu0
      %2812 = vmatprep.mubr.f32.mxu0 0.0
      %2813 = vmatmul.mubr.f32.gmra.mrb[0].mxu0 %v2051
      %v2814 = vpop.f32.mrb[0].mxu0
      %v2815 = vadd.f32 %v2403, %v2814
      %v2816 = vpop.f32.mrb[0].mxu0
      %2817 = vmatprep.mubr.f32.mxu0 0.0
      %2818 = vmatmul.mubr.f32.gmra.mrb[0].mxu0 %v2054
      %v2819 = vpop.f32.mrb[0].mxu0
      %v2820 = vadd.f32 %v2408, %v2819
      %v2821 = vpop.f32.mrb[0].mxu0
      %2822 = vmatprep.mubr.f32.mxu0 0.0
      %2823 = vmatmul.mubr.f32.gmra.mrb[0].mxu0 %v2057
      %v2824 = vpop.f32.mrb[0].mxu0
      %v2825 = vadd.f32 %v2413, %v2824
      %v2826 = vpop.f32.mrb[0].mxu0
      %2827 = vmatprep.mubr.f32.mxu0 0.0
      %2828 = vmatmul.mubr.f32.gmra.mrb[0].mxu0 %v2060
      %v2829 = vpop.f32.mrb[0].mxu0
      %v2830 = vadd.f32 %v2418, %v2829
      %v2831 = vpop.f32.mrb[0].mxu0
      %2832 = vmatprep.mubr.f32.mxu0 0.0
      %2833 = vmatmul.mubr.f32.gmra.mrb[0].mxu0 %v2063
      %v2834 = vpop.f32.mrb[0].mxu0
      %v2835 = vadd.f32 %v2423, %v2834
      %v2836 = vpop.f32.mrb[0].mxu0
      %2837 = vmatprep.mubr.f32.mxu0 0.0
      %2838 = vmatmul.mubr.f32.gmra.mrb[0].mxu0 %v2066
      %v2839 = vpop.f32.mrb[0].mxu0
      %v2840 = vadd.f32 %v2428, %v2839
      %v2841 = vpop.f32.mrb[0].mxu0
      %2842 = vmatprep.mubr.f32.mxu0 0.0
      %2843 = vmatmul.mubr.f32.gmra.mrb[0].mxu0 %v2069
      %v2844 = vpop.f32.mrb[0].mxu0
      %v2845 = vadd.f32 %v2433, %v2844
      %v2846 = vpop.f32.mrb[0].mxu0
      %2847 = vmatprep.mubr.f32.mxu0 0.0
      %2848 = vmatmul.mubr.f32.gmra.mrb[0].mxu0 %v2072
      %v2849 = vpop.f32.mrb[0].mxu0
      %v2850 = vadd.f32 %v2438, %v2849
      %v2851 = vpop.f32.mrb[0].mxu0
      %2852 = vmatprep.mubr.f32.mxu0 0.0
      %2853 = vmatmul.mubr.f32.gmra.mrb[0].mxu0 %v2075
      %v2854 = vpop.f32.mrb[0].mxu0
      %v2855 = vadd.f32 %v2443, %v2854
      %v2856 = vpop.f32.mrb[0].mxu0
      %2857 = vmatprep.mubr.f32.mxu0 0.0
      %2858 = vmatmul.mubr.f32.gmra.mrb[0].mxu0 %v2078
      %v2859 = vpop.f32.mrb[0].mxu0
      %v2860 = vadd.f32 %v2448, %v2859
      %v2861 = vpop.f32.mrb[0].mxu0
      %2862 = vmatprep.mubr.f32.mxu0 0.0
      %2863 = vmatmul.mubr.f32.gmra.mrb[0].mxu0 %v2081
      %v2864 = vpop.f32.mrb[0].mxu0
      %v2865 = vadd.f32 %v2453, %v2864
      %v2866 = vpop.f32.mrb[0].mxu0
      %2867 = vmatprep.mubr.f32.mxu0 0.0
      %2868 = vmatmul.mubr.f32.gmra.mrb[0].mxu0 %v2084
      %v2869 = vpop.f32.mrb[0].mxu0
      %v2870 = vadd.f32 %v2458, %v2869
      %v2871 = vpop.f32.mrb[0].mxu0
      %2872 = vmatprep.mubr.f32.mxu0 0.0
      %2873 = vmatmul.mubr.f32.gmra.mrb[0].mxu0 %v2087
      %v2874 = vpop.f32.mrb[0].mxu0
      %v2875 = vadd.f32 %v2463, %v2874
      %v2876 = vpop.f32.mrb[0].mxu0
      %2877 = vmatprep.mubr.f32.mxu0 0.0
      %2878 = vmatmul.mubr.f32.gmra.mrb[0].mxu0 %v2090
      %v2879 = vpop.f32.mrb[0].mxu0
      %v2880 = vadd.f32 %v2468, %v2879
      %v2881 = vpop.f32.mrb[0].mxu0
      %2882 = vmatprep.mubr.f32.mxu0 0.0
      %2883 = vmatmul.mubr.f32.gmra.mrb[0].mxu0 %v2093
      %v2884 = vpop.f32.mrb[0].mxu0
      %v2885 = vadd.f32 %v2473, %v2884
      %v2886 = vpop.f32.mrb[0].mxu0
      %2887 = vmatprep.mubr.f32.mxu0 0.0
      %2888 = vmatmul.mubr.f32.gmra.mrb[0].mxu0 %v2096
      %v2889 = vpop.f32.mrb[0].mxu0
      %v2890 = vadd.f32 %v2478, %v2889
      %v2891 = vpop.f32.mrb[0].mxu0
      %2892 = vmatprep.mubr.f32.mxu0 0.0
      %2893 = vmatmul.mubr.f32.gmra.mrb[0].mxu0 %v2099
      %v2894 = vpop.f32.mrb[0].mxu0
      %v2895 = vadd.f32 %v2483, %v2894
      %v2896 = vpop.f32.mrb[0].mxu0
      %2897 = vmatprep.mubr.f32.mxu0 0.0
      %2898 = vmatmul.mubr.f32.gmra.mrb[0].mxu0 %v2102
      %v2899 = vpop.f32.mrb[0].mxu0
      %v2900 = vadd.f32 %v2488, %v2899
      %v2901 = vpop.f32.mrb[0].mxu0
      %2902 = vmatprep.mubr.f32.mxu0 0.0
      %2903 = vmatmul.mubr.f32.gmra.mrb[0].mxu0 %v2105
      %v2904 = vpop.f32.mrb[0].mxu0
      %v2905 = vadd.f32 %v2493, %v2904
      %v2906 = vpop.f32.mrb[0].mxu0
      %2907 = vmatprep.mubr.f32.mxu0 0.0
      %2908 = vmatmul.mubr.f32.gmra.mrb[0].mxu0 %v2108
      %v2909 = vpop.f32.mrb[0].mxu0
      %v2910 = vadd.f32 %v2498, %v2909
      %v2911 = vpop.f32.mrb[0].mxu0
      %2912 = vmatprep.mubr.f32.mxu0 0.0
      %2913 = vmatmul.mubr.f32.gmra.mrb[0].mxu0 %v2111
      %v2914 = vpop.f32.mrb[0].mxu0
      %v2915 = vadd.f32 %v2503, %v2914
      %v2916 = vpop.f32.mrb[0].mxu0
      %2917 = vmatprep.mubr.f32.mxu0 0.0
      %2918 = vmatmul.mubr.f32.gmra.mrb[0].mxu0 %v2114
      %v2919 = vpop.f32.mrb[0].mxu0
      %v2920 = vadd.f32 %v2508, %v2919
      %v2921 = vpop.f32.mrb[0].mxu0
      %2922 = vmatprep.mubr.f32.mxu0 0.0
      %2923 = vmatmul.mubr.f32.gmra.mrb[0].mxu0 %v2117
      %v2924 = vpop.f32.mrb[0].mxu0
      %v2925 = vadd.f32 %v2513, %v2924
      %v2926 = vpop.f32.mrb[0].mxu0
      %2927 = vmatprep.mubr.f32.mxu0 0.0
      %2928 = vmatmul.mubr.f32.gmra.mrb[0].mxu0 %v2120
      %v2929 = vpop.f32.mrb[0].mxu0
      %v2930 = vadd.f32 %v2518, %v2929
      %v2931 = vpop.f32.mrb[0].mxu0
      %2932 = vmatprep.mubr.f32.mxu0 0.0
      %2933 = vmatmul.mubr.f32.gmra.mrb[0].mxu0 %v2123
      %v2934 = vpop.f32.mrb[0].mxu0
      %v2935 = vadd.f32 %v2523, %v2934
      %v2936 = vpop.f32.mrb[0].mxu0
      %2937 = vmatprep.mubr.f32.mxu0 0.0
      %2938 = vmatmul.mubr.f32.gmra.mrb[0].mxu0 %v2126
      %v2939 = vpop.f32.mrb[0].mxu0
      %v2940 = vadd.f32 %v2528, %v2939
      %v2941 = vpop.f32.mrb[0].mxu0
      %2942 = vmatprep.mubr.f32.mxu0 0.0
      %2943 = vmatmul.mubr.f32.gmra.mrb[0].mxu0 %v2129
      %v2944 = vpop.f32.mrb[0].mxu0
      %v2945 = vadd.f32 %v2533, %v2944
      %v2946 = vpop.f32.mrb[0].mxu0
      %2947 = vmatprep.mubr.f32.mxu0 0.0
      %2948 = vmatmul.mubr.f32.gmra.mrb[0].mxu0 %v2132
      %v2949 = vpop.f32.mrb[0].mxu0
      %v2950 = vadd.f32 %v2538, %v2949
      %v2951 = vpop.f32.mrb[0].mxu0
      %2952 = vmatprep.mubr.f32.mxu0 0.0
      %2953 = vmatmul.mubr.f32.gmra.mrb[0].mxu0 %v2135
      %v2954 = vpop.f32.mrb[0].mxu0
      %v2955 = vadd.f32 %v2543, %v2954
      %v2956 = vpop.f32.mrb[0].mxu0
      %2957 = vmatprep.mubr.f32.mxu0 0.0
      %2958 = vmatmul.mubr.f32.gmra.mrb[0].mxu0 %v2138
      %v2959 = vpop.f32.mrb[0].mxu0
      %v2960 = vadd.f32 %v2548, %v2959
      %v2961 = vpop.f32.mrb[0].mxu0
      %2962 = vmatprep.mubr.f32.mxu0 0.0
      %2963 = vmatmul.mubr.f32.gmra.mrb[0].mxu0 %v2141
      %v2964 = vpop.f32.mrb[0].mxu0
      %v2965 = vadd.f32 %v2553, %v2964
      %v2966 = vpop.f32.mrb[0].mxu0
      %2967 = vdwg.mxu0
      %s2968 = scalar_lea.vmem %s3, 8
      %v2969 = vld [vmem:[%s2968] sm:$0xf]
      %v2971 = vsel %vm1974, %v488, 0
      %v2974 = vsel %vm1974, %v489, 0
      %v2977 = vsel %vm1974, %v490, 0
      %v2980 = vsel %vm1974, %v491, 0
      %v2983 = vsel %vm1974, %v492, 0
      %v2986 = vsel %vm1974, %v493, 0
      %v2989 = vsel %vm1974, %v494, 0
      %v2992 = vsel %vm1974, %v495, 0
      %v2995 = vsel %vm2167, %v2969, 0
      %2997 = vmatprep.subr.mxu0 0.0
      %2998 = vmatpush1.msra.mxu0 %v2995
      %2999 = vmatprep.subr.mxu0 0.0
      %3000 = vmatpush1.msra.mxu0 0.0
      %3001 = vmatprep.subr.mxu0 0.0
      %3002 = vmatpush1.msra.mxu0 0.0
      %3003 = vmatprep.subr.mxu0 0.0
      %3004 = vmatpush1.msra.mxu0 0.0
      %3005 = vmatprep.subr.mxu0 0.0
      %3006 = vmatpush1.msra.mxu0 0.0
      %3007 = vmatprep.subr.mxu0 0.0
      %3008 = vmatpush1.msra.mxu0 0.0
      %3009 = vmatprep.subr.mxu0 0.0
      %3010 = vmatpush1.msra.mxu0 0.0
      %3011 = vmatprep.subr.mxu0 0.0
      %3012 = vmatpush1.msra.mxu0 0.0
      %3013 = vmatprep.subr.mxu0 0.0
      %3014 = vmatpush1.msra.mxu0 0.0
      %3015 = vmatprep.subr.mxu0 0.0
      %3016 = vmatpush1.msra.mxu0 0.0
      %3017 = vmatprep.subr.mxu0 0.0
      %3018 = vmatpush1.msra.mxu0 0.0
      %3019 = vmatprep.subr.mxu0 0.0
      %3020 = vmatpush1.msra.mxu0 0.0
      %3021 = vmatprep.subr.mxu0 0.0
      %3022 = vmatpush1.msra.mxu0 0.0
      %3023 = vmatprep.subr.mxu0 0.0
      %3024 = vmatpush1.msra.mxu0 0.0
      %3025 = vmatprep.subr.mxu0 0.0
      %3026 = vmatpush1.msra.mxu0 0.0
      %3027 = vmatprep.subr.mxu0 0.0
      %3028 = vmatpush1.msra.mxu0 0.0
      %3029 = vmatprep.subr.mxu0 0.0
      %3030 = vmatpush1.msra.mxu0 0.0
      %3031 = vmatprep.subr.mxu0 0.0
      %3032 = vmatpush1.msra.mxu0 0.0
      %3033 = vmatprep.subr.mxu0 0.0
      %3034 = vmatpush1.msra.mxu0 0.0
      %3035 = vmatprep.subr.mxu0 0.0
      %3036 = vmatpush1.msra.mxu0 0.0
      %3037 = vmatprep.subr.mxu0 0.0
      %3038 = vmatpush1.msra.mxu0 0.0
      %3039 = vmatprep.subr.mxu0 0.0
      %3040 = vmatpush1.msra.mxu0 0.0
      %3041 = vmatprep.subr.mxu0 0.0
      %3042 = vmatpush1.msra.mxu0 0.0
      %3043 = vmatprep.subr.mxu0 0.0
      %3044 = vmatpush1.msra.mxu0 0.0
      %3045 = vmatprep.subr.mxu0 0.0
      %3046 = vmatpush1.msra.mxu0 0.0
      %3047 = vmatprep.subr.mxu0 0.0
      %3048 = vmatpush1.msra.mxu0 0.0
      %3049 = vmatprep.subr.mxu0 0.0
      %3050 = vmatpush1.msra.mxu0 0.0
      %3051 = vmatprep.subr.mxu0 0.0
      %3052 = vmatpush1.msra.mxu0 0.0
      %3053 = vmatprep.subr.mxu0 0.0
      %3054 = vmatpush1.msra.mxu0 0.0
      %3055 = vmatprep.subr.mxu0 0.0
      %3056 = vmatpush1.msra.mxu0 0.0
      %3057 = vmatprep.subr.mxu0 0.0
      %3058 = vmatpush1.msra.mxu0 0.0
      %3059 = vmatprep.subr.mxu0 0.0
      %3060 = vmatpush1.msra.mxu0 0.0
      %3061 = vmatprep.mubr.f32.mxu0 0.0
      %3062 = vmatmul.mubr.f32.gmra.mrb[0].mxu0 %v2000
      %v3063 = vpop.f32.mrb[0].mxu0
      %v3064 = vadd.f32 0.0, %v3063
      %v3065 = vpop.f32.mrb[0].mxu0
      %3066 = vmatprep.mubr.f32.mxu0 0.0
      %3067 = vmatmul.mubr.f32.gmra.mrb[0].mxu0 %v2003
      %v3068 = vpop.f32.mrb[0].mxu0
      %v3069 = vadd.f32 0.0, %v3068
      %v3070 = vpop.f32.mrb[0].mxu0
      %3071 = vmatprep.mubr.f32.mxu0 0.0
      %3072 = vmatmul.mubr.f32.gmra.mrb[0].mxu0 %v2006
      %v3073 = vpop.f32.mrb[0].mxu0
      %v3074 = vadd.f32 0.0, %v3073
      %v3075 = vpop.f32.mrb[0].mxu0
      %3076 = vmatprep.mubr.f32.mxu0 0.0
      %3077 = vmatmul.mubr.f32.gmra.mrb[0].mxu0 %v2009
      %v3078 = vpop.f32.mrb[0].mxu0
      %v3079 = vadd.f32 0.0, %v3078
      %v3080 = vpop.f32.mrb[0].mxu0
      %3081 = vmatprep.mubr.f32.mxu0 0.0
      %3082 = vmatmul.mubr.f32.gmra.mrb[0].mxu0 %v2012
      %v3083 = vpop.f32.mrb[0].mxu0
      %v3084 = vadd.f32 0.0, %v3083
      %v3085 = vpop.f32.mrb[0].mxu0
      %3086 = vmatprep.mubr.f32.mxu0 0.0
      %3087 = vmatmul.mubr.f32.gmra.mrb[0].mxu0 %v2015
      %v3088 = vpop.f32.mrb[0].mxu0
      %v3089 = vadd.f32 0.0, %v3088
      %v3090 = vpop.f32.mrb[0].mxu0
      %3091 = vmatprep.mubr.f32.mxu0 0.0
      %3092 = vmatmul.mubr.f32.gmra.mrb[0].mxu0 %v2018
      %v3093 = vpop.f32.mrb[0].mxu0
      %v3094 = vadd.f32 0.0, %v3093
      %v3095 = vpop.f32.mrb[0].mxu0
      %3096 = vmatprep.mubr.f32.mxu0 0.0
      %3097 = vmatmul.mubr.f32.gmra.mrb[0].mxu0 %v2021
      %v3098 = vpop.f32.mrb[0].mxu0
      %v3099 = vadd.f32 0.0, %v3098
      %v3100 = vpop.f32.mrb[0].mxu0
      %3101 = vmatprep.mubr.f32.mxu0 0.0
      %3102 = vmatmul.mubr.f32.gmra.mrb[0].mxu0 %v2024
      %v3103 = vpop.f32.mrb[0].mxu0
      %v3104 = vadd.f32 0.0, %v3103
      %v3105 = vpop.f32.mrb[0].mxu0
      %3106 = vmatprep.mubr.f32.mxu0 0.0
      %3107 = vmatmul.mubr.f32.gmra.mrb[0].mxu0 %v2027
      %v3108 = vpop.f32.mrb[0].mxu0
      %v3109 = vadd.f32 0.0, %v3108
      %v3110 = vpop.f32.mrb[0].mxu0
      %3111 = vmatprep.mubr.f32.mxu0 0.0
      %3112 = vmatmul.mubr.f32.gmra.mrb[0].mxu0 %v2030
      %v3113 = vpop.f32.mrb[0].mxu0
      %v3114 = vadd.f32 0.0, %v3113
      %v3115 = vpop.f32.mrb[0].mxu0
      %3116 = vmatprep.mubr.f32.mxu0 0.0
      %3117 = vmatmul.mubr.f32.gmra.mrb[0].mxu0 %v2033
      %v3118 = vpop.f32.mrb[0].mxu0
      %v3119 = vadd.f32 0.0, %v3118
      %v3120 = vpop.f32.mrb[0].mxu0
      %3121 = vmatprep.mubr.f32.mxu0 0.0
      %3122 = vmatmul.mubr.f32.gmra.mrb[0].mxu0 %v2036
      %v3123 = vpop.f32.mrb[0].mxu0
      %v3124 = vadd.f32 0.0, %v3123
      %v3125 = vpop.f32.mrb[0].mxu0
      %3126 = vmatprep.mubr.f32.mxu0 0.0
      %3127 = vmatmul.mubr.f32.gmra.mrb[0].mxu0 %v2039
      %v3128 = vpop.f32.mrb[0].mxu0
      %v3129 = vadd.f32 0.0, %v3128
      %v3130 = vpop.f32.mrb[0].mxu0
      %3131 = vmatprep.mubr.f32.mxu0 0.0
      %3132 = vmatmul.mubr.f32.gmra.mrb[0].mxu0 %v2042
      %v3133 = vpop.f32.mrb[0].mxu0
      %v3134 = vadd.f32 0.0, %v3133
      %v3135 = vpop.f32.mrb[0].mxu0
      %3136 = vmatprep.mubr.f32.mxu0 0.0
      %3137 = vmatmul.mubr.f32.gmra.mrb[0].mxu0 %v2045
      %v3138 = vpop.f32.mrb[0].mxu0
      %v3139 = vadd.f32 0.0, %v3138
      %v3140 = vpop.f32.mrb[0].mxu0
      %3141 = vmatprep.mubr.f32.mxu0 0.0
      %3142 = vmatmul.mubr.f32.gmra.mrb[0].mxu0 %v2048
      %v3143 = vpop.f32.mrb[0].mxu0
      %v3144 = vadd.f32 0.0, %v3143
      %v3145 = vpop.f32.mrb[0].mxu0
      %3146 = vmatprep.mubr.f32.mxu0 0.0
      %3147 = vmatmul.mubr.f32.gmra.mrb[0].mxu0 %v2051
      %v3148 = vpop.f32.mrb[0].mxu0
      %v3149 = vadd.f32 0.0, %v3148
      %v3150 = vpop.f32.mrb[0].mxu0
      %3151 = vmatprep.mubr.f32.mxu0 0.0
      %3152 = vmatmul.mubr.f32.gmra.mrb[0].mxu0 %v2054
      %v3153 = vpop.f32.mrb[0].mxu0
      %v3154 = vadd.f32 0.0, %v3153
      %v3155 = vpop.f32.mrb[0].mxu0
      %3156 = vmatprep.mubr.f32.mxu0 0.0
      %3157 = vmatmul.mubr.f32.gmra.mrb[0].mxu0 %v2057
      %v3158 = vpop.f32.mrb[0].mxu0
      %v3159 = vadd.f32 0.0, %v3158
      %v3160 = vpop.f32.mrb[0].mxu0
      %3161 = vmatprep.mubr.f32.mxu0 0.0
      %3162 = vmatmul.mubr.f32.gmra.mrb[0].mxu0 %v2060
      %v3163 = vpop.f32.mrb[0].mxu0
      %v3164 = vadd.f32 0.0, %v3163
      %v3165 = vpop.f32.mrb[0].mxu0
      %3166 = vmatprep.mubr.f32.mxu0 0.0
      %3167 = vmatmul.mubr.f32.gmra.mrb[0].mxu0 %v2063
      %v3168 = vpop.f32.mrb[0].mxu0
      %v3169 = vadd.f32 0.0, %v3168
      %v3170 = vpop.f32.mrb[0].mxu0
      %3171 = vmatprep.mubr.f32.mxu0 0.0
      %3172 = vmatmul.mubr.f32.gmra.mrb[0].mxu0 %v2066
      %v3173 = vpop.f32.mrb[0].mxu0
      %v3174 = vadd.f32 0.0, %v3173
      %v3175 = vpop.f32.mrb[0].mxu0
      %3176 = vmatprep.mubr.f32.mxu0 0.0
      %3177 = vmatmul.mubr.f32.gmra.mrb[0].mxu0 %v2069
      %v3178 = vpop.f32.mrb[0].mxu0
      %v3179 = vadd.f32 0.0, %v3178
      %v3180 = vpop.f32.mrb[0].mxu0
      %3181 = vmatprep.mubr.f32.mxu0 0.0
      %3182 = vmatmul.mubr.f32.gmra.mrb[0].mxu0 %v2072
      %v3183 = vpop.f32.mrb[0].mxu0
      %v3184 = vadd.f32 0.0, %v3183
      %v3185 = vpop.f32.mrb[0].mxu0
      %3186 = vmatprep.mubr.f32.mxu0 0.0
      %3187 = vmatmul.mubr.f32.gmra.mrb[0].mxu0 %v2075
      %v3188 = vpop.f32.mrb[0].mxu0
      %v3189 = vadd.f32 0.0, %v3188
      %v3190 = vpop.f32.mrb[0].mxu0
      %3191 = vmatprep.mubr.f32.mxu0 0.0
      %3192 = vmatmul.mubr.f32.gmra.mrb[0].mxu0 %v2078
      %v3193 = vpop.f32.mrb[0].mxu0
      %v3194 = vadd.f32 0.0, %v3193
      %v3195 = vpop.f32.mrb[0].mxu0
      %3196 = vmatprep.mubr.f32.mxu0 0.0
      %3197 = vmatmul.mubr.f32.gmra.mrb[0].mxu0 %v2081
      %v3198 = vpop.f32.mrb[0].mxu0
      %v3199 = vadd.f32 0.0, %v3198
      %v3200 = vpop.f32.mrb[0].mxu0
      %3201 = vmatprep.mubr.f32.mxu0 0.0
      %3202 = vmatmul.mubr.f32.gmra.mrb[0].mxu0 %v2084
      %v3203 = vpop.f32.mrb[0].mxu0
      %v3204 = vadd.f32 0.0, %v3203
      %v3205 = vpop.f32.mrb[0].mxu0
      %3206 = vmatprep.mubr.f32.mxu0 0.0
      %3207 = vmatmul.mubr.f32.gmra.mrb[0].mxu0 %v2087
      %v3208 = vpop.f32.mrb[0].mxu0
      %v3209 = vadd.f32 0.0, %v3208
      %v3210 = vpop.f32.mrb[0].mxu0
      %3211 = vmatprep.mubr.f32.mxu0 0.0
      %3212 = vmatmul.mubr.f32.gmra.mrb[0].mxu0 %v2090
      %v3213 = vpop.f32.mrb[0].mxu0
      %v3214 = vadd.f32 0.0, %v3213
      %v3215 = vpop.f32.mrb[0].mxu0
      %3216 = vmatprep.mubr.f32.mxu0 0.0
      %3217 = vmatmul.mubr.f32.gmra.mrb[0].mxu0 %v2093
      %v3218 = vpop.f32.mrb[0].mxu0
      %v3219 = vadd.f32 0.0, %v3218
      %v3220 = vpop.f32.mrb[0].mxu0
      %3221 = vmatprep.mubr.f32.mxu0 0.0
      %3222 = vmatmul.mubr.f32.gmra.mrb[0].mxu0 %v2096
      %v3223 = vpop.f32.mrb[0].mxu0
      %v3224 = vadd.f32 0.0, %v3223
      %v3225 = vpop.f32.mrb[0].mxu0
      %3226 = vmatprep.mubr.f32.mxu0 0.0
      %3227 = vmatmul.mubr.f32.gmra.mrb[0].mxu0 %v2099
      %v3228 = vpop.f32.mrb[0].mxu0
      %v3229 = vadd.f32 0.0, %v3228
      %v3230 = vpop.f32.mrb[0].mxu0
      %3231 = vmatprep.mubr.f32.mxu0 0.0
      %3232 = vmatmul.mubr.f32.gmra.mrb[0].mxu0 %v2102
      %v3233 = vpop.f32.mrb[0].mxu0
      %v3234 = vadd.f32 0.0, %v3233
      %v3235 = vpop.f32.mrb[0].mxu0
      %3236 = vmatprep.mubr.f32.mxu0 0.0
      %3237 = vmatmul.mubr.f32.gmra.mrb[0].mxu0 %v2105
      %v3238 = vpop.f32.mrb[0].mxu0
      %v3239 = vadd.f32 0.0, %v3238
      %v3240 = vpop.f32.mrb[0].mxu0
      %3241 = vmatprep.mubr.f32.mxu0 0.0
      %3242 = vmatmul.mubr.f32.gmra.mrb[0].mxu0 %v2108
      %v3243 = vpop.f32.mrb[0].mxu0
      %v3244 = vadd.f32 0.0, %v3243
      %v3245 = vpop.f32.mrb[0].mxu0
      %3246 = vmatprep.mubr.f32.mxu0 0.0
      %3247 = vmatmul.mubr.f32.gmra.mrb[0].mxu0 %v2111
      %v3248 = vpop.f32.mrb[0].mxu0
      %v3249 = vadd.f32 0.0, %v3248
      %v3250 = vpop.f32.mrb[0].mxu0
      %3251 = vmatprep.mubr.f32.mxu0 0.0
      %3252 = vmatmul.mubr.f32.gmra.mrb[0].mxu0 %v2114
      %v3253 = vpop.f32.mrb[0].mxu0
      %v3254 = vadd.f32 0.0, %v3253
      %v3255 = vpop.f32.mrb[0].mxu0
      %3256 = vmatprep.mubr.f32.mxu0 0.0
      %3257 = vmatmul.mubr.f32.gmra.mrb[0].mxu0 %v2117
      %v3258 = vpop.f32.mrb[0].mxu0
      %v3259 = vadd.f32 0.0, %v3258
      %v3260 = vpop.f32.mrb[0].mxu0
      %3261 = vmatprep.mubr.f32.mxu0 0.0
      %3262 = vmatmul.mubr.f32.gmra.mrb[0].mxu0 %v2120
      %v3263 = vpop.f32.mrb[0].mxu0
      %v3264 = vadd.f32 0.0, %v3263
      %v3265 = vpop.f32.mrb[0].mxu0
      %3266 = vmatprep.mubr.f32.mxu0 0.0
      %3267 = vmatmul.mubr.f32.gmra.mrb[0].mxu0 %v2123
      %v3268 = vpop.f32.mrb[0].mxu0
      %v3269 = vadd.f32 0.0, %v3268
      %v3270 = vpop.f32.mrb[0].mxu0
      %3271 = vmatprep.mubr.f32.mxu0 0.0
      %3272 = vmatmul.mubr.f32.gmra.mrb[0].mxu0 %v2126
      %v3273 = vpop.f32.mrb[0].mxu0
      %v3274 = vadd.f32 0.0, %v3273
      %v3275 = vpop.f32.mrb[0].mxu0
      %3276 = vmatprep.mubr.f32.mxu0 0.0
      %3277 = vmatmul.mubr.f32.gmra.mrb[0].mxu0 %v2129
      %v3278 = vpop.f32.mrb[0].mxu0
      %v3279 = vadd.f32 0.0, %v3278
      %v3280 = vpop.f32.mrb[0].mxu0
      %3281 = vmatprep.mubr.f32.mxu0 0.0
      %3282 = vmatmul.mubr.f32.gmra.mrb[0].mxu0 %v2132
      %v3283 = vpop.f32.mrb[0].mxu0
      %v3284 = vadd.f32 0.0, %v3283
      %v3285 = vpop.f32.mrb[0].mxu0
      %3286 = vmatprep.mubr.f32.mxu0 0.0
      %3287 = vmatmul.mubr.f32.gmra.mrb[0].mxu0 %v2135
      %v3288 = vpop.f32.mrb[0].mxu0
      %v3289 = vadd.f32 0.0, %v3288
      %v3290 = vpop.f32.mrb[0].mxu0
      %3291 = vmatprep.mubr.f32.mxu0 0.0
      %3292 = vmatmul.mubr.f32.gmra.mrb[0].mxu0 %v2138
      %v3293 = vpop.f32.mrb[0].mxu0
      %v3294 = vadd.f32 0.0, %v3293
      %v3295 = vpop.f32.mrb[0].mxu0
      %3296 = vmatprep.mubr.f32.mxu0 0.0
      %3297 = vmatmul.mubr.f32.gmra.mrb[0].mxu0 %v2141
      %v3298 = vpop.f32.mrb[0].mxu0
      %v3299 = vadd.f32 0.0, %v3298
      %v3300 = vpop.f32.mrb[0].mxu0
      %3301 = vmatprep.mubr.f32.mxu0 0.0
      %3302 = vmatmul.mubr.f32.gmra.mrb[0].mxu0 %v2144
      %v3303 = vpop.f32.mrb[0].mxu0
      %v3304 = vadd.f32 0.0, %v3303
      %v3305 = vpop.f32.mrb[0].mxu0
      %3306 = vmatprep.mubr.f32.mxu0 0.0
      %3307 = vmatmul.mubr.f32.gmra.mrb[0].mxu0 %v2147
      %v3308 = vpop.f32.mrb[0].mxu0
      %v3309 = vadd.f32 0.0, %v3308
      %v3310 = vpop.f32.mrb[0].mxu0
      %3311 = vmatprep.mubr.f32.mxu0 0.0
      %3312 = vmatmul.mubr.f32.gmra.mrb[0].mxu0 %v2150
      %v3313 = vpop.f32.mrb[0].mxu0
      %v3314 = vadd.f32 0.0, %v3313
      %v3315 = vpop.f32.mrb[0].mxu0
      %3316 = vmatprep.mubr.f32.mxu0 0.0
      %3317 = vmatmul.mubr.f32.gmra.mrb[0].mxu0 %v2153
      %v3318 = vpop.f32.mrb[0].mxu0
      %v3319 = vadd.f32 0.0, %v3318
      %v3320 = vpop.f32.mrb[0].mxu0
      %3321 = vmatprep.mubr.f32.mxu0 0.0
      %3322 = vmatmul.mubr.f32.gmra.mrb[0].mxu0 %v2156
      %v3323 = vpop.f32.mrb[0].mxu0
      %v3324 = vadd.f32 0.0, %v3323
      %v3325 = vpop.f32.mrb[0].mxu0
      %3326 = vmatprep.mubr.f32.mxu0 0.0
      %3327 = vmatmul.mubr.f32.gmra.mrb[0].mxu0 %v2159
      %v3328 = vpop.f32.mrb[0].mxu0
      %v3329 = vadd.f32 0.0, %v3328
      %v3330 = vpop.f32.mrb[0].mxu0
      %3331 = vmatprep.mubr.f32.mxu0 0.0
      %3332 = vmatmul.mubr.f32.gmra.mrb[0].mxu0 %v2162
      %v3333 = vpop.f32.mrb[0].mxu0
      %v3334 = vadd.f32 0.0, %v3333
      %v3335 = vpop.f32.mrb[0].mxu0
      %3336 = vmatprep.mubr.f32.mxu0 0.0
      %3337 = vmatmul.mubr.f32.gmra.mrb[0].mxu0 %v2165
      %v3338 = vpop.f32.mrb[0].mxu0
      %v3339 = vadd.f32 0.0, %v3338
      %v3340 = vpop.f32.mrb[0].mxu0
      %3341 = vmatprep.mubr.f32.mxu0 0.0
      %3342 = vmatmul.mubr.f32.gmra.mrb[0].mxu0 %v2971
      %v3343 = vpop.f32.mrb[0].mxu0
      %v3344 = vadd.f32 0.0, %v3343
      %v3345 = vpop.f32.mrb[0].mxu0
      %3346 = vmatprep.mubr.f32.mxu0 0.0
      %3347 = vmatmul.mubr.f32.gmra.mrb[0].mxu0 %v2974
      %v3348 = vpop.f32.mrb[0].mxu0
      %v3349 = vadd.f32 0.0, %v3348
      %v3350 = vpop.f32.mrb[0].mxu0
      %3351 = vmatprep.mubr.f32.mxu0 0.0
      %3352 = vmatmul.mubr.f32.gmra.mrb[0].mxu0 %v2977
      %v3353 = vpop.f32.mrb[0].mxu0
      %v3354 = vadd.f32 0.0, %v3353
      %v3355 = vpop.f32.mrb[0].mxu0
      %3356 = vmatprep.mubr.f32.mxu0 0.0
      %3357 = vmatmul.mubr.f32.gmra.mrb[0].mxu0 %v2980
      %v3358 = vpop.f32.mrb[0].mxu0
      %v3359 = vadd.f32 0.0, %v3358
      %v3360 = vpop.f32.mrb[0].mxu0
      %3361 = vmatprep.mubr.f32.mxu0 0.0
      %3362 = vmatmul.mubr.f32.gmra.mrb[0].mxu0 %v2983
      %v3363 = vpop.f32.mrb[0].mxu0
      %v3364 = vadd.f32 0.0, %v3363
      %v3365 = vpop.f32.mrb[0].mxu0
      %3366 = vmatprep.mubr.f32.mxu0 0.0
      %3367 = vmatmul.mubr.f32.gmra.mrb[0].mxu0 %v2986
      %v3368 = vpop.f32.mrb[0].mxu0
      %v3369 = vadd.f32 0.0, %v3368
      %v3370 = vpop.f32.mrb[0].mxu0
      %3371 = vmatprep.mubr.f32.mxu0 0.0
      %3372 = vmatmul.mubr.f32.gmra.mrb[0].mxu0 %v2989
      %v3373 = vpop.f32.mrb[0].mxu0
      %v3374 = vadd.f32 0.0, %v3373
      %v3375 = vpop.f32.mrb[0].mxu0
      %3376 = vmatprep.mubr.f32.mxu0 0.0
      %3377 = vmatmul.mubr.f32.gmra.mrb[0].mxu0 %v2992
      %v3378 = vpop.f32.mrb[0].mxu0
      %v3379 = vadd.f32 0.0, %v3378
      %v3380 = vpop.f32.mrb[0].mxu0
      %3381 = vdwg.mxu0
      %v3382 = vadd.f32 %v2650, %v3064
      %v3383 = vadd.f32 %v2655, %v3069
      %v3384 = vadd.f32 %v2660, %v3074
      %v3385 = vadd.f32 %v2665, %v3079
      %v3386 = vadd.f32 %v2670, %v3084
      %v3387 = vadd.f32 %v2675, %v3089
      %v3388 = vadd.f32 %v2680, %v3094
      %v3389 = vadd.f32 %v2685, %v3099
      %v3390 = vadd.f32 %v2690, %v3104
      %v3391 = vadd.f32 %v2695, %v3109
      %v3392 = vadd.f32 %v2700, %v3114
      %v3393 = vadd.f32 %v2705, %v3119
      %v3394 = vadd.f32 %v2710, %v3124
      %v3395 = vadd.f32 %v2715, %v3129
      %v3396 = vadd.f32 %v2720, %v3134
      %v3397 = vadd.f32 %v2725, %v3139
      %v3398 = vadd.f32 %v2730, %v3144
      %v3399 = vadd.f32 %v2735, %v3149
      %v3400 = vadd.f32 %v2740, %v3154
      %v3401 = vadd.f32 %v2745, %v3159
      %v3402 = vadd.f32 %v2750, %v3164
      %v3403 = vadd.f32 %v2755, %v3169
      %v3404 = vadd.f32 %v2760, %v3174
      %v3405 = vadd.f32 %v2765, %v3179
      %v3406 = vadd.f32 %v2770, %v3184
      %v3407 = vadd.f32 %v2775, %v3189
      %v3408 = vadd.f32 %v2780, %v3194
      %v3409 = vadd.f32 %v2785, %v3199
      %v3410 = vadd.f32 %v2790, %v3204
      %v3411 = vadd.f32 %v2795, %v3209
      %v3412 = vadd.f32 %v2800, %v3214
      %v3413 = vadd.f32 %v2805, %v3219
      %v3414 = vadd.f32 %v2810, %v3224
      %v3415 = vadd.f32 %v2815, %v3229
      %v3416 = vadd.f32 %v2820, %v3234
      %v3417 = vadd.f32 %v2825, %v3239
      %v3418 = vadd.f32 %v2830, %v3244
      %v3419 = vadd.f32 %v2835, %v3249
      %v3420 = vadd.f32 %v2840, %v3254
      %v3421 = vadd.f32 %v2845, %v3259
      %v3422 = vadd.f32 %v2850, %v3264
      %v3423 = vadd.f32 %v2855, %v3269
      %v3424 = vadd.f32 %v2860, %v3274
      %v3425 = vadd.f32 %v2865, %v3279
      %v3426 = vadd.f32 %v2870, %v3284
      %v3427 = vadd.f32 %v2875, %v3289
      %v3428 = vadd.f32 %v2880, %v3294
      %v3429 = vadd.f32 %v2885, %v3299
      %v3430 = vadd.f32 %v2890, %v3304
      %v3431 = vadd.f32 %v2895, %v3309
      %v3432 = vadd.f32 %v2900, %v3314
      %v3433 = vadd.f32 %v2905, %v3319
      %v3434 = vadd.f32 %v2910, %v3324
      %v3435 = vadd.f32 %v2915, %v3329
      %v3436 = vadd.f32 %v2920, %v3334
      %v3437 = vadd.f32 %v2925, %v3339
      %v3438 = vadd.f32 %v2930, %v3344
      %v3439 = vadd.f32 %v2935, %v3349
      %v3440 = vadd.f32 %v2940, %v3354
      %v3441 = vadd.f32 %v2945, %v3359
      %v3442 = vadd.f32 %v2950, %v3364
      %v3443 = vadd.f32 %v2955, %v3369
      %v3444 = vadd.f32 %v2960, %v3374
      %v3445 = vadd.f32 %v2965, %v3379
      %s3446 = scalar_lea.vmem %s3, 12
      %v3447 = vld [vmem:[%s3446] sm:$0xf]
      %s3448 = scalar_lea.vmem %s3, 16
      %v3449 = vld [vmem:[%s3448] sm:$0xf]
      %v3451 = vsel %vm2167, %v3449, 0
      %3453 = vmatprep.subr.mxu0 0.0
      %3454 = vmatpush1.msra.mxu0 %v3451
      %3455 = vmatprep.subr.mxu0 0.0
      %3456 = vmatpush1.msra.mxu0 0.0
      %3457 = vmatprep.subr.mxu0 0.0
      %3458 = vmatpush1.msra.mxu0 0.0
      %3459 = vmatprep.subr.mxu0 0.0
      %3460 = vmatpush1.msra.mxu0 0.0
      %3461 = vmatprep.subr.mxu0 0.0
      %3462 = vmatpush1.msra.mxu0 0.0
      %3463 = vmatprep.subr.mxu0 0.0
      %3464 = vmatpush1.msra.mxu0 0.0
      %3465 = vmatprep.subr.mxu0 0.0
      %3466 = vmatpush1.msra.mxu0 0.0
      %3467 = vmatprep.subr.mxu0 0.0
      %3468 = vmatpush1.msra.mxu0 0.0
      %3469 = vmatprep.subr.mxu0 0.0
      %3470 = vmatpush1.msra.mxu0 0.0
      %3471 = vmatprep.subr.mxu0 0.0
      %3472 = vmatpush1.msra.mxu0 0.0
      %3473 = vmatprep.subr.mxu0 0.0
      %3474 = vmatpush1.msra.mxu0 0.0
      %3475 = vmatprep.subr.mxu0 0.0
      %3476 = vmatpush1.msra.mxu0 0.0
      %3477 = vmatprep.subr.mxu0 0.0
      %3478 = vmatpush1.msra.mxu0 0.0
      %3479 = vmatprep.subr.mxu0 0.0
      %3480 = vmatpush1.msra.mxu0 0.0
      %3481 = vmatprep.subr.mxu0 0.0
      %3482 = vmatpush1.msra.mxu0 0.0
      %3483 = vmatprep.subr.mxu0 0.0
      %3484 = vmatpush1.msra.mxu0 0.0
      %3485 = vmatprep.subr.mxu0 0.0
      %3486 = vmatpush1.msra.mxu0 0.0
      %3487 = vmatprep.subr.mxu0 0.0
      %3488 = vmatpush1.msra.mxu0 0.0
      %3489 = vmatprep.subr.mxu0 0.0
      %3490 = vmatpush1.msra.mxu0 0.0
      %3491 = vmatprep.subr.mxu0 0.0
      %3492 = vmatpush1.msra.mxu0 0.0
      %3493 = vmatprep.subr.mxu0 0.0
      %3494 = vmatpush1.msra.mxu0 0.0
      %3495 = vmatprep.subr.mxu0 0.0
      %3496 = vmatpush1.msra.mxu0 0.0
      %3497 = vmatprep.subr.mxu0 0.0
      %3498 = vmatpush1.msra.mxu0 0.0
      %3499 = vmatprep.subr.mxu0 0.0
      %3500 = vmatpush1.msra.mxu0 0.0
      %3501 = vmatprep.subr.mxu0 0.0
      %3502 = vmatpush1.msra.mxu0 0.0
      %3503 = vmatprep.subr.mxu0 0.0
      %3504 = vmatpush1.msra.mxu0 0.0
      %3505 = vmatprep.subr.mxu0 0.0
      %3506 = vmatpush1.msra.mxu0 0.0
      %3507 = vmatprep.subr.mxu0 0.0
      %3508 = vmatpush1.msra.mxu0 0.0
      %3509 = vmatprep.subr.mxu0 0.0
      %3510 = vmatpush1.msra.mxu0 0.0
      %3511 = vmatprep.subr.mxu0 0.0
      %3512 = vmatpush1.msra.mxu0 0.0
      %3513 = vmatprep.subr.mxu0 0.0
      %3514 = vmatpush1.msra.mxu0 0.0
      %3515 = vmatprep.subr.mxu0 0.0
      %3516 = vmatpush1.msra.mxu0 0.0
      %3517 = vmatprep.mubr.f32.mxu0 0.0
      %3518 = vmatmul.mubr.f32.gmra.mrb[0].mxu0 %v1976
      %v3519 = vpop.f32.mrb[0].mxu0
      %v3520 = vadd.f32 0.0, %v3519
      %v3521 = vpop.f32.mrb[0].mxu0
      %3522 = vmatprep.mubr.f32.mxu0 0.0
      %3523 = vmatmul.mubr.f32.gmra.mrb[0].mxu0 %v1979
      %v3524 = vpop.f32.mrb[0].mxu0
      %v3525 = vadd.f32 0.0, %v3524
      %v3526 = vpop.f32.mrb[0].mxu0
      %3527 = vmatprep.mubr.f32.mxu0 0.0
      %3528 = vmatmul.mubr.f32.gmra.mrb[0].mxu0 %v1982
      %v3529 = vpop.f32.mrb[0].mxu0
      %v3530 = vadd.f32 0.0, %v3529
      %v3531 = vpop.f32.mrb[0].mxu0
      %3532 = vmatprep.mubr.f32.mxu0 0.0
      %3533 = vmatmul.mubr.f32.gmra.mrb[0].mxu0 %v1985
      %v3534 = vpop.f32.mrb[0].mxu0
      %v3535 = vadd.f32 0.0, %v3534
      %v3536 = vpop.f32.mrb[0].mxu0
      %3537 = vmatprep.mubr.f32.mxu0 0.0
      %3538 = vmatmul.mubr.f32.gmra.mrb[0].mxu0 %v1988
      %v3539 = vpop.f32.mrb[0].mxu0
      %v3540 = vadd.f32 0.0, %v3539
      %v3541 = vpop.f32.mrb[0].mxu0
      %3542 = vmatprep.mubr.f32.mxu0 0.0
      %3543 = vmatmul.mubr.f32.gmra.mrb[0].mxu0 %v1991
      %v3544 = vpop.f32.mrb[0].mxu0
      %v3545 = vadd.f32 0.0, %v3544
      %v3546 = vpop.f32.mrb[0].mxu0
      %3547 = vmatprep.mubr.f32.mxu0 0.0
      %3548 = vmatmul.mubr.f32.gmra.mrb[0].mxu0 %v1994
      %v3549 = vpop.f32.mrb[0].mxu0
      %v3550 = vadd.f32 0.0, %v3549
      %v3551 = vpop.f32.mrb[0].mxu0
      %3552 = vmatprep.mubr.f32.mxu0 0.0
      %3553 = vmatmul.mubr.f32.gmra.mrb[0].mxu0 %v1997
      %v3554 = vpop.f32.mrb[0].mxu0
      %v3555 = vadd.f32 0.0, %v3554
      %v3556 = vpop.f32.mrb[0].mxu0
      %3557 = vmatprep.mubr.f32.mxu0 0.0
      %3558 = vmatmul.mubr.f32.gmra.mrb[0].mxu0 %v2000
      %v3559 = vpop.f32.mrb[0].mxu0
      %v3560 = vadd.f32 0.0, %v3559
      %v3561 = vpop.f32.mrb[0].mxu0
      %3562 = vmatprep.mubr.f32.mxu0 0.0
      %3563 = vmatmul.mubr.f32.gmra.mrb[0].mxu0 %v2003
      %v3564 = vpop.f32.mrb[0].mxu0
      %v3565 = vadd.f32 0.0, %v3564
      %v3566 = vpop.f32.mrb[0].mxu0
      %3567 = vmatprep.mubr.f32.mxu0 0.0
      %3568 = vmatmul.mubr.f32.gmra.mrb[0].mxu0 %v2006
      %v3569 = vpop.f32.mrb[0].mxu0
      %v3570 = vadd.f32 0.0, %v3569
      %v3571 = vpop.f32.mrb[0].mxu0
      %3572 = vmatprep.mubr.f32.mxu0 0.0
      %3573 = vmatmul.mubr.f32.gmra.mrb[0].mxu0 %v2009
      %v3574 = vpop.f32.mrb[0].mxu0
      %v3575 = vadd.f32 0.0, %v3574
      %v3576 = vpop.f32.mrb[0].mxu0
      %3577 = vmatprep.mubr.f32.mxu0 0.0
      %3578 = vmatmul.mubr.f32.gmra.mrb[0].mxu0 %v2012
      %v3579 = vpop.f32.mrb[0].mxu0
      %v3580 = vadd.f32 0.0, %v3579
      %v3581 = vpop.f32.mrb[0].mxu0
      %3582 = vmatprep.mubr.f32.mxu0 0.0
      %3583 = vmatmul.mubr.f32.gmra.mrb[0].mxu0 %v2015
      %v3584 = vpop.f32.mrb[0].mxu0
      %v3585 = vadd.f32 0.0, %v3584
      %v3586 = vpop.f32.mrb[0].mxu0
      %3587 = vmatprep.mubr.f32.mxu0 0.0
      %3588 = vmatmul.mubr.f32.gmra.mrb[0].mxu0 %v2018
      %v3589 = vpop.f32.mrb[0].mxu0
      %v3590 = vadd.f32 0.0, %v3589
      %v3591 = vpop.f32.mrb[0].mxu0
      %3592 = vmatprep.mubr.f32.mxu0 0.0
      %3593 = vmatmul.mubr.f32.gmra.mrb[0].mxu0 %v2021
      %v3594 = vpop.f32.mrb[0].mxu0
      %v3595 = vadd.f32 0.0, %v3594
      %v3596 = vpop.f32.mrb[0].mxu0
      %3597 = vmatprep.mubr.f32.mxu0 0.0
      %3598 = vmatmul.mubr.f32.gmra.mrb[0].mxu0 %v2024
      %v3599 = vpop.f32.mrb[0].mxu0
      %v3600 = vadd.f32 0.0, %v3599
      %v3601 = vpop.f32.mrb[0].mxu0
      %3602 = vmatprep.mubr.f32.mxu0 0.0
      %3603 = vmatmul.mubr.f32.gmra.mrb[0].mxu0 %v2027
      %v3604 = vpop.f32.mrb[0].mxu0
      %v3605 = vadd.f32 0.0, %v3604
      %v3606 = vpop.f32.mrb[0].mxu0
      %3607 = vmatprep.mubr.f32.mxu0 0.0
      %3608 = vmatmul.mubr.f32.gmra.mrb[0].mxu0 %v2030
      %v3609 = vpop.f32.mrb[0].mxu0
      %v3610 = vadd.f32 0.0, %v3609
      %v3611 = vpop.f32.mrb[0].mxu0
      %3612 = vmatprep.mubr.f32.mxu0 0.0
      %3613 = vmatmul.mubr.f32.gmra.mrb[0].mxu0 %v2033
      %v3614 = vpop.f32.mrb[0].mxu0
      %v3615 = vadd.f32 0.0, %v3614
      %v3616 = vpop.f32.mrb[0].mxu0
      %3617 = vmatprep.mubr.f32.mxu0 0.0
      %3618 = vmatmul.mubr.f32.gmra.mrb[0].mxu0 %v2036
      %v3619 = vpop.f32.mrb[0].mxu0
      %v3620 = vadd.f32 0.0, %v3619
      %v3621 = vpop.f32.mrb[0].mxu0
      %3622 = vmatprep.mubr.f32.mxu0 0.0
      %3623 = vmatmul.mubr.f32.gmra.mrb[0].mxu0 %v2039
      %v3624 = vpop.f32.mrb[0].mxu0
      %v3625 = vadd.f32 0.0, %v3624
      %v3626 = vpop.f32.mrb[0].mxu0
      %3627 = vmatprep.mubr.f32.mxu0 0.0
      %3628 = vmatmul.mubr.f32.gmra.mrb[0].mxu0 %v2042
      %v3629 = vpop.f32.mrb[0].mxu0
      %v3630 = vadd.f32 0.0, %v3629
      %v3631 = vpop.f32.mrb[0].mxu0
      %3632 = vmatprep.mubr.f32.mxu0 0.0
      %3633 = vmatmul.mubr.f32.gmra.mrb[0].mxu0 %v2045
      %v3634 = vpop.f32.mrb[0].mxu0
      %v3635 = vadd.f32 0.0, %v3634
      %v3636 = vpop.f32.mrb[0].mxu0
      %3637 = vmatprep.mubr.f32.mxu0 0.0
      %3638 = vmatmul.mubr.f32.gmra.mrb[0].mxu0 %v2048
      %v3639 = vpop.f32.mrb[0].mxu0
      %v3640 = vadd.f32 0.0, %v3639
      %v3641 = vpop.f32.mrb[0].mxu0
      %3642 = vmatprep.mubr.f32.mxu0 0.0
      %3643 = vmatmul.mubr.f32.gmra.mrb[0].mxu0 %v2051
      %v3644 = vpop.f32.mrb[0].mxu0
      %v3645 = vadd.f32 0.0, %v3644
      %v3646 = vpop.f32.mrb[0].mxu0
      %3647 = vmatprep.mubr.f32.mxu0 0.0
      %3648 = vmatmul.mubr.f32.gmra.mrb[0].mxu0 %v2054
      %v3649 = vpop.f32.mrb[0].mxu0
      %v3650 = vadd.f32 0.0, %v3649
      %v3651 = vpop.f32.mrb[0].mxu0
      %3652 = vmatprep.mubr.f32.mxu0 0.0
      %3653 = vmatmul.mubr.f32.gmra.mrb[0].mxu0 %v2057
      %v3654 = vpop.f32.mrb[0].mxu0
      %v3655 = vadd.f32 0.0, %v3654
      %v3656 = vpop.f32.mrb[0].mxu0
      %3657 = vmatprep.mubr.f32.mxu0 0.0
      %3658 = vmatmul.mubr.f32.gmra.mrb[0].mxu0 %v2060
      %v3659 = vpop.f32.mrb[0].mxu0
      %v3660 = vadd.f32 0.0, %v3659
      %v3661 = vpop.f32.mrb[0].mxu0
      %3662 = vmatprep.mubr.f32.mxu0 0.0
      %3663 = vmatmul.mubr.f32.gmra.mrb[0].mxu0 %v2063
      %v3664 = vpop.f32.mrb[0].mxu0
      %v3665 = vadd.f32 0.0, %v3664
      %v3666 = vpop.f32.mrb[0].mxu0
      %3667 = vmatprep.mubr.f32.mxu0 0.0
      %3668 = vmatmul.mubr.f32.gmra.mrb[0].mxu0 %v2066
      %v3669 = vpop.f32.mrb[0].mxu0
      %v3670 = vadd.f32 0.0, %v3669
      %v3671 = vpop.f32.mrb[0].mxu0
      %3672 = vmatprep.mubr.f32.mxu0 0.0
      %3673 = vmatmul.mubr.f32.gmra.mrb[0].mxu0 %v2069
      %v3674 = vpop.f32.mrb[0].mxu0
      %v3675 = vadd.f32 0.0, %v3674
      %v3676 = vpop.f32.mrb[0].mxu0
      %3677 = vmatprep.mubr.f32.mxu0 0.0
      %3678 = vmatmul.mubr.f32.gmra.mrb[0].mxu0 %v2072
      %v3679 = vpop.f32.mrb[0].mxu0
      %v3680 = vadd.f32 0.0, %v3679
      %v3681 = vpop.f32.mrb[0].mxu0
      %3682 = vmatprep.mubr.f32.mxu0 0.0
      %3683 = vmatmul.mubr.f32.gmra.mrb[0].mxu0 %v2075
      %v3684 = vpop.f32.mrb[0].mxu0
      %v3685 = vadd.f32 0.0, %v3684
      %v3686 = vpop.f32.mrb[0].mxu0
      %3687 = vmatprep.mubr.f32.mxu0 0.0
      %3688 = vmatmul.mubr.f32.gmra.mrb[0].mxu0 %v2078
      %v3689 = vpop.f32.mrb[0].mxu0
      %v3690 = vadd.f32 0.0, %v3689
      %v3691 = vpop.f32.mrb[0].mxu0
      %3692 = vmatprep.mubr.f32.mxu0 0.0
      %3693 = vmatmul.mubr.f32.gmra.mrb[0].mxu0 %v2081
      %v3694 = vpop.f32.mrb[0].mxu0
      %v3695 = vadd.f32 0.0, %v3694
      %v3696 = vpop.f32.mrb[0].mxu0
      %3697 = vmatprep.mubr.f32.mxu0 0.0
      %3698 = vmatmul.mubr.f32.gmra.mrb[0].mxu0 %v2084
      %v3699 = vpop.f32.mrb[0].mxu0
      %v3700 = vadd.f32 0.0, %v3699
      %v3701 = vpop.f32.mrb[0].mxu0
      %3702 = vmatprep.mubr.f32.mxu0 0.0
      %3703 = vmatmul.mubr.f32.gmra.mrb[0].mxu0 %v2087
      %v3704 = vpop.f32.mrb[0].mxu0
      %v3705 = vadd.f32 0.0, %v3704
      %v3706 = vpop.f32.mrb[0].mxu0
      %3707 = vmatprep.mubr.f32.mxu0 0.0
      %3708 = vmatmul.mubr.f32.gmra.mrb[0].mxu0 %v2090
      %v3709 = vpop.f32.mrb[0].mxu0
      %v3710 = vadd.f32 0.0, %v3709
      %v3711 = vpop.f32.mrb[0].mxu0
      %3712 = vmatprep.mubr.f32.mxu0 0.0
      %3713 = vmatmul.mubr.f32.gmra.mrb[0].mxu0 %v2093
      %v3714 = vpop.f32.mrb[0].mxu0
      %v3715 = vadd.f32 0.0, %v3714
      %v3716 = vpop.f32.mrb[0].mxu0
      %3717 = vmatprep.mubr.f32.mxu0 0.0
      %3718 = vmatmul.mubr.f32.gmra.mrb[0].mxu0 %v2096
      %v3719 = vpop.f32.mrb[0].mxu0
      %v3720 = vadd.f32 0.0, %v3719
      %v3721 = vpop.f32.mrb[0].mxu0
      %3722 = vmatprep.mubr.f32.mxu0 0.0
      %3723 = vmatmul.mubr.f32.gmra.mrb[0].mxu0 %v2099
      %v3724 = vpop.f32.mrb[0].mxu0
      %v3725 = vadd.f32 0.0, %v3724
      %v3726 = vpop.f32.mrb[0].mxu0
      %3727 = vmatprep.mubr.f32.mxu0 0.0
      %3728 = vmatmul.mubr.f32.gmra.mrb[0].mxu0 %v2102
      %v3729 = vpop.f32.mrb[0].mxu0
      %v3730 = vadd.f32 0.0, %v3729
      %v3731 = vpop.f32.mrb[0].mxu0
      %3732 = vmatprep.mubr.f32.mxu0 0.0
      %3733 = vmatmul.mubr.f32.gmra.mrb[0].mxu0 %v2105
      %v3734 = vpop.f32.mrb[0].mxu0
      %v3735 = vadd.f32 0.0, %v3734
      %v3736 = vpop.f32.mrb[0].mxu0
      %3737 = vmatprep.mubr.f32.mxu0 0.0
      %3738 = vmatmul.mubr.f32.gmra.mrb[0].mxu0 %v2108
      %v3739 = vpop.f32.mrb[0].mxu0
      %v3740 = vadd.f32 0.0, %v3739
      %v3741 = vpop.f32.mrb[0].mxu0
      %3742 = vmatprep.mubr.f32.mxu0 0.0
      %3743 = vmatmul.mubr.f32.gmra.mrb[0].mxu0 %v2111
      %v3744 = vpop.f32.mrb[0].mxu0
      %v3745 = vadd.f32 0.0, %v3744
      %v3746 = vpop.f32.mrb[0].mxu0
      %3747 = vmatprep.mubr.f32.mxu0 0.0
      %3748 = vmatmul.mubr.f32.gmra.mrb[0].mxu0 %v2114
      %v3749 = vpop.f32.mrb[0].mxu0
      %v3750 = vadd.f32 0.0, %v3749
      %v3751 = vpop.f32.mrb[0].mxu0
      %3752 = vmatprep.mubr.f32.mxu0 0.0
      %3753 = vmatmul.mubr.f32.gmra.mrb[0].mxu0 %v2117
      %v3754 = vpop.f32.mrb[0].mxu0
      %v3755 = vadd.f32 0.0, %v3754
      %v3756 = vpop.f32.mrb[0].mxu0
      %3757 = vmatprep.mubr.f32.mxu0 0.0
      %3758 = vmatmul.mubr.f32.gmra.mrb[0].mxu0 %v2120
      %v3759 = vpop.f32.mrb[0].mxu0
      %v3760 = vadd.f32 0.0, %v3759
      %v3761 = vpop.f32.mrb[0].mxu0
      %3762 = vmatprep.mubr.f32.mxu0 0.0
      %3763 = vmatmul.mubr.f32.gmra.mrb[0].mxu0 %v2123
      %v3764 = vpop.f32.mrb[0].mxu0
      %v3765 = vadd.f32 0.0, %v3764
      %v3766 = vpop.f32.mrb[0].mxu0
      %3767 = vmatprep.mubr.f32.mxu0 0.0
      %3768 = vmatmul.mubr.f32.gmra.mrb[0].mxu0 %v2126
      %v3769 = vpop.f32.mrb[0].mxu0
      %v3770 = vadd.f32 0.0, %v3769
      %v3771 = vpop.f32.mrb[0].mxu0
      %3772 = vmatprep.mubr.f32.mxu0 0.0
      %3773 = vmatmul.mubr.f32.gmra.mrb[0].mxu0 %v2129
      %v3774 = vpop.f32.mrb[0].mxu0
      %v3775 = vadd.f32 0.0, %v3774
      %v3776 = vpop.f32.mrb[0].mxu0
      %3777 = vmatprep.mubr.f32.mxu0 0.0
      %3778 = vmatmul.mubr.f32.gmra.mrb[0].mxu0 %v2132
      %v3779 = vpop.f32.mrb[0].mxu0
      %v3780 = vadd.f32 0.0, %v3779
      %v3781 = vpop.f32.mrb[0].mxu0
      %3782 = vmatprep.mubr.f32.mxu0 0.0
      %3783 = vmatmul.mubr.f32.gmra.mrb[0].mxu0 %v2135
      %v3784 = vpop.f32.mrb[0].mxu0
      %v3785 = vadd.f32 0.0, %v3784
      %v3786 = vpop.f32.mrb[0].mxu0
      %3787 = vmatprep.mubr.f32.mxu0 0.0
      %3788 = vmatmul.mubr.f32.gmra.mrb[0].mxu0 %v2138
      %v3789 = vpop.f32.mrb[0].mxu0
      %v3790 = vadd.f32 0.0, %v3789
      %v3791 = vpop.f32.mrb[0].mxu0
      %3792 = vmatprep.mubr.f32.mxu0 0.0
      %3793 = vmatmul.mubr.f32.gmra.mrb[0].mxu0 %v2141
      %v3794 = vpop.f32.mrb[0].mxu0
      %v3795 = vadd.f32 0.0, %v3794
      %v3796 = vpop.f32.mrb[0].mxu0
      %3797 = vmatprep.mubr.f32.mxu0 0.0
      %3798 = vmatmul.mubr.f32.gmra.mrb[0].mxu0 %v2144
      %v3799 = vpop.f32.mrb[0].mxu0
      %v3800 = vadd.f32 0.0, %v3799
      %v3801 = vpop.f32.mrb[0].mxu0
      %3802 = vmatprep.mubr.f32.mxu0 0.0
      %3803 = vmatmul.mubr.f32.gmra.mrb[0].mxu0 %v2147
      %v3804 = vpop.f32.mrb[0].mxu0
      %v3805 = vadd.f32 0.0, %v3804
      %v3806 = vpop.f32.mrb[0].mxu0
      %3807 = vmatprep.mubr.f32.mxu0 0.0
      %3808 = vmatmul.mubr.f32.gmra.mrb[0].mxu0 %v2150
      %v3809 = vpop.f32.mrb[0].mxu0
      %v3810 = vadd.f32 0.0, %v3809
      %v3811 = vpop.f32.mrb[0].mxu0
      %3812 = vmatprep.mubr.f32.mxu0 0.0
      %3813 = vmatmul.mubr.f32.gmra.mrb[0].mxu0 %v2153
      %v3814 = vpop.f32.mrb[0].mxu0
      %v3815 = vadd.f32 0.0, %v3814
      %v3816 = vpop.f32.mrb[0].mxu0
      %3817 = vmatprep.mubr.f32.mxu0 0.0
      %3818 = vmatmul.mubr.f32.gmra.mrb[0].mxu0 %v2156
      %v3819 = vpop.f32.mrb[0].mxu0
      %v3820 = vadd.f32 0.0, %v3819
      %v3821 = vpop.f32.mrb[0].mxu0
      %3822 = vmatprep.mubr.f32.mxu0 0.0
      %3823 = vmatmul.mubr.f32.gmra.mrb[0].mxu0 %v2159
      %v3824 = vpop.f32.mrb[0].mxu0
      %v3825 = vadd.f32 0.0, %v3824
      %v3826 = vpop.f32.mrb[0].mxu0
      %3827 = vmatprep.mubr.f32.mxu0 0.0
      %3828 = vmatmul.mubr.f32.gmra.mrb[0].mxu0 %v2162
      %v3829 = vpop.f32.mrb[0].mxu0
      %v3830 = vadd.f32 0.0, %v3829
      %v3831 = vpop.f32.mrb[0].mxu0
      %3832 = vmatprep.mubr.f32.mxu0 0.0
      %3833 = vmatmul.mubr.f32.gmra.mrb[0].mxu0 %v2165
      %v3834 = vpop.f32.mrb[0].mxu0
      %v3835 = vadd.f32 0.0, %v3834
      %v3836 = vpop.f32.mrb[0].mxu0
      %3837 = vdwg.mxu0
      %v3839 = vsel %vm1974, %v1457, 0
      %v3842 = vsel %vm1974, %v1458, 0
      %v3845 = vsel %vm1974, %v1459, 0
      %v3848 = vsel %vm1974, %v1460, 0
      %v3851 = vsel %vm1974, %v1461, 0
      %v3854 = vsel %vm1974, %v1462, 0
      %v3857 = vsel %vm1974, %v1463, 0
      %v3860 = vsel %vm1974, %v1464, 0
      %v3863 = vsel %vm1974, %v1465, 0
      %v3866 = vsel %vm1974, %v1466, 0
      %v3869 = vsel %vm1974, %v1467, 0
      %v3872 = vsel %vm1974, %v1468, 0
      %v3875 = vsel %vm1974, %v1469, 0
      %v3878 = vsel %vm1974, %v1470, 0
      %v3881 = vsel %vm1974, %v1471, 0
      %v3884 = vsel %vm1974, %v1472, 0
      %v3887 = vsel %vm1974, %v1473, 0
      %v3890 = vsel %vm1974, %v1474, 0
      %v3893 = vsel %vm1974, %v1475, 0
      %v3896 = vsel %vm1974, %v1476, 0
      %v3899 = vsel %vm1974, %v1477, 0
      %v3902 = vsel %vm1974, %v1478, 0
      %v3905 = vsel %vm1974, %v1479, 0
      %v3908 = vsel %vm1974, %v1480, 0
      %v3911 = vsel %vm1974, %v1481, 0
      %v3914 = vsel %vm1974, %v1482, 0
      %v3917 = vsel %vm1974, %v1483, 0
      %v3920 = vsel %vm1974, %v1484, 0
      %v3923 = vsel %vm1974, %v1485, 0
      %v3926 = vsel %vm1974, %v1486, 0
      %v3929 = vsel %vm1974, %v1487, 0
      %v3932 = vsel %vm1974, %v1488, 0
      %v3935 = vsel %vm1974, %v1489, 0
      %v3938 = vsel %vm1974, %v1490, 0
      %v3941 = vsel %vm1974, %v1491, 0
      %v3944 = vsel %vm1974, %v1492, 0
      %v3947 = vsel %vm1974, %v1493, 0
      %v3950 = vsel %vm1974, %v1494, 0
      %v3953 = vsel %vm1974, %v1495, 0
      %v3956 = vsel %vm1974, %v1496, 0
      %v3959 = vsel %vm1974, %v1497, 0
      %v3962 = vsel %vm1974, %v1498, 0
      %v3965 = vsel %vm1974, %v1499, 0
      %v3968 = vsel %vm1974, %v1500, 0
      %v3971 = vsel %vm1974, %v1501, 0
      %v3974 = vsel %vm1974, %v1502, 0
      %v3977 = vsel %vm1974, %v1503, 0
      %v3980 = vsel %vm1974, %v1504, 0
      %v3983 = vsel %vm1974, %v1505, 0
      %v3986 = vsel %vm1974, %v1506, 0
      %v3989 = vsel %vm1974, %v1507, 0
      %v3992 = vsel %vm1974, %v1508, 0
      %v3995 = vsel %vm1974, %v1509, 0
      %v3998 = vsel %vm1974, %v1510, 0
      %v4001 = vsel %vm1974, %v1511, 0
      %v4004 = vsel %vm1974, %v1512, 0
      %v4007 = vsel %vm1974, %v1513, 0
      %v4010 = vsel %vm1974, %v1514, 0
      %v4013 = vsel %vm1974, %v1515, 0
      %v4016 = vsel %vm1974, %v1516, 0
      %v4019 = vsel %vm1974, %v1517, 0
      %v4022 = vsel %vm1974, %v1518, 0
      %v4025 = vsel %vm1974, %v1519, 0
      %v4028 = vsel %vm1974, %v1520, 0
      %v4031 = vsel %vm2167, %v3447, 0
      %4033 = vmatprep.subr.mxu0 0.0
      %4034 = vmatpush1.msra.mxu0 %v4031
      %4035 = vmatprep.subr.mxu0 0.0
      %4036 = vmatpush1.msra.mxu0 0.0
      %4037 = vmatprep.subr.mxu0 0.0
      %4038 = vmatpush1.msra.mxu0 0.0
      %4039 = vmatprep.subr.mxu0 0.0
      %4040 = vmatpush1.msra.mxu0 0.0
      %4041 = vmatprep.subr.mxu0 0.0
      %4042 = vmatpush1.msra.mxu0 0.0
      %4043 = vmatprep.subr.mxu0 0.0
      %4044 = vmatpush1.msra.mxu0 0.0
      %4045 = vmatprep.subr.mxu0 0.0
      %4046 = vmatpush1.msra.mxu0 0.0
      %4047 = vmatprep.subr.mxu0 0.0
      %4048 = vmatpush1.msra.mxu0 0.0
      %4049 = vmatprep.subr.mxu0 0.0
      %4050 = vmatpush1.msra.mxu0 0.0
      %4051 = vmatprep.subr.mxu0 0.0
      %4052 = vmatpush1.msra.mxu0 0.0
      %4053 = vmatprep.subr.mxu0 0.0
      %4054 = vmatpush1.msra.mxu0 0.0
      %4055 = vmatprep.subr.mxu0 0.0
      %4056 = vmatpush1.msra.mxu0 0.0
      %4057 = vmatprep.subr.mxu0 0.0
      %4058 = vmatpush1.msra.mxu0 0.0
      %4059 = vmatprep.subr.mxu0 0.0
      %4060 = vmatpush1.msra.mxu0 0.0
      %4061 = vmatprep.subr.mxu0 0.0
      %4062 = vmatpush1.msra.mxu0 0.0
      %4063 = vmatprep.subr.mxu0 0.0
      %4064 = vmatpush1.msra.mxu0 0.0
      %4065 = vmatprep.subr.mxu0 0.0
      %4066 = vmatpush1.msra.mxu0 0.0
      %4067 = vmatprep.subr.mxu0 0.0
      %4068 = vmatpush1.msra.mxu0 0.0
      %4069 = vmatprep.subr.mxu0 0.0
      %4070 = vmatpush1.msra.mxu0 0.0
      %4071 = vmatprep.subr.mxu0 0.0
      %4072 = vmatpush1.msra.mxu0 0.0
      %4073 = vmatprep.subr.mxu0 0.0
      %4074 = vmatpush1.msra.mxu0 0.0
      %4075 = vmatprep.subr.mxu0 0.0
      %4076 = vmatpush1.msra.mxu0 0.0
      %4077 = vmatprep.subr.mxu0 0.0
      %4078 = vmatpush1.msra.mxu0 0.0
      %4079 = vmatprep.subr.mxu0 0.0
      %4080 = vmatpush1.msra.mxu0 0.0
      %4081 = vmatprep.subr.mxu0 0.0
      %4082 = vmatpush1.msra.mxu0 0.0
      %4083 = vmatprep.subr.mxu0 0.0
      %4084 = vmatpush1.msra.mxu0 0.0
      %4085 = vmatprep.subr.mxu0 0.0
      %4086 = vmatpush1.msra.mxu0 0.0
      %4087 = vmatprep.subr.mxu0 0.0
      %4088 = vmatpush1.msra.mxu0 0.0
      %4089 = vmatprep.subr.mxu0 0.0
      %4090 = vmatpush1.msra.mxu0 0.0
      %4091 = vmatprep.subr.mxu0 0.0
      %4092 = vmatpush1.msra.mxu0 0.0
      %4093 = vmatprep.subr.mxu0 0.0
      %4094 = vmatpush1.msra.mxu0 0.0
      %4095 = vmatprep.subr.mxu0 0.0
      %4096 = vmatpush1.msra.mxu0 0.0
      %4097 = vmatprep.mubr.f32.mxu0 0.0
      %4098 = vmatmul.mubr.f32.gmra.mrb[0].mxu0 %v3839
      %v4099 = vpop.f32.mrb[0].mxu0
      %v4100 = vadd.f32 %v3520, %v4099
      %v4101 = vpop.f32.mrb[0].mxu0
      %4102 = vmatprep.mubr.f32.mxu0 0.0
      %4103 = vmatmul.mubr.f32.gmra.mrb[0].mxu0 %v3842
      %v4104 = vpop.f32.mrb[0].mxu0
      %v4105 = vadd.f32 %v3525, %v4104
      %v4106 = vpop.f32.mrb[0].mxu0
      %4107 = vmatprep.mubr.f32.mxu0 0.0
      %4108 = vmatmul.mubr.f32.gmra.mrb[0].mxu0 %v3845
      %v4109 = vpop.f32.mrb[0].mxu0
      %v4110 = vadd.f32 %v3530, %v4109
      %v4111 = vpop.f32.mrb[0].mxu0
      %4112 = vmatprep.mubr.f32.mxu0 0.0
      %4113 = vmatmul.mubr.f32.gmra.mrb[0].mxu0 %v3848
      %v4114 = vpop.f32.mrb[0].mxu0
      %v4115 = vadd.f32 %v3535, %v4114
      %v4116 = vpop.f32.mrb[0].mxu0
      %4117 = vmatprep.mubr.f32.mxu0 0.0
      %4118 = vmatmul.mubr.f32.gmra.mrb[0].mxu0 %v3851
      %v4119 = vpop.f32.mrb[0].mxu0
      %v4120 = vadd.f32 %v3540, %v4119
      %v4121 = vpop.f32.mrb[0].mxu0
      %4122 = vmatprep.mubr.f32.mxu0 0.0
      %4123 = vmatmul.mubr.f32.gmra.mrb[0].mxu0 %v3854
      %v4124 = vpop.f32.mrb[0].mxu0
      %v4125 = vadd.f32 %v3545, %v4124
      %v4126 = vpop.f32.mrb[0].mxu0
      %4127 = vmatprep.mubr.f32.mxu0 0.0
      %4128 = vmatmul.mubr.f32.gmra.mrb[0].mxu0 %v3857
      %v4129 = vpop.f32.mrb[0].mxu0
      %v4130 = vadd.f32 %v3550, %v4129
      %v4131 = vpop.f32.mrb[0].mxu0
      %4132 = vmatprep.mubr.f32.mxu0 0.0
      %4133 = vmatmul.mubr.f32.gmra.mrb[0].mxu0 %v3860
      %v4134 = vpop.f32.mrb[0].mxu0
      %v4135 = vadd.f32 %v3555, %v4134
      %v4136 = vpop.f32.mrb[0].mxu0
      %4137 = vmatprep.mubr.f32.mxu0 0.0
      %4138 = vmatmul.mubr.f32.gmra.mrb[0].mxu0 %v3863
      %v4139 = vpop.f32.mrb[0].mxu0
      %v4140 = vadd.f32 %v3560, %v4139
      %v4141 = vpop.f32.mrb[0].mxu0
      %4142 = vmatprep.mubr.f32.mxu0 0.0
      %4143 = vmatmul.mubr.f32.gmra.mrb[0].mxu0 %v3866
      %v4144 = vpop.f32.mrb[0].mxu0
      %v4145 = vadd.f32 %v3565, %v4144
      %v4146 = vpop.f32.mrb[0].mxu0
      %4147 = vmatprep.mubr.f32.mxu0 0.0
      %4148 = vmatmul.mubr.f32.gmra.mrb[0].mxu0 %v3869
      %v4149 = vpop.f32.mrb[0].mxu0
      %v4150 = vadd.f32 %v3570, %v4149
      %v4151 = vpop.f32.mrb[0].mxu0
      %4152 = vmatprep.mubr.f32.mxu0 0.0
      %4153 = vmatmul.mubr.f32.gmra.mrb[0].mxu0 %v3872
      %v4154 = vpop.f32.mrb[0].mxu0
      %v4155 = vadd.f32 %v3575, %v4154
      %v4156 = vpop.f32.mrb[0].mxu0
      %4157 = vmatprep.mubr.f32.mxu0 0.0
      %4158 = vmatmul.mubr.f32.gmra.mrb[0].mxu0 %v3875
      %v4159 = vpop.f32.mrb[0].mxu0
      %v4160 = vadd.f32 %v3580, %v4159
      %v4161 = vpop.f32.mrb[0].mxu0
      %4162 = vmatprep.mubr.f32.mxu0 0.0
      %4163 = vmatmul.mubr.f32.gmra.mrb[0].mxu0 %v3878
      %v4164 = vpop.f32.mrb[0].mxu0
      %v4165 = vadd.f32 %v3585, %v4164
      %v4166 = vpop.f32.mrb[0].mxu0
      %4167 = vmatprep.mubr.f32.mxu0 0.0
      %4168 = vmatmul.mubr.f32.gmra.mrb[0].mxu0 %v3881
      %v4169 = vpop.f32.mrb[0].mxu0
      %v4170 = vadd.f32 %v3590, %v4169
      %v4171 = vpop.f32.mrb[0].mxu0
      %4172 = vmatprep.mubr.f32.mxu0 0.0
      %4173 = vmatmul.mubr.f32.gmra.mrb[0].mxu0 %v3884
      %v4174 = vpop.f32.mrb[0].mxu0
      %v4175 = vadd.f32 %v3595, %v4174
      %v4176 = vpop.f32.mrb[0].mxu0
      %4177 = vmatprep.mubr.f32.mxu0 0.0
      %4178 = vmatmul.mubr.f32.gmra.mrb[0].mxu0 %v3887
      %v4179 = vpop.f32.mrb[0].mxu0
      %v4180 = vadd.f32 %v3600, %v4179
      %v4181 = vpop.f32.mrb[0].mxu0
      %4182 = vmatprep.mubr.f32.mxu0 0.0
      %4183 = vmatmul.mubr.f32.gmra.mrb[0].mxu0 %v3890
      %v4184 = vpop.f32.mrb[0].mxu0
      %v4185 = vadd.f32 %v3605, %v4184
      %v4186 = vpop.f32.mrb[0].mxu0
      %4187 = vmatprep.mubr.f32.mxu0 0.0
      %4188 = vmatmul.mubr.f32.gmra.mrb[0].mxu0 %v3893
      %v4189 = vpop.f32.mrb[0].mxu0
      %v4190 = vadd.f32 %v3610, %v4189
      %v4191 = vpop.f32.mrb[0].mxu0
      %4192 = vmatprep.mubr.f32.mxu0 0.0
      %4193 = vmatmul.mubr.f32.gmra.mrb[0].mxu0 %v3896
      %v4194 = vpop.f32.mrb[0].mxu0
      %v4195 = vadd.f32 %v3615, %v4194
      %v4196 = vpop.f32.mrb[0].mxu0
      %4197 = vmatprep.mubr.f32.mxu0 0.0
      %4198 = vmatmul.mubr.f32.gmra.mrb[0].mxu0 %v3899
      %v4199 = vpop.f32.mrb[0].mxu0
      %v4200 = vadd.f32 %v3620, %v4199
      %v4201 = vpop.f32.mrb[0].mxu0
      %4202 = vmatprep.mubr.f32.mxu0 0.0
      %4203 = vmatmul.mubr.f32.gmra.mrb[0].mxu0 %v3902
      %v4204 = vpop.f32.mrb[0].mxu0
      %v4205 = vadd.f32 %v3625, %v4204
      %v4206 = vpop.f32.mrb[0].mxu0
      %4207 = vmatprep.mubr.f32.mxu0 0.0
      %4208 = vmatmul.mubr.f32.gmra.mrb[0].mxu0 %v3905
      %v4209 = vpop.f32.mrb[0].mxu0
      %v4210 = vadd.f32 %v3630, %v4209
      %v4211 = vpop.f32.mrb[0].mxu0
      %4212 = vmatprep.mubr.f32.mxu0 0.0
      %4213 = vmatmul.mubr.f32.gmra.mrb[0].mxu0 %v3908
      %v4214 = vpop.f32.mrb[0].mxu0
      %v4215 = vadd.f32 %v3635, %v4214
      %v4216 = vpop.f32.mrb[0].mxu0
      %4217 = vmatprep.mubr.f32.mxu0 0.0
      %4218 = vmatmul.mubr.f32.gmra.mrb[0].mxu0 %v3911
      %v4219 = vpop.f32.mrb[0].mxu0
      %v4220 = vadd.f32 %v3640, %v4219
      %v4221 = vpop.f32.mrb[0].mxu0
      %4222 = vmatprep.mubr.f32.mxu0 0.0
      %4223 = vmatmul.mubr.f32.gmra.mrb[0].mxu0 %v3914
      %v4224 = vpop.f32.mrb[0].mxu0
      %v4225 = vadd.f32 %v3645, %v4224
      %v4226 = vpop.f32.mrb[0].mxu0
      %4227 = vmatprep.mubr.f32.mxu0 0.0
      %4228 = vmatmul.mubr.f32.gmra.mrb[0].mxu0 %v3917
      %v4229 = vpop.f32.mrb[0].mxu0
      %v4230 = vadd.f32 %v3650, %v4229
      %v4231 = vpop.f32.mrb[0].mxu0
      %4232 = vmatprep.mubr.f32.mxu0 0.0
      %4233 = vmatmul.mubr.f32.gmra.mrb[0].mxu0 %v3920
      %v4234 = vpop.f32.mrb[0].mxu0
      %v4235 = vadd.f32 %v3655, %v4234
      %v4236 = vpop.f32.mrb[0].mxu0
      %4237 = vmatprep.mubr.f32.mxu0 0.0
      %4238 = vmatmul.mubr.f32.gmra.mrb[0].mxu0 %v3923
      %v4239 = vpop.f32.mrb[0].mxu0
      %v4240 = vadd.f32 %v3660, %v4239
      %v4241 = vpop.f32.mrb[0].mxu0
      %4242 = vmatprep.mubr.f32.mxu0 0.0
      %4243 = vmatmul.mubr.f32.gmra.mrb[0].mxu0 %v3926
      %v4244 = vpop.f32.mrb[0].mxu0
      %v4245 = vadd.f32 %v3665, %v4244
      %v4246 = vpop.f32.mrb[0].mxu0
      %4247 = vmatprep.mubr.f32.mxu0 0.0
      %4248 = vmatmul.mubr.f32.gmra.mrb[0].mxu0 %v3929
      %v4249 = vpop.f32.mrb[0].mxu0
      %v4250 = vadd.f32 %v3670, %v4249
      %v4251 = vpop.f32.mrb[0].mxu0
      %4252 = vmatprep.mubr.f32.mxu0 0.0
      %4253 = vmatmul.mubr.f32.gmra.mrb[0].mxu0 %v3932
      %v4254 = vpop.f32.mrb[0].mxu0
      %v4255 = vadd.f32 %v3675, %v4254
      %v4256 = vpop.f32.mrb[0].mxu0
      %4257 = vmatprep.mubr.f32.mxu0 0.0
      %4258 = vmatmul.mubr.f32.gmra.mrb[0].mxu0 %v3935
      %v4259 = vpop.f32.mrb[0].mxu0
      %v4260 = vadd.f32 %v3680, %v4259
      %v4261 = vpop.f32.mrb[0].mxu0
      %4262 = vmatprep.mubr.f32.mxu0 0.0
      %4263 = vmatmul.mubr.f32.gmra.mrb[0].mxu0 %v3938
      %v4264 = vpop.f32.mrb[0].mxu0
      %v4265 = vadd.f32 %v3685, %v4264
      %v4266 = vpop.f32.mrb[0].mxu0
      %4267 = vmatprep.mubr.f32.mxu0 0.0
      %4268 = vmatmul.mubr.f32.gmra.mrb[0].mxu0 %v3941
      %v4269 = vpop.f32.mrb[0].mxu0
      %v4270 = vadd.f32 %v3690, %v4269
      %v4271 = vpop.f32.mrb[0].mxu0
      %4272 = vmatprep.mubr.f32.mxu0 0.0
      %4273 = vmatmul.mubr.f32.gmra.mrb[0].mxu0 %v3944
      %v4274 = vpop.f32.mrb[0].mxu0
      %v4275 = vadd.f32 %v3695, %v4274
      %v4276 = vpop.f32.mrb[0].mxu0
      %4277 = vmatprep.mubr.f32.mxu0 0.0
      %4278 = vmatmul.mubr.f32.gmra.mrb[0].mxu0 %v3947
      %v4279 = vpop.f32.mrb[0].mxu0
      %v4280 = vadd.f32 %v3700, %v4279
      %v4281 = vpop.f32.mrb[0].mxu0
      %4282 = vmatprep.mubr.f32.mxu0 0.0
      %4283 = vmatmul.mubr.f32.gmra.mrb[0].mxu0 %v3950
      %v4284 = vpop.f32.mrb[0].mxu0
      %v4285 = vadd.f32 %v3705, %v4284
      %v4286 = vpop.f32.mrb[0].mxu0
      %4287 = vmatprep.mubr.f32.mxu0 0.0
      %4288 = vmatmul.mubr.f32.gmra.mrb[0].mxu0 %v3953
      %v4289 = vpop.f32.mrb[0].mxu0
      %v4290 = vadd.f32 %v3710, %v4289
      %v4291 = vpop.f32.mrb[0].mxu0
      %4292 = vmatprep.mubr.f32.mxu0 0.0
      %4293 = vmatmul.mubr.f32.gmra.mrb[0].mxu0 %v3956
      %v4294 = vpop.f32.mrb[0].mxu0
      %v4295 = vadd.f32 %v3715, %v4294
      %v4296 = vpop.f32.mrb[0].mxu0
      %4297 = vmatprep.mubr.f32.mxu0 0.0
      %4298 = vmatmul.mubr.f32.gmra.mrb[0].mxu0 %v3959
      %v4299 = vpop.f32.mrb[0].mxu0
      %v4300 = vadd.f32 %v3720, %v4299
      %v4301 = vpop.f32.mrb[0].mxu0
      %4302 = vmatprep.mubr.f32.mxu0 0.0
      %4303 = vmatmul.mubr.f32.gmra.mrb[0].mxu0 %v3962
      %v4304 = vpop.f32.mrb[0].mxu0
      %v4305 = vadd.f32 %v3725, %v4304
      %v4306 = vpop.f32.mrb[0].mxu0
      %4307 = vmatprep.mubr.f32.mxu0 0.0
      %4308 = vmatmul.mubr.f32.gmra.mrb[0].mxu0 %v3965
      %v4309 = vpop.f32.mrb[0].mxu0
      %v4310 = vadd.f32 %v3730, %v4309
      %v4311 = vpop.f32.mrb[0].mxu0
      %4312 = vmatprep.mubr.f32.mxu0 0.0
      %4313 = vmatmul.mubr.f32.gmra.mrb[0].mxu0 %v3968
      %v4314 = vpop.f32.mrb[0].mxu0
      %v4315 = vadd.f32 %v3735, %v4314
      %v4316 = vpop.f32.mrb[0].mxu0
      %4317 = vmatprep.mubr.f32.mxu0 0.0
      %4318 = vmatmul.mubr.f32.gmra.mrb[0].mxu0 %v3971
      %v4319 = vpop.f32.mrb[0].mxu0
      %v4320 = vadd.f32 %v3740, %v4319
      %v4321 = vpop.f32.mrb[0].mxu0
      %4322 = vmatprep.mubr.f32.mxu0 0.0
      %4323 = vmatmul.mubr.f32.gmra.mrb[0].mxu0 %v3974
      %v4324 = vpop.f32.mrb[0].mxu0
      %v4325 = vadd.f32 %v3745, %v4324
      %v4326 = vpop.f32.mrb[0].mxu0
      %4327 = vmatprep.mubr.f32.mxu0 0.0
      %4328 = vmatmul.mubr.f32.gmra.mrb[0].mxu0 %v3977
      %v4329 = vpop.f32.mrb[0].mxu0
      %v4330 = vadd.f32 %v3750, %v4329
      %v4331 = vpop.f32.mrb[0].mxu0
      %4332 = vmatprep.mubr.f32.mxu0 0.0
      %4333 = vmatmul.mubr.f32.gmra.mrb[0].mxu0 %v3980
      %v4334 = vpop.f32.mrb[0].mxu0
      %v4335 = vadd.f32 %v3755, %v4334
      %v4336 = vpop.f32.mrb[0].mxu0
      %4337 = vmatprep.mubr.f32.mxu0 0.0
      %4338 = vmatmul.mubr.f32.gmra.mrb[0].mxu0 %v3983
      %v4339 = vpop.f32.mrb[0].mxu0
      %v4340 = vadd.f32 %v3760, %v4339
      %v4341 = vpop.f32.mrb[0].mxu0
      %4342 = vmatprep.mubr.f32.mxu0 0.0
      %4343 = vmatmul.mubr.f32.gmra.mrb[0].mxu0 %v3986
      %v4344 = vpop.f32.mrb[0].mxu0
      %v4345 = vadd.f32 %v3765, %v4344
      %v4346 = vpop.f32.mrb[0].mxu0
      %4347 = vmatprep.mubr.f32.mxu0 0.0
      %4348 = vmatmul.mubr.f32.gmra.mrb[0].mxu0 %v3989
      %v4349 = vpop.f32.mrb[0].mxu0
      %v4350 = vadd.f32 %v3770, %v4349
      %v4351 = vpop.f32.mrb[0].mxu0
      %4352 = vmatprep.mubr.f32.mxu0 0.0
      %4353 = vmatmul.mubr.f32.gmra.mrb[0].mxu0 %v3992
      %v4354 = vpop.f32.mrb[0].mxu0
      %v4355 = vadd.f32 %v3775, %v4354
      %v4356 = vpop.f32.mrb[0].mxu0
      %4357 = vmatprep.mubr.f32.mxu0 0.0
      %4358 = vmatmul.mubr.f32.gmra.mrb[0].mxu0 %v3995
      %v4359 = vpop.f32.mrb[0].mxu0
      %v4360 = vadd.f32 %v3780, %v4359
      %v4361 = vpop.f32.mrb[0].mxu0
      %4362 = vmatprep.mubr.f32.mxu0 0.0
      %4363 = vmatmul.mubr.f32.gmra.mrb[0].mxu0 %v3998
      %v4364 = vpop.f32.mrb[0].mxu0
      %v4365 = vadd.f32 %v3785, %v4364
      %v4366 = vpop.f32.mrb[0].mxu0
      %4367 = vmatprep.mubr.f32.mxu0 0.0
      %4368 = vmatmul.mubr.f32.gmra.mrb[0].mxu0 %v4001
      %v4369 = vpop.f32.mrb[0].mxu0
      %v4370 = vadd.f32 %v3790, %v4369
      %v4371 = vpop.f32.mrb[0].mxu0
      %4372 = vmatprep.mubr.f32.mxu0 0.0
      %4373 = vmatmul.mubr.f32.gmra.mrb[0].mxu0 %v4004
      %v4374 = vpop.f32.mrb[0].mxu0
      %v4375 = vadd.f32 %v3795, %v4374
      %v4376 = vpop.f32.mrb[0].mxu0
      %4377 = vmatprep.mubr.f32.mxu0 0.0
      %4378 = vmatmul.mubr.f32.gmra.mrb[0].mxu0 %v4007
      %v4379 = vpop.f32.mrb[0].mxu0
      %v4380 = vadd.f32 %v3800, %v4379
      %v4381 = vpop.f32.mrb[0].mxu0
      %4382 = vmatprep.mubr.f32.mxu0 0.0
      %4383 = vmatmul.mubr.f32.gmra.mrb[0].mxu0 %v4010
      %v4384 = vpop.f32.mrb[0].mxu0
      %v4385 = vadd.f32 %v3805, %v4384
      %v4386 = vpop.f32.mrb[0].mxu0
      %4387 = vmatprep.mubr.f32.mxu0 0.0
      %4388 = vmatmul.mubr.f32.gmra.mrb[0].mxu0 %v4013
      %v4389 = vpop.f32.mrb[0].mxu0
      %v4390 = vadd.f32 %v3810, %v4389
      %v4391 = vpop.f32.mrb[0].mxu0
      %4392 = vmatprep.mubr.f32.mxu0 0.0
      %4393 = vmatmul.mubr.f32.gmra.mrb[0].mxu0 %v4016
      %v4394 = vpop.f32.mrb[0].mxu0
      %v4395 = vadd.f32 %v3815, %v4394
      %v4396 = vpop.f32.mrb[0].mxu0
      %4397 = vmatprep.mubr.f32.mxu0 0.0
      %4398 = vmatmul.mubr.f32.gmra.mrb[0].mxu0 %v4019
      %v4399 = vpop.f32.mrb[0].mxu0
      %v4400 = vadd.f32 %v3820, %v4399
      %v4401 = vpop.f32.mrb[0].mxu0
      %4402 = vmatprep.mubr.f32.mxu0 0.0
      %4403 = vmatmul.mubr.f32.gmra.mrb[0].mxu0 %v4022
      %v4404 = vpop.f32.mrb[0].mxu0
      %v4405 = vadd.f32 %v3825, %v4404
      %v4406 = vpop.f32.mrb[0].mxu0
      %4407 = vmatprep.mubr.f32.mxu0 0.0
      %4408 = vmatmul.mubr.f32.gmra.mrb[0].mxu0 %v4025
      %v4409 = vpop.f32.mrb[0].mxu0
      %v4410 = vadd.f32 %v3830, %v4409
      %v4411 = vpop.f32.mrb[0].mxu0
      %4412 = vmatprep.mubr.f32.mxu0 0.0
      %4413 = vmatmul.mubr.f32.gmra.mrb[0].mxu0 %v4028
      %v4414 = vpop.f32.mrb[0].mxu0
      %v4415 = vadd.f32 %v3835, %v4414
      %v4416 = vpop.f32.mrb[0].mxu0
      %4417 = vdwg.mxu0
      %s4418 = scalar_lea.vmem %s3, 20
      %v4419 = vld [vmem:[%s4418] sm:$0xf]
      %v4421 = vsel %vm1974, %v1521, 0
      %v4424 = vsel %vm1974, %v1522, 0
      %v4427 = vsel %vm1974, %v1523, 0
      %v4430 = vsel %vm1974, %v1524, 0
      %v4433 = vsel %vm1974, %v1525, 0
      %v4436 = vsel %vm1974, %v1526, 0
      %v4439 = vsel %vm1974, %v1527, 0
      %v4442 = vsel %vm1974, %v1528, 0
      %v4445 = vsel %vm1974, %v1529, 0
      %v4448 = vsel %vm1974, %v1530, 0
      %v4451 = vsel %vm1974, %v1531, 0
      %v4454 = vsel %vm1974, %v1532, 0
      %v4457 = vsel %vm1974, %v1533, 0
      %v4460 = vsel %vm1974, %v1534, 0
      %v4463 = vsel %vm1974, %v1535, 0
      %v4466 = vsel %vm1974, %v1536, 0
      %v4469 = vsel %vm1974, %v1537, 0
      %v4472 = vsel %vm1974, %v1538, 0
      %v4475 = vsel %vm1974, %v1539, 0
      %v4478 = vsel %vm1974, %v1540, 0
      %v4481 = vsel %vm1974, %v1541, 0
      %v4484 = vsel %vm1974, %v1542, 0
      %v4487 = vsel %vm1974, %v1543, 0
      %v4490 = vsel %vm1974, %v1544, 0
      %v4493 = vsel %vm1974, %v1545, 0
      %v4496 = vsel %vm1974, %v1546, 0
      %v4499 = vsel %vm1974, %v1547, 0
      %v4502 = vsel %vm1974, %v1548, 0
      %v4505 = vsel %vm1974, %v1549, 0
      %v4508 = vsel %vm1974, %v1550, 0
      %v4511 = vsel %vm1974, %v1551, 0
      %v4514 = vsel %vm1974, %v1552, 0
      %v4517 = vsel %vm1974, %v1553, 0
      %v4520 = vsel %vm1974, %v1554, 0
      %v4523 = vsel %vm1974, %v1555, 0
      %v4526 = vsel %vm1974, %v1556, 0
      %v4529 = vsel %vm1974, %v1557, 0
      %v4532 = vsel %vm1974, %v1558, 0
      %v4535 = vsel %vm1974, %v1559, 0
      %v4538 = vsel %vm1974, %v1560, 0
      %v4541 = vsel %vm1974, %v1561, 0
      %v4544 = vsel %vm1974, %v1562, 0
      %v4547 = vsel %vm1974, %v1563, 0
      %v4550 = vsel %vm1974, %v1564, 0
      %v4553 = vsel %vm1974, %v1565, 0
      %v4556 = vsel %vm1974, %v1566, 0
      %v4559 = vsel %vm1974, %v1567, 0
      %v4562 = vsel %vm1974, %v1568, 0
      %v4565 = vsel %vm1974, %v1569, 0
      %v4568 = vsel %vm1974, %v1570, 0
      %v4571 = vsel %vm1974, %v1571, 0
      %v4574 = vsel %vm1974, %v1572, 0
      %v4577 = vsel %vm1974, %v1573, 0
      %v4580 = vsel %vm1974, %v1574, 0
      %v4583 = vsel %vm1974, %v1575, 0
      %v4586 = vsel %vm1974, %v1576, 0
      %v4589 = vsel %vm1974, %v1577, 0
      %v4592 = vsel %vm1974, %v1578, 0
      %v4595 = vsel %vm1974, %v1579, 0
      %v4598 = vsel %vm1974, %v1580, 0
      %v4601 = vsel %vm1974, %v1581, 0
      %v4604 = vsel %vm1974, %v1582, 0
      %v4607 = vsel %vm1974, %v1583, 0
      %v4610 = vsel %vm1974, %v1584, 0
      %v4613 = vsel %vm2167, %v4419, 0
      %4615 = vmatprep.subr.mxu0 0.0
      %4616 = vmatpush1.msra.mxu0 %v4613
      %4617 = vmatprep.subr.mxu0 0.0
      %4618 = vmatpush1.msra.mxu0 0.0
      %4619 = vmatprep.subr.mxu0 0.0
      %4620 = vmatpush1.msra.mxu0 0.0
      %4621 = vmatprep.subr.mxu0 0.0
      %4622 = vmatpush1.msra.mxu0 0.0
      %4623 = vmatprep.subr.mxu0 0.0
      %4624 = vmatpush1.msra.mxu0 0.0
      %4625 = vmatprep.subr.mxu0 0.0
      %4626 = vmatpush1.msra.mxu0 0.0
      %4627 = vmatprep.subr.mxu0 0.0
      %4628 = vmatpush1.msra.mxu0 0.0
      %4629 = vmatprep.subr.mxu0 0.0
      %4630 = vmatpush1.msra.mxu0 0.0
      %4631 = vmatprep.subr.mxu0 0.0
      %4632 = vmatpush1.msra.mxu0 0.0
      %4633 = vmatprep.subr.mxu0 0.0
      %4634 = vmatpush1.msra.mxu0 0.0
      %4635 = vmatprep.subr.mxu0 0.0
      %4636 = vmatpush1.msra.mxu0 0.0
      %4637 = vmatprep.subr.mxu0 0.0
      %4638 = vmatpush1.msra.mxu0 0.0
      %4639 = vmatprep.subr.mxu0 0.0
      %4640 = vmatpush1.msra.mxu0 0.0
      %4641 = vmatprep.subr.mxu0 0.0
      %4642 = vmatpush1.msra.mxu0 0.0
      %4643 = vmatprep.subr.mxu0 0.0
      %4644 = vmatpush1.msra.mxu0 0.0
      %4645 = vmatprep.subr.mxu0 0.0
      %4646 = vmatpush1.msra.mxu0 0.0
      %4647 = vmatprep.subr.mxu0 0.0
      %4648 = vmatpush1.msra.mxu0 0.0
      %4649 = vmatprep.subr.mxu0 0.0
      %4650 = vmatpush1.msra.mxu0 0.0
      %4651 = vmatprep.subr.mxu0 0.0
      %4652 = vmatpush1.msra.mxu0 0.0
      %4653 = vmatprep.subr.mxu0 0.0
      %4654 = vmatpush1.msra.mxu0 0.0
      %4655 = vmatprep.subr.mxu0 0.0
      %4656 = vmatpush1.msra.mxu0 0.0
      %4657 = vmatprep.subr.mxu0 0.0
      %4658 = vmatpush1.msra.mxu0 0.0
      %4659 = vmatprep.subr.mxu0 0.0
      %4660 = vmatpush1.msra.mxu0 0.0
      %4661 = vmatprep.subr.mxu0 0.0
      %4662 = vmatpush1.msra.mxu0 0.0
      %4663 = vmatprep.subr.mxu0 0.0
      %4664 = vmatpush1.msra.mxu0 0.0
      %4665 = vmatprep.subr.mxu0 0.0
      %4666 = vmatpush1.msra.mxu0 0.0
      %4667 = vmatprep.subr.mxu0 0.0
      %4668 = vmatpush1.msra.mxu0 0.0
      %4669 = vmatprep.subr.mxu0 0.0
      %4670 = vmatpush1.msra.mxu0 0.0
      %4671 = vmatprep.subr.mxu0 0.0
      %4672 = vmatpush1.msra.mxu0 0.0
      %4673 = vmatprep.subr.mxu0 0.0
      %4674 = vmatpush1.msra.mxu0 0.0
      %4675 = vmatprep.subr.mxu0 0.0
      %4676 = vmatpush1.msra.mxu0 0.0
      %4677 = vmatprep.subr.mxu0 0.0
      %4678 = vmatpush1.msra.mxu0 0.0
      %4679 = vmatprep.mubr.f32.mxu0 0.0
      %4680 = vmatmul.mubr.f32.gmra.mrb[0].mxu0 %v4421
      %v4681 = vpop.f32.mrb[0].mxu0
      %v4682 = vadd.f32 0.0, %v4681
      %v4683 = vpop.f32.mrb[0].mxu0
      %4684 = vmatprep.mubr.f32.mxu0 0.0
      %4685 = vmatmul.mubr.f32.gmra.mrb[0].mxu0 %v4424
      %v4686 = vpop.f32.mrb[0].mxu0
      %v4687 = vadd.f32 0.0, %v4686
      %v4688 = vpop.f32.mrb[0].mxu0
      %4689 = vmatprep.mubr.f32.mxu0 0.0
      %4690 = vmatmul.mubr.f32.gmra.mrb[0].mxu0 %v4427
      %v4691 = vpop.f32.mrb[0].mxu0
      %v4692 = vadd.f32 0.0, %v4691
      %v4693 = vpop.f32.mrb[0].mxu0
      %4694 = vmatprep.mubr.f32.mxu0 0.0
      %4695 = vmatmul.mubr.f32.gmra.mrb[0].mxu0 %v4430
      %v4696 = vpop.f32.mrb[0].mxu0
      %v4697 = vadd.f32 0.0, %v4696
      %v4698 = vpop.f32.mrb[0].mxu0
      %4699 = vmatprep.mubr.f32.mxu0 0.0
      %4700 = vmatmul.mubr.f32.gmra.mrb[0].mxu0 %v4433
      %v4701 = vpop.f32.mrb[0].mxu0
      %v4702 = vadd.f32 0.0, %v4701
      %v4703 = vpop.f32.mrb[0].mxu0
      %4704 = vmatprep.mubr.f32.mxu0 0.0
      %4705 = vmatmul.mubr.f32.gmra.mrb[0].mxu0 %v4436
      %v4706 = vpop.f32.mrb[0].mxu0
      %v4707 = vadd.f32 0.0, %v4706
      %v4708 = vpop.f32.mrb[0].mxu0
      %4709 = vmatprep.mubr.f32.mxu0 0.0
      %4710 = vmatmul.mubr.f32.gmra.mrb[0].mxu0 %v4439
      %v4711 = vpop.f32.mrb[0].mxu0
      %v4712 = vadd.f32 0.0, %v4711
      %v4713 = vpop.f32.mrb[0].mxu0
      %4714 = vmatprep.mubr.f32.mxu0 0.0
      %4715 = vmatmul.mubr.f32.gmra.mrb[0].mxu0 %v4442
      %v4716 = vpop.f32.mrb[0].mxu0
      %v4717 = vadd.f32 0.0, %v4716
      %v4718 = vpop.f32.mrb[0].mxu0
      %4719 = vmatprep.mubr.f32.mxu0 0.0
      %4720 = vmatmul.mubr.f32.gmra.mrb[0].mxu0 %v4445
      %v4721 = vpop.f32.mrb[0].mxu0
      %v4722 = vadd.f32 0.0, %v4721
      %v4723 = vpop.f32.mrb[0].mxu0
      %4724 = vmatprep.mubr.f32.mxu0 0.0
      %4725 = vmatmul.mubr.f32.gmra.mrb[0].mxu0 %v4448
      %v4726 = vpop.f32.mrb[0].mxu0
      %v4727 = vadd.f32 0.0, %v4726
      %v4728 = vpop.f32.mrb[0].mxu0
      %4729 = vmatprep.mubr.f32.mxu0 0.0
      %4730 = vmatmul.mubr.f32.gmra.mrb[0].mxu0 %v4451
      %v4731 = vpop.f32.mrb[0].mxu0
      %v4732 = vadd.f32 0.0, %v4731
      %v4733 = vpop.f32.mrb[0].mxu0
      %4734 = vmatprep.mubr.f32.mxu0 0.0
      %4735 = vmatmul.mubr.f32.gmra.mrb[0].mxu0 %v4454
      %v4736 = vpop.f32.mrb[0].mxu0
      %v4737 = vadd.f32 0.0, %v4736
      %v4738 = vpop.f32.mrb[0].mxu0
      %4739 = vmatprep.mubr.f32.mxu0 0.0
      %4740 = vmatmul.mubr.f32.gmra.mrb[0].mxu0 %v4457
      %v4741 = vpop.f32.mrb[0].mxu0
      %v4742 = vadd.f32 0.0, %v4741
      %v4743 = vpop.f32.mrb[0].mxu0
      %4744 = vmatprep.mubr.f32.mxu0 0.0
      %4745 = vmatmul.mubr.f32.gmra.mrb[0].mxu0 %v4460
      %v4746 = vpop.f32.mrb[0].mxu0
      %v4747 = vadd.f32 0.0, %v4746
      %v4748 = vpop.f32.mrb[0].mxu0
      %4749 = vmatprep.mubr.f32.mxu0 0.0
      %4750 = vmatmul.mubr.f32.gmra.mrb[0].mxu0 %v4463
      %v4751 = vpop.f32.mrb[0].mxu0
      %v4752 = vadd.f32 0.0, %v4751
      %v4753 = vpop.f32.mrb[0].mxu0
      %4754 = vmatprep.mubr.f32.mxu0 0.0
      %4755 = vmatmul.mubr.f32.gmra.mrb[0].mxu0 %v4466
      %v4756 = vpop.f32.mrb[0].mxu0
      %v4757 = vadd.f32 0.0, %v4756
      %v4758 = vpop.f32.mrb[0].mxu0
      %4759 = vmatprep.mubr.f32.mxu0 0.0
      %4760 = vmatmul.mubr.f32.gmra.mrb[0].mxu0 %v4469
      %v4761 = vpop.f32.mrb[0].mxu0
      %v4762 = vadd.f32 0.0, %v4761
      %v4763 = vpop.f32.mrb[0].mxu0
      %4764 = vmatprep.mubr.f32.mxu0 0.0
      %4765 = vmatmul.mubr.f32.gmra.mrb[0].mxu0 %v4472
      %v4766 = vpop.f32.mrb[0].mxu0
      %v4767 = vadd.f32 0.0, %v4766
      %v4768 = vpop.f32.mrb[0].mxu0
      %4769 = vmatprep.mubr.f32.mxu0 0.0
      %4770 = vmatmul.mubr.f32.gmra.mrb[0].mxu0 %v4475
      %v4771 = vpop.f32.mrb[0].mxu0
      %v4772 = vadd.f32 0.0, %v4771
      %v4773 = vpop.f32.mrb[0].mxu0
      %4774 = vmatprep.mubr.f32.mxu0 0.0
      %4775 = vmatmul.mubr.f32.gmra.mrb[0].mxu0 %v4478
      %v4776 = vpop.f32.mrb[0].mxu0
      %v4777 = vadd.f32 0.0, %v4776
      %v4778 = vpop.f32.mrb[0].mxu0
      %4779 = vmatprep.mubr.f32.mxu0 0.0
      %4780 = vmatmul.mubr.f32.gmra.mrb[0].mxu0 %v4481
      %v4781 = vpop.f32.mrb[0].mxu0
      %v4782 = vadd.f32 0.0, %v4781
      %v4783 = vpop.f32.mrb[0].mxu0
      %4784 = vmatprep.mubr.f32.mxu0 0.0
      %4785 = vmatmul.mubr.f32.gmra.mrb[0].mxu0 %v4484
      %v4786 = vpop.f32.mrb[0].mxu0
      %v4787 = vadd.f32 0.0, %v4786
      %v4788 = vpop.f32.mrb[0].mxu0
      %4789 = vmatprep.mubr.f32.mxu0 0.0
      %4790 = vmatmul.mubr.f32.gmra.mrb[0].mxu0 %v4487
      %v4791 = vpop.f32.mrb[0].mxu0
      %v4792 = vadd.f32 0.0, %v4791
      %v4793 = vpop.f32.mrb[0].mxu0
      %4794 = vmatprep.mubr.f32.mxu0 0.0
      %4795 = vmatmul.mubr.f32.gmra.mrb[0].mxu0 %v4490
      %v4796 = vpop.f32.mrb[0].mxu0
      %v4797 = vadd.f32 0.0, %v4796
      %v4798 = vpop.f32.mrb[0].mxu0
      %4799 = vmatprep.mubr.f32.mxu0 0.0
      %4800 = vmatmul.mubr.f32.gmra.mrb[0].mxu0 %v4493
      %v4801 = vpop.f32.mrb[0].mxu0
      %v4802 = vadd.f32 0.0, %v4801
      %v4803 = vpop.f32.mrb[0].mxu0
      %4804 = vmatprep.mubr.f32.mxu0 0.0
      %4805 = vmatmul.mubr.f32.gmra.mrb[0].mxu0 %v4496
      %v4806 = vpop.f32.mrb[0].mxu0
      %v4807 = vadd.f32 0.0, %v4806
      %v4808 = vpop.f32.mrb[0].mxu0
      %4809 = vmatprep.mubr.f32.mxu0 0.0
      %4810 = vmatmul.mubr.f32.gmra.mrb[0].mxu0 %v4499
      %v4811 = vpop.f32.mrb[0].mxu0
      %v4812 = vadd.f32 0.0, %v4811
      %v4813 = vpop.f32.mrb[0].mxu0
      %4814 = vmatprep.mubr.f32.mxu0 0.0
      %4815 = vmatmul.mubr.f32.gmra.mrb[0].mxu0 %v4502
      %v4816 = vpop.f32.mrb[0].mxu0
      %v4817 = vadd.f32 0.0, %v4816
      %v4818 = vpop.f32.mrb[0].mxu0
      %4819 = vmatprep.mubr.f32.mxu0 0.0
      %4820 = vmatmul.mubr.f32.gmra.mrb[0].mxu0 %v4505
      %v4821 = vpop.f32.mrb[0].mxu0
      %v4822 = vadd.f32 0.0, %v4821
      %v4823 = vpop.f32.mrb[0].mxu0
      %4824 = vmatprep.mubr.f32.mxu0 0.0
      %4825 = vmatmul.mubr.f32.gmra.mrb[0].mxu0 %v4508
      %v4826 = vpop.f32.mrb[0].mxu0
      %v4827 = vadd.f32 0.0, %v4826
      %v4828 = vpop.f32.mrb[0].mxu0
      %4829 = vmatprep.mubr.f32.mxu0 0.0
      %4830 = vmatmul.mubr.f32.gmra.mrb[0].mxu0 %v4511
      %v4831 = vpop.f32.mrb[0].mxu0
      %v4832 = vadd.f32 0.0, %v4831
      %v4833 = vpop.f32.mrb[0].mxu0
      %4834 = vmatprep.mubr.f32.mxu0 0.0
      %4835 = vmatmul.mubr.f32.gmra.mrb[0].mxu0 %v4514
      %v4836 = vpop.f32.mrb[0].mxu0
      %v4837 = vadd.f32 0.0, %v4836
      %v4838 = vpop.f32.mrb[0].mxu0
      %4839 = vmatprep.mubr.f32.mxu0 0.0
      %4840 = vmatmul.mubr.f32.gmra.mrb[0].mxu0 %v4517
      %v4841 = vpop.f32.mrb[0].mxu0
      %v4842 = vadd.f32 0.0, %v4841
      %v4843 = vpop.f32.mrb[0].mxu0
      %4844 = vmatprep.mubr.f32.mxu0 0.0
      %4845 = vmatmul.mubr.f32.gmra.mrb[0].mxu0 %v4520
      %v4846 = vpop.f32.mrb[0].mxu0
      %v4847 = vadd.f32 0.0, %v4846
      %v4848 = vpop.f32.mrb[0].mxu0
      %4849 = vmatprep.mubr.f32.mxu0 0.0
      %4850 = vmatmul.mubr.f32.gmra.mrb[0].mxu0 %v4523
      %v4851 = vpop.f32.mrb[0].mxu0
      %v4852 = vadd.f32 0.0, %v4851
      %v4853 = vpop.f32.mrb[0].mxu0
      %4854 = vmatprep.mubr.f32.mxu0 0.0
      %4855 = vmatmul.mubr.f32.gmra.mrb[0].mxu0 %v4526
      %v4856 = vpop.f32.mrb[0].mxu0
      %v4857 = vadd.f32 0.0, %v4856
      %v4858 = vpop.f32.mrb[0].mxu0
      %4859 = vmatprep.mubr.f32.mxu0 0.0
      %4860 = vmatmul.mubr.f32.gmra.mrb[0].mxu0 %v4529
      %v4861 = vpop.f32.mrb[0].mxu0
      %v4862 = vadd.f32 0.0, %v4861
      %v4863 = vpop.f32.mrb[0].mxu0
      %4864 = vmatprep.mubr.f32.mxu0 0.0
      %4865 = vmatmul.mubr.f32.gmra.mrb[0].mxu0 %v4532
      %v4866 = vpop.f32.mrb[0].mxu0
      %v4867 = vadd.f32 0.0, %v4866
      %v4868 = vpop.f32.mrb[0].mxu0
      %4869 = vmatprep.mubr.f32.mxu0 0.0
      %4870 = vmatmul.mubr.f32.gmra.mrb[0].mxu0 %v4535
      %v4871 = vpop.f32.mrb[0].mxu0
      %v4872 = vadd.f32 0.0, %v4871
      %v4873 = vpop.f32.mrb[0].mxu0
      %4874 = vmatprep.mubr.f32.mxu0 0.0
      %4875 = vmatmul.mubr.f32.gmra.mrb[0].mxu0 %v4538
      %v4876 = vpop.f32.mrb[0].mxu0
      %v4877 = vadd.f32 0.0, %v4876
      %v4878 = vpop.f32.mrb[0].mxu0
      %4879 = vmatprep.mubr.f32.mxu0 0.0
      %4880 = vmatmul.mubr.f32.gmra.mrb[0].mxu0 %v4541
      %v4881 = vpop.f32.mrb[0].mxu0
      %v4882 = vadd.f32 0.0, %v4881
      %v4883 = vpop.f32.mrb[0].mxu0
      %4884 = vmatprep.mubr.f32.mxu0 0.0
      %4885 = vmatmul.mubr.f32.gmra.mrb[0].mxu0 %v4544
      %v4886 = vpop.f32.mrb[0].mxu0
      %v4887 = vadd.f32 0.0, %v4886
      %v4888 = vpop.f32.mrb[0].mxu0
      %4889 = vmatprep.mubr.f32.mxu0 0.0
      %4890 = vmatmul.mubr.f32.gmra.mrb[0].mxu0 %v4547
      %v4891 = vpop.f32.mrb[0].mxu0
      %v4892 = vadd.f32 0.0, %v4891
      %v4893 = vpop.f32.mrb[0].mxu0
      %4894 = vmatprep.mubr.f32.mxu0 0.0
      %4895 = vmatmul.mubr.f32.gmra.mrb[0].mxu0 %v4550
      %v4896 = vpop.f32.mrb[0].mxu0
      %v4897 = vadd.f32 0.0, %v4896
      %v4898 = vpop.f32.mrb[0].mxu0
      %4899 = vmatprep.mubr.f32.mxu0 0.0
      %4900 = vmatmul.mubr.f32.gmra.mrb[0].mxu0 %v4553
      %v4901 = vpop.f32.mrb[0].mxu0
      %v4902 = vadd.f32 0.0, %v4901
      %v4903 = vpop.f32.mrb[0].mxu0
      %4904 = vmatprep.mubr.f32.mxu0 0.0
      %4905 = vmatmul.mubr.f32.gmra.mrb[0].mxu0 %v4556
      %v4906 = vpop.f32.mrb[0].mxu0
      %v4907 = vadd.f32 0.0, %v4906
      %v4908 = vpop.f32.mrb[0].mxu0
      %4909 = vmatprep.mubr.f32.mxu0 0.0
      %4910 = vmatmul.mubr.f32.gmra.mrb[0].mxu0 %v4559
      %v4911 = vpop.f32.mrb[0].mxu0
      %v4912 = vadd.f32 0.0, %v4911
      %v4913 = vpop.f32.mrb[0].mxu0
      %4914 = vmatprep.mubr.f32.mxu0 0.0
      %4915 = vmatmul.mubr.f32.gmra.mrb[0].mxu0 %v4562
      %v4916 = vpop.f32.mrb[0].mxu0
      %v4917 = vadd.f32 0.0, %v4916
      %v4918 = vpop.f32.mrb[0].mxu0
      %4919 = vmatprep.mubr.f32.mxu0 0.0
      %4920 = vmatmul.mubr.f32.gmra.mrb[0].mxu0 %v4565
      %v4921 = vpop.f32.mrb[0].mxu0
      %v4922 = vadd.f32 0.0, %v4921
      %v4923 = vpop.f32.mrb[0].mxu0
      %4924 = vmatprep.mubr.f32.mxu0 0.0
      %4925 = vmatmul.mubr.f32.gmra.mrb[0].mxu0 %v4568
      %v4926 = vpop.f32.mrb[0].mxu0
      %v4927 = vadd.f32 0.0, %v4926
      %v4928 = vpop.f32.mrb[0].mxu0
      %4929 = vmatprep.mubr.f32.mxu0 0.0
      %4930 = vmatmul.mubr.f32.gmra.mrb[0].mxu0 %v4571
      %v4931 = vpop.f32.mrb[0].mxu0
      %v4932 = vadd.f32 0.0, %v4931
      %v4933 = vpop.f32.mrb[0].mxu0
      %4934 = vmatprep.mubr.f32.mxu0 0.0
      %4935 = vmatmul.mubr.f32.gmra.mrb[0].mxu0 %v4574
      %v4936 = vpop.f32.mrb[0].mxu0
      %v4937 = vadd.f32 0.0, %v4936
      %v4938 = vpop.f32.mrb[0].mxu0
      %4939 = vmatprep.mubr.f32.mxu0 0.0
      %4940 = vmatmul.mubr.f32.gmra.mrb[0].mxu0 %v4577
      %v4941 = vpop.f32.mrb[0].mxu0
      %v4942 = vadd.f32 0.0, %v4941
      %v4943 = vpop.f32.mrb[0].mxu0
      %4944 = vmatprep.mubr.f32.mxu0 0.0
      %4945 = vmatmul.mubr.f32.gmra.mrb[0].mxu0 %v4580
      %v4946 = vpop.f32.mrb[0].mxu0
      %v4947 = vadd.f32 0.0, %v4946
      %v4948 = vpop.f32.mrb[0].mxu0
      %4949 = vmatprep.mubr.f32.mxu0 0.0
      %4950 = vmatmul.mubr.f32.gmra.mrb[0].mxu0 %v4583
      %v4951 = vpop.f32.mrb[0].mxu0
      %v4952 = vadd.f32 0.0, %v4951
      %v4953 = vpop.f32.mrb[0].mxu0
      %4954 = vmatprep.mubr.f32.mxu0 0.0
      %4955 = vmatmul.mubr.f32.gmra.mrb[0].mxu0 %v4586
      %v4956 = vpop.f32.mrb[0].mxu0
      %v4957 = vadd.f32 0.0, %v4956
      %v4958 = vpop.f32.mrb[0].mxu0
      %4959 = vmatprep.mubr.f32.mxu0 0.0
      %4960 = vmatmul.mubr.f32.gmra.mrb[0].mxu0 %v4589
      %v4961 = vpop.f32.mrb[0].mxu0
      %v4962 = vadd.f32 0.0, %v4961
      %v4963 = vpop.f32.mrb[0].mxu0
      %4964 = vmatprep.mubr.f32.mxu0 0.0
      %4965 = vmatmul.mubr.f32.gmra.mrb[0].mxu0 %v4592
      %v4966 = vpop.f32.mrb[0].mxu0
      %v4967 = vadd.f32 0.0, %v4966
      %v4968 = vpop.f32.mrb[0].mxu0
      %4969 = vmatprep.mubr.f32.mxu0 0.0
      %4970 = vmatmul.mubr.f32.gmra.mrb[0].mxu0 %v4595
      %v4971 = vpop.f32.mrb[0].mxu0
      %v4972 = vadd.f32 0.0, %v4971
      %v4973 = vpop.f32.mrb[0].mxu0
      %4974 = vmatprep.mubr.f32.mxu0 0.0
      %4975 = vmatmul.mubr.f32.gmra.mrb[0].mxu0 %v4598
      %v4976 = vpop.f32.mrb[0].mxu0
      %v4977 = vadd.f32 0.0, %v4976
      %v4978 = vpop.f32.mrb[0].mxu0
      %4979 = vmatprep.mubr.f32.mxu0 0.0
      %4980 = vmatmul.mubr.f32.gmra.mrb[0].mxu0 %v4601
      %v4981 = vpop.f32.mrb[0].mxu0
      %v4982 = vadd.f32 0.0, %v4981
      %v4983 = vpop.f32.mrb[0].mxu0
      %4984 = vmatprep.mubr.f32.mxu0 0.0
      %4985 = vmatmul.mubr.f32.gmra.mrb[0].mxu0 %v4604
      %v4986 = vpop.f32.mrb[0].mxu0
      %v4987 = vadd.f32 0.0, %v4986
      %v4988 = vpop.f32.mrb[0].mxu0
      %4989 = vmatprep.mubr.f32.mxu0 0.0
      %4990 = vmatmul.mubr.f32.gmra.mrb[0].mxu0 %v4607
      %v4991 = vpop.f32.mrb[0].mxu0
      %v4992 = vadd.f32 0.0, %v4991
      %v4993 = vpop.f32.mrb[0].mxu0
      %4994 = vmatprep.mubr.f32.mxu0 0.0
      %4995 = vmatmul.mubr.f32.gmra.mrb[0].mxu0 %v4610
      %v4996 = vpop.f32.mrb[0].mxu0
      %v4997 = vadd.f32 0.0, %v4996
      %v4998 = vpop.f32.mrb[0].mxu0
      %4999 = vdwg.mxu0
      %v5000 = vadd.f32 %v4100, %v4682
      %v5001 = vadd.f32 %v4105, %v4687
      %v5002 = vadd.f32 %v4110, %v4692
      %v5003 = vadd.f32 %v4115, %v4697
      %v5004 = vadd.f32 %v4120, %v4702
      %v5005 = vadd.f32 %v4125, %v4707
      %v5006 = vadd.f32 %v4130, %v4712
      %v5007 = vadd.f32 %v4135, %v4717
      %v5008 = vadd.f32 %v4140, %v4722
      %v5009 = vadd.f32 %v4145, %v4727
      %v5010 = vadd.f32 %v4150, %v4732
      %v5011 = vadd.f32 %v4155, %v4737
      %v5012 = vadd.f32 %v4160, %v4742
      %v5013 = vadd.f32 %v4165, %v4747
      %v5014 = vadd.f32 %v4170, %v4752
      %v5015 = vadd.f32 %v4175, %v4757
      %v5016 = vadd.f32 %v4180, %v4762
      %v5017 = vadd.f32 %v4185, %v4767
      %v5018 = vadd.f32 %v4190, %v4772
      %v5019 = vadd.f32 %v4195, %v4777
      %v5020 = vadd.f32 %v4200, %v4782
      %v5021 = vadd.f32 %v4205, %v4787
      %v5022 = vadd.f32 %v4210, %v4792
      %v5023 = vadd.f32 %v4215, %v4797
      %v5024 = vadd.f32 %v4220, %v4802
      %v5025 = vadd.f32 %v4225, %v4807
      %v5026 = vadd.f32 %v4230, %v4812
      %v5027 = vadd.f32 %v4235, %v4817
      %v5028 = vadd.f32 %v4240, %v4822
      %v5029 = vadd.f32 %v4245, %v4827
      %v5030 = vadd.f32 %v4250, %v4832
      %v5031 = vadd.f32 %v4255, %v4837
      %v5032 = vadd.f32 %v4260, %v4842
      %v5033 = vadd.f32 %v4265, %v4847
      %v5034 = vadd.f32 %v4270, %v4852
      %v5035 = vadd.f32 %v4275, %v4857
      %v5036 = vadd.f32 %v4280, %v4862
      %v5037 = vadd.f32 %v4285, %v4867
      %v5038 = vadd.f32 %v4290, %v4872
      %v5039 = vadd.f32 %v4295, %v4877
      %v5040 = vadd.f32 %v4300, %v4882
      %v5041 = vadd.f32 %v4305, %v4887
      %v5042 = vadd.f32 %v4310, %v4892
      %v5043 = vadd.f32 %v4315, %v4897
      %v5044 = vadd.f32 %v4320, %v4902
      %v5045 = vadd.f32 %v4325, %v4907
      %v5046 = vadd.f32 %v4330, %v4912
      %v5047 = vadd.f32 %v4335, %v4917
      %v5048 = vadd.f32 %v4340, %v4922
      %v5049 = vadd.f32 %v4345, %v4927
      %v5050 = vadd.f32 %v4350, %v4932
      %v5051 = vadd.f32 %v4355, %v4937
      %v5052 = vadd.f32 %v4360, %v4942
      %v5053 = vadd.f32 %v4365, %v4947
      %v5054 = vadd.f32 %v4370, %v4952
      %v5055 = vadd.f32 %v4375, %v4957
      %v5056 = vadd.f32 %v4380, %v4962
      %v5057 = vadd.f32 %v4385, %v4967
      %v5058 = vadd.f32 %v4390, %v4972
      %v5059 = vadd.f32 %v4395, %v4977
      %v5060 = vadd.f32 %v4400, %v4982
      %v5061 = vadd.f32 %v4405, %v4987
      %v5062 = vadd.f32 %v4410, %v4992
      %v5063 = vadd.f32 %v4415, %v4997
      %s5064 = scalar_lea.vmem %s3, 24
      %v5065 = vld [vmem:[%s5064] sm:$0xf]
      %s5066 = scalar_lea.vmem %s3, 28
      %v5067 = vld [vmem:[%s5066] sm:$0xf]
      %v5069 = vsel %vm2167, %v5067, 0
      %5071 = vmatprep.subr.mxu0 0.0
      %5072 = vmatpush1.msra.mxu0 %v5069
      %5073 = vmatprep.subr.mxu0 0.0
      %5074 = vmatpush1.msra.mxu0 0.0
      %5075 = vmatprep.subr.mxu0 0.0
      %5076 = vmatpush1.msra.mxu0 0.0
      %5077 = vmatprep.subr.mxu0 0.0
      %5078 = vmatpush1.msra.mxu0 0.0
      %5079 = vmatprep.subr.mxu0 0.0
      %5080 = vmatpush1.msra.mxu0 0.0
      %5081 = vmatprep.subr.mxu0 0.0
      %5082 = vmatpush1.msra.mxu0 0.0
      %5083 = vmatprep.subr.mxu0 0.0
      %5084 = vmatpush1.msra.mxu0 0.0
      %5085 = vmatprep.subr.mxu0 0.0
      %5086 = vmatpush1.msra.mxu0 0.0
      %5087 = vmatprep.subr.mxu0 0.0
      %5088 = vmatpush1.msra.mxu0 0.0
      %5089 = vmatprep.subr.mxu0 0.0
      %5090 = vmatpush1.msra.mxu0 0.0
      %5091 = vmatprep.subr.mxu0 0.0
      %5092 = vmatpush1.msra.mxu0 0.0
      %5093 = vmatprep.subr.mxu0 0.0
      %5094 = vmatpush1.msra.mxu0 0.0
      %5095 = vmatprep.subr.mxu0 0.0
      %5096 = vmatpush1.msra.mxu0 0.0
      %5097 = vmatprep.subr.mxu0 0.0
      %5098 = vmatpush1.msra.mxu0 0.0
      %5099 = vmatprep.subr.mxu0 0.0
      %5100 = vmatpush1.msra.mxu0 0.0
      %5101 = vmatprep.subr.mxu0 0.0
      %5102 = vmatpush1.msra.mxu0 0.0
      %5103 = vmatprep.subr.mxu0 0.0
      %5104 = vmatpush1.msra.mxu0 0.0
      %5105 = vmatprep.subr.mxu0 0.0
      %5106 = vmatpush1.msra.mxu0 0.0
      %5107 = vmatprep.subr.mxu0 0.0
      %5108 = vmatpush1.msra.mxu0 0.0
      %5109 = vmatprep.subr.mxu0 0.0
      %5110 = vmatpush1.msra.mxu0 0.0
      %5111 = vmatprep.subr.mxu0 0.0
      %5112 = vmatpush1.msra.mxu0 0.0
      %5113 = vmatprep.subr.mxu0 0.0
      %5114 = vmatpush1.msra.mxu0 0.0
      %5115 = vmatprep.subr.mxu0 0.0
      %5116 = vmatpush1.msra.mxu0 0.0
      %5117 = vmatprep.subr.mxu0 0.0
      %5118 = vmatpush1.msra.mxu0 0.0
      %5119 = vmatprep.subr.mxu0 0.0
      %5120 = vmatpush1.msra.mxu0 0.0
      %5121 = vmatprep.subr.mxu0 0.0
      %5122 = vmatpush1.msra.mxu0 0.0
      %5123 = vmatprep.subr.mxu0 0.0
      %5124 = vmatpush1.msra.mxu0 0.0
      %5125 = vmatprep.subr.mxu0 0.0
      %5126 = vmatpush1.msra.mxu0 0.0
      %5127 = vmatprep.subr.mxu0 0.0
      %5128 = vmatpush1.msra.mxu0 0.0
      %5129 = vmatprep.subr.mxu0 0.0
      %5130 = vmatpush1.msra.mxu0 0.0
      %5131 = vmatprep.subr.mxu0 0.0
      %5132 = vmatpush1.msra.mxu0 0.0
      %5133 = vmatprep.subr.mxu0 0.0
      %5134 = vmatpush1.msra.mxu0 0.0
      %5135 = vmatprep.mubr.f32.mxu0 0.0
      %5136 = vmatmul.mubr.f32.gmra.mrb[0].mxu0 %v1976
      %v5137 = vpop.f32.mrb[0].mxu0
      %v5138 = vadd.f32 0.0, %v5137
      %v5139 = vpop.f32.mrb[0].mxu0
      %5140 = vmatprep.mubr.f32.mxu0 0.0
      %5141 = vmatmul.mubr.f32.gmra.mrb[0].mxu0 %v1979
      %v5142 = vpop.f32.mrb[0].mxu0
      %v5143 = vadd.f32 0.0, %v5142
      %v5144 = vpop.f32.mrb[0].mxu0
      %5145 = vmatprep.mubr.f32.mxu0 0.0
      %5146 = vmatmul.mubr.f32.gmra.mrb[0].mxu0 %v1982
      %v5147 = vpop.f32.mrb[0].mxu0
      %v5148 = vadd.f32 0.0, %v5147
      %v5149 = vpop.f32.mrb[0].mxu0
      %5150 = vmatprep.mubr.f32.mxu0 0.0
      %5151 = vmatmul.mubr.f32.gmra.mrb[0].mxu0 %v1985
      %v5152 = vpop.f32.mrb[0].mxu0
      %v5153 = vadd.f32 0.0, %v5152
      %v5154 = vpop.f32.mrb[0].mxu0
      %5155 = vmatprep.mubr.f32.mxu0 0.0
      %5156 = vmatmul.mubr.f32.gmra.mrb[0].mxu0 %v1988
      %v5157 = vpop.f32.mrb[0].mxu0
      %v5158 = vadd.f32 0.0, %v5157
      %v5159 = vpop.f32.mrb[0].mxu0
      %5160 = vmatprep.mubr.f32.mxu0 0.0
      %5161 = vmatmul.mubr.f32.gmra.mrb[0].mxu0 %v1991
      %v5162 = vpop.f32.mrb[0].mxu0
      %v5163 = vadd.f32 0.0, %v5162
      %v5164 = vpop.f32.mrb[0].mxu0
      %5165 = vmatprep.mubr.f32.mxu0 0.0
      %5166 = vmatmul.mubr.f32.gmra.mrb[0].mxu0 %v1994
      %v5167 = vpop.f32.mrb[0].mxu0
      %v5168 = vadd.f32 0.0, %v5167
      %v5169 = vpop.f32.mrb[0].mxu0
      %5170 = vmatprep.mubr.f32.mxu0 0.0
      %5171 = vmatmul.mubr.f32.gmra.mrb[0].mxu0 %v1997
      %v5172 = vpop.f32.mrb[0].mxu0
      %v5173 = vadd.f32 0.0, %v5172
      %v5174 = vpop.f32.mrb[0].mxu0
      %5175 = vmatprep.mubr.f32.mxu0 0.0
      %5176 = vmatmul.mubr.f32.gmra.mrb[0].mxu0 %v2000
      %v5177 = vpop.f32.mrb[0].mxu0
      %v5178 = vadd.f32 0.0, %v5177
      %v5179 = vpop.f32.mrb[0].mxu0
      %5180 = vmatprep.mubr.f32.mxu0 0.0
      %5181 = vmatmul.mubr.f32.gmra.mrb[0].mxu0 %v2003
      %v5182 = vpop.f32.mrb[0].mxu0
      %v5183 = vadd.f32 0.0, %v5182
      %v5184 = vpop.f32.mrb[0].mxu0
      %5185 = vmatprep.mubr.f32.mxu0 0.0
      %5186 = vmatmul.mubr.f32.gmra.mrb[0].mxu0 %v2006
      %v5187 = vpop.f32.mrb[0].mxu0
      %v5188 = vadd.f32 0.0, %v5187
      %v5189 = vpop.f32.mrb[0].mxu0
      %5190 = vmatprep.mubr.f32.mxu0 0.0
      %5191 = vmatmul.mubr.f32.gmra.mrb[0].mxu0 %v2009
      %v5192 = vpop.f32.mrb[0].mxu0
      %v5193 = vadd.f32 0.0, %v5192
      %v5194 = vpop.f32.mrb[0].mxu0
      %5195 = vmatprep.mubr.f32.mxu0 0.0
      %5196 = vmatmul.mubr.f32.gmra.mrb[0].mxu0 %v2012
      %v5197 = vpop.f32.mrb[0].mxu0
      %v5198 = vadd.f32 0.0, %v5197
      %v5199 = vpop.f32.mrb[0].mxu0
      %5200 = vmatprep.mubr.f32.mxu0 0.0
      %5201 = vmatmul.mubr.f32.gmra.mrb[0].mxu0 %v2015
      %v5202 = vpop.f32.mrb[0].mxu0
      %v5203 = vadd.f32 0.0, %v5202
      %v5204 = vpop.f32.mrb[0].mxu0
      %5205 = vmatprep.mubr.f32.mxu0 0.0
      %5206 = vmatmul.mubr.f32.gmra.mrb[0].mxu0 %v2018
      %v5207 = vpop.f32.mrb[0].mxu0
      %v5208 = vadd.f32 0.0, %v5207
      %v5209 = vpop.f32.mrb[0].mxu0
      %5210 = vmatprep.mubr.f32.mxu0 0.0
      %5211 = vmatmul.mubr.f32.gmra.mrb[0].mxu0 %v2021
      %v5212 = vpop.f32.mrb[0].mxu0
      %v5213 = vadd.f32 0.0, %v5212
      %v5214 = vpop.f32.mrb[0].mxu0
      %5215 = vmatprep.mubr.f32.mxu0 0.0
      %5216 = vmatmul.mubr.f32.gmra.mrb[0].mxu0 %v2024
      %v5217 = vpop.f32.mrb[0].mxu0
      %v5218 = vadd.f32 0.0, %v5217
      %v5219 = vpop.f32.mrb[0].mxu0
      %5220 = vmatprep.mubr.f32.mxu0 0.0
      %5221 = vmatmul.mubr.f32.gmra.mrb[0].mxu0 %v2027
      %v5222 = vpop.f32.mrb[0].mxu0
      %v5223 = vadd.f32 0.0, %v5222
      %v5224 = vpop.f32.mrb[0].mxu0
      %5225 = vmatprep.mubr.f32.mxu0 0.0
      %5226 = vmatmul.mubr.f32.gmra.mrb[0].mxu0 %v2030
      %v5227 = vpop.f32.mrb[0].mxu0
      %v5228 = vadd.f32 0.0, %v5227
      %v5229 = vpop.f32.mrb[0].mxu0
      %5230 = vmatprep.mubr.f32.mxu0 0.0
      %5231 = vmatmul.mubr.f32.gmra.mrb[0].mxu0 %v2033
      %v5232 = vpop.f32.mrb[0].mxu0
      %v5233 = vadd.f32 0.0, %v5232
      %v5234 = vpop.f32.mrb[0].mxu0
      %5235 = vmatprep.mubr.f32.mxu0 0.0
      %5236 = vmatmul.mubr.f32.gmra.mrb[0].mxu0 %v2036
      %v5237 = vpop.f32.mrb[0].mxu0
      %v5238 = vadd.f32 0.0, %v5237
      %v5239 = vpop.f32.mrb[0].mxu0
      %5240 = vmatprep.mubr.f32.mxu0 0.0
      %5241 = vmatmul.mubr.f32.gmra.mrb[0].mxu0 %v2039
      %v5242 = vpop.f32.mrb[0].mxu0
      %v5243 = vadd.f32 0.0, %v5242
      %v5244 = vpop.f32.mrb[0].mxu0
      %5245 = vmatprep.mubr.f32.mxu0 0.0
      %5246 = vmatmul.mubr.f32.gmra.mrb[0].mxu0 %v2042
      %v5247 = vpop.f32.mrb[0].mxu0
      %v5248 = vadd.f32 0.0, %v5247
      %v5249 = vpop.f32.mrb[0].mxu0
      %5250 = vmatprep.mubr.f32.mxu0 0.0
      %5251 = vmatmul.mubr.f32.gmra.mrb[0].mxu0 %v2045
      %v5252 = vpop.f32.mrb[0].mxu0
      %v5253 = vadd.f32 0.0, %v5252
      %v5254 = vpop.f32.mrb[0].mxu0
      %5255 = vmatprep.mubr.f32.mxu0 0.0
      %5256 = vmatmul.mubr.f32.gmra.mrb[0].mxu0 %v2048
      %v5257 = vpop.f32.mrb[0].mxu0
      %v5258 = vadd.f32 0.0, %v5257
      %v5259 = vpop.f32.mrb[0].mxu0
      %5260 = vmatprep.mubr.f32.mxu0 0.0
      %5261 = vmatmul.mubr.f32.gmra.mrb[0].mxu0 %v2051
      %v5262 = vpop.f32.mrb[0].mxu0
      %v5263 = vadd.f32 0.0, %v5262
      %v5264 = vpop.f32.mrb[0].mxu0
      %5265 = vmatprep.mubr.f32.mxu0 0.0
      %5266 = vmatmul.mubr.f32.gmra.mrb[0].mxu0 %v2054
      %v5267 = vpop.f32.mrb[0].mxu0
      %v5268 = vadd.f32 0.0, %v5267
      %v5269 = vpop.f32.mrb[0].mxu0
      %5270 = vmatprep.mubr.f32.mxu0 0.0
      %5271 = vmatmul.mubr.f32.gmra.mrb[0].mxu0 %v2057
      %v5272 = vpop.f32.mrb[0].mxu0
      %v5273 = vadd.f32 0.0, %v5272
      %v5274 = vpop.f32.mrb[0].mxu0
      %5275 = vmatprep.mubr.f32.mxu0 0.0
      %5276 = vmatmul.mubr.f32.gmra.mrb[0].mxu0 %v2060
      %v5277 = vpop.f32.mrb[0].mxu0
      %v5278 = vadd.f32 0.0, %v5277
      %v5279 = vpop.f32.mrb[0].mxu0
      %5280 = vmatprep.mubr.f32.mxu0 0.0
      %5281 = vmatmul.mubr.f32.gmra.mrb[0].mxu0 %v2063
      %v5282 = vpop.f32.mrb[0].mxu0
      %v5283 = vadd.f32 0.0, %v5282
      %v5284 = vpop.f32.mrb[0].mxu0
      %5285 = vmatprep.mubr.f32.mxu0 0.0
      %5286 = vmatmul.mubr.f32.gmra.mrb[0].mxu0 %v2066
      %v5287 = vpop.f32.mrb[0].mxu0
      %v5288 = vadd.f32 0.0, %v5287
      %v5289 = vpop.f32.mrb[0].mxu0
      %5290 = vmatprep.mubr.f32.mxu0 0.0
      %5291 = vmatmul.mubr.f32.gmra.mrb[0].mxu0 %v2069
      %v5292 = vpop.f32.mrb[0].mxu0
      %v5293 = vadd.f32 0.0, %v5292
      %v5294 = vpop.f32.mrb[0].mxu0
      %5295 = vmatprep.mubr.f32.mxu0 0.0
      %5296 = vmatmul.mubr.f32.gmra.mrb[0].mxu0 %v2072
      %v5297 = vpop.f32.mrb[0].mxu0
      %v5298 = vadd.f32 0.0, %v5297
      %v5299 = vpop.f32.mrb[0].mxu0
      %5300 = vmatprep.mubr.f32.mxu0 0.0
      %5301 = vmatmul.mubr.f32.gmra.mrb[0].mxu0 %v2075
      %v5302 = vpop.f32.mrb[0].mxu0
      %v5303 = vadd.f32 0.0, %v5302
      %v5304 = vpop.f32.mrb[0].mxu0
      %5305 = vmatprep.mubr.f32.mxu0 0.0
      %5306 = vmatmul.mubr.f32.gmra.mrb[0].mxu0 %v2078
      %v5307 = vpop.f32.mrb[0].mxu0
      %v5308 = vadd.f32 0.0, %v5307
      %v5309 = vpop.f32.mrb[0].mxu0
      %5310 = vmatprep.mubr.f32.mxu0 0.0
      %5311 = vmatmul.mubr.f32.gmra.mrb[0].mxu0 %v2081
      %v5312 = vpop.f32.mrb[0].mxu0
      %v5313 = vadd.f32 0.0, %v5312
      %v5314 = vpop.f32.mrb[0].mxu0
      %5315 = vmatprep.mubr.f32.mxu0 0.0
      %5316 = vmatmul.mubr.f32.gmra.mrb[0].mxu0 %v2084
      %v5317 = vpop.f32.mrb[0].mxu0
      %v5318 = vadd.f32 0.0, %v5317
      %v5319 = vpop.f32.mrb[0].mxu0
      %5320 = vmatprep.mubr.f32.mxu0 0.0
      %5321 = vmatmul.mubr.f32.gmra.mrb[0].mxu0 %v2087
      %v5322 = vpop.f32.mrb[0].mxu0
      %v5323 = vadd.f32 0.0, %v5322
      %v5324 = vpop.f32.mrb[0].mxu0
      %5325 = vmatprep.mubr.f32.mxu0 0.0
      %5326 = vmatmul.mubr.f32.gmra.mrb[0].mxu0 %v2090
      %v5327 = vpop.f32.mrb[0].mxu0
      %v5328 = vadd.f32 0.0, %v5327
      %v5329 = vpop.f32.mrb[0].mxu0
      %5330 = vmatprep.mubr.f32.mxu0 0.0
      %5331 = vmatmul.mubr.f32.gmra.mrb[0].mxu0 %v2093
      %v5332 = vpop.f32.mrb[0].mxu0
      %v5333 = vadd.f32 0.0, %v5332
      %v5334 = vpop.f32.mrb[0].mxu0
      %5335 = vmatprep.mubr.f32.mxu0 0.0
      %5336 = vmatmul.mubr.f32.gmra.mrb[0].mxu0 %v2096
      %v5337 = vpop.f32.mrb[0].mxu0
      %v5338 = vadd.f32 0.0, %v5337
      %v5339 = vpop.f32.mrb[0].mxu0
      %5340 = vmatprep.mubr.f32.mxu0 0.0
      %5341 = vmatmul.mubr.f32.gmra.mrb[0].mxu0 %v2099
      %v5342 = vpop.f32.mrb[0].mxu0
      %v5343 = vadd.f32 0.0, %v5342
      %v5344 = vpop.f32.mrb[0].mxu0
      %5345 = vmatprep.mubr.f32.mxu0 0.0
      %5346 = vmatmul.mubr.f32.gmra.mrb[0].mxu0 %v2102
      %v5347 = vpop.f32.mrb[0].mxu0
      %v5348 = vadd.f32 0.0, %v5347
      %v5349 = vpop.f32.mrb[0].mxu0
      %5350 = vmatprep.mubr.f32.mxu0 0.0
      %5351 = vmatmul.mubr.f32.gmra.mrb[0].mxu0 %v2105
      %v5352 = vpop.f32.mrb[0].mxu0
      %v5353 = vadd.f32 0.0, %v5352
      %v5354 = vpop.f32.mrb[0].mxu0
      %5355 = vmatprep.mubr.f32.mxu0 0.0
      %5356 = vmatmul.mubr.f32.gmra.mrb[0].mxu0 %v2108
      %v5357 = vpop.f32.mrb[0].mxu0
      %v5358 = vadd.f32 0.0, %v5357
      %v5359 = vpop.f32.mrb[0].mxu0
      %5360 = vmatprep.mubr.f32.mxu0 0.0
      %5361 = vmatmul.mubr.f32.gmra.mrb[0].mxu0 %v2111
      %v5362 = vpop.f32.mrb[0].mxu0
      %v5363 = vadd.f32 0.0, %v5362
      %v5364 = vpop.f32.mrb[0].mxu0
      %5365 = vmatprep.mubr.f32.mxu0 0.0
      %5366 = vmatmul.mubr.f32.gmra.mrb[0].mxu0 %v2114
      %v5367 = vpop.f32.mrb[0].mxu0
      %v5368 = vadd.f32 0.0, %v5367
      %v5369 = vpop.f32.mrb[0].mxu0
      %5370 = vmatprep.mubr.f32.mxu0 0.0
      %5371 = vmatmul.mubr.f32.gmra.mrb[0].mxu0 %v2117
      %v5372 = vpop.f32.mrb[0].mxu0
      %v5373 = vadd.f32 0.0, %v5372
      %v5374 = vpop.f32.mrb[0].mxu0
      %5375 = vmatprep.mubr.f32.mxu0 0.0
      %5376 = vmatmul.mubr.f32.gmra.mrb[0].mxu0 %v2120
      %v5377 = vpop.f32.mrb[0].mxu0
      %v5378 = vadd.f32 0.0, %v5377
      %v5379 = vpop.f32.mrb[0].mxu0
      %5380 = vmatprep.mubr.f32.mxu0 0.0
      %5381 = vmatmul.mubr.f32.gmra.mrb[0].mxu0 %v2123
      %v5382 = vpop.f32.mrb[0].mxu0
      %v5383 = vadd.f32 0.0, %v5382
      %v5384 = vpop.f32.mrb[0].mxu0
      %5385 = vmatprep.mubr.f32.mxu0 0.0
      %5386 = vmatmul.mubr.f32.gmra.mrb[0].mxu0 %v2126
      %v5387 = vpop.f32.mrb[0].mxu0
      %v5388 = vadd.f32 0.0, %v5387
      %v5389 = vpop.f32.mrb[0].mxu0
      %5390 = vmatprep.mubr.f32.mxu0 0.0
      %5391 = vmatmul.mubr.f32.gmra.mrb[0].mxu0 %v2129
      %v5392 = vpop.f32.mrb[0].mxu0
      %v5393 = vadd.f32 0.0, %v5392
      %v5394 = vpop.f32.mrb[0].mxu0
      %5395 = vmatprep.mubr.f32.mxu0 0.0
      %5396 = vmatmul.mubr.f32.gmra.mrb[0].mxu0 %v2132
      %v5397 = vpop.f32.mrb[0].mxu0
      %v5398 = vadd.f32 0.0, %v5397
      %v5399 = vpop.f32.mrb[0].mxu0
      %5400 = vmatprep.mubr.f32.mxu0 0.0
      %5401 = vmatmul.mubr.f32.gmra.mrb[0].mxu0 %v2135
      %v5402 = vpop.f32.mrb[0].mxu0
      %v5403 = vadd.f32 0.0, %v5402
      %v5404 = vpop.f32.mrb[0].mxu0
      %5405 = vmatprep.mubr.f32.mxu0 0.0
      %5406 = vmatmul.mubr.f32.gmra.mrb[0].mxu0 %v2138
      %v5407 = vpop.f32.mrb[0].mxu0
      %v5408 = vadd.f32 0.0, %v5407
      %v5409 = vpop.f32.mrb[0].mxu0
      %5410 = vmatprep.mubr.f32.mxu0 0.0
      %5411 = vmatmul.mubr.f32.gmra.mrb[0].mxu0 %v2141
      %v5412 = vpop.f32.mrb[0].mxu0
      %v5413 = vadd.f32 0.0, %v5412
      %v5414 = vpop.f32.mrb[0].mxu0
      %5415 = vmatprep.mubr.f32.mxu0 0.0
      %5416 = vmatmul.mubr.f32.gmra.mrb[0].mxu0 %v2144
      %v5417 = vpop.f32.mrb[0].mxu0
      %v5418 = vadd.f32 0.0, %v5417
      %v5419 = vpop.f32.mrb[0].mxu0
      %5420 = vmatprep.mubr.f32.mxu0 0.0
      %5421 = vmatmul.mubr.f32.gmra.mrb[0].mxu0 %v2147
      %v5422 = vpop.f32.mrb[0].mxu0
      %v5423 = vadd.f32 0.0, %v5422
      %v5424 = vpop.f32.mrb[0].mxu0
      %5425 = vmatprep.mubr.f32.mxu0 0.0
      %5426 = vmatmul.mubr.f32.gmra.mrb[0].mxu0 %v2150
      %v5427 = vpop.f32.mrb[0].mxu0
      %v5428 = vadd.f32 0.0, %v5427
      %v5429 = vpop.f32.mrb[0].mxu0
      %5430 = vmatprep.mubr.f32.mxu0 0.0
      %5431 = vmatmul.mubr.f32.gmra.mrb[0].mxu0 %v2153
      %v5432 = vpop.f32.mrb[0].mxu0
      %v5433 = vadd.f32 0.0, %v5432
      %v5434 = vpop.f32.mrb[0].mxu0
      %5435 = vmatprep.mubr.f32.mxu0 0.0
      %5436 = vmatmul.mubr.f32.gmra.mrb[0].mxu0 %v2156
      %v5437 = vpop.f32.mrb[0].mxu0
      %v5438 = vadd.f32 0.0, %v5437
      %v5439 = vpop.f32.mrb[0].mxu0
      %5440 = vmatprep.mubr.f32.mxu0 0.0
      %5441 = vmatmul.mubr.f32.gmra.mrb[0].mxu0 %v2159
      %v5442 = vpop.f32.mrb[0].mxu0
      %v5443 = vadd.f32 0.0, %v5442
      %v5444 = vpop.f32.mrb[0].mxu0
      %5445 = vmatprep.mubr.f32.mxu0 0.0
      %5446 = vmatmul.mubr.f32.gmra.mrb[0].mxu0 %v2162
      %v5447 = vpop.f32.mrb[0].mxu0
      %v5448 = vadd.f32 0.0, %v5447
      %v5449 = vpop.f32.mrb[0].mxu0
      %5450 = vmatprep.mubr.f32.mxu0 0.0
      %5451 = vmatmul.mubr.f32.gmra.mrb[0].mxu0 %v2165
      %v5452 = vpop.f32.mrb[0].mxu0
      %v5453 = vadd.f32 0.0, %v5452
      %v5454 = vpop.f32.mrb[0].mxu0
      %5455 = vdwg.mxu0
      %v5457 = vsel %vm1974, %v1714, 0
      %v5460 = vsel %vm1974, %v1715, 0
      %v5463 = vsel %vm1974, %v1716, 0
      %v5466 = vsel %vm1974, %v1717, 0
      %v5469 = vsel %vm1974, %v1718, 0
      %v5472 = vsel %vm1974, %v1719, 0
      %v5475 = vsel %vm1974, %v1720, 0
      %v5478 = vsel %vm1974, %v1721, 0
      %v5481 = vsel %vm1974, %v1722, 0
      %v5484 = vsel %vm1974, %v1723, 0
      %v5487 = vsel %vm1974, %v1724, 0
      %v5490 = vsel %vm1974, %v1725, 0
      %v5493 = vsel %vm1974, %v1726, 0
      %v5496 = vsel %vm1974, %v1727, 0
      %v5499 = vsel %vm1974, %v1728, 0
      %v5502 = vsel %vm1974, %v1729, 0
      %v5505 = vsel %vm1974, %v1730, 0
      %v5508 = vsel %vm1974, %v1731, 0
      %v5511 = vsel %vm1974, %v1732, 0
      %v5514 = vsel %vm1974, %v1733, 0
      %v5517 = vsel %vm1974, %v1734, 0
      %v5520 = vsel %vm1974, %v1735, 0
      %v5523 = vsel %vm1974, %v1736, 0
      %v5526 = vsel %vm1974, %v1737, 0
      %v5529 = vsel %vm1974, %v1738, 0
      %v5532 = vsel %vm1974, %v1739, 0
      %v5535 = vsel %vm1974, %v1740, 0
      %v5538 = vsel %vm1974, %v1741, 0
      %v5541 = vsel %vm1974, %v1742, 0
      %v5544 = vsel %vm1974, %v1743, 0
      %v5547 = vsel %vm1974, %v1744, 0
      %v5550 = vsel %vm1974, %v1745, 0
      %v5553 = vsel %vm1974, %v1746, 0
      %v5556 = vsel %vm1974, %v1747, 0
      %v5559 = vsel %vm1974, %v1748, 0
      %v5562 = vsel %vm1974, %v1749, 0
      %v5565 = vsel %vm1974, %v1750, 0
      %v5568 = vsel %vm1974, %v1751, 0
      %v5571 = vsel %vm1974, %v1752, 0
      %v5574 = vsel %vm1974, %v1753, 0
      %v5577 = vsel %vm1974, %v1754, 0
      %v5580 = vsel %vm1974, %v1755, 0
      %v5583 = vsel %vm1974, %v1756, 0
      %v5586 = vsel %vm1974, %v1757, 0
      %v5589 = vsel %vm1974, %v1758, 0
      %v5592 = vsel %vm1974, %v1759, 0
      %v5595 = vsel %vm1974, %v1760, 0
      %v5598 = vsel %vm1974, %v1761, 0
      %v5601 = vsel %vm1974, %v1762, 0
      %v5604 = vsel %vm1974, %v1763, 0
      %v5607 = vsel %vm1974, %v1764, 0
      %v5610 = vsel %vm1974, %v1765, 0
      %v5613 = vsel %vm1974, %v1766, 0
      %v5616 = vsel %vm1974, %v1767, 0
      %v5619 = vsel %vm1974, %v1768, 0
      %v5622 = vsel %vm1974, %v1769, 0
      %v5625 = vsel %vm1974, %v1770, 0
      %v5628 = vsel %vm1974, %v1771, 0
      %v5631 = vsel %vm1974, %v1772, 0
      %v5634 = vsel %vm1974, %v1773, 0
      %v5637 = vsel %vm1974, %v1774, 0
      %v5640 = vsel %vm1974, %v1775, 0
      %v5643 = vsel %vm1974, %v1776, 0
      %v5646 = vsel %vm1974, %v1777, 0
      %v5649 = vsel %vm2167, %v5065, 0
      %5651 = vmatprep.subr.mxu0 0.0
      %5652 = vmatpush1.msra.mxu0 %v5649
      %5653 = vmatprep.subr.mxu0 0.0
      %5654 = vmatpush1.msra.mxu0 0.0
      %5655 = vmatprep.subr.mxu0 0.0
      %5656 = vmatpush1.msra.mxu0 0.0
      %5657 = vmatprep.subr.mxu0 0.0
      %5658 = vmatpush1.msra.mxu0 0.0
      %5659 = vmatprep.subr.mxu0 0.0
      %5660 = vmatpush1.msra.mxu0 0.0
      %5661 = vmatprep.subr.mxu0 0.0
      %5662 = vmatpush1.msra.mxu0 0.0
      %5663 = vmatprep.subr.mxu0 0.0
      %5664 = vmatpush1.msra.mxu0 0.0
      %5665 = vmatprep.subr.mxu0 0.0
      %5666 = vmatpush1.msra.mxu0 0.0
      %5667 = vmatprep.subr.mxu0 0.0
      %5668 = vmatpush1.msra.mxu0 0.0
      %5669 = vmatprep.subr.mxu0 0.0
      %5670 = vmatpush1.msra.mxu0 0.0
      %5671 = vmatprep.subr.mxu0 0.0
      %5672 = vmatpush1.msra.mxu0 0.0
      %5673 = vmatprep.subr.mxu0 0.0
      %5674 = vmatpush1.msra.mxu0 0.0
      %5675 = vmatprep.subr.mxu0 0.0
      %5676 = vmatpush1.msra.mxu0 0.0
      %5677 = vmatprep.subr.mxu0 0.0
      %5678 = vmatpush1.msra.mxu0 0.0
      %5679 = vmatprep.subr.mxu0 0.0
      %5680 = vmatpush1.msra.mxu0 0.0
      %5681 = vmatprep.subr.mxu0 0.0
      %5682 = vmatpush1.msra.mxu0 0.0
      %5683 = vmatprep.subr.mxu0 0.0
      %5684 = vmatpush1.msra.mxu0 0.0
      %5685 = vmatprep.subr.mxu0 0.0
      %5686 = vmatpush1.msra.mxu0 0.0
      %5687 = vmatprep.subr.mxu0 0.0
      %5688 = vmatpush1.msra.mxu0 0.0
      %5689 = vmatprep.subr.mxu0 0.0
      %5690 = vmatpush1.msra.mxu0 0.0
      %5691 = vmatprep.subr.mxu0 0.0
      %5692 = vmatpush1.msra.mxu0 0.0
      %5693 = vmatprep.subr.mxu0 0.0
      %5694 = vmatpush1.msra.mxu0 0.0
      %5695 = vmatprep.subr.mxu0 0.0
      %5696 = vmatpush1.msra.mxu0 0.0
      %5697 = vmatprep.subr.mxu0 0.0
      %5698 = vmatpush1.msra.mxu0 0.0
      %5699 = vmatprep.subr.mxu0 0.0
      %5700 = vmatpush1.msra.mxu0 0.0
      %5701 = vmatprep.subr.mxu0 0.0
      %5702 = vmatpush1.msra.mxu0 0.0
      %5703 = vmatprep.subr.mxu0 0.0
      %5704 = vmatpush1.msra.mxu0 0.0
      %5705 = vmatprep.subr.mxu0 0.0
      %5706 = vmatpush1.msra.mxu0 0.0
      %5707 = vmatprep.subr.mxu0 0.0
      %5708 = vmatpush1.msra.mxu0 0.0
      %5709 = vmatprep.subr.mxu0 0.0
      %5710 = vmatpush1.msra.mxu0 0.0
      %5711 = vmatprep.subr.mxu0 0.0
      %5712 = vmatpush1.msra.mxu0 0.0
      %5713 = vmatprep.subr.mxu0 0.0
      %5714 = vmatpush1.msra.mxu0 0.0
      %5715 = vmatprep.mubr.f32.mxu0 0.0
      %5716 = vmatmul.mubr.f32.gmra.mrb[0].mxu0 %v5457
      %v5717 = vpop.f32.mrb[0].mxu0
      %v5718 = vadd.f32 %v5138, %v5717
      %v5719 = vpop.f32.mrb[0].mxu0
      %5720 = vmatprep.mubr.f32.mxu0 0.0
      %5721 = vmatmul.mubr.f32.gmra.mrb[0].mxu0 %v5460
      %v5722 = vpop.f32.mrb[0].mxu0
      %v5723 = vadd.f32 %v5143, %v5722
      %v5724 = vpop.f32.mrb[0].mxu0
      %5725 = vmatprep.mubr.f32.mxu0 0.0
      %5726 = vmatmul.mubr.f32.gmra.mrb[0].mxu0 %v5463
      %v5727 = vpop.f32.mrb[0].mxu0
      %v5728 = vadd.f32 %v5148, %v5727
      %v5729 = vpop.f32.mrb[0].mxu0
      %5730 = vmatprep.mubr.f32.mxu0 0.0
      %5731 = vmatmul.mubr.f32.gmra.mrb[0].mxu0 %v5466
      %v5732 = vpop.f32.mrb[0].mxu0
      %v5733 = vadd.f32 %v5153, %v5732
      %v5734 = vpop.f32.mrb[0].mxu0
      %5735 = vmatprep.mubr.f32.mxu0 0.0
      %5736 = vmatmul.mubr.f32.gmra.mrb[0].mxu0 %v5469
      %v5737 = vpop.f32.mrb[0].mxu0
      %v5738 = vadd.f32 %v5158, %v5737
      %v5739 = vpop.f32.mrb[0].mxu0
      %5740 = vmatprep.mubr.f32.mxu0 0.0
      %5741 = vmatmul.mubr.f32.gmra.mrb[0].mxu0 %v5472
      %v5742 = vpop.f32.mrb[0].mxu0
      %v5743 = vadd.f32 %v5163, %v5742
      %v5744 = vpop.f32.mrb[0].mxu0
      %5745 = vmatprep.mubr.f32.mxu0 0.0
      %5746 = vmatmul.mubr.f32.gmra.mrb[0].mxu0 %v5475
      %v5747 = vpop.f32.mrb[0].mxu0
      %v5748 = vadd.f32 %v5168, %v5747
      %v5749 = vpop.f32.mrb[0].mxu0
      %5750 = vmatprep.mubr.f32.mxu0 0.0
      %5751 = vmatmul.mubr.f32.gmra.mrb[0].mxu0 %v5478
      %v5752 = vpop.f32.mrb[0].mxu0
      %v5753 = vadd.f32 %v5173, %v5752
      %v5754 = vpop.f32.mrb[0].mxu0
      %5755 = vmatprep.mubr.f32.mxu0 0.0
      %5756 = vmatmul.mubr.f32.gmra.mrb[0].mxu0 %v5481
      %v5757 = vpop.f32.mrb[0].mxu0
      %v5758 = vadd.f32 %v5178, %v5757
      %v5759 = vpop.f32.mrb[0].mxu0
      %5760 = vmatprep.mubr.f32.mxu0 0.0
      %5761 = vmatmul.mubr.f32.gmra.mrb[0].mxu0 %v5484
      %v5762 = vpop.f32.mrb[0].mxu0
      %v5763 = vadd.f32 %v5183, %v5762
      %v5764 = vpop.f32.mrb[0].mxu0
      %5765 = vmatprep.mubr.f32.mxu0 0.0
      %5766 = vmatmul.mubr.f32.gmra.mrb[0].mxu0 %v5487
      %v5767 = vpop.f32.mrb[0].mxu0
      %v5768 = vadd.f32 %v5188, %v5767
      %v5769 = vpop.f32.mrb[0].mxu0
      %5770 = vmatprep.mubr.f32.mxu0 0.0
      %5771 = vmatmul.mubr.f32.gmra.mrb[0].mxu0 %v5490
      %v5772 = vpop.f32.mrb[0].mxu0
      %v5773 = vadd.f32 %v5193, %v5772
      %v5774 = vpop.f32.mrb[0].mxu0
      %5775 = vmatprep.mubr.f32.mxu0 0.0
      %5776 = vmatmul.mubr.f32.gmra.mrb[0].mxu0 %v5493
      %v5777 = vpop.f32.mrb[0].mxu0
      %v5778 = vadd.f32 %v5198, %v5777
      %v5779 = vpop.f32.mrb[0].mxu0
      %5780 = vmatprep.mubr.f32.mxu0 0.0
      %5781 = vmatmul.mubr.f32.gmra.mrb[0].mxu0 %v5496
      %v5782 = vpop.f32.mrb[0].mxu0
      %v5783 = vadd.f32 %v5203, %v5782
      %v5784 = vpop.f32.mrb[0].mxu0
      %5785 = vmatprep.mubr.f32.mxu0 0.0
      %5786 = vmatmul.mubr.f32.gmra.mrb[0].mxu0 %v5499
      %v5787 = vpop.f32.mrb[0].mxu0
      %v5788 = vadd.f32 %v5208, %v5787
      %v5789 = vpop.f32.mrb[0].mxu0
      %5790 = vmatprep.mubr.f32.mxu0 0.0
      %5791 = vmatmul.mubr.f32.gmra.mrb[0].mxu0 %v5502
      %v5792 = vpop.f32.mrb[0].mxu0
      %v5793 = vadd.f32 %v5213, %v5792
      %v5794 = vpop.f32.mrb[0].mxu0
      %5795 = vmatprep.mubr.f32.mxu0 0.0
      %5796 = vmatmul.mubr.f32.gmra.mrb[0].mxu0 %v5505
      %v5797 = vpop.f32.mrb[0].mxu0
      %v5798 = vadd.f32 %v5218, %v5797
      %v5799 = vpop.f32.mrb[0].mxu0
      %5800 = vmatprep.mubr.f32.mxu0 0.0
      %5801 = vmatmul.mubr.f32.gmra.mrb[0].mxu0 %v5508
      %v5802 = vpop.f32.mrb[0].mxu0
      %v5803 = vadd.f32 %v5223, %v5802
      %v5804 = vpop.f32.mrb[0].mxu0
      %5805 = vmatprep.mubr.f32.mxu0 0.0
      %5806 = vmatmul.mubr.f32.gmra.mrb[0].mxu0 %v5511
      %v5807 = vpop.f32.mrb[0].mxu0
      %v5808 = vadd.f32 %v5228, %v5807
      %v5809 = vpop.f32.mrb[0].mxu0
      %5810 = vmatprep.mubr.f32.mxu0 0.0
      %5811 = vmatmul.mubr.f32.gmra.mrb[0].mxu0 %v5514
      %v5812 = vpop.f32.mrb[0].mxu0
      %v5813 = vadd.f32 %v5233, %v5812
      %v5814 = vpop.f32.mrb[0].mxu0
      %5815 = vmatprep.mubr.f32.mxu0 0.0
      %5816 = vmatmul.mubr.f32.gmra.mrb[0].mxu0 %v5517
      %v5817 = vpop.f32.mrb[0].mxu0
      %v5818 = vadd.f32 %v5238, %v5817
      %v5819 = vpop.f32.mrb[0].mxu0
      %5820 = vmatprep.mubr.f32.mxu0 0.0
      %5821 = vmatmul.mubr.f32.gmra.mrb[0].mxu0 %v5520
      %v5822 = vpop.f32.mrb[0].mxu0
      %v5823 = vadd.f32 %v5243, %v5822
      %v5824 = vpop.f32.mrb[0].mxu0
      %5825 = vmatprep.mubr.f32.mxu0 0.0
      %5826 = vmatmul.mubr.f32.gmra.mrb[0].mxu0 %v5523
      %v5827 = vpop.f32.mrb[0].mxu0
      %v5828 = vadd.f32 %v5248, %v5827
      %v5829 = vpop.f32.mrb[0].mxu0
      %5830 = vmatprep.mubr.f32.mxu0 0.0
      %5831 = vmatmul.mubr.f32.gmra.mrb[0].mxu0 %v5526
      %v5832 = vpop.f32.mrb[0].mxu0
      %v5833 = vadd.f32 %v5253, %v5832
      %v5834 = vpop.f32.mrb[0].mxu0
      %5835 = vmatprep.mubr.f32.mxu0 0.0
      %5836 = vmatmul.mubr.f32.gmra.mrb[0].mxu0 %v5529
      %v5837 = vpop.f32.mrb[0].mxu0
      %v5838 = vadd.f32 %v5258, %v5837
      %v5839 = vpop.f32.mrb[0].mxu0
      %5840 = vmatprep.mubr.f32.mxu0 0.0
      %5841 = vmatmul.mubr.f32.gmra.mrb[0].mxu0 %v5532
      %v5842 = vpop.f32.mrb[0].mxu0
      %v5843 = vadd.f32 %v5263, %v5842
      %v5844 = vpop.f32.mrb[0].mxu0
      %5845 = vmatprep.mubr.f32.mxu0 0.0
      %5846 = vmatmul.mubr.f32.gmra.mrb[0].mxu0 %v5535
      %v5847 = vpop.f32.mrb[0].mxu0
      %v5848 = vadd.f32 %v5268, %v5847
      %v5849 = vpop.f32.mrb[0].mxu0
      %5850 = vmatprep.mubr.f32.mxu0 0.0
      %5851 = vmatmul.mubr.f32.gmra.mrb[0].mxu0 %v5538
      %v5852 = vpop.f32.mrb[0].mxu0
      %v5853 = vadd.f32 %v5273, %v5852
      %v5854 = vpop.f32.mrb[0].mxu0
      %5855 = vmatprep.mubr.f32.mxu0 0.0
      %5856 = vmatmul.mubr.f32.gmra.mrb[0].mxu0 %v5541
      %v5857 = vpop.f32.mrb[0].mxu0
      %v5858 = vadd.f32 %v5278, %v5857
      %v5859 = vpop.f32.mrb[0].mxu0
      %5860 = vmatprep.mubr.f32.mxu0 0.0
      %5861 = vmatmul.mubr.f32.gmra.mrb[0].mxu0 %v5544
      %v5862 = vpop.f32.mrb[0].mxu0
      %v5863 = vadd.f32 %v5283, %v5862
      %v5864 = vpop.f32.mrb[0].mxu0
      %5865 = vmatprep.mubr.f32.mxu0 0.0
      %5866 = vmatmul.mubr.f32.gmra.mrb[0].mxu0 %v5547
      %v5867 = vpop.f32.mrb[0].mxu0
      %v5868 = vadd.f32 %v5288, %v5867
      %v5869 = vpop.f32.mrb[0].mxu0
      %5870 = vmatprep.mubr.f32.mxu0 0.0
      %5871 = vmatmul.mubr.f32.gmra.mrb[0].mxu0 %v5550
      %v5872 = vpop.f32.mrb[0].mxu0
      %v5873 = vadd.f32 %v5293, %v5872
      %v5874 = vpop.f32.mrb[0].mxu0
      %5875 = vmatprep.mubr.f32.mxu0 0.0
      %5876 = vmatmul.mubr.f32.gmra.mrb[0].mxu0 %v5553
      %v5877 = vpop.f32.mrb[0].mxu0
      %v5878 = vadd.f32 %v5298, %v5877
      %v5879 = vpop.f32.mrb[0].mxu0
      %5880 = vmatprep.mubr.f32.mxu0 0.0
      %5881 = vmatmul.mubr.f32.gmra.mrb[0].mxu0 %v5556
      %v5882 = vpop.f32.mrb[0].mxu0
      %v5883 = vadd.f32 %v5303, %v5882
      %v5884 = vpop.f32.mrb[0].mxu0
      %5885 = vmatprep.mubr.f32.mxu0 0.0
      %5886 = vmatmul.mubr.f32.gmra.mrb[0].mxu0 %v5559
      %v5887 = vpop.f32.mrb[0].mxu0
      %v5888 = vadd.f32 %v5308, %v5887
      %v5889 = vpop.f32.mrb[0].mxu0
      %5890 = vmatprep.mubr.f32.mxu0 0.0
      %5891 = vmatmul.mubr.f32.gmra.mrb[0].mxu0 %v5562
      %v5892 = vpop.f32.mrb[0].mxu0
      %v5893 = vadd.f32 %v5313, %v5892
      %v5894 = vpop.f32.mrb[0].mxu0
      %5895 = vmatprep.mubr.f32.mxu0 0.0
      %5896 = vmatmul.mubr.f32.gmra.mrb[0].mxu0 %v5565
      %v5897 = vpop.f32.mrb[0].mxu0
      %v5898 = vadd.f32 %v5318, %v5897
      %v5899 = vpop.f32.mrb[0].mxu0
      %5900 = vmatprep.mubr.f32.mxu0 0.0
      %5901 = vmatmul.mubr.f32.gmra.mrb[0].mxu0 %v5568
      %v5902 = vpop.f32.mrb[0].mxu0
      %v5903 = vadd.f32 %v5323, %v5902
      %v5904 = vpop.f32.mrb[0].mxu0
      %5905 = vmatprep.mubr.f32.mxu0 0.0
      %5906 = vmatmul.mubr.f32.gmra.mrb[0].mxu0 %v5571
      %v5907 = vpop.f32.mrb[0].mxu0
      %v5908 = vadd.f32 %v5328, %v5907
      %v5909 = vpop.f32.mrb[0].mxu0
      %5910 = vmatprep.mubr.f32.mxu0 0.0
      %5911 = vmatmul.mubr.f32.gmra.mrb[0].mxu0 %v5574
      %v5912 = vpop.f32.mrb[0].mxu0
      %v5913 = vadd.f32 %v5333, %v5912
      %v5914 = vpop.f32.mrb[0].mxu0
      %5915 = vmatprep.mubr.f32.mxu0 0.0
      %5916 = vmatmul.mubr.f32.gmra.mrb[0].mxu0 %v5577
      %v5917 = vpop.f32.mrb[0].mxu0
      %v5918 = vadd.f32 %v5338, %v5917
      %v5919 = vpop.f32.mrb[0].mxu0
      %5920 = vmatprep.mubr.f32.mxu0 0.0
      %5921 = vmatmul.mubr.f32.gmra.mrb[0].mxu0 %v5580
      %v5922 = vpop.f32.mrb[0].mxu0
      %v5923 = vadd.f32 %v5343, %v5922
      %v5924 = vpop.f32.mrb[0].mxu0
      %5925 = vmatprep.mubr.f32.mxu0 0.0
      %5926 = vmatmul.mubr.f32.gmra.mrb[0].mxu0 %v5583
      %v5927 = vpop.f32.mrb[0].mxu0
      %v5928 = vadd.f32 %v5348, %v5927
      %v5929 = vpop.f32.mrb[0].mxu0
      %5930 = vmatprep.mubr.f32.mxu0 0.0
      %5931 = vmatmul.mubr.f32.gmra.mrb[0].mxu0 %v5586
      %v5932 = vpop.f32.mrb[0].mxu0
      %v5933 = vadd.f32 %v5353, %v5932
      %v5934 = vpop.f32.mrb[0].mxu0
      %5935 = vmatprep.mubr.f32.mxu0 0.0
      %5936 = vmatmul.mubr.f32.gmra.mrb[0].mxu0 %v5589
      %v5937 = vpop.f32.mrb[0].mxu0
      %v5938 = vadd.f32 %v5358, %v5937
      %v5939 = vpop.f32.mrb[0].mxu0
      %5940 = vmatprep.mubr.f32.mxu0 0.0
      %5941 = vmatmul.mubr.f32.gmra.mrb[0].mxu0 %v5592
      %v5942 = vpop.f32.mrb[0].mxu0
      %v5943 = vadd.f32 %v5363, %v5942
      %v5944 = vpop.f32.mrb[0].mxu0
      %5945 = vmatprep.mubr.f32.mxu0 0.0
      %5946 = vmatmul.mubr.f32.gmra.mrb[0].mxu0 %v5595
      %v5947 = vpop.f32.mrb[0].mxu0
      %v5948 = vadd.f32 %v5368, %v5947
      %v5949 = vpop.f32.mrb[0].mxu0
      %5950 = vmatprep.mubr.f32.mxu0 0.0
      %5951 = vmatmul.mubr.f32.gmra.mrb[0].mxu0 %v5598
      %v5952 = vpop.f32.mrb[0].mxu0
      %v5953 = vadd.f32 %v5373, %v5952
      %v5954 = vpop.f32.mrb[0].mxu0
      %5955 = vmatprep.mubr.f32.mxu0 0.0
      %5956 = vmatmul.mubr.f32.gmra.mrb[0].mxu0 %v5601
      %v5957 = vpop.f32.mrb[0].mxu0
      %v5958 = vadd.f32 %v5378, %v5957
      %v5959 = vpop.f32.mrb[0].mxu0
      %5960 = vmatprep.mubr.f32.mxu0 0.0
      %5961 = vmatmul.mubr.f32.gmra.mrb[0].mxu0 %v5604
      %v5962 = vpop.f32.mrb[0].mxu0
      %v5963 = vadd.f32 %v5383, %v5962
      %v5964 = vpop.f32.mrb[0].mxu0
      %5965 = vmatprep.mubr.f32.mxu0 0.0
      %5966 = vmatmul.mubr.f32.gmra.mrb[0].mxu0 %v5607
      %v5967 = vpop.f32.mrb[0].mxu0
      %v5968 = vadd.f32 %v5388, %v5967
      %v5969 = vpop.f32.mrb[0].mxu0
      %5970 = vmatprep.mubr.f32.mxu0 0.0
      %5971 = vmatmul.mubr.f32.gmra.mrb[0].mxu0 %v5610
      %v5972 = vpop.f32.mrb[0].mxu0
      %v5973 = vadd.f32 %v5393, %v5972
      %v5974 = vpop.f32.mrb[0].mxu0
      %5975 = vmatprep.mubr.f32.mxu0 0.0
      %5976 = vmatmul.mubr.f32.gmra.mrb[0].mxu0 %v5613
      %v5977 = vpop.f32.mrb[0].mxu0
      %v5978 = vadd.f32 %v5398, %v5977
      %v5979 = vpop.f32.mrb[0].mxu0
      %5980 = vmatprep.mubr.f32.mxu0 0.0
      %5981 = vmatmul.mubr.f32.gmra.mrb[0].mxu0 %v5616
      %v5982 = vpop.f32.mrb[0].mxu0
      %v5983 = vadd.f32 %v5403, %v5982
      %v5984 = vpop.f32.mrb[0].mxu0
      %5985 = vmatprep.mubr.f32.mxu0 0.0
      %5986 = vmatmul.mubr.f32.gmra.mrb[0].mxu0 %v5619
      %v5987 = vpop.f32.mrb[0].mxu0
      %v5988 = vadd.f32 %v5408, %v5987
      %v5989 = vpop.f32.mrb[0].mxu0
      %5990 = vmatprep.mubr.f32.mxu0 0.0
      %5991 = vmatmul.mubr.f32.gmra.mrb[0].mxu0 %v5622
      %v5992 = vpop.f32.mrb[0].mxu0
      %v5993 = vadd.f32 %v5413, %v5992
      %v5994 = vpop.f32.mrb[0].mxu0
      %5995 = vmatprep.mubr.f32.mxu0 0.0
      %5996 = vmatmul.mubr.f32.gmra.mrb[0].mxu0 %v5625
      %v5997 = vpop.f32.mrb[0].mxu0
      %v5998 = vadd.f32 %v5418, %v5997
      %v5999 = vpop.f32.mrb[0].mxu0
      %6000 = vmatprep.mubr.f32.mxu0 0.0
      %6001 = vmatmul.mubr.f32.gmra.mrb[0].mxu0 %v5628
      %v6002 = vpop.f32.mrb[0].mxu0
      %v6003 = vadd.f32 %v5423, %v6002
      %v6004 = vpop.f32.mrb[0].mxu0
      %6005 = vmatprep.mubr.f32.mxu0 0.0
      %6006 = vmatmul.mubr.f32.gmra.mrb[0].mxu0 %v5631
      %v6007 = vpop.f32.mrb[0].mxu0
      %v6008 = vadd.f32 %v5428, %v6007
      %v6009 = vpop.f32.mrb[0].mxu0
      %6010 = vmatprep.mubr.f32.mxu0 0.0
      %6011 = vmatmul.mubr.f32.gmra.mrb[0].mxu0 %v5634
      %v6012 = vpop.f32.mrb[0].mxu0
      %v6013 = vadd.f32 %v5433, %v6012
      %v6014 = vpop.f32.mrb[0].mxu0
      %6015 = vmatprep.mubr.f32.mxu0 0.0
      %6016 = vmatmul.mubr.f32.gmra.mrb[0].mxu0 %v5637
      %v6017 = vpop.f32.mrb[0].mxu0
      %v6018 = vadd.f32 %v5438, %v6017
      %v6019 = vpop.f32.mrb[0].mxu0
      %6020 = vmatprep.mubr.f32.mxu0 0.0
      %6021 = vmatmul.mubr.f32.gmra.mrb[0].mxu0 %v5640
      %v6022 = vpop.f32.mrb[0].mxu0
      %v6023 = vadd.f32 %v5443, %v6022
      %v6024 = vpop.f32.mrb[0].mxu0
      %6025 = vmatprep.mubr.f32.mxu0 0.0
      %6026 = vmatmul.mubr.f32.gmra.mrb[0].mxu0 %v5643
      %v6027 = vpop.f32.mrb[0].mxu0
      %v6028 = vadd.f32 %v5448, %v6027
      %v6029 = vpop.f32.mrb[0].mxu0
      %6030 = vmatprep.mubr.f32.mxu0 0.0
      %6031 = vmatmul.mubr.f32.gmra.mrb[0].mxu0 %v5646
      %v6032 = vpop.f32.mrb[0].mxu0
      %v6033 = vadd.f32 %v5453, %v6032
      %v6034 = vpop.f32.mrb[0].mxu0
      %6035 = vdwg.mxu0
      %s6036 = scalar_lea.vmem %s3, 32
      %v6037 = vld [vmem:[%s6036] sm:$0xf]
      %v6039 = vsel %vm1974, %v1907, 0
      %v6042 = vsel %vm1974, %v1908, 0
      %v6045 = vsel %vm1974, %v1909, 0
      %v6048 = vsel %vm1974, %v1910, 0
      %v6051 = vsel %vm1974, %v1911, 0
      %v6054 = vsel %vm1974, %v1912, 0
      %v6057 = vsel %vm1974, %v1913, 0
      %v6060 = vsel %vm1974, %v1914, 0
      %v6063 = vsel %vm1974, %v1915, 0
      %v6066 = vsel %vm1974, %v1916, 0
      %v6069 = vsel %vm1974, %v1917, 0
      %v6072 = vsel %vm1974, %v1918, 0
      %v6075 = vsel %vm1974, %v1919, 0
      %v6078 = vsel %vm1974, %v1920, 0
      %v6081 = vsel %vm1974, %v1921, 0
      %v6084 = vsel %vm1974, %v1922, 0
      %v6087 = vsel %vm1974, %v1923, 0
      %v6090 = vsel %vm1974, %v1924, 0
      %v6093 = vsel %vm1974, %v1925, 0
      %v6096 = vsel %vm1974, %v1926, 0
      %v6099 = vsel %vm1974, %v1927, 0
      %v6102 = vsel %vm1974, %v1928, 0
      %v6105 = vsel %vm1974, %v1929, 0
      %v6108 = vsel %vm1974, %v1930, 0
      %v6111 = vsel %vm1974, %v1931, 0
      %v6114 = vsel %vm1974, %v1932, 0
      %v6117 = vsel %vm1974, %v1933, 0
      %v6120 = vsel %vm1974, %v1934, 0
      %v6123 = vsel %vm1974, %v1935, 0
      %v6126 = vsel %vm1974, %v1936, 0
      %v6129 = vsel %vm1974, %v1937, 0
      %v6132 = vsel %vm1974, %v1938, 0
      %v6135 = vsel %vm1974, %v1939, 0
      %v6138 = vsel %vm1974, %v1940, 0
      %v6141 = vsel %vm1974, %v1941, 0
      %v6144 = vsel %vm1974, %v1942, 0
      %v6147 = vsel %vm1974, %v1943, 0
      %v6150 = vsel %vm1974, %v1944, 0
      %v6153 = vsel %vm1974, %v1945, 0
      %v6156 = vsel %vm1974, %v1946, 0
      %v6159 = vsel %vm1974, %v1947, 0
      %v6162 = vsel %vm1974, %v1948, 0
      %v6165 = vsel %vm1974, %v1949, 0
      %v6168 = vsel %vm1974, %v1950, 0
      %v6171 = vsel %vm1974, %v1951, 0
      %v6174 = vsel %vm1974, %v1952, 0
      %v6177 = vsel %vm1974, %v1953, 0
      %v6180 = vsel %vm1974, %v1954, 0
      %v6183 = vsel %vm1974, %v1955, 0
      %v6186 = vsel %vm1974, %v1956, 0
      %v6189 = vsel %vm1974, %v1957, 0
      %v6192 = vsel %vm1974, %v1958, 0
      %v6195 = vsel %vm1974, %v1959, 0
      %v6198 = vsel %vm1974, %v1960, 0
      %v6201 = vsel %vm1974, %v1961, 0
      %v6204 = vsel %vm1974, %v1962, 0
      %v6207 = vsel %vm1974, %v1963, 0
      %v6210 = vsel %vm1974, %v1964, 0
      %v6213 = vsel %vm1974, %v1965, 0
      %v6216 = vsel %vm1974, %v1966, 0
      %v6219 = vsel %vm1974, %v1967, 0
      %v6222 = vsel %vm1974, %v1968, 0
      %v6225 = vsel %vm1974, %v1969, 0
      %v6228 = vsel %vm1974, %v1970, 0
      %v6231 = vsel %vm2167, %v6037, 0
      %6233 = vmatprep.subr.mxu0 0.0
      %6234 = vmatpush1.msra.mxu0 %v6231
      %6235 = vmatprep.subr.mxu0 0.0
      %6236 = vmatpush1.msra.mxu0 0.0
      %6237 = vmatprep.subr.mxu0 0.0
      %6238 = vmatpush1.msra.mxu0 0.0
      %6239 = vmatprep.subr.mxu0 0.0
      %6240 = vmatpush1.msra.mxu0 0.0
      %6241 = vmatprep.subr.mxu0 0.0
      %6242 = vmatpush1.msra.mxu0 0.0
      %6243 = vmatprep.subr.mxu0 0.0
      %6244 = vmatpush1.msra.mxu0 0.0
      %6245 = vmatprep.subr.mxu0 0.0
      %6246 = vmatpush1.msra.mxu0 0.0
      %6247 = vmatprep.subr.mxu0 0.0
      %6248 = vmatpush1.msra.mxu0 0.0
      %6249 = vmatprep.subr.mxu0 0.0
      %6250 = vmatpush1.msra.mxu0 0.0
      %6251 = vmatprep.subr.mxu0 0.0
      %6252 = vmatpush1.msra.mxu0 0.0
      %6253 = vmatprep.subr.mxu0 0.0
      %6254 = vmatpush1.msra.mxu0 0.0
      %6255 = vmatprep.subr.mxu0 0.0
      %6256 = vmatpush1.msra.mxu0 0.0
      %6257 = vmatprep.subr.mxu0 0.0
      %6258 = vmatpush1.msra.mxu0 0.0
      %6259 = vmatprep.subr.mxu0 0.0
      %6260 = vmatpush1.msra.mxu0 0.0
      %6261 = vmatprep.subr.mxu0 0.0
      %6262 = vmatpush1.msra.mxu0 0.0
      %6263 = vmatprep.subr.mxu0 0.0
      %6264 = vmatpush1.msra.mxu0 0.0
      %6265 = vmatprep.subr.mxu0 0.0
      %6266 = vmatpush1.msra.mxu0 0.0
      %6267 = vmatprep.subr.mxu0 0.0
      %6268 = vmatpush1.msra.mxu0 0.0
      %6269 = vmatprep.subr.mxu0 0.0
      %6270 = vmatpush1.msra.mxu0 0.0
      %6271 = vmatprep.subr.mxu0 0.0
      %6272 = vmatpush1.msra.mxu0 0.0
      %6273 = vmatprep.subr.mxu0 0.0
      %6274 = vmatpush1.msra.mxu0 0.0
      %6275 = vmatprep.subr.mxu0 0.0
      %6276 = vmatpush1.msra.mxu0 0.0
      %6277 = vmatprep.subr.mxu0 0.0
      %6278 = vmatpush1.msra.mxu0 0.0
      %6279 = vmatprep.subr.mxu0 0.0
      %6280 = vmatpush1.msra.mxu0 0.0
      %6281 = vmatprep.subr.mxu0 0.0
      %6282 = vmatpush1.msra.mxu0 0.0
      %6283 = vmatprep.subr.mxu0 0.0
      %6284 = vmatpush1.msra.mxu0 0.0
      %6285 = vmatprep.subr.mxu0 0.0
      %6286 = vmatpush1.msra.mxu0 0.0
      %6287 = vmatprep.subr.mxu0 0.0
      %6288 = vmatpush1.msra.mxu0 0.0
      %6289 = vmatprep.subr.mxu0 0.0
      %6290 = vmatpush1.msra.mxu0 0.0
      %6291 = vmatprep.subr.mxu0 0.0
      %6292 = vmatpush1.msra.mxu0 0.0
      %6293 = vmatprep.subr.mxu0 0.0
      %6294 = vmatpush1.msra.mxu0 0.0
      %6295 = vmatprep.subr.mxu0 0.0
      %6296 = vmatpush1.msra.mxu0 0.0
      %6297 = vmatprep.mubr.f32.mxu0 0.0
      %6298 = vmatmul.mubr.f32.gmra.mrb[0].mxu0 %v6039
      %v6299 = vpop.f32.mrb[0].mxu0
      %v6300 = vadd.f32 0.0, %v6299
      %v6301 = vpop.f32.mrb[0].mxu0
      %6302 = vmatprep.mubr.f32.mxu0 0.0
      %6303 = vmatmul.mubr.f32.gmra.mrb[0].mxu0 %v6042
      %v6304 = vpop.f32.mrb[0].mxu0
      %v6305 = vadd.f32 0.0, %v6304
      %v6306 = vpop.f32.mrb[0].mxu0
      %6307 = vmatprep.mubr.f32.mxu0 0.0
      %6308 = vmatmul.mubr.f32.gmra.mrb[0].mxu0 %v6045
      %v6309 = vpop.f32.mrb[0].mxu0
      %v6310 = vadd.f32 0.0, %v6309
      %v6311 = vpop.f32.mrb[0].mxu0
      %6312 = vmatprep.mubr.f32.mxu0 0.0
      %6313 = vmatmul.mubr.f32.gmra.mrb[0].mxu0 %v6048
      %v6314 = vpop.f32.mrb[0].mxu0
      %v6315 = vadd.f32 0.0, %v6314
      %v6316 = vpop.f32.mrb[0].mxu0
      %6317 = vmatprep.mubr.f32.mxu0 0.0
      %6318 = vmatmul.mubr.f32.gmra.mrb[0].mxu0 %v6051
      %v6319 = vpop.f32.mrb[0].mxu0
      %v6320 = vadd.f32 0.0, %v6319
      %v6321 = vpop.f32.mrb[0].mxu0
      %6322 = vmatprep.mubr.f32.mxu0 0.0
      %6323 = vmatmul.mubr.f32.gmra.mrb[0].mxu0 %v6054
      %v6324 = vpop.f32.mrb[0].mxu0
      %v6325 = vadd.f32 0.0, %v6324
      %v6326 = vpop.f32.mrb[0].mxu0
      %6327 = vmatprep.mubr.f32.mxu0 0.0
      %6328 = vmatmul.mubr.f32.gmra.mrb[0].mxu0 %v6057
      %v6329 = vpop.f32.mrb[0].mxu0
      %v6330 = vadd.f32 0.0, %v6329
      %v6331 = vpop.f32.mrb[0].mxu0
      %6332 = vmatprep.mubr.f32.mxu0 0.0
      %6333 = vmatmul.mubr.f32.gmra.mrb[0].mxu0 %v6060
      %v6334 = vpop.f32.mrb[0].mxu0
      %v6335 = vadd.f32 0.0, %v6334
      %v6336 = vpop.f32.mrb[0].mxu0
      %6337 = vmatprep.mubr.f32.mxu0 0.0
      %6338 = vmatmul.mubr.f32.gmra.mrb[0].mxu0 %v6063
      %v6339 = vpop.f32.mrb[0].mxu0
      %v6340 = vadd.f32 0.0, %v6339
      %v6341 = vpop.f32.mrb[0].mxu0
      %6342 = vmatprep.mubr.f32.mxu0 0.0
      %6343 = vmatmul.mubr.f32.gmra.mrb[0].mxu0 %v6066
      %v6344 = vpop.f32.mrb[0].mxu0
      %v6345 = vadd.f32 0.0, %v6344
      %v6346 = vpop.f32.mrb[0].mxu0
      %6347 = vmatprep.mubr.f32.mxu0 0.0
      %6348 = vmatmul.mubr.f32.gmra.mrb[0].mxu0 %v6069
      %v6349 = vpop.f32.mrb[0].mxu0
      %v6350 = vadd.f32 0.0, %v6349
      %v6351 = vpop.f32.mrb[0].mxu0
      %6352 = vmatprep.mubr.f32.mxu0 0.0
      %6353 = vmatmul.mubr.f32.gmra.mrb[0].mxu0 %v6072
      %v6354 = vpop.f32.mrb[0].mxu0
      %v6355 = vadd.f32 0.0, %v6354
      %v6356 = vpop.f32.mrb[0].mxu0
      %6357 = vmatprep.mubr.f32.mxu0 0.0
      %6358 = vmatmul.mubr.f32.gmra.mrb[0].mxu0 %v6075
      %v6359 = vpop.f32.mrb[0].mxu0
      %v6360 = vadd.f32 0.0, %v6359
      %v6361 = vpop.f32.mrb[0].mxu0
      %6362 = vmatprep.mubr.f32.mxu0 0.0
      %6363 = vmatmul.mubr.f32.gmra.mrb[0].mxu0 %v6078
      %v6364 = vpop.f32.mrb[0].mxu0
      %v6365 = vadd.f32 0.0, %v6364
      %v6366 = vpop.f32.mrb[0].mxu0
      %6367 = vmatprep.mubr.f32.mxu0 0.0
      %6368 = vmatmul.mubr.f32.gmra.mrb[0].mxu0 %v6081
      %v6369 = vpop.f32.mrb[0].mxu0
      %v6370 = vadd.f32 0.0, %v6369
      %v6371 = vpop.f32.mrb[0].mxu0
      %6372 = vmatprep.mubr.f32.mxu0 0.0
      %6373 = vmatmul.mubr.f32.gmra.mrb[0].mxu0 %v6084
      %v6374 = vpop.f32.mrb[0].mxu0
      %v6375 = vadd.f32 0.0, %v6374
      %v6376 = vpop.f32.mrb[0].mxu0
      %6377 = vmatprep.mubr.f32.mxu0 0.0
      %6378 = vmatmul.mubr.f32.gmra.mrb[0].mxu0 %v6087
      %v6379 = vpop.f32.mrb[0].mxu0
      %v6380 = vadd.f32 0.0, %v6379
      %v6381 = vpop.f32.mrb[0].mxu0
      %6382 = vmatprep.mubr.f32.mxu0 0.0
      %6383 = vmatmul.mubr.f32.gmra.mrb[0].mxu0 %v6090
      %v6384 = vpop.f32.mrb[0].mxu0
      %v6385 = vadd.f32 0.0, %v6384
      %v6386 = vpop.f32.mrb[0].mxu0
      %6387 = vmatprep.mubr.f32.mxu0 0.0
      %6388 = vmatmul.mubr.f32.gmra.mrb[0].mxu0 %v6093
      %v6389 = vpop.f32.mrb[0].mxu0
      %v6390 = vadd.f32 0.0, %v6389
      %v6391 = vpop.f32.mrb[0].mxu0
      %6392 = vmatprep.mubr.f32.mxu0 0.0
      %6393 = vmatmul.mubr.f32.gmra.mrb[0].mxu0 %v6096
      %v6394 = vpop.f32.mrb[0].mxu0
      %v6395 = vadd.f32 0.0, %v6394
      %v6396 = vpop.f32.mrb[0].mxu0
      %6397 = vmatprep.mubr.f32.mxu0 0.0
      %6398 = vmatmul.mubr.f32.gmra.mrb[0].mxu0 %v6099
      %v6399 = vpop.f32.mrb[0].mxu0
      %v6400 = vadd.f32 0.0, %v6399
      %v6401 = vpop.f32.mrb[0].mxu0
      %6402 = vmatprep.mubr.f32.mxu0 0.0
      %6403 = vmatmul.mubr.f32.gmra.mrb[0].mxu0 %v6102
      %v6404 = vpop.f32.mrb[0].mxu0
      %v6405 = vadd.f32 0.0, %v6404
      %v6406 = vpop.f32.mrb[0].mxu0
      %6407 = vmatprep.mubr.f32.mxu0 0.0
      %6408 = vmatmul.mubr.f32.gmra.mrb[0].mxu0 %v6105
      %v6409 = vpop.f32.mrb[0].mxu0
      %v6410 = vadd.f32 0.0, %v6409
      %v6411 = vpop.f32.mrb[0].mxu0
      %6412 = vmatprep.mubr.f32.mxu0 0.0
      %6413 = vmatmul.mubr.f32.gmra.mrb[0].mxu0 %v6108
      %v6414 = vpop.f32.mrb[0].mxu0
      %v6415 = vadd.f32 0.0, %v6414
      %v6416 = vpop.f32.mrb[0].mxu0
      %6417 = vmatprep.mubr.f32.mxu0 0.0
      %6418 = vmatmul.mubr.f32.gmra.mrb[0].mxu0 %v6111
      %v6419 = vpop.f32.mrb[0].mxu0
      %v6420 = vadd.f32 0.0, %v6419
      %v6421 = vpop.f32.mrb[0].mxu0
      %6422 = vmatprep.mubr.f32.mxu0 0.0
      %6423 = vmatmul.mubr.f32.gmra.mrb[0].mxu0 %v6114
      %v6424 = vpop.f32.mrb[0].mxu0
      %v6425 = vadd.f32 0.0, %v6424
      %v6426 = vpop.f32.mrb[0].mxu0
      %6427 = vmatprep.mubr.f32.mxu0 0.0
      %6428 = vmatmul.mubr.f32.gmra.mrb[0].mxu0 %v6117
      %v6429 = vpop.f32.mrb[0].mxu0
      %v6430 = vadd.f32 0.0, %v6429
      %v6431 = vpop.f32.mrb[0].mxu0
      %6432 = vmatprep.mubr.f32.mxu0 0.0
      %6433 = vmatmul.mubr.f32.gmra.mrb[0].mxu0 %v6120
      %v6434 = vpop.f32.mrb[0].mxu0
      %v6435 = vadd.f32 0.0, %v6434
      %v6436 = vpop.f32.mrb[0].mxu0
      %6437 = vmatprep.mubr.f32.mxu0 0.0
      %6438 = vmatmul.mubr.f32.gmra.mrb[0].mxu0 %v6123
      %v6439 = vpop.f32.mrb[0].mxu0
      %v6440 = vadd.f32 0.0, %v6439
      %v6441 = vpop.f32.mrb[0].mxu0
      %6442 = vmatprep.mubr.f32.mxu0 0.0
      %6443 = vmatmul.mubr.f32.gmra.mrb[0].mxu0 %v6126
      %v6444 = vpop.f32.mrb[0].mxu0
      %v6445 = vadd.f32 0.0, %v6444
      %v6446 = vpop.f32.mrb[0].mxu0
      %6447 = vmatprep.mubr.f32.mxu0 0.0
      %6448 = vmatmul.mubr.f32.gmra.mrb[0].mxu0 %v6129
      %v6449 = vpop.f32.mrb[0].mxu0
      %v6450 = vadd.f32 0.0, %v6449
      %v6451 = vpop.f32.mrb[0].mxu0
      %6452 = vmatprep.mubr.f32.mxu0 0.0
      %6453 = vmatmul.mubr.f32.gmra.mrb[0].mxu0 %v6132
      %v6454 = vpop.f32.mrb[0].mxu0
      %v6455 = vadd.f32 0.0, %v6454
      %v6456 = vpop.f32.mrb[0].mxu0
      %6457 = vmatprep.mubr.f32.mxu0 0.0
      %6458 = vmatmul.mubr.f32.gmra.mrb[0].mxu0 %v6135
      %v6459 = vpop.f32.mrb[0].mxu0
      %v6460 = vadd.f32 0.0, %v6459
      %v6461 = vpop.f32.mrb[0].mxu0
      %6462 = vmatprep.mubr.f32.mxu0 0.0
      %6463 = vmatmul.mubr.f32.gmra.mrb[0].mxu0 %v6138
      %v6464 = vpop.f32.mrb[0].mxu0
      %v6465 = vadd.f32 0.0, %v6464
      %v6466 = vpop.f32.mrb[0].mxu0
      %6467 = vmatprep.mubr.f32.mxu0 0.0
      %6468 = vmatmul.mubr.f32.gmra.mrb[0].mxu0 %v6141
      %v6469 = vpop.f32.mrb[0].mxu0
      %v6470 = vadd.f32 0.0, %v6469
      %v6471 = vpop.f32.mrb[0].mxu0
      %6472 = vmatprep.mubr.f32.mxu0 0.0
      %6473 = vmatmul.mubr.f32.gmra.mrb[0].mxu0 %v6144
      %v6474 = vpop.f32.mrb[0].mxu0
      %v6475 = vadd.f32 0.0, %v6474
      %v6476 = vpop.f32.mrb[0].mxu0
      %6477 = vmatprep.mubr.f32.mxu0 0.0
      %6478 = vmatmul.mubr.f32.gmra.mrb[0].mxu0 %v6147
      %v6479 = vpop.f32.mrb[0].mxu0
      %v6480 = vadd.f32 0.0, %v6479
      %v6481 = vpop.f32.mrb[0].mxu0
      %6482 = vmatprep.mubr.f32.mxu0 0.0
      %6483 = vmatmul.mubr.f32.gmra.mrb[0].mxu0 %v6150
      %v6484 = vpop.f32.mrb[0].mxu0
      %v6485 = vadd.f32 0.0, %v6484
      %v6486 = vpop.f32.mrb[0].mxu0
      %6487 = vmatprep.mubr.f32.mxu0 0.0
      %6488 = vmatmul.mubr.f32.gmra.mrb[0].mxu0 %v6153
      %v6489 = vpop.f32.mrb[0].mxu0
      %v6490 = vadd.f32 0.0, %v6489
      %v6491 = vpop.f32.mrb[0].mxu0
      %6492 = vmatprep.mubr.f32.mxu0 0.0
      %6493 = vmatmul.mubr.f32.gmra.mrb[0].mxu0 %v6156
      %v6494 = vpop.f32.mrb[0].mxu0
      %v6495 = vadd.f32 0.0, %v6494
      %v6496 = vpop.f32.mrb[0].mxu0
      %6497 = vmatprep.mubr.f32.mxu0 0.0
      %6498 = vmatmul.mubr.f32.gmra.mrb[0].mxu0 %v6159
      %v6499 = vpop.f32.mrb[0].mxu0
      %v6500 = vadd.f32 0.0, %v6499
      %v6501 = vpop.f32.mrb[0].mxu0
      %6502 = vmatprep.mubr.f32.mxu0 0.0
      %6503 = vmatmul.mubr.f32.gmra.mrb[0].mxu0 %v6162
      %v6504 = vpop.f32.mrb[0].mxu0
      %v6505 = vadd.f32 0.0, %v6504
      %v6506 = vpop.f32.mrb[0].mxu0
      %6507 = vmatprep.mubr.f32.mxu0 0.0
      %6508 = vmatmul.mubr.f32.gmra.mrb[0].mxu0 %v6165
      %v6509 = vpop.f32.mrb[0].mxu0
      %v6510 = vadd.f32 0.0, %v6509
      %v6511 = vpop.f32.mrb[0].mxu0
      %6512 = vmatprep.mubr.f32.mxu0 0.0
      %6513 = vmatmul.mubr.f32.gmra.mrb[0].mxu0 %v6168
      %v6514 = vpop.f32.mrb[0].mxu0
      %v6515 = vadd.f32 0.0, %v6514
      %v6516 = vpop.f32.mrb[0].mxu0
      %6517 = vmatprep.mubr.f32.mxu0 0.0
      %6518 = vmatmul.mubr.f32.gmra.mrb[0].mxu0 %v6171
      %v6519 = vpop.f32.mrb[0].mxu0
      %v6520 = vadd.f32 0.0, %v6519
      %v6521 = vpop.f32.mrb[0].mxu0
      %6522 = vmatprep.mubr.f32.mxu0 0.0
      %6523 = vmatmul.mubr.f32.gmra.mrb[0].mxu0 %v6174
      %v6524 = vpop.f32.mrb[0].mxu0
      %v6525 = vadd.f32 0.0, %v6524
      %v6526 = vpop.f32.mrb[0].mxu0
      %6527 = vmatprep.mubr.f32.mxu0 0.0
      %6528 = vmatmul.mubr.f32.gmra.mrb[0].mxu0 %v6177
      %v6529 = vpop.f32.mrb[0].mxu0
      %v6530 = vadd.f32 0.0, %v6529
      %v6531 = vpop.f32.mrb[0].mxu0
      %6532 = vmatprep.mubr.f32.mxu0 0.0
      %6533 = vmatmul.mubr.f32.gmra.mrb[0].mxu0 %v6180
      %v6534 = vpop.f32.mrb[0].mxu0
      %v6535 = vadd.f32 0.0, %v6534
      %v6536 = vpop.f32.mrb[0].mxu0
      %6537 = vmatprep.mubr.f32.mxu0 0.0
      %6538 = vmatmul.mubr.f32.gmra.mrb[0].mxu0 %v6183
      %v6539 = vpop.f32.mrb[0].mxu0
      %v6540 = vadd.f32 0.0, %v6539
      %v6541 = vpop.f32.mrb[0].mxu0
      %6542 = vmatprep.mubr.f32.mxu0 0.0
      %6543 = vmatmul.mubr.f32.gmra.mrb[0].mxu0 %v6186
      %v6544 = vpop.f32.mrb[0].mxu0
      %v6545 = vadd.f32 0.0, %v6544
      %v6546 = vpop.f32.mrb[0].mxu0
      %6547 = vmatprep.mubr.f32.mxu0 0.0
      %6548 = vmatmul.mubr.f32.gmra.mrb[0].mxu0 %v6189
      %v6549 = vpop.f32.mrb[0].mxu0
      %v6550 = vadd.f32 0.0, %v6549
      %v6551 = vpop.f32.mrb[0].mxu0
      %6552 = vmatprep.mubr.f32.mxu0 0.0
      %6553 = vmatmul.mubr.f32.gmra.mrb[0].mxu0 %v6192
      %v6554 = vpop.f32.mrb[0].mxu0
      %v6555 = vadd.f32 0.0, %v6554
      %v6556 = vpop.f32.mrb[0].mxu0
      %6557 = vmatprep.mubr.f32.mxu0 0.0
      %6558 = vmatmul.mubr.f32.gmra.mrb[0].mxu0 %v6195
      %v6559 = vpop.f32.mrb[0].mxu0
      %v6560 = vadd.f32 0.0, %v6559
      %v6561 = vpop.f32.mrb[0].mxu0
      %6562 = vmatprep.mubr.f32.mxu0 0.0
      %6563 = vmatmul.mubr.f32.gmra.mrb[0].mxu0 %v6198
      %v6564 = vpop.f32.mrb[0].mxu0
      %v6565 = vadd.f32 0.0, %v6564
      %v6566 = vpop.f32.mrb[0].mxu0
      %6567 = vmatprep.mubr.f32.mxu0 0.0
      %6568 = vmatmul.mubr.f32.gmra.mrb[0].mxu0 %v6201
      %v6569 = vpop.f32.mrb[0].mxu0
      %v6570 = vadd.f32 0.0, %v6569
      %v6571 = vpop.f32.mrb[0].mxu0
      %6572 = vmatprep.mubr.f32.mxu0 0.0
      %6573 = vmatmul.mubr.f32.gmra.mrb[0].mxu0 %v6204
      %v6574 = vpop.f32.mrb[0].mxu0
      %v6575 = vadd.f32 0.0, %v6574
      %v6576 = vpop.f32.mrb[0].mxu0
      %6577 = vmatprep.mubr.f32.mxu0 0.0
      %6578 = vmatmul.mubr.f32.gmra.mrb[0].mxu0 %v6207
      %v6579 = vpop.f32.mrb[0].mxu0
      %v6580 = vadd.f32 0.0, %v6579
      %v6581 = vpop.f32.mrb[0].mxu0
      %6582 = vmatprep.mubr.f32.mxu0 0.0
      %6583 = vmatmul.mubr.f32.gmra.mrb[0].mxu0 %v6210
      %v6584 = vpop.f32.mrb[0].mxu0
      %v6585 = vadd.f32 0.0, %v6584
      %v6586 = vpop.f32.mrb[0].mxu0
      %6587 = vmatprep.mubr.f32.mxu0 0.0
      %6588 = vmatmul.mubr.f32.gmra.mrb[0].mxu0 %v6213
      %v6589 = vpop.f32.mrb[0].mxu0
      %v6590 = vadd.f32 0.0, %v6589
      %v6591 = vpop.f32.mrb[0].mxu0
      %6592 = vmatprep.mubr.f32.mxu0 0.0
      %6593 = vmatmul.mubr.f32.gmra.mrb[0].mxu0 %v6216
      %v6594 = vpop.f32.mrb[0].mxu0
      %v6595 = vadd.f32 0.0, %v6594
      %v6596 = vpop.f32.mrb[0].mxu0
      %6597 = vmatprep.mubr.f32.mxu0 0.0
      %6598 = vmatmul.mubr.f32.gmra.mrb[0].mxu0 %v6219
      %v6599 = vpop.f32.mrb[0].mxu0
      %v6600 = vadd.f32 0.0, %v6599
      %v6601 = vpop.f32.mrb[0].mxu0
      %6602 = vmatprep.mubr.f32.mxu0 0.0
      %6603 = vmatmul.mubr.f32.gmra.mrb[0].mxu0 %v6222
      %v6604 = vpop.f32.mrb[0].mxu0
      %v6605 = vadd.f32 0.0, %v6604
      %v6606 = vpop.f32.mrb[0].mxu0
      %6607 = vmatprep.mubr.f32.mxu0 0.0
      %6608 = vmatmul.mubr.f32.gmra.mrb[0].mxu0 %v6225
      %v6609 = vpop.f32.mrb[0].mxu0
      %v6610 = vadd.f32 0.0, %v6609
      %v6611 = vpop.f32.mrb[0].mxu0
      %6612 = vmatprep.mubr.f32.mxu0 0.0
      %6613 = vmatmul.mubr.f32.gmra.mrb[0].mxu0 %v6228
      %v6614 = vpop.f32.mrb[0].mxu0
      %v6615 = vadd.f32 0.0, %v6614
      %v6616 = vpop.f32.mrb[0].mxu0
      %6617 = vdwg.mxu0
      %v6618 = vadd.f32 %v5718, %v6300
      %v6619 = vadd.f32 %v5723, %v6305
      %v6620 = vadd.f32 %v5728, %v6310
      %v6621 = vadd.f32 %v5733, %v6315
      %v6622 = vadd.f32 %v5738, %v6320
      %v6623 = vadd.f32 %v5743, %v6325
      %v6624 = vadd.f32 %v5748, %v6330
      %v6625 = vadd.f32 %v5753, %v6335
      %v6626 = vadd.f32 %v5758, %v6340
      %v6627 = vadd.f32 %v5763, %v6345
      %v6628 = vadd.f32 %v5768, %v6350
      %v6629 = vadd.f32 %v5773, %v6355
      %v6630 = vadd.f32 %v5778, %v6360
      %v6631 = vadd.f32 %v5783, %v6365
      %v6632 = vadd.f32 %v5788, %v6370
      %v6633 = vadd.f32 %v5793, %v6375
      %v6634 = vadd.f32 %v5798, %v6380
      %v6635 = vadd.f32 %v5803, %v6385
      %v6636 = vadd.f32 %v5808, %v6390
      %v6637 = vadd.f32 %v5813, %v6395
      %v6638 = vadd.f32 %v5818, %v6400
      %v6639 = vadd.f32 %v5823, %v6405
      %v6640 = vadd.f32 %v5828, %v6410
      %v6641 = vadd.f32 %v5833, %v6415
      %v6642 = vadd.f32 %v5838, %v6420
      %v6643 = vadd.f32 %v5843, %v6425
      %v6644 = vadd.f32 %v5848, %v6430
      %v6645 = vadd.f32 %v5853, %v6435
      %v6646 = vadd.f32 %v5858, %v6440
      %v6647 = vadd.f32 %v5863, %v6445
      %v6648 = vadd.f32 %v5868, %v6450
      %v6649 = vadd.f32 %v5873, %v6455
      %v6650 = vadd.f32 %v5878, %v6460
      %v6651 = vadd.f32 %v5883, %v6465
      %v6652 = vadd.f32 %v5888, %v6470
      %v6653 = vadd.f32 %v5893, %v6475
      %v6654 = vadd.f32 %v5898, %v6480
      %v6655 = vadd.f32 %v5903, %v6485
      %v6656 = vadd.f32 %v5908, %v6490
      %v6657 = vadd.f32 %v5913, %v6495
      %v6658 = vadd.f32 %v5918, %v6500
      %v6659 = vadd.f32 %v5923, %v6505
      %v6660 = vadd.f32 %v5928, %v6510
      %v6661 = vadd.f32 %v5933, %v6515
      %v6662 = vadd.f32 %v5938, %v6520
      %v6663 = vadd.f32 %v5943, %v6525
      %v6664 = vadd.f32 %v5948, %v6530
      %v6665 = vadd.f32 %v5953, %v6535
      %v6666 = vadd.f32 %v5958, %v6540
      %v6667 = vadd.f32 %v5963, %v6545
      %v6668 = vadd.f32 %v5968, %v6550
      %v6669 = vadd.f32 %v5973, %v6555
      %v6670 = vadd.f32 %v5978, %v6560
      %v6671 = vadd.f32 %v5983, %v6565
      %v6672 = vadd.f32 %v5988, %v6570
      %v6673 = vadd.f32 %v5993, %v6575
      %v6674 = vadd.f32 %v5998, %v6580
      %v6675 = vadd.f32 %v6003, %v6585
      %v6676 = vadd.f32 %v6008, %v6590
      %v6677 = vadd.f32 %v6013, %v6595
      %v6678 = vadd.f32 %v6018, %v6600
      %v6679 = vadd.f32 %v6023, %v6605
      %v6680 = vadd.f32 %v6028, %v6610
      %v6681 = vadd.f32 %v6033, %v6615
      %v6682 = vld [vmem:[%s4] sm:$0x1]
      %v6683 = vlaneseq
      %v6684 = vshrl.u32 %v6683, 7
      %v6685 = vsub.s32 0, %v6684
      %v6686 = vrot.slane %v6682, %v6685
      %v6687 = vadd.f32 %v3382, %v6686
      %v6688 = vadd.f32 %v3383, %v6686
      %v6689 = vadd.f32 %v3384, %v6686
      %v6690 = vadd.f32 %v3385, %v6686
      %v6691 = vadd.f32 %v3386, %v6686
      %v6692 = vadd.f32 %v3387, %v6686
      %v6693 = vadd.f32 %v3388, %v6686
      %v6694 = vadd.f32 %v3389, %v6686
      %v6695 = vadd.f32 %v3390, %v6686
      %v6696 = vadd.f32 %v3391, %v6686
      %v6697 = vadd.f32 %v3392, %v6686
      %v6698 = vadd.f32 %v3393, %v6686
      %v6699 = vadd.f32 %v3394, %v6686
      %v6700 = vadd.f32 %v3395, %v6686
      %v6701 = vadd.f32 %v3396, %v6686
      %v6702 = vadd.f32 %v3397, %v6686
      %v6703 = vadd.f32 %v3398, %v6686
      %v6704 = vadd.f32 %v3399, %v6686
      %v6705 = vadd.f32 %v3400, %v6686
      %v6706 = vadd.f32 %v3401, %v6686
      %v6707 = vadd.f32 %v3402, %v6686
      %v6708 = vadd.f32 %v3403, %v6686
      %v6709 = vadd.f32 %v3404, %v6686
      %v6710 = vadd.f32 %v3405, %v6686
      %v6711 = vadd.f32 %v3406, %v6686
      %v6712 = vadd.f32 %v3407, %v6686
      %v6713 = vadd.f32 %v3408, %v6686
      %v6714 = vadd.f32 %v3409, %v6686
      %v6715 = vadd.f32 %v3410, %v6686
      %v6716 = vadd.f32 %v3411, %v6686
      %v6717 = vadd.f32 %v3412, %v6686
      %v6718 = vadd.f32 %v3413, %v6686
      %v6719 = vadd.f32 %v3414, %v6686
      %v6720 = vadd.f32 %v3415, %v6686
      %v6721 = vadd.f32 %v3416, %v6686
      %v6722 = vadd.f32 %v3417, %v6686
      %v6723 = vadd.f32 %v3418, %v6686
      %v6724 = vadd.f32 %v3419, %v6686
      %v6725 = vadd.f32 %v3420, %v6686
      %v6726 = vadd.f32 %v3421, %v6686
      %v6727 = vadd.f32 %v3422, %v6686
      %v6728 = vadd.f32 %v3423, %v6686
      %v6729 = vadd.f32 %v3424, %v6686
      %v6730 = vadd.f32 %v3425, %v6686
      %v6731 = vadd.f32 %v3426, %v6686
      %v6732 = vadd.f32 %v3427, %v6686
      %v6733 = vadd.f32 %v3428, %v6686
      %v6734 = vadd.f32 %v3429, %v6686
      %v6735 = vadd.f32 %v3430, %v6686
      %v6736 = vadd.f32 %v3431, %v6686
      %v6737 = vadd.f32 %v3432, %v6686
      %v6738 = vadd.f32 %v3433, %v6686
      %v6739 = vadd.f32 %v3434, %v6686
      %v6740 = vadd.f32 %v3435, %v6686
      %v6741 = vadd.f32 %v3436, %v6686
      %v6742 = vadd.f32 %v3437, %v6686
      %v6743 = vadd.f32 %v3438, %v6686
      %v6744 = vadd.f32 %v3439, %v6686
      %v6745 = vadd.f32 %v3440, %v6686
      %v6746 = vadd.f32 %v3441, %v6686
      %v6747 = vadd.f32 %v3442, %v6686
      %v6748 = vadd.f32 %v3443, %v6686
      %v6749 = vadd.f32 %v3444, %v6686
      %v6750 = vadd.f32 %v3445, %v6686
      %v6751 = vtanh.pop %v6687
      %v6752 = vtanh.pop %v6688
      %v6753 = vtanh.pop %v6689
      %v6754 = vtanh.pop %v6690
      %v6755 = vtanh.pop %v6691
      %v6756 = vtanh.pop %v6692
      %v6757 = vtanh.pop %v6693
      %v6758 = vtanh.pop %v6694
      %v6759 = vtanh.pop %v6695
      %v6760 = vtanh.pop %v6696
      %v6761 = vtanh.pop %v6697
      %v6762 = vtanh.pop %v6698
      %v6763 = vtanh.pop %v6699
      %v6764 = vtanh.pop %v6700
      %v6765 = vtanh.pop %v6701
      %v6766 = vtanh.pop %v6702
      %v6767 = vtanh.pop %v6703
      %v6768 = vtanh.pop %v6704
      %v6769 = vtanh.pop %v6705
      %v6770 = vtanh.pop %v6706
      %v6771 = vtanh.pop %v6707
      %v6772 = vtanh.pop %v6708
      %v6773 = vtanh.pop %v6709
      %v6774 = vtanh.pop %v6710
      %v6775 = vtanh.pop %v6711
      %v6776 = vtanh.pop %v6712
      %v6777 = vtanh.pop %v6713
      %v6778 = vtanh.pop %v6714
      %v6779 = vtanh.pop %v6715
      %v6780 = vtanh.pop %v6716
      %v6781 = vtanh.pop %v6717
      %v6782 = vtanh.pop %v6718
      %v6783 = vtanh.pop %v6719
      %v6784 = vtanh.pop %v6720
      %v6785 = vtanh.pop %v6721
      %v6786 = vtanh.pop %v6722
      %v6787 = vtanh.pop %v6723
      %v6788 = vtanh.pop %v6724
      %v6789 = vtanh.pop %v6725
      %v6790 = vtanh.pop %v6726
      %v6791 = vtanh.pop %v6727
      %v6792 = vtanh.pop %v6728
      %v6793 = vtanh.pop %v6729
      %v6794 = vtanh.pop %v6730
      %v6795 = vtanh.pop %v6731
      %v6796 = vtanh.pop %v6732
      %v6797 = vtanh.pop %v6733
      %v6798 = vtanh.pop %v6734
      %v6799 = vtanh.pop %v6735
      %v6800 = vtanh.pop %v6736
      %v6801 = vtanh.pop %v6737
      %v6802 = vtanh.pop %v6738
      %v6803 = vtanh.pop %v6739
      %v6804 = vtanh.pop %v6740
      %v6805 = vtanh.pop %v6741
      %v6806 = vtanh.pop %v6742
      %v6807 = vtanh.pop %v6743
      %v6808 = vtanh.pop %v6744
      %v6809 = vtanh.pop %v6745
      %v6810 = vtanh.pop %v6746
      %v6811 = vtanh.pop %v6747
      %v6812 = vtanh.pop %v6748
      %v6813 = vtanh.pop %v6749
      %v6814 = vtanh.pop %v6750
      %v6815 = vld [vmem:[%s4 + $0x1] sm:$0x1]
      %v6816 = vlaneseq
      %v6817 = vshrl.u32 %v6816, 7
      %v6818 = vsub.s32 0, %v6817
      %v6819 = vrot.slane %v6815, %v6818
      %v6820 = vadd.f32 %v5000, %v6819
      %v6821 = vadd.f32 %v5001, %v6819
      %v6822 = vadd.f32 %v5002, %v6819
      %v6823 = vadd.f32 %v5003, %v6819
      %v6824 = vadd.f32 %v5004, %v6819
      %v6825 = vadd.f32 %v5005, %v6819
      %v6826 = vadd.f32 %v5006, %v6819
      %v6827 = vadd.f32 %v5007, %v6819
      %v6828 = vadd.f32 %v5008, %v6819
      %v6829 = vadd.f32 %v5009, %v6819
      %v6830 = vadd.f32 %v5010, %v6819
      %v6831 = vadd.f32 %v5011, %v6819
      %v6832 = vadd.f32 %v5012, %v6819
      %v6833 = vadd.f32 %v5013, %v6819
      %v6834 = vadd.f32 %v5014, %v6819
      %v6835 = vadd.f32 %v5015, %v6819
      %v6836 = vadd.f32 %v5016, %v6819
      %v6837 = vadd.f32 %v5017, %v6819
      %v6838 = vadd.f32 %v5018, %v6819
      %v6839 = vadd.f32 %v5019, %v6819
      %v6840 = vadd.f32 %v5020, %v6819
      %v6841 = vadd.f32 %v5021, %v6819
      %v6842 = vadd.f32 %v5022, %v6819
      %v6843 = vadd.f32 %v5023, %v6819
      %v6844 = vadd.f32 %v5024, %v6819
      %v6845 = vadd.f32 %v5025, %v6819
      %v6846 = vadd.f32 %v5026, %v6819
      %v6847 = vadd.f32 %v5027, %v6819
      %v6848 = vadd.f32 %v5028, %v6819
      %v6849 = vadd.f32 %v5029, %v6819
      %v6850 = vadd.f32 %v5030, %v6819
      %v6851 = vadd.f32 %v5031, %v6819
      %v6852 = vadd.f32 %v5032, %v6819
      %v6853 = vadd.f32 %v5033, %v6819
      %v6854 = vadd.f32 %v5034, %v6819
      %v6855 = vadd.f32 %v5035, %v6819
      %v6856 = vadd.f32 %v5036, %v6819
      %v6857 = vadd.f32 %v5037, %v6819
      %v6858 = vadd.f32 %v5038, %v6819
      %v6859 = vadd.f32 %v5039, %v6819
      %v6860 = vadd.f32 %v5040, %v6819
      %v6861 = vadd.f32 %v5041, %v6819
      %v6862 = vadd.f32 %v5042, %v6819
      %v6863 = vadd.f32 %v5043, %v6819
      %v6864 = vadd.f32 %v5044, %v6819
      %v6865 = vadd.f32 %v5045, %v6819
      %v6866 = vadd.f32 %v5046, %v6819
      %v6867 = vadd.f32 %v5047, %v6819
      %v6868 = vadd.f32 %v5048, %v6819
      %v6869 = vadd.f32 %v5049, %v6819
      %v6870 = vadd.f32 %v5050, %v6819
      %v6871 = vadd.f32 %v5051, %v6819
      %v6872 = vadd.f32 %v5052, %v6819
      %v6873 = vadd.f32 %v5053, %v6819
      %v6874 = vadd.f32 %v5054, %v6819
      %v6875 = vadd.f32 %v5055, %v6819
      %v6876 = vadd.f32 %v5056, %v6819
      %v6877 = vadd.f32 %v5057, %v6819
      %v6878 = vadd.f32 %v5058, %v6819
      %v6879 = vadd.f32 %v5059, %v6819
      %v6880 = vadd.f32 %v5060, %v6819
      %v6881 = vadd.f32 %v5061, %v6819
      %v6882 = vadd.f32 %v5062, %v6819
      %v6883 = vadd.f32 %v5063, %v6819
      %v6884 = vtanh.pop %v6820
      %v6885 = vtanh.pop %v6821
      %v6886 = vtanh.pop %v6822
      %v6887 = vtanh.pop %v6823
      %v6888 = vtanh.pop %v6824
      %v6889 = vtanh.pop %v6825
      %v6890 = vtanh.pop %v6826
      %v6891 = vtanh.pop %v6827
      %v6892 = vtanh.pop %v6828
      %v6893 = vtanh.pop %v6829
      %v6894 = vtanh.pop %v6830
      %v6895 = vtanh.pop %v6831
      %v6896 = vtanh.pop %v6832
      %v6897 = vtanh.pop %v6833
      %v6898 = vtanh.pop %v6834
      %v6899 = vtanh.pop %v6835
      %v6900 = vtanh.pop %v6836
      %v6901 = vtanh.pop %v6837
      %v6902 = vtanh.pop %v6838
      %v6903 = vtanh.pop %v6839
      %v6904 = vtanh.pop %v6840
      %v6905 = vtanh.pop %v6841
      %v6906 = vtanh.pop %v6842
      %v6907 = vtanh.pop %v6843
      %v6908 = vtanh.pop %v6844
      %v6909 = vtanh.pop %v6845
      %v6910 = vtanh.pop %v6846
      %v6911 = vtanh.pop %v6847
      %v6912 = vtanh.pop %v6848
      %v6913 = vtanh.pop %v6849
      %v6914 = vtanh.pop %v6850
      %v6915 = vtanh.pop %v6851
      %v6916 = vtanh.pop %v6852
      %v6917 = vtanh.pop %v6853
      %v6918 = vtanh.pop %v6854
      %v6919 = vtanh.pop %v6855
      %v6920 = vtanh.pop %v6856
      %v6921 = vtanh.pop %v6857
      %v6922 = vtanh.pop %v6858
      %v6923 = vtanh.pop %v6859
      %v6924 = vtanh.pop %v6860
      %v6925 = vtanh.pop %v6861
      %v6926 = vtanh.pop %v6862
      %v6927 = vtanh.pop %v6863
      %v6928 = vtanh.pop %v6864
      %v6929 = vtanh.pop %v6865
      %v6930 = vtanh.pop %v6866
      %v6931 = vtanh.pop %v6867
      %v6932 = vtanh.pop %v6868
      %v6933 = vtanh.pop %v6869
      %v6934 = vtanh.pop %v6870
      %v6935 = vtanh.pop %v6871
      %v6936 = vtanh.pop %v6872
      %v6937 = vtanh.pop %v6873
      %v6938 = vtanh.pop %v6874
      %v6939 = vtanh.pop %v6875
      %v6940 = vtanh.pop %v6876
      %v6941 = vtanh.pop %v6877
      %v6942 = vtanh.pop %v6878
      %v6943 = vtanh.pop %v6879
      %v6944 = vtanh.pop %v6880
      %v6945 = vtanh.pop %v6881
      %v6946 = vtanh.pop %v6882
      %v6947 = vtanh.pop %v6883
      %v6948 = vadd.f32 %v6751, %v6884
      %v6949 = vadd.f32 %v6752, %v6885
      %v6950 = vadd.f32 %v6753, %v6886
      %v6951 = vadd.f32 %v6754, %v6887
      %v6952 = vadd.f32 %v6755, %v6888
      %v6953 = vadd.f32 %v6756, %v6889
      %v6954 = vadd.f32 %v6757, %v6890
      %v6955 = vadd.f32 %v6758, %v6891
      %v6956 = vadd.f32 %v6759, %v6892
      %v6957 = vadd.f32 %v6760, %v6893
      %v6958 = vadd.f32 %v6761, %v6894
      %v6959 = vadd.f32 %v6762, %v6895
      %v6960 = vadd.f32 %v6763, %v6896
      %v6961 = vadd.f32 %v6764, %v6897
      %v6962 = vadd.f32 %v6765, %v6898
      %v6963 = vadd.f32 %v6766, %v6899
      %v6964 = vadd.f32 %v6767, %v6900
      %v6965 = vadd.f32 %v6768, %v6901
      %v6966 = vadd.f32 %v6769, %v6902
      %v6967 = vadd.f32 %v6770, %v6903
      %v6968 = vadd.f32 %v6771, %v6904
      %v6969 = vadd.f32 %v6772, %v6905
      %v6970 = vadd.f32 %v6773, %v6906
      %v6971 = vadd.f32 %v6774, %v6907
      %v6972 = vadd.f32 %v6775, %v6908
      %v6973 = vadd.f32 %v6776, %v6909
      %v6974 = vadd.f32 %v6777, %v6910
      %v6975 = vadd.f32 %v6778, %v6911
      %v6976 = vadd.f32 %v6779, %v6912
      %v6977 = vadd.f32 %v6780, %v6913
      %v6978 = vadd.f32 %v6781, %v6914
      %v6979 = vadd.f32 %v6782, %v6915
      %v6980 = vadd.f32 %v6783, %v6916
      %v6981 = vadd.f32 %v6784, %v6917
      %v6982 = vadd.f32 %v6785, %v6918
      %v6983 = vadd.f32 %v6786, %v6919
      %v6984 = vadd.f32 %v6787, %v6920
      %v6985 = vadd.f32 %v6788, %v6921
      %v6986 = vadd.f32 %v6789, %v6922
      %v6987 = vadd.f32 %v6790, %v6923
      %v6988 = vadd.f32 %v6791, %v6924
      %v6989 = vadd.f32 %v6792, %v6925
      %v6990 = vadd.f32 %v6793, %v6926
      %v6991 = vadd.f32 %v6794, %v6927
      %v6992 = vadd.f32 %v6795, %v6928
      %v6993 = vadd.f32 %v6796, %v6929
      %v6994 = vadd.f32 %v6797, %v6930
      %v6995 = vadd.f32 %v6798, %v6931
      %v6996 = vadd.f32 %v6799, %v6932
      %v6997 = vadd.f32 %v6800, %v6933
      %v6998 = vadd.f32 %v6801, %v6934
      %v6999 = vadd.f32 %v6802, %v6935
      %v7000 = vadd.f32 %v6803, %v6936
      %v7001 = vadd.f32 %v6804, %v6937
      %v7002 = vadd.f32 %v6805, %v6938
      %v7003 = vadd.f32 %v6806, %v6939
      %v7004 = vadd.f32 %v6807, %v6940
      %v7005 = vadd.f32 %v6808, %v6941
      %v7006 = vadd.f32 %v6809, %v6942
      %v7007 = vadd.f32 %v6810, %v6943
      %v7008 = vadd.f32 %v6811, %v6944
      %v7009 = vadd.f32 %v6812, %v6945
      %v7010 = vadd.f32 %v6813, %v6946
      %v7011 = vadd.f32 %v6814, %v6947
      %v7012 = vld [vmem:[%s4 + $0x2] sm:$0x1]
      %v7013 = vlaneseq
      %v7014 = vshrl.u32 %v7013, 7
      %v7015 = vsub.s32 0, %v7014
      %v7016 = vrot.slane %v7012, %v7015
      %v7017 = vadd.f32 %v6618, %v7016
      %v7018 = vadd.f32 %v6619, %v7016
      %v7019 = vadd.f32 %v6620, %v7016
      %v7020 = vadd.f32 %v6621, %v7016
      %v7021 = vadd.f32 %v6622, %v7016
      %v7022 = vadd.f32 %v6623, %v7016
      %v7023 = vadd.f32 %v6624, %v7016
      %v7024 = vadd.f32 %v6625, %v7016
      %v7025 = vadd.f32 %v6626, %v7016
      %v7026 = vadd.f32 %v6627, %v7016
      %v7027 = vadd.f32 %v6628, %v7016
      %v7028 = vadd.f32 %v6629, %v7016
      %v7029 = vadd.f32 %v6630, %v7016
      %v7030 = vadd.f32 %v6631, %v7016
      %v7031 = vadd.f32 %v6632, %v7016
      %v7032 = vadd.f32 %v6633, %v7016
      %v7033 = vadd.f32 %v6634, %v7016
      %v7034 = vadd.f32 %v6635, %v7016
      %v7035 = vadd.f32 %v6636, %v7016
      %v7036 = vadd.f32 %v6637, %v7016
      %v7037 = vadd.f32 %v6638, %v7016
      %v7038 = vadd.f32 %v6639, %v7016
      %v7039 = vadd.f32 %v6640, %v7016
      %v7040 = vadd.f32 %v6641, %v7016
      %v7041 = vadd.f32 %v6642, %v7016
      %v7042 = vadd.f32 %v6643, %v7016
      %v7043 = vadd.f32 %v6644, %v7016
      %v7044 = vadd.f32 %v6645, %v7016
      %v7045 = vadd.f32 %v6646, %v7016
      %v7046 = vadd.f32 %v6647, %v7016
      %v7047 = vadd.f32 %v6648, %v7016
      %v7048 = vadd.f32 %v6649, %v7016
      %v7049 = vadd.f32 %v6650, %v7016
      %v7050 = vadd.f32 %v6651, %v7016
      %v7051 = vadd.f32 %v6652, %v7016
      %v7052 = vadd.f32 %v6653, %v7016
      %v7053 = vadd.f32 %v6654, %v7016
      %v7054 = vadd.f32 %v6655, %v7016
      %v7055 = vadd.f32 %v6656, %v7016
      %v7056 = vadd.f32 %v6657, %v7016
      %v7057 = vadd.f32 %v6658, %v7016
      %v7058 = vadd.f32 %v6659, %v7016
      %v7059 = vadd.f32 %v6660, %v7016
      %v7060 = vadd.f32 %v6661, %v7016
      %v7061 = vadd.f32 %v6662, %v7016
      %v7062 = vadd.f32 %v6663, %v7016
      %v7063 = vadd.f32 %v6664, %v7016
      %v7064 = vadd.f32 %v6665, %v7016
      %v7065 = vadd.f32 %v6666, %v7016
      %v7066 = vadd.f32 %v6667, %v7016
      %v7067 = vadd.f32 %v6668, %v7016
      %v7068 = vadd.f32 %v6669, %v7016
      %v7069 = vadd.f32 %v6670, %v7016
      %v7070 = vadd.f32 %v6671, %v7016
      %v7071 = vadd.f32 %v6672, %v7016
      %v7072 = vadd.f32 %v6673, %v7016
      %v7073 = vadd.f32 %v6674, %v7016
      %v7074 = vadd.f32 %v6675, %v7016
      %v7075 = vadd.f32 %v6676, %v7016
      %v7076 = vadd.f32 %v6677, %v7016
      %v7077 = vadd.f32 %v6678, %v7016
      %v7078 = vadd.f32 %v6679, %v7016
      %v7079 = vadd.f32 %v6680, %v7016
      %v7080 = vadd.f32 %v6681, %v7016
      %v7081 = vtanh.pop %v7017
      %v7082 = vtanh.pop %v7018
      %v7083 = vtanh.pop %v7019
      %v7084 = vtanh.pop %v7020
      %v7085 = vtanh.pop %v7021
      %v7086 = vtanh.pop %v7022
      %v7087 = vtanh.pop %v7023
      %v7088 = vtanh.pop %v7024
      %v7089 = vtanh.pop %v7025
      %v7090 = vtanh.pop %v7026
      %v7091 = vtanh.pop %v7027
      %v7092 = vtanh.pop %v7028
      %v7093 = vtanh.pop %v7029
      %v7094 = vtanh.pop %v7030
      %v7095 = vtanh.pop %v7031
      %v7096 = vtanh.pop %v7032
      %v7097 = vtanh.pop %v7033
      %v7098 = vtanh.pop %v7034
      %v7099 = vtanh.pop %v7035
      %v7100 = vtanh.pop %v7036
      %v7101 = vtanh.pop %v7037
      %v7102 = vtanh.pop %v7038
      %v7103 = vtanh.pop %v7039
      %v7104 = vtanh.pop %v7040
      %v7105 = vtanh.pop %v7041
      %v7106 = vtanh.pop %v7042
      %v7107 = vtanh.pop %v7043
      %v7108 = vtanh.pop %v7044
      %v7109 = vtanh.pop %v7045
      %v7110 = vtanh.pop %v7046
      %v7111 = vtanh.pop %v7047
      %v7112 = vtanh.pop %v7048
      %v7113 = vtanh.pop %v7049
      %v7114 = vtanh.pop %v7050
      %v7115 = vtanh.pop %v7051
      %v7116 = vtanh.pop %v7052
      %v7117 = vtanh.pop %v7053
      %v7118 = vtanh.pop %v7054
      %v7119 = vtanh.pop %v7055
      %v7120 = vtanh.pop %v7056
      %v7121 = vtanh.pop %v7057
      %v7122 = vtanh.pop %v7058
      %v7123 = vtanh.pop %v7059
      %v7124 = vtanh.pop %v7060
      %v7125 = vtanh.pop %v7061
      %v7126 = vtanh.pop %v7062
      %v7127 = vtanh.pop %v7063
      %v7128 = vtanh.pop %v7064
      %v7129 = vtanh.pop %v7065
      %v7130 = vtanh.pop %v7066
      %v7131 = vtanh.pop %v7067
      %v7132 = vtanh.pop %v7068
      %v7133 = vtanh.pop %v7069
      %v7134 = vtanh.pop %v7070
      %v7135 = vtanh.pop %v7071
      %v7136 = vtanh.pop %v7072
      %v7137 = vtanh.pop %v7073
      %v7138 = vtanh.pop %v7074
      %v7139 = vtanh.pop %v7075
      %v7140 = vtanh.pop %v7076
      %v7141 = vtanh.pop %v7077
      %v7142 = vtanh.pop %v7078
      %v7143 = vtanh.pop %v7079
      %v7144 = vtanh.pop %v7080
      %v7145 = vadd.f32 %v6948, %v7081
      %v7146 = vadd.f32 %v6949, %v7082
      %v7147 = vadd.f32 %v6950, %v7083
      %v7148 = vadd.f32 %v6951, %v7084
      %v7149 = vadd.f32 %v6952, %v7085
      %v7150 = vadd.f32 %v6953, %v7086
      %v7151 = vadd.f32 %v6954, %v7087
      %v7152 = vadd.f32 %v6955, %v7088
      %v7153 = vadd.f32 %v6956, %v7089
      %v7154 = vadd.f32 %v6957, %v7090
      %v7155 = vadd.f32 %v6958, %v7091
      %v7156 = vadd.f32 %v6959, %v7092
      %v7157 = vadd.f32 %v6960, %v7093
      %v7158 = vadd.f32 %v6961, %v7094
      %v7159 = vadd.f32 %v6962, %v7095
      %v7160 = vadd.f32 %v6963, %v7096
      %v7161 = vadd.f32 %v6964, %v7097
      %v7162 = vadd.f32 %v6965, %v7098
      %v7163 = vadd.f32 %v6966, %v7099
      %v7164 = vadd.f32 %v6967, %v7100
      %v7165 = vadd.f32 %v6968, %v7101
      %v7166 = vadd.f32 %v6969, %v7102
      %v7167 = vadd.f32 %v6970, %v7103
      %v7168 = vadd.f32 %v6971, %v7104
      %v7169 = vadd.f32 %v6972, %v7105
      %v7170 = vadd.f32 %v6973, %v7106
      %v7171 = vadd.f32 %v6974, %v7107
      %v7172 = vadd.f32 %v6975, %v7108
      %v7173 = vadd.f32 %v6976, %v7109
      %v7174 = vadd.f32 %v6977, %v7110
      %v7175 = vadd.f32 %v6978, %v7111
      %v7176 = vadd.f32 %v6979, %v7112
      %v7177 = vadd.f32 %v6980, %v7113
      %v7178 = vadd.f32 %v6981, %v7114
      %v7179 = vadd.f32 %v6982, %v7115
      %v7180 = vadd.f32 %v6983, %v7116
      %v7181 = vadd.f32 %v6984, %v7117
      %v7182 = vadd.f32 %v6985, %v7118
      %v7183 = vadd.f32 %v6986, %v7119
      %v7184 = vadd.f32 %v6987, %v7120
      %v7185 = vadd.f32 %v6988, %v7121
      %v7186 = vadd.f32 %v6989, %v7122
      %v7187 = vadd.f32 %v6990, %v7123
      %v7188 = vadd.f32 %v6991, %v7124
      %v7189 = vadd.f32 %v6992, %v7125
      %v7190 = vadd.f32 %v6993, %v7126
      %v7191 = vadd.f32 %v6994, %v7127
      %v7192 = vadd.f32 %v6995, %v7128
      %v7193 = vadd.f32 %v6996, %v7129
      %v7194 = vadd.f32 %v6997, %v7130
      %v7195 = vadd.f32 %v6998, %v7131
      %v7196 = vadd.f32 %v6999, %v7132
      %v7197 = vadd.f32 %v7000, %v7133
      %v7198 = vadd.f32 %v7001, %v7134
      %v7199 = vadd.f32 %v7002, %v7135
      %v7200 = vadd.f32 %v7003, %v7136
      %v7201 = vadd.f32 %v7004, %v7137
      %v7202 = vadd.f32 %v7005, %v7138
      %v7203 = vadd.f32 %v7006, %v7139
      %v7204 = vadd.f32 %v7007, %v7140
      %v7205 = vadd.f32 %v7008, %v7141
      %v7206 = vadd.f32 %v7009, %v7142
      %v7207 = vadd.f32 %v7010, %v7143
      %v7208 = vadd.f32 %v7011, %v7144
      %v7209 = vmul.f32 %v7145, 0.5
      %v7210 = vmul.f32 %v7146, 0.5
      %v7211 = vmul.f32 %v7147, 0.5
      %v7212 = vmul.f32 %v7148, 0.5
      %v7213 = vmul.f32 %v7149, 0.5
      %v7214 = vmul.f32 %v7150, 0.5
      %v7215 = vmul.f32 %v7151, 0.5
      %v7216 = vmul.f32 %v7152, 0.5
      %v7217 = vmul.f32 %v7153, 0.5
      %v7218 = vmul.f32 %v7154, 0.5
      %v7219 = vmul.f32 %v7155, 0.5
      %v7220 = vmul.f32 %v7156, 0.5
      %v7221 = vmul.f32 %v7157, 0.5
      %v7222 = vmul.f32 %v7158, 0.5
      %v7223 = vmul.f32 %v7159, 0.5
      %v7224 = vmul.f32 %v7160, 0.5
      %v7225 = vmul.f32 %v7161, 0.5
      %v7226 = vmul.f32 %v7162, 0.5
      %v7227 = vmul.f32 %v7163, 0.5
      %v7228 = vmul.f32 %v7164, 0.5
      %v7229 = vmul.f32 %v7165, 0.5
      %v7230 = vmul.f32 %v7166, 0.5
      %v7231 = vmul.f32 %v7167, 0.5
      %v7232 = vmul.f32 %v7168, 0.5
      %v7233 = vmul.f32 %v7169, 0.5
      %v7234 = vmul.f32 %v7170, 0.5
      %v7235 = vmul.f32 %v7171, 0.5
      %v7236 = vmul.f32 %v7172, 0.5
      %v7237 = vmul.f32 %v7173, 0.5
      %v7238 = vmul.f32 %v7174, 0.5
      %v7239 = vmul.f32 %v7175, 0.5
      %v7240 = vmul.f32 %v7176, 0.5
      %v7241 = vmul.f32 %v7177, 0.5
      %v7242 = vmul.f32 %v7178, 0.5
      %v7243 = vmul.f32 %v7179, 0.5
      %v7244 = vmul.f32 %v7180, 0.5
      %v7245 = vmul.f32 %v7181, 0.5
      %v7246 = vmul.f32 %v7182, 0.5
      %v7247 = vmul.f32 %v7183, 0.5
      %v7248 = vmul.f32 %v7184, 0.5
      %v7249 = vmul.f32 %v7185, 0.5
      %v7250 = vmul.f32 %v7186, 0.5
      %v7251 = vmul.f32 %v7187, 0.5
      %v7252 = vmul.f32 %v7188, 0.5
      %v7253 = vmul.f32 %v7189, 0.5
      %v7254 = vmul.f32 %v7190, 0.5
      %v7255 = vmul.f32 %v7191, 0.5
      %v7256 = vmul.f32 %v7192, 0.5
      %v7257 = vmul.f32 %v7193, 0.5
      %v7258 = vmul.f32 %v7194, 0.5
      %v7259 = vmul.f32 %v7195, 0.5
      %v7260 = vmul.f32 %v7196, 0.5
      %v7261 = vmul.f32 %v7197, 0.5
      %v7262 = vmul.f32 %v7198, 0.5
      %v7263 = vmul.f32 %v7199, 0.5
      %v7264 = vmul.f32 %v7200, 0.5
      %v7265 = vmul.f32 %v7201, 0.5
      %v7266 = vmul.f32 %v7202, 0.5
      %v7267 = vmul.f32 %v7203, 0.5
      %v7268 = vmul.f32 %v7204, 0.5
      %v7269 = vmul.f32 %v7205, 0.5
      %v7270 = vmul.f32 %v7206, 0.5
      %v7271 = vmul.f32 %v7207, 0.5
      %v7272 = vmul.f32 %v7208, 0.5
      %v7273 = vadd.f32 %v7209, 1.5
      %v7274 = vadd.f32 %v7210, 1.5
      %v7275 = vadd.f32 %v7211, 1.5
      %v7276 = vadd.f32 %v7212, 1.5
      %v7277 = vadd.f32 %v7213, 1.5
      %v7278 = vadd.f32 %v7214, 1.5
      %v7279 = vadd.f32 %v7215, 1.5
      %v7280 = vadd.f32 %v7216, 1.5
      %v7281 = vadd.f32 %v7217, 1.5
      %v7282 = vadd.f32 %v7218, 1.5
      %v7283 = vadd.f32 %v7219, 1.5
      %v7284 = vadd.f32 %v7220, 1.5
      %v7285 = vadd.f32 %v7221, 1.5
      %v7286 = vadd.f32 %v7222, 1.5
      %v7287 = vadd.f32 %v7223, 1.5
      %v7288 = vadd.f32 %v7224, 1.5
      %v7289 = vadd.f32 %v7225, 1.5
      %v7290 = vadd.f32 %v7226, 1.5
      %v7291 = vadd.f32 %v7227, 1.5
      %v7292 = vadd.f32 %v7228, 1.5
      %v7293 = vadd.f32 %v7229, 1.5
      %v7294 = vadd.f32 %v7230, 1.5
      %v7295 = vadd.f32 %v7231, 1.5
      %v7296 = vadd.f32 %v7232, 1.5
      %v7297 = vadd.f32 %v7233, 1.5
      %v7298 = vadd.f32 %v7234, 1.5
      %v7299 = vadd.f32 %v7235, 1.5
      %v7300 = vadd.f32 %v7236, 1.5
      %v7301 = vadd.f32 %v7237, 1.5
      %v7302 = vadd.f32 %v7238, 1.5
      %v7303 = vadd.f32 %v7239, 1.5
      %v7304 = vadd.f32 %v7240, 1.5
      %v7305 = vadd.f32 %v7241, 1.5
      %v7306 = vadd.f32 %v7242, 1.5
      %v7307 = vadd.f32 %v7243, 1.5
      %v7308 = vadd.f32 %v7244, 1.5
      %v7309 = vadd.f32 %v7245, 1.5
      %v7310 = vadd.f32 %v7246, 1.5
      %v7311 = vadd.f32 %v7247, 1.5
      %v7312 = vadd.f32 %v7248, 1.5
      %v7313 = vadd.f32 %v7249, 1.5
      %v7314 = vadd.f32 %v7250, 1.5
      %v7315 = vadd.f32 %v7251, 1.5
      %v7316 = vadd.f32 %v7252, 1.5
      %v7317 = vadd.f32 %v7253, 1.5
      %v7318 = vadd.f32 %v7254, 1.5
      %v7319 = vadd.f32 %v7255, 1.5
      %v7320 = vadd.f32 %v7256, 1.5
      %v7321 = vadd.f32 %v7257, 1.5
      %v7322 = vadd.f32 %v7258, 1.5
      %v7323 = vadd.f32 %v7259, 1.5
      %v7324 = vadd.f32 %v7260, 1.5
      %v7325 = vadd.f32 %v7261, 1.5
      %v7326 = vadd.f32 %v7262, 1.5
      %v7327 = vadd.f32 %v7263, 1.5
      %v7328 = vadd.f32 %v7264, 1.5
      %v7329 = vadd.f32 %v7265, 1.5
      %v7330 = vadd.f32 %v7266, 1.5
      %v7331 = vadd.f32 %v7267, 1.5
      %v7332 = vadd.f32 %v7268, 1.5
      %v7333 = vadd.f32 %v7269, 1.5
      %v7334 = vadd.f32 %v7270, 1.5
      %v7335 = vadd.f32 %v7271, 1.5
      %v7336 = vadd.f32 %v7272, 1.5
      %v7337 = vmul.f32 %v7273, %v392
      %v7338 = vmul.f32 %v7274, %v393
      %v7339 = vmul.f32 %v7275, %v394
      %v7340 = vmul.f32 %v7276, %v395
      %v7341 = vmul.f32 %v7277, %v396
      %v7342 = vmul.f32 %v7278, %v397
      %v7343 = vmul.f32 %v7279, %v398
      %v7344 = vmul.f32 %v7280, %v399
      %v7345 = vmul.f32 %v7281, %v400
      %v7346 = vmul.f32 %v7282, %v401
      %v7347 = vmul.f32 %v7283, %v402
      %v7348 = vmul.f32 %v7284, %v403
      %v7349 = vmul.f32 %v7285, %v404
      %v7350 = vmul.f32 %v7286, %v405
      %v7351 = vmul.f32 %v7287, %v406
      %v7352 = vmul.f32 %v7288, %v407
      %v7353 = vmul.f32 %v7289, %v408
      %v7354 = vmul.f32 %v7290, %v409
      %v7355 = vmul.f32 %v7291, %v410
      %v7356 = vmul.f32 %v7292, %v411
      %v7357 = vmul.f32 %v7293, %v412
      %v7358 = vmul.f32 %v7294, %v413
      %v7359 = vmul.f32 %v7295, %v414
      %v7360 = vmul.f32 %v7296, %v415
      %v7361 = vmul.f32 %v7297, %v416
      %v7362 = vmul.f32 %v7298, %v417
      %v7363 = vmul.f32 %v7299, %v418
      %v7364 = vmul.f32 %v7300, %v419
      %v7365 = vmul.f32 %v7301, %v420
      %v7366 = vmul.f32 %v7302, %v421
      %v7367 = vmul.f32 %v7303, %v422
      %v7368 = vmul.f32 %v7304, %v423
      %v7369 = vmul.f32 %v7305, %v424
      %v7370 = vmul.f32 %v7306, %v425
      %v7371 = vmul.f32 %v7307, %v426
      %v7372 = vmul.f32 %v7308, %v427
      %v7373 = vmul.f32 %v7309, %v428
      %v7374 = vmul.f32 %v7310, %v429
      %v7375 = vmul.f32 %v7311, %v430
      %v7376 = vmul.f32 %v7312, %v431
      %v7377 = vmul.f32 %v7313, %v432
      %v7378 = vmul.f32 %v7314, %v433
      %v7379 = vmul.f32 %v7315, %v434
      %v7380 = vmul.f32 %v7316, %v435
      %v7381 = vmul.f32 %v7317, %v436
      %v7382 = vmul.f32 %v7318, %v437
      %v7383 = vmul.f32 %v7319, %v438
      %v7384 = vmul.f32 %v7320, %v439
      %v7385 = vmul.f32 %v7321, %v440
      %v7386 = vmul.f32 %v7322, %v441
      %v7387 = vmul.f32 %v7323, %v442
      %v7388 = vmul.f32 %v7324, %v443
      %v7389 = vmul.f32 %v7325, %v444
      %v7390 = vmul.f32 %v7326, %v445
      %v7391 = vmul.f32 %v7327, %v446
      %v7392 = vmul.f32 %v7328, %v447
      %v7393 = vmul.f32 %v7329, %v448
      %v7394 = vmul.f32 %v7330, %v449
      %v7395 = vmul.f32 %v7331, %v450
      %v7396 = vmul.f32 %v7332, %v451
      %v7397 = vmul.f32 %v7333, %v452
      %v7398 = vmul.f32 %v7334, %v453
      %v7399 = vmul.f32 %v7335, %v454
      %v7400 = vmul.f32 %v7336, %v455
      %7401 = vst.msk [vmem:[%s390] sm:$0xff] %vm1974, %v7337
      %7402 = vst.msk [vmem:[%s390 + $0x8] sm:$0xff] %vm1974, %v7338
      %7403 = vst.msk [vmem:[%s390 + $0x10] sm:$0xff] %vm1974, %v7339
      %7404 = vst.msk [vmem:[%s390 + $0x18] sm:$0xff] %vm1974, %v7340
      %7405 = vst.msk [vmem:[%s390 + $0x20] sm:$0xff] %vm1974, %v7341
      %7406 = vst.msk [vmem:[%s390 + $0x28] sm:$0xff] %vm1974, %v7342
      %7407 = vst.msk [vmem:[%s390 + $0x30] sm:$0xff] %vm1974, %v7343
      %7408 = vst.msk [vmem:[%s390 + $0x38] sm:$0xff] %vm1974, %v7344
      %7409 = vst.msk [vmem:[%s390 + $0x40] sm:$0xff] %vm1974, %v7345
      %7410 = vst.msk [vmem:[%s390 + $0x48] sm:$0xff] %vm1974, %v7346
      %7411 = vst.msk [vmem:[%s390 + $0x50] sm:$0xff] %vm1974, %v7347
      %7412 = vst.msk [vmem:[%s390 + $0x58] sm:$0xff] %vm1974, %v7348
      %7413 = vst.msk [vmem:[%s390 + $0x60] sm:$0xff] %vm1974, %v7349
      %7414 = vst.msk [vmem:[%s390 + $0x68] sm:$0xff] %vm1974, %v7350
      %7415 = vst.msk [vmem:[%s390 + $0x70] sm:$0xff] %vm1974, %v7351
      %7416 = vst.msk [vmem:[%s390 + $0x78] sm:$0xff] %vm1974, %v7352
      %7417 = vst.msk [vmem:[%s390 + $0x80] sm:$0xff] %vm1974, %v7353
      %7418 = vst.msk [vmem:[%s390 + $0x88] sm:$0xff] %vm1974, %v7354
      %7419 = vst.msk [vmem:[%s390 + $0x90] sm:$0xff] %vm1974, %v7355
      %7420 = vst.msk [vmem:[%s390 + $0x98] sm:$0xff] %vm1974, %v7356
      %7421 = vst.msk [vmem:[%s390 + $0xa0] sm:$0xff] %vm1974, %v7357
      %7422 = vst.msk [vmem:[%s390 + $0xa8] sm:$0xff] %vm1974, %v7358
      %7423 = vst.msk [vmem:[%s390 + $0xb0] sm:$0xff] %vm1974, %v7359
      %7424 = vst.msk [vmem:[%s390 + $0xb8] sm:$0xff] %vm1974, %v7360
      %7425 = vst.msk [vmem:[%s390 + $0xc0] sm:$0xff] %vm1974, %v7361
      %7426 = vst.msk [vmem:[%s390 + $0xc8] sm:$0xff] %vm1974, %v7362
      %7427 = vst.msk [vmem:[%s390 + $0xd0] sm:$0xff] %vm1974, %v7363
      %7428 = vst.msk [vmem:[%s390 + $0xd8] sm:$0xff] %vm1974, %v7364
      %7429 = vst.msk [vmem:[%s390 + $0xe0] sm:$0xff] %vm1974, %v7365
      %7430 = vst.msk [vmem:[%s390 + $0xe8] sm:$0xff] %vm1974, %v7366
      %7431 = vst.msk [vmem:[%s390 + $0xf0] sm:$0xff] %vm1974, %v7367
      %7432 = vst.msk [vmem:[%s390 + $0xf8] sm:$0xff] %vm1974, %v7368
      %7433 = vst.msk [vmem:[%s390 + $0x100] sm:$0xff] %vm1974, %v7369
      %7434 = vst.msk [vmem:[%s390 + $0x108] sm:$0xff] %vm1974, %v7370
      %7435 = vst.msk [vmem:[%s390 + $0x110] sm:$0xff] %vm1974, %v7371
      %7436 = vst.msk [vmem:[%s390 + $0x118] sm:$0xff] %vm1974, %v7372
      %7437 = vst.msk [vmem:[%s390 + $0x120] sm:$0xff] %vm1974, %v7373
      %7438 = vst.msk [vmem:[%s390 + $0x128] sm:$0xff] %vm1974, %v7374
      %7439 = vst.msk [vmem:[%s390 + $0x130] sm:$0xff] %vm1974, %v7375
      %7440 = vst.msk [vmem:[%s390 + $0x138] sm:$0xff] %vm1974, %v7376
      %7441 = vst.msk [vmem:[%s390 + $0x140] sm:$0xff] %vm1974, %v7377
      %7442 = vst.msk [vmem:[%s390 + $0x148] sm:$0xff] %vm1974, %v7378
      %7443 = vst.msk [vmem:[%s390 + $0x150] sm:$0xff] %vm1974, %v7379
      %7444 = vst.msk [vmem:[%s390 + $0x158] sm:$0xff] %vm1974, %v7380
      %7445 = vst.msk [vmem:[%s390 + $0x160] sm:$0xff] %vm1974, %v7381
      %7446 = vst.msk [vmem:[%s390 + $0x168] sm:$0xff] %vm1974, %v7382
      %7447 = vst.msk [vmem:[%s390 + $0x170] sm:$0xff] %vm1974, %v7383
      %7448 = vst.msk [vmem:[%s390 + $0x178] sm:$0xff] %vm1974, %v7384
      %7449 = vst.msk [vmem:[%s390 + $0x180] sm:$0xff] %vm1974, %v7385
      %7450 = vst.msk [vmem:[%s390 + $0x188] sm:$0xff] %vm1974, %v7386
      %7451 = vst.msk [vmem:[%s390 + $0x190] sm:$0xff] %vm1974, %v7387
      %7452 = vst.msk [vmem:[%s390 + $0x198] sm:$0xff] %vm1974, %v7388
      %7453 = vst.msk [vmem:[%s390 + $0x1a0] sm:$0xff] %vm1974, %v7389
      %7454 = vst.msk [vmem:[%s390 + $0x1a8] sm:$0xff] %vm1974, %v7390
      %7455 = vst.msk [vmem:[%s390 + $0x1b0] sm:$0xff] %vm1974, %v7391
      %7456 = vst.msk [vmem:[%s390 + $0x1b8] sm:$0xff] %vm1974, %v7392
      %7457 = vst.msk [vmem:[%s390 + $0x1c0] sm:$0xff] %vm1974, %v7393
      %7458 = vst.msk [vmem:[%s390 + $0x1c8] sm:$0xff] %vm1974, %v7394
      %7459 = vst.msk [vmem:[%s390 + $0x1d0] sm:$0xff] %vm1974, %v7395
      %7460 = vst.msk [vmem:[%s390 + $0x1d8] sm:$0xff] %vm1974, %v7396
      %7461 = vst.msk [vmem:[%s390 + $0x1e0] sm:$0xff] %vm1974, %v7397
      %7462 = vst.msk [vmem:[%s390 + $0x1e8] sm:$0xff] %vm1974, %v7398
      %7463 = vst.msk [vmem:[%s390 + $0x1f0] sm:$0xff] %vm1974, %v7399
      %7464 = vst.msk [vmem:[%s390 + $0x1f8] sm:$0xff] %vm1974, %v7400
      %s7465 = smul.u32 64, %s21
      %p7466 = scmp.lt.s32.totalorder %s20, 1
      %s7467 = scalar_select %p7466, %s20, 1
      %p7468 = scmp.lt.s32.totalorder %s7465, 63
      %s7469 = scalar_select %p7468, %s7465, 63
      %s7470 = smul.addr %s7467, 64
      %s7471 = sadd.s32 %s7469, %s7470
      %s7472 = smul.addr %s7471, 8
      %s7473 = scalar_lea.vmem %s5, %s7472
      // Predicated region
      $region41: #{tpu_custom_call.1} parent=39 // pred_check
        %p7474 = pneg %p190
      $region42: #{tpu_custom_call.1} parent=39 // pred_check_branch
        %7476 = sbr.rel (%p7474) target = $region44
      $region43: #{tpu_custom_call.1} parent=39 // pred_region
        %s7477 = smul.u32 64, %s21
      $region44: #{tpu_custom_call.1} parent=39 // pred_fallthru
        _
    $region40: #{tpu_custom_call.1} parent=5 // pred_fallthru
      _
    %p7478 = scmp.le.s32.totalorder 2, %s11
    // Predicated region
    $region45: #{tpu_custom_call.1} parent=5 // pred_check
      %p7479 = pneg %p7478
    $region46: #{tpu_custom_call.1} parent=5 // pred_check_branch
      %7481 = sbr.rel (%p7479) target = $region48
    $region47: #{tpu_custom_call.1} parent=5 // pred_region
      %s7482 = ssub.s32 %s11, 2
      // Predicated region
      $region49: #{tpu_custom_call.1} parent=47 // pred_check
        %p7483 = pneg %p196
      $region50: #{tpu_custom_call.1} parent=47 // pred_check_branch
        %7485 = sbr.rel (%p7483) target = $region52
      $region51: #{tpu_custom_call.1} parent=47 // pred_region
        %s7486 = smul.u32 64, %s23
        %p7487 = scmp.lt.s32.totalorder %s22, 1
        %s7488 = scalar_select %p7487, %s22, 1
        %p7489 = scmp.lt.s32.totalorder %s7486, 63
        %s7490 = scalar_select %p7489, %s7486, 63
        %s7491 = smul.addr %s7488, 64
        %s7492 = sadd.s32 %s7490, %s7491
        %s7493 = smul.addr %s7492, 8
        %s7494 = scalar_lea.vmem %s5, %s7493
      $region52: #{tpu_custom_call.1} parent=47 // pred_fallthru
        _
    $region48: #{tpu_custom_call.1} parent=5 // pred_fallthru
      _
  $region6: #{tpu_custom_call.1} parent=0 // loop_footer
    %s15 = sadd.s32 1, %s11
  $region7: #{tpu_custom_call.1} parent=0 // loop_footer_branch
    %10 = sbr.rel target = $region3
  $region8: #{tpu_custom_call.1} parent=0 // loop_exit
    _

</llo_original>
